<compile_context>
chip_gen: v6e
topology: v6e:2x2x1
jax: 0.10.0
libtpu: 0.0.40
codegen_flags: <defaults>
</compile_context>

<pallas_src>
import functools

import jax
import jax.numpy as jnp
from jax.experimental import pallas as pl
from jax.experimental.pallas import tpu as pltpu


# ----------------------------------------------------------------------------
# Fused kernel: whole forward pass for one batch element.
# ----------------------------------------------------------------------------
def _ssdnet_kernel(*refs, L, n_w):
    f32 = jnp.float32
    x_ref = refs[0]                       # (1, L, 7) im2col'd input columns
    w = refs[1:1 + n_w]                   # all weights / folded-BN params
    o_ref = refs[1 + n_w]                 # (1, 1, 2) logits
    (t0, pA1, pB1, pA2, pB2, pA3, pB3, pA4, pB4) = refs[2 + n_w:]

    L1, L2, L3, L4 = L // 4, L // 16, L // 64, L // 256

    # ---- helpers ------------------------------------------------------------
    def zero_edges(pref, lr):
        # 'same' padding lives inside the kernel: rows 0 and lr+1 are zero.
        c = pref.shape[1]
        z = jnp.zeros((1, c), f32)
        pref[pl.ds(0, 1), :] = z
        pref[pl.ds(lr + 1, 1), :] = z

    for pref, lr in ((pA1, L1), (pB1, L1), (pA2, L2), (pB2, L2),
                     (pA3, L3), (pB3, L3), (pA4, L4), (pB4, L4)):
        zero_edges(pref, lr)

    def bn_act(y, s_ref, b_ref):
        return jnp.maximum(y * s_ref[...] + b_ref[...], 0.0)

    def conv3(pref, w_ref, lr):
        # im2col: one (lr, 3*Cin) x (3*Cin, Cout) MXU matmul instead of 3 taps.
        cols = jnp.concatenate([pref[pl.ds(k, lr), :] for k in range(3)],
                               axis=1)
        return jnp.dot(cols, w_ref[...], preferred_element_type=f32)

    def pool4(pref, lr, start):
        # non-overlapping max-pool (window 4) via stride-4 sublane reads.
        lo = lr // 4
        r = pref[pl.ds(start, lo, stride=4), :]
        for p in range(1, 4):
            r = jnp.maximum(r, pref[pl.ds(start + p, lo, stride=4), :])
        return r

    def rsm(pA, pB, base, lr):
        # pA rows 1..lr hold the stage input (edges zero).
        w1, s1, b1, w2, s2, b2, w3, wn, s3, b3 = w[base:base + 10]
        yy = bn_act(conv3(pA, w1, lr), s1, b1)          # relu(bn1(conv1(x)))
        pB[pl.ds(1, lr), :] = yy
        yy = bn_act(conv3(pB, w2, lr), s2, b2)          # relu(bn2(conv2(.)))
        pB[pl.ds(1, lr), :] = yy
        yy = conv3(pB, w3, lr)                          # conv3(.)
        nin = jnp.dot(pA[pl.ds(1, lr), :], wn[...],     # 1x1 nin(x)
                      preferred_element_type=f32)
        out = bn_act(yy + nin, s3, b3)                  # relu(bn3(sum))
        pB[pl.ds(1, lr), :] = out                       # leave for pooling
        return out

    # ---- stage 0: conv1 (K=7, Cin=1->16, same pad) + BN + ReLU + pool4 ------
    h = jnp.dot(x_ref[0], w[0][...], preferred_element_type=f32)   # (L, 16)
    t0[...] = bn_act(h, w[1], w[2])
    pA1[pl.ds(1, L1), :] = pool4(t0, L, 0)

    # ---- RSM blocks, each followed by its fused max-pool --------------------
    rsm(pA1, pB1, 3, L1)
    pA2[pl.ds(1, L2), :] = pool4(pB1, L1, 1)
    rsm(pA2, pB2, 13, L2)
    pA3[pl.ds(1, L3), :] = pool4(pB2, L2, 1)
    rsm(pA3, pB3, 23, L3)
    pA4[pl.ds(1, L4), :] = pool4(pB3, L3, 1)
    out4 = rsm(pA4, pB4, 33, L4)

    # ---- global max-pool over the remaining length + fc head ----------------
    feat = jnp.max(out4, axis=0, keepdims=True)                    # (1, 128)
    wf1, bf1, wf2, bf2, wo, bo = w[43:49]
    hd = jnp.maximum(jnp.dot(feat, wf1[...], preferred_element_type=f32)
                     + bf1[...], 0.0)
    hd = jnp.maximum(jnp.dot(hd, wf2[...], preferred_element_type=f32)
                     + bf2[...], 0.0)
    logits = jnp.dot(hd, wo[...], preferred_element_type=f32) + bo[...]
    o_ref[0] = logits.astype(o_ref.dtype)


# ----------------------------------------------------------------------------
# Wrapper: one pallas_call for the whole network.
# ----------------------------------------------------------------------------
@jax.jit
def ssdnet1d_forward(x_nlc, params):
    n, L, cin = x_nlc.shape
    assert cin == 1 and L % 256 == 0
    L1, L2, L3, L4 = L // 4, L // 16, L // 64, L // 256

    # im2col of the tiny (N, L, 1) network input (8 KiB): columns k = x[l+k-3].
    xpad = jnp.pad(x_nlc[:, :, 0], ((0, 0), (3, 3)))               # (N, L+6)
    xcols = jnp.stack([xpad[:, k:k + L] for k in range(7)], axis=-1)  # (N,L,7)

    n_w = len(params)
    kernel = functools.partial(_ssdnet_kernel, L=L, n_w=n_w)

    in_specs = [pl.BlockSpec((1, L, 7), lambda i: (i, 0, 0))]
    for a in params:
        in_specs.append(pl.BlockSpec(a.shape, lambda i, nd=a.ndim: (0,) * nd))

    out = pl.pallas_call(
        kernel,
        out_shape=jax.ShapeDtypeStruct((n, 1, 2), jnp.float32),
        grid=(n,),
        in_specs=in_specs,
        out_specs=pl.BlockSpec((1, 1, 2), lambda i: (i, 0, 0)),
        scratch_shapes=[
            pltpu.VMEM((L, 16), jnp.float32),        # conv1 output (pre-pool)
            pltpu.VMEM((L1 + 2, 16), jnp.float32),   # RSM1 padded input
            pltpu.VMEM((L1 + 2, 32), jnp.float32),   # RSM1 padded mid/out
            pltpu.VMEM((L2 + 2, 32), jnp.float32),   # RSM2 padded input
            pltpu.VMEM((L2 + 2, 64), jnp.float32),   # RSM2 padded mid/out
            pltpu.VMEM((L3 + 2, 64), jnp.float32),   # RSM3 padded input
            pltpu.VMEM((L3 + 2, 128), jnp.float32),  # RSM3 padded mid/out
            pltpu.VMEM((L4 + 2, 128), jnp.float32),  # RSM4 padded input
            pltpu.VMEM((L4 + 2, 128), jnp.float32),  # RSM4 padded mid/out
        ],
        compiler_params=pltpu.CompilerParams(
            dimension_semantics=("parallel",)),       # v7x: 2 TCs, 1 per batch
    )(xcols, *params)
    return out[:, 0, :]


# ----------------------------------------------------------------------------
# Parameters (flat list in the order the kernel unpacks; BN folded, conv
# weights pre-reshaped to the im2col (K*Cin, Cout) layout).
# ----------------------------------------------------------------------------
def init_params(key):
    keys = iter(jax.random.split(key, 128))
    eps = 1e-5

    def conv_w(cin, cout, k):
        fan_in = cin * k
        return (jax.random.normal(next(keys), (k, cin, cout), jnp.float32)
                / jnp.sqrt(jnp.float32(fan_in)))

    def bn(c):
        gamma = 1.0 + 0.1 * jax.random.normal(next(keys), (1, c), jnp.float32)
        beta = 0.1 * jax.random.normal(next(keys), (1, c), jnp.float32)
        mean = 0.1 * jax.random.normal(next(keys), (1, c), jnp.float32)
        var = jax.random.uniform(next(keys), (1, c), jnp.float32, 0.5, 1.5)
        scale = gamma / jnp.sqrt(var + eps)
        bias = beta - mean * scale
        return scale, bias

    def linear(din, dout):
        w = (jax.random.normal(next(keys), (din, dout), jnp.float32)
             / jnp.sqrt(jnp.float32(din)))
        b = 0.1 * jax.random.normal(next(keys), (1, dout), jnp.float32)
        return w, b

    flat = []
    # first conv: K=7, Cin=1 -> 16, folded BN
    flat.append(conv_w(1, 16, 7).reshape(7, 16))
    s0, b0 = bn(16)
    flat += [s0, b0]
    # RSM blocks
    for cin, cout in ((16, 32), (32, 64), (64, 128), (128, 128)):
        wc1 = conv_w(cin, cout, 3).reshape(3 * cin, cout)
        s1, b1 = bn(cout)
        wc2 = conv_w(cout, cout, 3).reshape(3 * cout, cout)
        s2, b2 = bn(cout)
        wc3 = conv_w(cout, cout, 3).reshape(3 * cout, cout)
        wn = conv_w(cin, cout, 1)[0]                  # (cin, cout) 1x1 conv
        s3, b3 = bn(cout)
        flat += [wc1, s1, b1, wc2, s2, b2, wc3, wn, s3, b3]
    # fc head
    for din, dout in ((128, 64), (64, 32), (32, 2)):
        w, b = linear(din, dout)
        flat += [w, b]
    return flat


# ----------------------------------------------------------------------------
if __name__ == "__main__":
    key = jax.random.PRNGKey(0)
    pkey, xkey = jax.random.split(key)
    params = init_params(pkey)

    N, L = 2, 1024                        # torch input (N, 1, L) -> here (N, L, 1)
    x_nlc = jax.random.normal(xkey, (N, L, 1), jnp.float32)

    out = ssdnet1d_forward(x_nlc, params)
    out = jax.block_until_ready(out)
    assert out.shape == (N, 2) and out.dtype == jnp.float32
    print("KERNEL_OK")
</pallas_src>

<mosaic_0001>
module attributes {stable_mosaic.version = 11 : i64} {
  func.func @_ssdnet_kernel(%arg0: i32, %arg1: memref<1x1024x7xf32, #tpu.memory_space<vmem>>, %arg2: memref<7x16xf32, #tpu.memory_space<vmem>>, %arg3: memref<1x16xf32, #tpu.memory_space<vmem>>, %arg4: memref<1x16xf32, #tpu.memory_space<vmem>>, %arg5: memref<48x32xf32, #tpu.memory_space<vmem>>, %arg6: memref<1x32xf32, #tpu.memory_space<vmem>>, %arg7: memref<1x32xf32, #tpu.memory_space<vmem>>, %arg8: memref<96x32xf32, #tpu.memory_space<vmem>>, %arg9: memref<1x32xf32, #tpu.memory_space<vmem>>, %arg10: memref<1x32xf32, #tpu.memory_space<vmem>>, %arg11: memref<96x32xf32, #tpu.memory_space<vmem>>, %arg12: memref<16x32xf32, #tpu.memory_space<vmem>>, %arg13: memref<1x32xf32, #tpu.memory_space<vmem>>, %arg14: memref<1x32xf32, #tpu.memory_space<vmem>>, %arg15: memref<96x64xf32, #tpu.memory_space<vmem>>, %arg16: memref<1x64xf32, #tpu.memory_space<vmem>>, %arg17: memref<1x64xf32, #tpu.memory_space<vmem>>, %arg18: memref<192x64xf32, #tpu.memory_space<vmem>>, %arg19: memref<1x64xf32, #tpu.memory_space<vmem>>, %arg20: memref<1x64xf32, #tpu.memory_space<vmem>>, %arg21: memref<192x64xf32, #tpu.memory_space<vmem>>, %arg22: memref<32x64xf32, #tpu.memory_space<vmem>>, %arg23: memref<1x64xf32, #tpu.memory_space<vmem>>, %arg24: memref<1x64xf32, #tpu.memory_space<vmem>>, %arg25: memref<192x128xf32, #tpu.memory_space<vmem>>, %arg26: memref<1x128xf32, #tpu.memory_space<vmem>>, %arg27: memref<1x128xf32, #tpu.memory_space<vmem>>, %arg28: memref<384x128xf32, #tpu.memory_space<vmem>>, %arg29: memref<1x128xf32, #tpu.memory_space<vmem>>, %arg30: memref<1x128xf32, #tpu.memory_space<vmem>>, %arg31: memref<384x128xf32, #tpu.memory_space<vmem>>, %arg32: memref<64x128xf32, #tpu.memory_space<vmem>>, %arg33: memref<1x128xf32, #tpu.memory_space<vmem>>, %arg34: memref<1x128xf32, #tpu.memory_space<vmem>>, %arg35: memref<384x128xf32, #tpu.memory_space<vmem>>, %arg36: memref<1x128xf32, #tpu.memory_space<vmem>>, %arg37: memref<1x128xf32, #tpu.memory_space<vmem>>, %arg38: memref<384x128xf32, #tpu.memory_space<vmem>>, %arg39: memref<1x128xf32, #tpu.memory_space<vmem>>, %arg40: memref<1x128xf32, #tpu.memory_space<vmem>>, %arg41: memref<384x128xf32, #tpu.memory_space<vmem>>, %arg42: memref<128x128xf32, #tpu.memory_space<vmem>>, %arg43: memref<1x128xf32, #tpu.memory_space<vmem>>, %arg44: memref<1x128xf32, #tpu.memory_space<vmem>>, %arg45: memref<128x64xf32, #tpu.memory_space<vmem>>, %arg46: memref<1x64xf32, #tpu.memory_space<vmem>>, %arg47: memref<64x32xf32, #tpu.memory_space<vmem>>, %arg48: memref<1x32xf32, #tpu.memory_space<vmem>>, %arg49: memref<32x2xf32, #tpu.memory_space<vmem>>, %arg50: memref<1x2xf32, #tpu.memory_space<vmem>>, %arg51: memref<1x1x2xf32, #tpu.memory_space<vmem>>, %arg52: memref<1024x16xf32, #tpu.memory_space<vmem>>, %arg53: memref<258x16xf32, #tpu.memory_space<vmem>>, %arg54: memref<258x32xf32, #tpu.memory_space<vmem>>, %arg55: memref<66x32xf32, #tpu.memory_space<vmem>>, %arg56: memref<66x64xf32, #tpu.memory_space<vmem>>, %arg57: memref<18x64xf32, #tpu.memory_space<vmem>>, %arg58: memref<18x128xf32, #tpu.memory_space<vmem>>, %arg59: memref<6x128xf32, #tpu.memory_space<vmem>>, %arg60: memref<6x128xf32, #tpu.memory_space<vmem>>) attributes {dimension_semantics = [#tpu.dimension_semantics<parallel>], iteration_bounds = array<i64: 2>, scalar_prefetch = 0 : i64, scratch_operands = 9 : i64, tpu.core_type = #tpu.core_type<tc>, window_params = [{transform_indices = @transform_0, window_bounds = array<i64: 1, 1024, 7>}, {pipeline_mode = #tpu.pipeline_mode<synchronous>, transform_indices = @transform_1, window_bounds = array<i64: 7, 16>}, {pipeline_mode = #tpu.pipeline_mode<synchronous>, transform_indices = @transform_2, window_bounds = array<i64: 1, 16>}, {pipeline_mode = #tpu.pipeline_mode<synchronous>, transform_indices = @transform_3, window_bounds = array<i64: 1, 16>}, {pipeline_mode = #tpu.pipeline_mode<synchronous>, transform_indices = @transform_4, window_bounds = array<i64: 48, 32>}, {pipeline_mode = #tpu.pipeline_mode<synchronous>, transform_indices = @transform_5, window_bounds = array<i64: 1, 32>}, {pipeline_mode = #tpu.pipeline_mode<synchronous>, transform_indices = @transform_6, window_bounds = array<i64: 1, 32>}, {pipeline_mode = #tpu.pipeline_mode<synchronous>, transform_indices = @transform_7, window_bounds = array<i64: 96, 32>}, {pipeline_mode = #tpu.pipeline_mode<synchronous>, transform_indices = @transform_8, window_bounds = array<i64: 1, 32>}, {pipeline_mode = #tpu.pipeline_mode<synchronous>, transform_indices = @transform_9, window_bounds = array<i64: 1, 32>}, {pipeline_mode = #tpu.pipeline_mode<synchronous>, transform_indices = @transform_10, window_bounds = array<i64: 96, 32>}, {pipeline_mode = #tpu.pipeline_mode<synchronous>, transform_indices = @transform_11, window_bounds = array<i64: 16, 32>}, {pipeline_mode = #tpu.pipeline_mode<synchronous>, transform_indices = @transform_12, window_bounds = array<i64: 1, 32>}, {pipeline_mode = #tpu.pipeline_mode<synchronous>, transform_indices = @transform_13, window_bounds = array<i64: 1, 32>}, {pipeline_mode = #tpu.pipeline_mode<synchronous>, transform_indices = @transform_14, window_bounds = array<i64: 96, 64>}, {pipeline_mode = #tpu.pipeline_mode<synchronous>, transform_indices = @transform_15, window_bounds = array<i64: 1, 64>}, {pipeline_mode = #tpu.pipeline_mode<synchronous>, transform_indices = @transform_16, window_bounds = array<i64: 1, 64>}, {pipeline_mode = #tpu.pipeline_mode<synchronous>, transform_indices = @transform_17, window_bounds = array<i64: 192, 64>}, {pipeline_mode = #tpu.pipeline_mode<synchronous>, transform_indices = @transform_18, window_bounds = array<i64: 1, 64>}, {pipeline_mode = #tpu.pipeline_mode<synchronous>, transform_indices = @transform_19, window_bounds = array<i64: 1, 64>}, {pipeline_mode = #tpu.pipeline_mode<synchronous>, transform_indices = @transform_20, window_bounds = array<i64: 192, 64>}, {pipeline_mode = #tpu.pipeline_mode<synchronous>, transform_indices = @transform_21, window_bounds = array<i64: 32, 64>}, {pipeline_mode = #tpu.pipeline_mode<synchronous>, transform_indices = @transform_22, window_bounds = array<i64: 1, 64>}, {pipeline_mode = #tpu.pipeline_mode<synchronous>, transform_indices = @transform_23, window_bounds = array<i64: 1, 64>}, {pipeline_mode = #tpu.pipeline_mode<synchronous>, transform_indices = @transform_24, window_bounds = array<i64: 192, 128>}, {pipeline_mode = #tpu.pipeline_mode<synchronous>, transform_indices = @transform_25, window_bounds = array<i64: 1, 128>}, {pipeline_mode = #tpu.pipeline_mode<synchronous>, transform_indices = @transform_26, window_bounds = array<i64: 1, 128>}, {pipeline_mode = #tpu.pipeline_mode<synchronous>, transform_indices = @transform_27, window_bounds = array<i64: 384, 128>}, {pipeline_mode = #tpu.pipeline_mode<synchronous>, transform_indices = @transform_28, window_bounds = array<i64: 1, 128>}, {pipeline_mode = #tpu.pipeline_mode<synchronous>, transform_indices = @transform_29, window_bounds = array<i64: 1, 128>}, {pipeline_mode = #tpu.pipeline_mode<synchronous>, transform_indices = @transform_30, window_bounds = array<i64: 384, 128>}, {pipeline_mode = #tpu.pipeline_mode<synchronous>, transform_indices = @transform_31, window_bounds = array<i64: 64, 128>}, {pipeline_mode = #tpu.pipeline_mode<synchronous>, transform_indices = @transform_32, window_bounds = array<i64: 1, 128>}, {pipeline_mode = #tpu.pipeline_mode<synchronous>, transform_indices = @transform_33, window_bounds = array<i64: 1, 128>}, {pipeline_mode = #tpu.pipeline_mode<synchronous>, transform_indices = @transform_34, window_bounds = array<i64: 384, 128>}, {pipeline_mode = #tpu.pipeline_mode<synchronous>, transform_indices = @transform_35, window_bounds = array<i64: 1, 128>}, {pipeline_mode = #tpu.pipeline_mode<synchronous>, transform_indices = @transform_36, window_bounds = array<i64: 1, 128>}, {pipeline_mode = #tpu.pipeline_mode<synchronous>, transform_indices = @transform_37, window_bounds = array<i64: 384, 128>}, {pipeline_mode = #tpu.pipeline_mode<synchronous>, transform_indices = @transform_38, window_bounds = array<i64: 1, 128>}, {pipeline_mode = #tpu.pipeline_mode<synchronous>, transform_indices = @transform_39, window_bounds = array<i64: 1, 128>}, {pipeline_mode = #tpu.pipeline_mode<synchronous>, transform_indices = @transform_40, window_bounds = array<i64: 384, 128>}, {pipeline_mode = #tpu.pipeline_mode<synchronous>, transform_indices = @transform_41, window_bounds = array<i64: 128, 128>}, {pipeline_mode = #tpu.pipeline_mode<synchronous>, transform_indices = @transform_42, window_bounds = array<i64: 1, 128>}, {pipeline_mode = #tpu.pipeline_mode<synchronous>, transform_indices = @transform_43, window_bounds = array<i64: 1, 128>}, {pipeline_mode = #tpu.pipeline_mode<synchronous>, transform_indices = @transform_44, window_bounds = array<i64: 128, 64>}, {pipeline_mode = #tpu.pipeline_mode<synchronous>, transform_indices = @transform_45, window_bounds = array<i64: 1, 64>}, {pipeline_mode = #tpu.pipeline_mode<synchronous>, transform_indices = @transform_46, window_bounds = array<i64: 64, 32>}, {pipeline_mode = #tpu.pipeline_mode<synchronous>, transform_indices = @transform_47, window_bounds = array<i64: 1, 32>}, {pipeline_mode = #tpu.pipeline_mode<synchronous>, transform_indices = @transform_48, window_bounds = array<i64: 32, 2>}, {pipeline_mode = #tpu.pipeline_mode<synchronous>, transform_indices = @transform_49, window_bounds = array<i64: 1, 2>}, {transform_indices = @transform_50, window_bounds = array<i64: 1, 1, 2>}]} {
    %cst = arith.constant 0.000000e+00 : f32
    %0 = vector.broadcast %cst : f32 to vector<1x16xf32>
    %c0 = arith.constant 0 : index
    %c0_0 = arith.constant 0 : index
    %1 = vector.load %arg53[%c0, %c0_0] : memref<258x16xf32, #tpu.memory_space<vmem>>, vector<1x16xf32>
    tpu.vector_store %arg53[%c0, %c0_0], %0 {strides = array<i32>} : memref<258x16xf32, #tpu.memory_space<vmem>>, vector<1x16xf32>,
    %c257 = arith.constant 257 : index
    %c0_1 = arith.constant 0 : index
    %2 = vector.load %arg53[%c257, %c0_1] : memref<258x16xf32, #tpu.memory_space<vmem>>, vector<1x16xf32>
    tpu.vector_store %arg53[%c257, %c0_1], %0 {strides = array<i32>} : memref<258x16xf32, #tpu.memory_space<vmem>>, vector<1x16xf32>,
    %cst_2 = arith.constant 0.000000e+00 : f32
    %3 = vector.broadcast %cst_2 : f32 to vector<1x32xf32>
    %c0_3 = arith.constant 0 : index
    %c0_4 = arith.constant 0 : index
    %4 = vector.load %arg54[%c0_3, %c0_4] : memref<258x32xf32, #tpu.memory_space<vmem>>, vector<1x32xf32>
    tpu.vector_store %arg54[%c0_3, %c0_4], %3 {strides = array<i32>} : memref<258x32xf32, #tpu.memory_space<vmem>>, vector<1x32xf32>,
    %c257_5 = arith.constant 257 : index
    %c0_6 = arith.constant 0 : index
    %5 = vector.load %arg54[%c257_5, %c0_6] : memref<258x32xf32, #tpu.memory_space<vmem>>, vector<1x32xf32>
    tpu.vector_store %arg54[%c257_5, %c0_6], %3 {strides = array<i32>} : memref<258x32xf32, #tpu.memory_space<vmem>>, vector<1x32xf32>,
    %cst_7 = arith.constant 0.000000e+00 : f32
    %6 = vector.broadcast %cst_7 : f32 to vector<1x32xf32>
    %c0_8 = arith.constant 0 : index
    %c0_9 = arith.constant 0 : index
    %7 = vector.load %arg55[%c0_8, %c0_9] : memref<66x32xf32, #tpu.memory_space<vmem>>, vector<1x32xf32>
    tpu.vector_store %arg55[%c0_8, %c0_9], %6 {strides = array<i32>} : memref<66x32xf32, #tpu.memory_space<vmem>>, vector<1x32xf32>,
    %c65 = arith.constant 65 : index
    %c0_10 = arith.constant 0 : index
    %8 = vector.load %arg55[%c65, %c0_10] : memref<66x32xf32, #tpu.memory_space<vmem>>, vector<1x32xf32>
    tpu.vector_store %arg55[%c65, %c0_10], %6 {strides = array<i32>} : memref<66x32xf32, #tpu.memory_space<vmem>>, vector<1x32xf32>,
    %cst_11 = arith.constant 0.000000e+00 : f32
    %9 = vector.broadcast %cst_11 : f32 to vector<1x64xf32>
    %c0_12 = arith.constant 0 : index
    %c0_13 = arith.constant 0 : index
    %10 = vector.load %arg56[%c0_12, %c0_13] : memref<66x64xf32, #tpu.memory_space<vmem>>, vector<1x64xf32>
    tpu.vector_store %arg56[%c0_12, %c0_13], %9 {strides = array<i32>} : memref<66x64xf32, #tpu.memory_space<vmem>>, vector<1x64xf32>,
    %c65_14 = arith.constant 65 : index
    %c0_15 = arith.constant 0 : index
    %11 = vector.load %arg56[%c65_14, %c0_15] : memref<66x64xf32, #tpu.memory_space<vmem>>, vector<1x64xf32>
    tpu.vector_store %arg56[%c65_14, %c0_15], %9 {strides = array<i32>} : memref<66x64xf32, #tpu.memory_space<vmem>>, vector<1x64xf32>,
    %cst_16 = arith.constant 0.000000e+00 : f32
    %12 = vector.broadcast %cst_16 : f32 to vector<1x64xf32>
    %c0_17 = arith.constant 0 : index
    %c0_18 = arith.constant 0 : index
    %13 = vector.load %arg57[%c0_17, %c0_18] : memref<18x64xf32, #tpu.memory_space<vmem>>, vector<1x64xf32>
    tpu.vector_store %arg57[%c0_17, %c0_18], %12 {strides = array<i32>} : memref<18x64xf32, #tpu.memory_space<vmem>>, vector<1x64xf32>,
    %c17 = arith.constant 17 : index
    %c0_19 = arith.constant 0 : index
    %14 = vector.load %arg57[%c17, %c0_19] : memref<18x64xf32, #tpu.memory_space<vmem>>, vector<1x64xf32>
    tpu.vector_store %arg57[%c17, %c0_19], %12 {strides = array<i32>} : memref<18x64xf32, #tpu.memory_space<vmem>>, vector<1x64xf32>,
    %cst_20 = arith.constant 0.000000e+00 : f32
    %15 = vector.broadcast %cst_20 : f32 to vector<1x128xf32>
    %c0_21 = arith.constant 0 : index
    %c0_22 = arith.constant 0 : index
    %16 = vector.load %arg58[%c0_21, %c0_22] : memref<18x128xf32, #tpu.memory_space<vmem>>, vector<1x128xf32>
    tpu.vector_store %arg58[%c0_21, %c0_22], %15 {strides = array<i32>} : memref<18x128xf32, #tpu.memory_space<vmem>>, vector<1x128xf32>,
    %c17_23 = arith.constant 17 : index
    %c0_24 = arith.constant 0 : index
    %17 = vector.load %arg58[%c17_23, %c0_24] : memref<18x128xf32, #tpu.memory_space<vmem>>, vector<1x128xf32>
    tpu.vector_store %arg58[%c17_23, %c0_24], %15 {strides = array<i32>} : memref<18x128xf32, #tpu.memory_space<vmem>>, vector<1x128xf32>,
    %cst_25 = arith.constant 0.000000e+00 : f32
    %18 = vector.broadcast %cst_25 : f32 to vector<1x128xf32>
    %c0_26 = arith.constant 0 : index
    %c0_27 = arith.constant 0 : index
    %19 = vector.load %arg59[%c0_26, %c0_27] : memref<6x128xf32, #tpu.memory_space<vmem>>, vector<1x128xf32>
    tpu.vector_store %arg59[%c0_26, %c0_27], %18 {strides = array<i32>} : memref<6x128xf32, #tpu.memory_space<vmem>>, vector<1x128xf32>,
    %c5 = arith.constant 5 : index
    %c0_28 = arith.constant 0 : index
    %20 = vector.load %arg59[%c5, %c0_28] : memref<6x128xf32, #tpu.memory_space<vmem>>, vector<1x128xf32>
    tpu.vector_store %arg59[%c5, %c0_28], %18 {strides = array<i32>} : memref<6x128xf32, #tpu.memory_space<vmem>>, vector<1x128xf32>,
    %cst_29 = arith.constant 0.000000e+00 : f32
    %21 = vector.broadcast %cst_29 : f32 to vector<1x128xf32>
    %c0_30 = arith.constant 0 : index
    %c0_31 = arith.constant 0 : index
    %22 = vector.load %arg60[%c0_30, %c0_31] : memref<6x128xf32, #tpu.memory_space<vmem>>, vector<1x128xf32>
    tpu.vector_store %arg60[%c0_30, %c0_31], %21 {strides = array<i32>} : memref<6x128xf32, #tpu.memory_space<vmem>>, vector<1x128xf32>,
    %c5_32 = arith.constant 5 : index
    %c0_33 = arith.constant 0 : index
    %23 = vector.load %arg60[%c5_32, %c0_33] : memref<6x128xf32, #tpu.memory_space<vmem>>, vector<1x128xf32>
    tpu.vector_store %arg60[%c5_32, %c0_33], %21 {strides = array<i32>} : memref<6x128xf32, #tpu.memory_space<vmem>>, vector<1x128xf32>,
    %c0_34 = arith.constant 0 : index
    %c0_35 = arith.constant 0 : index
    %c0_36 = arith.constant 0 : index
    %24 = vector.load %arg1[%c0_34, %c0_35, %c0_36] : memref<1x1024x7xf32, #tpu.memory_space<vmem>>, vector<1x1024x7xf32>
    %25 = vector.shape_cast %24 : vector<1x1024x7xf32> to vector<1024x7xf32>
    %c0_37 = arith.constant 0 : index
    %c0_38 = arith.constant 0 : index
    %26 = vector.load %arg2[%c0_37, %c0_38] : memref<7x16xf32, #tpu.memory_space<vmem>>, vector<7x16xf32>
    %cst_39 = arith.constant dense<0.000000e+00> : vector<1024x16xf32>
    %27 = tpu.matmul %25, %26, %cst_39 {dimension_numbers = #tpu.dot_dimension_numbers<[1], [0], [0], [1], [0, 0, 1, 1], [], []>} : vector<1024x7xf32>, vector<7x16xf32>, vector<1024x16xf32> -> vector<1024x16xf32>
    %c0_40 = arith.constant 0 : index
    %c0_41 = arith.constant 0 : index
    %28 = vector.load %arg3[%c0_40, %c0_41] : memref<1x16xf32, #tpu.memory_space<vmem>>, vector<1x16xf32>
    %29 = vector.broadcast %28 : vector<1x16xf32> to vector<1024x16xf32>
    %30 = arith.mulf %27, %29 : vector<1024x16xf32>
    %c0_42 = arith.constant 0 : index
    %c0_43 = arith.constant 0 : index
    %31 = vector.load %arg4[%c0_42, %c0_43] : memref<1x16xf32, #tpu.memory_space<vmem>>, vector<1x16xf32>
    %32 = vector.broadcast %31 : vector<1x16xf32> to vector<1024x16xf32>
    %33 = arith.addf %30, %32 : vector<1024x16xf32>
    %cst_44 = arith.constant 0.000000e+00 : f32
    %34 = vector.broadcast %cst_44 : f32 to vector<1024x16xf32>
    %35 = arith.maximumf %33, %34 : vector<1024x16xf32>
    %c0_45 = arith.constant 0 : index
    %c0_46 = arith.constant 0 : index
    %36 = vector.load %arg52[%c0_45, %c0_46] : memref<1024x16xf32, #tpu.memory_space<vmem>>, vector<1024x16xf32>
    tpu.vector_store %arg52[%c0_45, %c0_46], %35 {strides = array<i32>} : memref<1024x16xf32, #tpu.memory_space<vmem>>, vector<1024x16xf32>,
    %c0_47 = arith.constant 0 : index
    %c0_48 = arith.constant 0 : index
    %37 = tpu.strided_load %arg52[%c0_47, %c0_48] {strides = array<i32: 4, 1>} : memref<1024x16xf32, #tpu.memory_space<vmem>>, vector<256x16xf32>
    %c1 = arith.constant 1 : index
    %c0_49 = arith.constant 0 : index
    %38 = tpu.strided_load %arg52[%c1, %c0_49] {strides = array<i32: 4, 1>} : memref<1024x16xf32, #tpu.memory_space<vmem>>, vector<256x16xf32>
    %39 = arith.maximumf %37, %38 : vector<256x16xf32>
    %c2 = arith.constant 2 : index
    %c0_50 = arith.constant 0 : index
    %40 = tpu.strided_load %arg52[%c2, %c0_50] {strides = array<i32: 4, 1>} : memref<1024x16xf32, #tpu.memory_space<vmem>>, vector<256x16xf32>
    %41 = arith.maximumf %39, %40 : vector<256x16xf32>
    %c3 = arith.constant 3 : index
    %c0_51 = arith.constant 0 : index
    %42 = tpu.strided_load %arg52[%c3, %c0_51] {strides = array<i32: 4, 1>} : memref<1024x16xf32, #tpu.memory_space<vmem>>, vector<256x16xf32>
    %43 = arith.maximumf %41, %42 : vector<256x16xf32>
    %c1_52 = arith.constant 1 : index
    %c0_53 = arith.constant 0 : index
    %44 = vector.load %arg53[%c1_52, %c0_53] : memref<258x16xf32, #tpu.memory_space<vmem>>, vector<256x16xf32>
    tpu.vector_store %arg53[%c1_52, %c0_53], %43 {strides = array<i32>} : memref<258x16xf32, #tpu.memory_space<vmem>>, vector<256x16xf32>,
    %c0_54 = arith.constant 0 : index
    %c0_55 = arith.constant 0 : index
    %45 = vector.load %arg53[%c0_54, %c0_55] : memref<258x16xf32, #tpu.memory_space<vmem>>, vector<256x16xf32>
    %c1_56 = arith.constant 1 : index
    %c0_57 = arith.constant 0 : index
    %46 = vector.load %arg53[%c1_56, %c0_57] : memref<258x16xf32, #tpu.memory_space<vmem>>, vector<256x16xf32>
    %c2_58 = arith.constant 2 : index
    %c0_59 = arith.constant 0 : index
    %47 = vector.load %arg53[%c2_58, %c0_59] : memref<258x16xf32, #tpu.memory_space<vmem>>, vector<256x16xf32>
    %48 = tpu.concatenate %45, %46, %47 in 1 : vector<256x16xf32>, vector<256x16xf32>, vector<256x16xf32> -> vector<256x48xf32>
    %c0_60 = arith.constant 0 : index
    %c0_61 = arith.constant 0 : index
    %49 = vector.load %arg5[%c0_60, %c0_61] : memref<48x32xf32, #tpu.memory_space<vmem>>, vector<48x32xf32>
    %cst_62 = arith.constant dense<0.000000e+00> : vector<256x32xf32>
    %50 = tpu.matmul %48, %49, %cst_62 {dimension_numbers = #tpu.dot_dimension_numbers<[1], [0], [0], [1], [0, 0, 1, 1], [], []>} : vector<256x48xf32>, vector<48x32xf32>, vector<256x32xf32> -> vector<256x32xf32>
    %c0_63 = arith.constant 0 : index
    %c0_64 = arith.constant 0 : index
    %51 = vector.load %arg6[%c0_63, %c0_64] : memref<1x32xf32, #tpu.memory_space<vmem>>, vector<1x32xf32>
    %52 = vector.broadcast %51 : vector<1x32xf32> to vector<256x32xf32>
    %53 = arith.mulf %50, %52 : vector<256x32xf32>
    %c0_65 = arith.constant 0 : index
    %c0_66 = arith.constant 0 : index
    %54 = vector.load %arg7[%c0_65, %c0_66] : memref<1x32xf32, #tpu.memory_space<vmem>>, vector<1x32xf32>
    %55 = vector.broadcast %54 : vector<1x32xf32> to vector<256x32xf32>
    %56 = arith.addf %53, %55 : vector<256x32xf32>
    %cst_67 = arith.constant 0.000000e+00 : f32
    %57 = vector.broadcast %cst_67 : f32 to vector<256x32xf32>
    %58 = arith.maximumf %56, %57 : vector<256x32xf32>
    %c1_68 = arith.constant 1 : index
    %c0_69 = arith.constant 0 : index
    %59 = vector.load %arg54[%c1_68, %c0_69] : memref<258x32xf32, #tpu.memory_space<vmem>>, vector<256x32xf32>
    tpu.vector_store %arg54[%c1_68, %c0_69], %58 {strides = array<i32>} : memref<258x32xf32, #tpu.memory_space<vmem>>, vector<256x32xf32>,
    %c0_70 = arith.constant 0 : index
    %c0_71 = arith.constant 0 : index
    %60 = vector.load %arg54[%c0_70, %c0_71] : memref<258x32xf32, #tpu.memory_space<vmem>>, vector<256x32xf32>
    %c1_72 = arith.constant 1 : index
    %c0_73 = arith.constant 0 : index
    %61 = vector.load %arg54[%c1_72, %c0_73] : memref<258x32xf32, #tpu.memory_space<vmem>>, vector<256x32xf32>
    %c2_74 = arith.constant 2 : index
    %c0_75 = arith.constant 0 : index
    %62 = vector.load %arg54[%c2_74, %c0_75] : memref<258x32xf32, #tpu.memory_space<vmem>>, vector<256x32xf32>
    %63 = tpu.concatenate %60, %61, %62 in 1 : vector<256x32xf32>, vector<256x32xf32>, vector<256x32xf32> -> vector<256x96xf32>
    %c0_76 = arith.constant 0 : index
    %c0_77 = arith.constant 0 : index
    %64 = vector.load %arg8[%c0_76, %c0_77] : memref<96x32xf32, #tpu.memory_space<vmem>>, vector<96x32xf32>
    %cst_78 = arith.constant dense<0.000000e+00> : vector<256x32xf32>
    %65 = tpu.matmul %63, %64, %cst_78 {dimension_numbers = #tpu.dot_dimension_numbers<[1], [0], [0], [1], [0, 0, 1, 1], [], []>} : vector<256x96xf32>, vector<96x32xf32>, vector<256x32xf32> -> vector<256x32xf32>
    %c0_79 = arith.constant 0 : index
    %c0_80 = arith.constant 0 : index
    %66 = vector.load %arg9[%c0_79, %c0_80] : memref<1x32xf32, #tpu.memory_space<vmem>>, vector<1x32xf32>
    %67 = vector.broadcast %66 : vector<1x32xf32> to vector<256x32xf32>
    %68 = arith.mulf %65, %67 : vector<256x32xf32>
    %c0_81 = arith.constant 0 : index
    %c0_82 = arith.constant 0 : index
    %69 = vector.load %arg10[%c0_81, %c0_82] : memref<1x32xf32, #tpu.memory_space<vmem>>, vector<1x32xf32>
    %70 = vector.broadcast %69 : vector<1x32xf32> to vector<256x32xf32>
    %71 = arith.addf %68, %70 : vector<256x32xf32>
    %cst_83 = arith.constant 0.000000e+00 : f32
    %72 = vector.broadcast %cst_83 : f32 to vector<256x32xf32>
    %73 = arith.maximumf %71, %72 : vector<256x32xf32>
    %c1_84 = arith.constant 1 : index
    %c0_85 = arith.constant 0 : index
    %74 = vector.load %arg54[%c1_84, %c0_85] : memref<258x32xf32, #tpu.memory_space<vmem>>, vector<256x32xf32>
    tpu.vector_store %arg54[%c1_84, %c0_85], %73 {strides = array<i32>} : memref<258x32xf32, #tpu.memory_space<vmem>>, vector<256x32xf32>,
    %c0_86 = arith.constant 0 : index
    %c0_87 = arith.constant 0 : index
    %75 = vector.load %arg54[%c0_86, %c0_87] : memref<258x32xf32, #tpu.memory_space<vmem>>, vector<256x32xf32>
    %c1_88 = arith.constant 1 : index
    %c0_89 = arith.constant 0 : index
    %76 = vector.load %arg54[%c1_88, %c0_89] : memref<258x32xf32, #tpu.memory_space<vmem>>, vector<256x32xf32>
    %c2_90 = arith.constant 2 : index
    %c0_91 = arith.constant 0 : index
    %77 = vector.load %arg54[%c2_90, %c0_91] : memref<258x32xf32, #tpu.memory_space<vmem>>, vector<256x32xf32>
    %78 = tpu.concatenate %75, %76, %77 in 1 : vector<256x32xf32>, vector<256x32xf32>, vector<256x32xf32> -> vector<256x96xf32>
    %c0_92 = arith.constant 0 : index
    %c0_93 = arith.constant 0 : index
    %79 = vector.load %arg11[%c0_92, %c0_93] : memref<96x32xf32, #tpu.memory_space<vmem>>, vector<96x32xf32>
    %cst_94 = arith.constant dense<0.000000e+00> : vector<256x32xf32>
    %80 = tpu.matmul %78, %79, %cst_94 {dimension_numbers = #tpu.dot_dimension_numbers<[1], [0], [0], [1], [0, 0, 1, 1], [], []>} : vector<256x96xf32>, vector<96x32xf32>, vector<256x32xf32> -> vector<256x32xf32>
    %c1_95 = arith.constant 1 : index
    %c0_96 = arith.constant 0 : index
    %81 = vector.load %arg53[%c1_95, %c0_96] : memref<258x16xf32, #tpu.memory_space<vmem>>, vector<256x16xf32>
    %c0_97 = arith.constant 0 : index
    %c0_98 = arith.constant 0 : index
    %82 = vector.load %arg12[%c0_97, %c0_98] : memref<16x32xf32, #tpu.memory_space<vmem>>, vector<16x32xf32>
    %cst_99 = arith.constant dense<0.000000e+00> : vector<256x32xf32>
    %83 = tpu.matmul %81, %82, %cst_99 {dimension_numbers = #tpu.dot_dimension_numbers<[1], [0], [0], [1], [0, 0, 1, 1], [], []>} : vector<256x16xf32>, vector<16x32xf32>, vector<256x32xf32> -> vector<256x32xf32>
    %84 = arith.addf %80, %83 : vector<256x32xf32>
    %c0_100 = arith.constant 0 : index
    %c0_101 = arith.constant 0 : index
    %85 = vector.load %arg13[%c0_100, %c0_101] : memref<1x32xf32, #tpu.memory_space<vmem>>, vector<1x32xf32>
    %86 = vector.broadcast %85 : vector<1x32xf32> to vector<256x32xf32>
    %87 = arith.mulf %84, %86 : vector<256x32xf32>
    %c0_102 = arith.constant 0 : index
    %c0_103 = arith.constant 0 : index
    %88 = vector.load %arg14[%c0_102, %c0_103] : memref<1x32xf32, #tpu.memory_space<vmem>>, vector<1x32xf32>
    %89 = vector.broadcast %88 : vector<1x32xf32> to vector<256x32xf32>
    %90 = arith.addf %87, %89 : vector<256x32xf32>
    %cst_104 = arith.constant 0.000000e+00 : f32
    %91 = vector.broadcast %cst_104 : f32 to vector<256x32xf32>
    %92 = arith.maximumf %90, %91 : vector<256x32xf32>
    %c1_105 = arith.constant 1 : index
    %c0_106 = arith.constant 0 : index
    %93 = vector.load %arg54[%c1_105, %c0_106] : memref<258x32xf32, #tpu.memory_space<vmem>>, vector<256x32xf32>
    tpu.vector_store %arg54[%c1_105, %c0_106], %92 {strides = array<i32>} : memref<258x32xf32, #tpu.memory_space<vmem>>, vector<256x32xf32>,
    %c1_107 = arith.constant 1 : index
    %c0_108 = arith.constant 0 : index
    %94 = tpu.strided_load %arg54[%c1_107, %c0_108] {strides = array<i32: 4, 1>} : memref<258x32xf32, #tpu.memory_space<vmem>>, vector<64x32xf32>
    %c2_109 = arith.constant 2 : index
    %c0_110 = arith.constant 0 : index
    %95 = tpu.strided_load %arg54[%c2_109, %c0_110] {strides = array<i32: 4, 1>} : memref<258x32xf32, #tpu.memory_space<vmem>>, vector<64x32xf32>
    %96 = arith.maximumf %94, %95 : vector<64x32xf32>
    %c3_111 = arith.constant 3 : index
    %c0_112 = arith.constant 0 : index
    %97 = tpu.strided_load %arg54[%c3_111, %c0_112] {strides = array<i32: 4, 1>} : memref<258x32xf32, #tpu.memory_space<vmem>>, vector<64x32xf32>
    %98 = arith.maximumf %96, %97 : vector<64x32xf32>
    %c4 = arith.constant 4 : index
    %c0_113 = arith.constant 0 : index
    %99 = tpu.strided_load %arg54[%c4, %c0_113] {strides = array<i32: 4, 1>} : memref<258x32xf32, #tpu.memory_space<vmem>>, vector<64x32xf32>
    %100 = arith.maximumf %98, %99 : vector<64x32xf32>
    %c1_114 = arith.constant 1 : index
    %c0_115 = arith.constant 0 : index
    %101 = vector.load %arg55[%c1_114, %c0_115] : memref<66x32xf32, #tpu.memory_space<vmem>>, vector<64x32xf32>
    tpu.vector_store %arg55[%c1_114, %c0_115], %100 {strides = array<i32>} : memref<66x32xf32, #tpu.memory_space<vmem>>, vector<64x32xf32>,
    %c0_116 = arith.constant 0 : index
    %c0_117 = arith.constant 0 : index
    %102 = vector.load %arg55[%c0_116, %c0_117] : memref<66x32xf32, #tpu.memory_space<vmem>>, vector<64x32xf32>
    %c1_118 = arith.constant 1 : index
    %c0_119 = arith.constant 0 : index
    %103 = vector.load %arg55[%c1_118, %c0_119] : memref<66x32xf32, #tpu.memory_space<vmem>>, vector<64x32xf32>
    %c2_120 = arith.constant 2 : index
    %c0_121 = arith.constant 0 : index
    %104 = vector.load %arg55[%c2_120, %c0_121] : memref<66x32xf32, #tpu.memory_space<vmem>>, vector<64x32xf32>
    %105 = tpu.concatenate %102, %103, %104 in 1 : vector<64x32xf32>, vector<64x32xf32>, vector<64x32xf32> -> vector<64x96xf32>
    %c0_122 = arith.constant 0 : index
    %c0_123 = arith.constant 0 : index
    %106 = vector.load %arg15[%c0_122, %c0_123] : memref<96x64xf32, #tpu.memory_space<vmem>>, vector<96x64xf32>
    %cst_124 = arith.constant dense<0.000000e+00> : vector<64x64xf32>
    %107 = tpu.matmul %105, %106, %cst_124 {dimension_numbers = #tpu.dot_dimension_numbers<[1], [0], [0], [1], [0, 0, 1, 1], [], []>} : vector<64x96xf32>, vector<96x64xf32>, vector<64x64xf32> -> vector<64x64xf32>
    %c0_125 = arith.constant 0 : index
    %c0_126 = arith.constant 0 : index
    %108 = vector.load %arg16[%c0_125, %c0_126] : memref<1x64xf32, #tpu.memory_space<vmem>>, vector<1x64xf32>
    %109 = vector.broadcast %108 : vector<1x64xf32> to vector<64x64xf32>
    %110 = arith.mulf %107, %109 : vector<64x64xf32>
    %c0_127 = arith.constant 0 : index
    %c0_128 = arith.constant 0 : index
    %111 = vector.load %arg17[%c0_127, %c0_128] : memref<1x64xf32, #tpu.memory_space<vmem>>, vector<1x64xf32>
    %112 = vector.broadcast %111 : vector<1x64xf32> to vector<64x64xf32>
    %113 = arith.addf %110, %112 : vector<64x64xf32>
    %cst_129 = arith.constant 0.000000e+00 : f32
    %114 = vector.broadcast %cst_129 : f32 to vector<64x64xf32>
    %115 = arith.maximumf %113, %114 : vector<64x64xf32>
    %c1_130 = arith.constant 1 : index
    %c0_131 = arith.constant 0 : index
    %116 = vector.load %arg56[%c1_130, %c0_131] : memref<66x64xf32, #tpu.memory_space<vmem>>, vector<64x64xf32>
    tpu.vector_store %arg56[%c1_130, %c0_131], %115 {strides = array<i32>} : memref<66x64xf32, #tpu.memory_space<vmem>>, vector<64x64xf32>,
    %c0_132 = arith.constant 0 : index
    %c0_133 = arith.constant 0 : index
    %117 = vector.load %arg56[%c0_132, %c0_133] : memref<66x64xf32, #tpu.memory_space<vmem>>, vector<64x64xf32>
    %c1_134 = arith.constant 1 : index
    %c0_135 = arith.constant 0 : index
    %118 = vector.load %arg56[%c1_134, %c0_135] : memref<66x64xf32, #tpu.memory_space<vmem>>, vector<64x64xf32>
    %c2_136 = arith.constant 2 : index
    %c0_137 = arith.constant 0 : index
    %119 = vector.load %arg56[%c2_136, %c0_137] : memref<66x64xf32, #tpu.memory_space<vmem>>, vector<64x64xf32>
    %120 = tpu.concatenate %117, %118, %119 in 1 : vector<64x64xf32>, vector<64x64xf32>, vector<64x64xf32> -> vector<64x192xf32>
    %c0_138 = arith.constant 0 : index
    %c0_139 = arith.constant 0 : index
    %121 = vector.load %arg18[%c0_138, %c0_139] : memref<192x64xf32, #tpu.memory_space<vmem>>, vector<192x64xf32>
    %cst_140 = arith.constant dense<0.000000e+00> : vector<64x64xf32>
    %122 = tpu.matmul %120, %121, %cst_140 {dimension_numbers = #tpu.dot_dimension_numbers<[1], [0], [0], [1], [0, 0, 1, 1], [], []>} : vector<64x192xf32>, vector<192x64xf32>, vector<64x64xf32> -> vector<64x64xf32>
    %c0_141 = arith.constant 0 : index
    %c0_142 = arith.constant 0 : index
    %123 = vector.load %arg19[%c0_141, %c0_142] : memref<1x64xf32, #tpu.memory_space<vmem>>, vector<1x64xf32>
    %124 = vector.broadcast %123 : vector<1x64xf32> to vector<64x64xf32>
    %125 = arith.mulf %122, %124 : vector<64x64xf32>
    %c0_143 = arith.constant 0 : index
    %c0_144 = arith.constant 0 : index
    %126 = vector.load %arg20[%c0_143, %c0_144] : memref<1x64xf32, #tpu.memory_space<vmem>>, vector<1x64xf32>
    %127 = vector.broadcast %126 : vector<1x64xf32> to vector<64x64xf32>
    %128 = arith.addf %125, %127 : vector<64x64xf32>
    %cst_145 = arith.constant 0.000000e+00 : f32
    %129 = vector.broadcast %cst_145 : f32 to vector<64x64xf32>
    %130 = arith.maximumf %128, %129 : vector<64x64xf32>
    %c1_146 = arith.constant 1 : index
    %c0_147 = arith.constant 0 : index
    %131 = vector.load %arg56[%c1_146, %c0_147] : memref<66x64xf32, #tpu.memory_space<vmem>>, vector<64x64xf32>
    tpu.vector_store %arg56[%c1_146, %c0_147], %130 {strides = array<i32>} : memref<66x64xf32, #tpu.memory_space<vmem>>, vector<64x64xf32>,
    %c0_148 = arith.constant 0 : index
    %c0_149 = arith.constant 0 : index
    %132 = vector.load %arg56[%c0_148, %c0_149] : memref<66x64xf32, #tpu.memory_space<vmem>>, vector<64x64xf32>
    %c1_150 = arith.constant 1 : index
    %c0_151 = arith.constant 0 : index
    %133 = vector.load %arg56[%c1_150, %c0_151] : memref<66x64xf32, #tpu.memory_space<vmem>>, vector<64x64xf32>
    %c2_152 = arith.constant 2 : index
    %c0_153 = arith.constant 0 : index
    %134 = vector.load %arg56[%c2_152, %c0_153] : memref<66x64xf32, #tpu.memory_space<vmem>>, vector<64x64xf32>
    %135 = tpu.concatenate %132, %133, %134 in 1 : vector<64x64xf32>, vector<64x64xf32>, vector<64x64xf32> -> vector<64x192xf32>
    %c0_154 = arith.constant 0 : index
    %c0_155 = arith.constant 0 : index
    %136 = vector.load %arg21[%c0_154, %c0_155] : memref<192x64xf32, #tpu.memory_space<vmem>>, vector<192x64xf32>
    %cst_156 = arith.constant dense<0.000000e+00> : vector<64x64xf32>
    %137 = tpu.matmul %135, %136, %cst_156 {dimension_numbers = #tpu.dot_dimension_numbers<[1], [0], [0], [1], [0, 0, 1, 1], [], []>} : vector<64x192xf32>, vector<192x64xf32>, vector<64x64xf32> -> vector<64x64xf32>
    %c1_157 = arith.constant 1 : index
    %c0_158 = arith.constant 0 : index
    %138 = vector.load %arg55[%c1_157, %c0_158] : memref<66x32xf32, #tpu.memory_space<vmem>>, vector<64x32xf32>
    %c0_159 = arith.constant 0 : index
    %c0_160 = arith.constant 0 : index
    %139 = vector.load %arg22[%c0_159, %c0_160] : memref<32x64xf32, #tpu.memory_space<vmem>>, vector<32x64xf32>
    %cst_161 = arith.constant dense<0.000000e+00> : vector<64x64xf32>
    %140 = tpu.matmul %138, %139, %cst_161 {dimension_numbers = #tpu.dot_dimension_numbers<[1], [0], [0], [1], [0, 0, 1, 1], [], []>} : vector<64x32xf32>, vector<32x64xf32>, vector<64x64xf32> -> vector<64x64xf32>
    %141 = arith.addf %137, %140 : vector<64x64xf32>
    %c0_162 = arith.constant 0 : index
    %c0_163 = arith.constant 0 : index
    %142 = vector.load %arg23[%c0_162, %c0_163] : memref<1x64xf32, #tpu.memory_space<vmem>>, vector<1x64xf32>
    %143 = vector.broadcast %142 : vector<1x64xf32> to vector<64x64xf32>
    %144 = arith.mulf %141, %143 : vector<64x64xf32>
    %c0_164 = arith.constant 0 : index
    %c0_165 = arith.constant 0 : index
    %145 = vector.load %arg24[%c0_164, %c0_165] : memref<1x64xf32, #tpu.memory_space<vmem>>, vector<1x64xf32>
    %146 = vector.broadcast %145 : vector<1x64xf32> to vector<64x64xf32>
    %147 = arith.addf %144, %146 : vector<64x64xf32>
    %cst_166 = arith.constant 0.000000e+00 : f32
    %148 = vector.broadcast %cst_166 : f32 to vector<64x64xf32>
    %149 = arith.maximumf %147, %148 : vector<64x64xf32>
    %c1_167 = arith.constant 1 : index
    %c0_168 = arith.constant 0 : index
    %150 = vector.load %arg56[%c1_167, %c0_168] : memref<66x64xf32, #tpu.memory_space<vmem>>, vector<64x64xf32>
    tpu.vector_store %arg56[%c1_167, %c0_168], %149 {strides = array<i32>} : memref<66x64xf32, #tpu.memory_space<vmem>>, vector<64x64xf32>,
    %c1_169 = arith.constant 1 : index
    %c0_170 = arith.constant 0 : index
    %151 = tpu.strided_load %arg56[%c1_169, %c0_170] {strides = array<i32: 4, 1>} : memref<66x64xf32, #tpu.memory_space<vmem>>, vector<16x64xf32>
    %c2_171 = arith.constant 2 : index
    %c0_172 = arith.constant 0 : index
    %152 = tpu.strided_load %arg56[%c2_171, %c0_172] {strides = array<i32: 4, 1>} : memref<66x64xf32, #tpu.memory_space<vmem>>, vector<16x64xf32>
    %153 = arith.maximumf %151, %152 : vector<16x64xf32>
    %c3_173 = arith.constant 3 : index
    %c0_174 = arith.constant 0 : index
    %154 = tpu.strided_load %arg56[%c3_173, %c0_174] {strides = array<i32: 4, 1>} : memref<66x64xf32, #tpu.memory_space<vmem>>, vector<16x64xf32>
    %155 = arith.maximumf %153, %154 : vector<16x64xf32>
    %c4_175 = arith.constant 4 : index
    %c0_176 = arith.constant 0 : index
    %156 = tpu.strided_load %arg56[%c4_175, %c0_176] {strides = array<i32: 4, 1>} : memref<66x64xf32, #tpu.memory_space<vmem>>, vector<16x64xf32>
    %157 = arith.maximumf %155, %156 : vector<16x64xf32>
    %c1_177 = arith.constant 1 : index
    %c0_178 = arith.constant 0 : index
    %158 = vector.load %arg57[%c1_177, %c0_178] : memref<18x64xf32, #tpu.memory_space<vmem>>, vector<16x64xf32>
    tpu.vector_store %arg57[%c1_177, %c0_178], %157 {strides = array<i32>} : memref<18x64xf32, #tpu.memory_space<vmem>>, vector<16x64xf32>,
    %c0_179 = arith.constant 0 : index
    %c0_180 = arith.constant 0 : index
    %159 = vector.load %arg57[%c0_179, %c0_180] : memref<18x64xf32, #tpu.memory_space<vmem>>, vector<16x64xf32>
    %c1_181 = arith.constant 1 : index
    %c0_182 = arith.constant 0 : index
    %160 = vector.load %arg57[%c1_181, %c0_182] : memref<18x64xf32, #tpu.memory_space<vmem>>, vector<16x64xf32>
    %c2_183 = arith.constant 2 : index
    %c0_184 = arith.constant 0 : index
    %161 = vector.load %arg57[%c2_183, %c0_184] : memref<18x64xf32, #tpu.memory_space<vmem>>, vector<16x64xf32>
    %162 = tpu.concatenate %159, %160, %161 in 1 : vector<16x64xf32>, vector<16x64xf32>, vector<16x64xf32> -> vector<16x192xf32>
    %c0_185 = arith.constant 0 : index
    %c0_186 = arith.constant 0 : index
    %163 = vector.load %arg25[%c0_185, %c0_186] : memref<192x128xf32, #tpu.memory_space<vmem>>, vector<192x128xf32>
    %cst_187 = arith.constant dense<0.000000e+00> : vector<16x128xf32>
    %164 = tpu.matmul %162, %163, %cst_187 {dimension_numbers = #tpu.dot_dimension_numbers<[1], [0], [0], [1], [0, 0, 1, 1], [], []>} : vector<16x192xf32>, vector<192x128xf32>, vector<16x128xf32> -> vector<16x128xf32>
    %c0_188 = arith.constant 0 : index
    %c0_189 = arith.constant 0 : index
    %165 = vector.load %arg26[%c0_188, %c0_189] : memref<1x128xf32, #tpu.memory_space<vmem>>, vector<1x128xf32>
    %166 = vector.broadcast %165 : vector<1x128xf32> to vector<16x128xf32>
    %167 = arith.mulf %164, %166 : vector<16x128xf32>
    %c0_190 = arith.constant 0 : index
    %c0_191 = arith.constant 0 : index
    %168 = vector.load %arg27[%c0_190, %c0_191] : memref<1x128xf32, #tpu.memory_space<vmem>>, vector<1x128xf32>
    %169 = vector.broadcast %168 : vector<1x128xf32> to vector<16x128xf32>
    %170 = arith.addf %167, %169 : vector<16x128xf32>
    %cst_192 = arith.constant 0.000000e+00 : f32
    %171 = vector.broadcast %cst_192 : f32 to vector<16x128xf32>
    %172 = arith.maximumf %170, %171 : vector<16x128xf32>
    %c1_193 = arith.constant 1 : index
    %c0_194 = arith.constant 0 : index
    %173 = vector.load %arg58[%c1_193, %c0_194] : memref<18x128xf32, #tpu.memory_space<vmem>>, vector<16x128xf32>
    tpu.vector_store %arg58[%c1_193, %c0_194], %172 {strides = array<i32>} : memref<18x128xf32, #tpu.memory_space<vmem>>, vector<16x128xf32>,
    %c0_195 = arith.constant 0 : index
    %c0_196 = arith.constant 0 : index
    %174 = vector.load %arg58[%c0_195, %c0_196] : memref<18x128xf32, #tpu.memory_space<vmem>>, vector<16x128xf32>
    %c1_197 = arith.constant 1 : index
    %c0_198 = arith.constant 0 : index
    %175 = vector.load %arg58[%c1_197, %c0_198] : memref<18x128xf32, #tpu.memory_space<vmem>>, vector<16x128xf32>
    %c2_199 = arith.constant 2 : index
    %c0_200 = arith.constant 0 : index
    %176 = vector.load %arg58[%c2_199, %c0_200] : memref<18x128xf32, #tpu.memory_space<vmem>>, vector<16x128xf32>
    %177 = tpu.concatenate %174, %175, %176 in 1 : vector<16x128xf32>, vector<16x128xf32>, vector<16x128xf32> -> vector<16x384xf32>
    %c0_201 = arith.constant 0 : index
    %c0_202 = arith.constant 0 : index
    %178 = vector.load %arg28[%c0_201, %c0_202] : memref<384x128xf32, #tpu.memory_space<vmem>>, vector<384x128xf32>
    %cst_203 = arith.constant dense<0.000000e+00> : vector<16x128xf32>
    %179 = tpu.matmul %177, %178, %cst_203 {dimension_numbers = #tpu.dot_dimension_numbers<[1], [0], [0], [1], [0, 0, 1, 1], [], []>} : vector<16x384xf32>, vector<384x128xf32>, vector<16x128xf32> -> vector<16x128xf32>
    %c0_204 = arith.constant 0 : index
    %c0_205 = arith.constant 0 : index
    %180 = vector.load %arg29[%c0_204, %c0_205] : memref<1x128xf32, #tpu.memory_space<vmem>>, vector<1x128xf32>
    %181 = vector.broadcast %180 : vector<1x128xf32> to vector<16x128xf32>
    %182 = arith.mulf %179, %181 : vector<16x128xf32>
    %c0_206 = arith.constant 0 : index
    %c0_207 = arith.constant 0 : index
    %183 = vector.load %arg30[%c0_206, %c0_207] : memref<1x128xf32, #tpu.memory_space<vmem>>, vector<1x128xf32>
    %184 = vector.broadcast %183 : vector<1x128xf32> to vector<16x128xf32>
    %185 = arith.addf %182, %184 : vector<16x128xf32>
    %cst_208 = arith.constant 0.000000e+00 : f32
    %186 = vector.broadcast %cst_208 : f32 to vector<16x128xf32>
    %187 = arith.maximumf %185, %186 : vector<16x128xf32>
    %c1_209 = arith.constant 1 : index
    %c0_210 = arith.constant 0 : index
    %188 = vector.load %arg58[%c1_209, %c0_210] : memref<18x128xf32, #tpu.memory_space<vmem>>, vector<16x128xf32>
    tpu.vector_store %arg58[%c1_209, %c0_210], %187 {strides = array<i32>} : memref<18x128xf32, #tpu.memory_space<vmem>>, vector<16x128xf32>,
    %c0_211 = arith.constant 0 : index
    %c0_212 = arith.constant 0 : index
    %189 = vector.load %arg58[%c0_211, %c0_212] : memref<18x128xf32, #tpu.memory_space<vmem>>, vector<16x128xf32>
    %c1_213 = arith.constant 1 : index
    %c0_214 = arith.constant 0 : index
    %190 = vector.load %arg58[%c1_213, %c0_214] : memref<18x128xf32, #tpu.memory_space<vmem>>, vector<16x128xf32>
    %c2_215 = arith.constant 2 : index
    %c0_216 = arith.constant 0 : index
    %191 = vector.load %arg58[%c2_215, %c0_216] : memref<18x128xf32, #tpu.memory_space<vmem>>, vector<16x128xf32>
    %192 = tpu.concatenate %189, %190, %191 in 1 : vector<16x128xf32>, vector<16x128xf32>, vector<16x128xf32> -> vector<16x384xf32>
    %c0_217 = arith.constant 0 : index
    %c0_218 = arith.constant 0 : index
    %193 = vector.load %arg31[%c0_217, %c0_218] : memref<384x128xf32, #tpu.memory_space<vmem>>, vector<384x128xf32>
    %cst_219 = arith.constant dense<0.000000e+00> : vector<16x128xf32>
    %194 = tpu.matmul %192, %193, %cst_219 {dimension_numbers = #tpu.dot_dimension_numbers<[1], [0], [0], [1], [0, 0, 1, 1], [], []>} : vector<16x384xf32>, vector<384x128xf32>, vector<16x128xf32> -> vector<16x128xf32>
    %c1_220 = arith.constant 1 : index
    %c0_221 = arith.constant 0 : index
    %195 = vector.load %arg57[%c1_220, %c0_221] : memref<18x64xf32, #tpu.memory_space<vmem>>, vector<16x64xf32>
    %c0_222 = arith.constant 0 : index
    %c0_223 = arith.constant 0 : index
    %196 = vector.load %arg32[%c0_222, %c0_223] : memref<64x128xf32, #tpu.memory_space<vmem>>, vector<64x128xf32>
    %cst_224 = arith.constant dense<0.000000e+00> : vector<16x128xf32>
    %197 = tpu.matmul %195, %196, %cst_224 {dimension_numbers = #tpu.dot_dimension_numbers<[1], [0], [0], [1], [0, 0, 1, 1], [], []>} : vector<16x64xf32>, vector<64x128xf32>, vector<16x128xf32> -> vector<16x128xf32>
    %198 = arith.addf %194, %197 : vector<16x128xf32>
    %c0_225 = arith.constant 0 : index
    %c0_226 = arith.constant 0 : index
    %199 = vector.load %arg33[%c0_225, %c0_226] : memref<1x128xf32, #tpu.memory_space<vmem>>, vector<1x128xf32>
    %200 = vector.broadcast %199 : vector<1x128xf32> to vector<16x128xf32>
    %201 = arith.mulf %198, %200 : vector<16x128xf32>
    %c0_227 = arith.constant 0 : index
    %c0_228 = arith.constant 0 : index
    %202 = vector.load %arg34[%c0_227, %c0_228] : memref<1x128xf32, #tpu.memory_space<vmem>>, vector<1x128xf32>
    %203 = vector.broadcast %202 : vector<1x128xf32> to vector<16x128xf32>
    %204 = arith.addf %201, %203 : vector<16x128xf32>
    %cst_229 = arith.constant 0.000000e+00 : f32
    %205 = vector.broadcast %cst_229 : f32 to vector<16x128xf32>
    %206 = arith.maximumf %204, %205 : vector<16x128xf32>
    %c1_230 = arith.constant 1 : index
    %c0_231 = arith.constant 0 : index
    %207 = vector.load %arg58[%c1_230, %c0_231] : memref<18x128xf32, #tpu.memory_space<vmem>>, vector<16x128xf32>
    tpu.vector_store %arg58[%c1_230, %c0_231], %206 {strides = array<i32>} : memref<18x128xf32, #tpu.memory_space<vmem>>, vector<16x128xf32>,
    %c1_232 = arith.constant 1 : index
    %c0_233 = arith.constant 0 : index
    %208 = tpu.strided_load %arg58[%c1_232, %c0_233] {strides = array<i32: 4, 1>} : memref<18x128xf32, #tpu.memory_space<vmem>>, vector<4x128xf32>
    %c2_234 = arith.constant 2 : index
    %c0_235 = arith.constant 0 : index
    %209 = tpu.strided_load %arg58[%c2_234, %c0_235] {strides = array<i32: 4, 1>} : memref<18x128xf32, #tpu.memory_space<vmem>>, vector<4x128xf32>
    %210 = arith.maximumf %208, %209 : vector<4x128xf32>
    %c3_236 = arith.constant 3 : index
    %c0_237 = arith.constant 0 : index
    %211 = tpu.strided_load %arg58[%c3_236, %c0_237] {strides = array<i32: 4, 1>} : memref<18x128xf32, #tpu.memory_space<vmem>>, vector<4x128xf32>
    %212 = arith.maximumf %210, %211 : vector<4x128xf32>
    %c4_238 = arith.constant 4 : index
    %c0_239 = arith.constant 0 : index
    %213 = tpu.strided_load %arg58[%c4_238, %c0_239] {strides = array<i32: 4, 1>} : memref<18x128xf32, #tpu.memory_space<vmem>>, vector<4x128xf32>
    %214 = arith.maximumf %212, %213 : vector<4x128xf32>
    %c1_240 = arith.constant 1 : index
    %c0_241 = arith.constant 0 : index
    %215 = vector.load %arg59[%c1_240, %c0_241] : memref<6x128xf32, #tpu.memory_space<vmem>>, vector<4x128xf32>
    tpu.vector_store %arg59[%c1_240, %c0_241], %214 {strides = array<i32>} : memref<6x128xf32, #tpu.memory_space<vmem>>, vector<4x128xf32>,
    %c0_242 = arith.constant 0 : index
    %c0_243 = arith.constant 0 : index
    %216 = vector.load %arg59[%c0_242, %c0_243] : memref<6x128xf32, #tpu.memory_space<vmem>>, vector<4x128xf32>
    %c1_244 = arith.constant 1 : index
    %c0_245 = arith.constant 0 : index
    %217 = vector.load %arg59[%c1_244, %c0_245] : memref<6x128xf32, #tpu.memory_space<vmem>>, vector<4x128xf32>
    %c2_246 = arith.constant 2 : index
    %c0_247 = arith.constant 0 : index
    %218 = vector.load %arg59[%c2_246, %c0_247] : memref<6x128xf32, #tpu.memory_space<vmem>>, vector<4x128xf32>
    %219 = tpu.concatenate %216, %217, %218 in 1 : vector<4x128xf32>, vector<4x128xf32>, vector<4x128xf32> -> vector<4x384xf32>
    %c0_248 = arith.constant 0 : index
    %c0_249 = arith.constant 0 : index
    %220 = vector.load %arg35[%c0_248, %c0_249] : memref<384x128xf32, #tpu.memory_space<vmem>>, vector<384x128xf32>
    %cst_250 = arith.constant dense<0.000000e+00> : vector<4x128xf32>
    %221 = tpu.matmul %219, %220, %cst_250 {dimension_numbers = #tpu.dot_dimension_numbers<[1], [0], [0], [1], [0, 0, 1, 1], [], []>} : vector<4x384xf32>, vector<384x128xf32>, vector<4x128xf32> -> vector<4x128xf32>
    %c0_251 = arith.constant 0 : index
    %c0_252 = arith.constant 0 : index
    %222 = vector.load %arg36[%c0_251, %c0_252] : memref<1x128xf32, #tpu.memory_space<vmem>>, vector<1x128xf32>
    %223 = vector.broadcast %222 : vector<1x128xf32> to vector<4x128xf32>
    %224 = arith.mulf %221, %223 : vector<4x128xf32>
    %c0_253 = arith.constant 0 : index
    %c0_254 = arith.constant 0 : index
    %225 = vector.load %arg37[%c0_253, %c0_254] : memref<1x128xf32, #tpu.memory_space<vmem>>, vector<1x128xf32>
    %226 = vector.broadcast %225 : vector<1x128xf32> to vector<4x128xf32>
    %227 = arith.addf %224, %226 : vector<4x128xf32>
    %cst_255 = arith.constant 0.000000e+00 : f32
    %228 = vector.broadcast %cst_255 : f32 to vector<4x128xf32>
    %229 = arith.maximumf %227, %228 : vector<4x128xf32>
    %c1_256 = arith.constant 1 : index
    %c0_257 = arith.constant 0 : index
    %230 = vector.load %arg60[%c1_256, %c0_257] : memref<6x128xf32, #tpu.memory_space<vmem>>, vector<4x128xf32>
    tpu.vector_store %arg60[%c1_256, %c0_257], %229 {strides = array<i32>} : memref<6x128xf32, #tpu.memory_space<vmem>>, vector<4x128xf32>,
    %c0_258 = arith.constant 0 : index
    %c0_259 = arith.constant 0 : index
    %231 = vector.load %arg60[%c0_258, %c0_259] : memref<6x128xf32, #tpu.memory_space<vmem>>, vector<4x128xf32>
    %c1_260 = arith.constant 1 : index
    %c0_261 = arith.constant 0 : index
    %232 = vector.load %arg60[%c1_260, %c0_261] : memref<6x128xf32, #tpu.memory_space<vmem>>, vector<4x128xf32>
    %c2_262 = arith.constant 2 : index
    %c0_263 = arith.constant 0 : index
    %233 = vector.load %arg60[%c2_262, %c0_263] : memref<6x128xf32, #tpu.memory_space<vmem>>, vector<4x128xf32>
    %234 = tpu.concatenate %231, %232, %233 in 1 : vector<4x128xf32>, vector<4x128xf32>, vector<4x128xf32> -> vector<4x384xf32>
    %c0_264 = arith.constant 0 : index
    %c0_265 = arith.constant 0 : index
    %235 = vector.load %arg38[%c0_264, %c0_265] : memref<384x128xf32, #tpu.memory_space<vmem>>, vector<384x128xf32>
    %cst_266 = arith.constant dense<0.000000e+00> : vector<4x128xf32>
    %236 = tpu.matmul %234, %235, %cst_266 {dimension_numbers = #tpu.dot_dimension_numbers<[1], [0], [0], [1], [0, 0, 1, 1], [], []>} : vector<4x384xf32>, vector<384x128xf32>, vector<4x128xf32> -> vector<4x128xf32>
    %c0_267 = arith.constant 0 : index
    %c0_268 = arith.constant 0 : index
    %237 = vector.load %arg39[%c0_267, %c0_268] : memref<1x128xf32, #tpu.memory_space<vmem>>, vector<1x128xf32>
    %238 = vector.broadcast %237 : vector<1x128xf32> to vector<4x128xf32>
    %239 = arith.mulf %236, %238 : vector<4x128xf32>
    %c0_269 = arith.constant 0 : index
    %c0_270 = arith.constant 0 : index
    %240 = vector.load %arg40[%c0_269, %c0_270] : memref<1x128xf32, #tpu.memory_space<vmem>>, vector<1x128xf32>
    %241 = vector.broadcast %240 : vector<1x128xf32> to vector<4x128xf32>
    %242 = arith.addf %239, %241 : vector<4x128xf32>
    %cst_271 = arith.constant 0.000000e+00 : f32
    %243 = vector.broadcast %cst_271 : f32 to vector<4x128xf32>
    %244 = arith.maximumf %242, %243 : vector<4x128xf32>
    %c1_272 = arith.constant 1 : index
    %c0_273 = arith.constant 0 : index
    %245 = vector.load %arg60[%c1_272, %c0_273] : memref<6x128xf32, #tpu.memory_space<vmem>>, vector<4x128xf32>
    tpu.vector_store %arg60[%c1_272, %c0_273], %244 {strides = array<i32>} : memref<6x128xf32, #tpu.memory_space<vmem>>, vector<4x128xf32>,
    %c0_274 = arith.constant 0 : index
    %c0_275 = arith.constant 0 : index
    %246 = vector.load %arg60[%c0_274, %c0_275] : memref<6x128xf32, #tpu.memory_space<vmem>>, vector<4x128xf32>
    %c1_276 = arith.constant 1 : index
    %c0_277 = arith.constant 0 : index
    %247 = vector.load %arg60[%c1_276, %c0_277] : memref<6x128xf32, #tpu.memory_space<vmem>>, vector<4x128xf32>
    %c2_278 = arith.constant 2 : index
    %c0_279 = arith.constant 0 : index
    %248 = vector.load %arg60[%c2_278, %c0_279] : memref<6x128xf32, #tpu.memory_space<vmem>>, vector<4x128xf32>
    %249 = tpu.concatenate %246, %247, %248 in 1 : vector<4x128xf32>, vector<4x128xf32>, vector<4x128xf32> -> vector<4x384xf32>
    %c0_280 = arith.constant 0 : index
    %c0_281 = arith.constant 0 : index
    %250 = vector.load %arg41[%c0_280, %c0_281] : memref<384x128xf32, #tpu.memory_space<vmem>>, vector<384x128xf32>
    %cst_282 = arith.constant dense<0.000000e+00> : vector<4x128xf32>
    %251 = tpu.matmul %249, %250, %cst_282 {dimension_numbers = #tpu.dot_dimension_numbers<[1], [0], [0], [1], [0, 0, 1, 1], [], []>} : vector<4x384xf32>, vector<384x128xf32>, vector<4x128xf32> -> vector<4x128xf32>
    %c1_283 = arith.constant 1 : index
    %c0_284 = arith.constant 0 : index
    %252 = vector.load %arg59[%c1_283, %c0_284] : memref<6x128xf32, #tpu.memory_space<vmem>>, vector<4x128xf32>
    %c0_285 = arith.constant 0 : index
    %c0_286 = arith.constant 0 : index
    %253 = vector.load %arg42[%c0_285, %c0_286] : memref<128x128xf32, #tpu.memory_space<vmem>>, vector<128x128xf32>
    %cst_287 = arith.constant dense<0.000000e+00> : vector<4x128xf32>
    %254 = tpu.matmul %252, %253, %cst_287 {dimension_numbers = #tpu.dot_dimension_numbers<[1], [0], [0], [1], [0, 0, 1, 1], [], []>} : vector<4x128xf32>, vector<128x128xf32>, vector<4x128xf32> -> vector<4x128xf32>
    %255 = arith.addf %251, %254 : vector<4x128xf32>
    %c0_288 = arith.constant 0 : index
    %c0_289 = arith.constant 0 : index
    %256 = vector.load %arg43[%c0_288, %c0_289] : memref<1x128xf32, #tpu.memory_space<vmem>>, vector<1x128xf32>
    %257 = vector.broadcast %256 : vector<1x128xf32> to vector<4x128xf32>
    %258 = arith.mulf %255, %257 : vector<4x128xf32>
    %c0_290 = arith.constant 0 : index
    %c0_291 = arith.constant 0 : index
    %259 = vector.load %arg44[%c0_290, %c0_291] : memref<1x128xf32, #tpu.memory_space<vmem>>, vector<1x128xf32>
    %260 = vector.broadcast %259 : vector<1x128xf32> to vector<4x128xf32>
    %261 = arith.addf %258, %260 : vector<4x128xf32>
    %cst_292 = arith.constant 0.000000e+00 : f32
    %262 = vector.broadcast %cst_292 : f32 to vector<4x128xf32>
    %263 = arith.maximumf %261, %262 : vector<4x128xf32>
    %c1_293 = arith.constant 1 : index
    %c0_294 = arith.constant 0 : index
    %264 = vector.load %arg60[%c1_293, %c0_294] : memref<6x128xf32, #tpu.memory_space<vmem>>, vector<4x128xf32>
    tpu.vector_store %arg60[%c1_293, %c0_294], %263 {strides = array<i32>} : memref<6x128xf32, #tpu.memory_space<vmem>>, vector<4x128xf32>,
    %cst_295 = arith.constant dense<0xFF800000> : vector<128xf32>
    %265 = vector.multi_reduction <maximumf>, %263, %cst_295 [0] : vector<4x128xf32> to vector<128xf32>
    %266 = vector.shape_cast %265 : vector<128xf32> to vector<1x128xf32>
    %c0_296 = arith.constant 0 : index
    %c0_297 = arith.constant 0 : index
    %267 = vector.load %arg45[%c0_296, %c0_297] : memref<128x64xf32, #tpu.memory_space<vmem>>, vector<128x64xf32>
    %cst_298 = arith.constant dense<0.000000e+00> : vector<1x64xf32>
    %268 = tpu.matmul %266, %267, %cst_298 {dimension_numbers = #tpu.dot_dimension_numbers<[1], [0], [0], [1], [0, 0, 1, 1], [], []>} : vector<1x128xf32>, vector<128x64xf32>, vector<1x64xf32> -> vector<1x64xf32>
    %c0_299 = arith.constant 0 : index
    %c0_300 = arith.constant 0 : index
    %269 = vector.load %arg46[%c0_299, %c0_300] : memref<1x64xf32, #tpu.memory_space<vmem>>, vector<1x64xf32>
    %270 = arith.addf %268, %269 : vector<1x64xf32>
    %cst_301 = arith.constant 0.000000e+00 : f32
    %271 = vector.broadcast %cst_301 : f32 to vector<1x64xf32>
    %272 = arith.maximumf %270, %271 : vector<1x64xf32>
    %c0_302 = arith.constant 0 : index
    %c0_303 = arith.constant 0 : index
    %273 = vector.load %arg47[%c0_302, %c0_303] : memref<64x32xf32, #tpu.memory_space<vmem>>, vector<64x32xf32>
    %cst_304 = arith.constant dense<0.000000e+00> : vector<1x32xf32>
    %274 = tpu.matmul %272, %273, %cst_304 {dimension_numbers = #tpu.dot_dimension_numbers<[1], [0], [0], [1], [0, 0, 1, 1], [], []>} : vector<1x64xf32>, vector<64x32xf32>, vector<1x32xf32> -> vector<1x32xf32>
    %c0_305 = arith.constant 0 : index
    %c0_306 = arith.constant 0 : index
    %275 = vector.load %arg48[%c0_305, %c0_306] : memref<1x32xf32, #tpu.memory_space<vmem>>, vector<1x32xf32>
    %276 = arith.addf %274, %275 : vector<1x32xf32>
    %cst_307 = arith.constant 0.000000e+00 : f32
    %277 = vector.broadcast %cst_307 : f32 to vector<1x32xf32>
    %278 = arith.maximumf %276, %277 : vector<1x32xf32>
    %c0_308 = arith.constant 0 : index
    %c0_309 = arith.constant 0 : index
    %279 = vector.load %arg49[%c0_308, %c0_309] : memref<32x2xf32, #tpu.memory_space<vmem>>, vector<32x2xf32>
    %cst_310 = arith.constant dense<0.000000e+00> : vector<1x2xf32>
    %280 = tpu.matmul %278, %279, %cst_310 {dimension_numbers = #tpu.dot_dimension_numbers<[1], [0], [0], [1], [0, 0, 1, 1], [], []>} : vector<1x32xf32>, vector<32x2xf32>, vector<1x2xf32> -> vector<1x2xf32>
    %c0_311 = arith.constant 0 : index
    %c0_312 = arith.constant 0 : index
    %281 = vector.load %arg50[%c0_311, %c0_312] : memref<1x2xf32, #tpu.memory_space<vmem>>, vector<1x2xf32>
    %282 = arith.addf %280, %281 : vector<1x2xf32>
    %c0_313 = arith.constant 0 : index
    %c0_314 = arith.constant 0 : index
    %c0_315 = arith.constant 0 : index
    %283 = vector.load %arg51[%c0_313, %c0_314, %c0_315] : memref<1x1x2xf32, #tpu.memory_space<vmem>>, vector<1x1x2xf32>
    %284 = vector.shape_cast %283 : vector<1x1x2xf32> to vector<1x2xf32>
    %285 = vector.shape_cast %282 : vector<1x2xf32> to vector<1x1x2xf32>
    tpu.vector_store %arg51[%c0_313, %c0_314, %c0_315], %285 {strides = array<i32>} : memref<1x1x2xf32, #tpu.memory_space<vmem>>, vector<1x1x2xf32>,
    return
  }
  func.func @transform_0(%arg0: i32) -> (i32, i32, i32) {
    %c0_i32 = arith.constant 0 : i32
    %c0_i32_0 = arith.constant 0 : i32
    %c0_i32_1 = arith.constant 0 : i32
    return %arg0, %c0_i32, %c0_i32_0 : i32, i32, i32
  }
  func.func @transform_1(%arg0: i32) -> (i32, i32) {
    %c0_i32 = arith.constant 0 : i32
    %c0_i32_0 = arith.constant 0 : i32
    %c0_i32_1 = arith.constant 0 : i32
    return %c0_i32, %c0_i32_0 : i32, i32
  }
  func.func @transform_2(%arg0: i32) -> (i32, i32) {
    %c0_i32 = arith.constant 0 : i32
    %c0_i32_0 = arith.constant 0 : i32
    %c0_i32_1 = arith.constant 0 : i32
    return %c0_i32, %c0_i32_0 : i32, i32
  }
  func.func @transform_3(%arg0: i32) -> (i32, i32) {
    %c0_i32 = arith.constant 0 : i32
    %c0_i32_0 = arith.constant 0 : i32
    %c0_i32_1 = arith.constant 0 : i32
    return %c0_i32, %c0_i32_0 : i32, i32
  }
  func.func @transform_4(%arg0: i32) -> (i32, i32) {
    %c0_i32 = arith.constant 0 : i32
    %c0_i32_0 = arith.constant 0 : i32
    %c0_i32_1 = arith.constant 0 : i32
    return %c0_i32, %c0_i32_0 : i32, i32
  }
  func.func @transform_5(%arg0: i32) -> (i32, i32) {
    %c0_i32 = arith.constant 0 : i32
    %c0_i32_0 = arith.constant 0 : i32
    %c0_i32_1 = arith.constant 0 : i32
    return %c0_i32, %c0_i32_0 : i32, i32
  }
  func.func @transform_6(%arg0: i32) -> (i32, i32) {
    %c0_i32 = arith.constant 0 : i32
    %c0_i32_0 = arith.constant 0 : i32
    %c0_i32_1 = arith.constant 0 : i32
    return %c0_i32, %c0_i32_0 : i32, i32
  }
  func.func @transform_7(%arg0: i32) -> (i32, i32) {
    %c0_i32 = arith.constant 0 : i32
    %c0_i32_0 = arith.constant 0 : i32
    %c0_i32_1 = arith.constant 0 : i32
    return %c0_i32, %c0_i32_0 : i32, i32
  }
  func.func @transform_8(%arg0: i32) -> (i32, i32) {
    %c0_i32 = arith.constant 0 : i32
    %c0_i32_0 = arith.constant 0 : i32
    %c0_i32_1 = arith.constant 0 : i32
    return %c0_i32, %c0_i32_0 : i32, i32
  }
  func.func @transform_9(%arg0: i32) -> (i32, i32) {
    %c0_i32 = arith.constant 0 : i32
    %c0_i32_0 = arith.constant 0 : i32
    %c0_i32_1 = arith.constant 0 : i32
    return %c0_i32, %c0_i32_0 : i32, i32
  }
  func.func @transform_10(%arg0: i32) -> (i32, i32) {
    %c0_i32 = arith.constant 0 : i32
    %c0_i32_0 = arith.constant 0 : i32
    %c0_i32_1 = arith.constant 0 : i32
    return %c0_i32, %c0_i32_0 : i32, i32
  }
  func.func @transform_11(%arg0: i32) -> (i32, i32) {
    %c0_i32 = arith.constant 0 : i32
    %c0_i32_0 = arith.constant 0 : i32
    %c0_i32_1 = arith.constant 0 : i32
    return %c0_i32, %c0_i32_0 : i32, i32
  }
  func.func @transform_12(%arg0: i32) -> (i32, i32) {
    %c0_i32 = arith.constant 0 : i32
    %c0_i32_0 = arith.constant 0 : i32
    %c0_i32_1 = arith.constant 0 : i32
    return %c0_i32, %c0_i32_0 : i32, i32
  }
  func.func @transform_13(%arg0: i32) -> (i32, i32) {
    %c0_i32 = arith.constant 0 : i32
    %c0_i32_0 = arith.constant 0 : i32
    %c0_i32_1 = arith.constant 0 : i32
    return %c0_i32, %c0_i32_0 : i32, i32
  }
  func.func @transform_14(%arg0: i32) -> (i32, i32) {
    %c0_i32 = arith.constant 0 : i32
    %c0_i32_0 = arith.constant 0 : i32
    %c0_i32_1 = arith.constant 0 : i32
    return %c0_i32, %c0_i32_0 : i32, i32
  }
  func.func @transform_15(%arg0: i32) -> (i32, i32) {
    %c0_i32 = arith.constant 0 : i32
    %c0_i32_0 = arith.constant 0 : i32
    %c0_i32_1 = arith.constant 0 : i32
    return %c0_i32, %c0_i32_0 : i32, i32
  }
  func.func @transform_16(%arg0: i32) -> (i32, i32) {
    %c0_i32 = arith.constant 0 : i32
    %c0_i32_0 = arith.constant 0 : i32
    %c0_i32_1 = arith.constant 0 : i32
    return %c0_i32, %c0_i32_0 : i32, i32
  }
  func.func @transform_17(%arg0: i32) -> (i32, i32) {
    %c0_i32 = arith.constant 0 : i32
    %c0_i32_0 = arith.constant 0 : i32
    %c0_i32_1 = arith.constant 0 : i32
    return %c0_i32, %c0_i32_0 : i32, i32
  }
  func.func @transform_18(%arg0: i32) -> (i32, i32) {
    %c0_i32 = arith.constant 0 : i32
    %c0_i32_0 = arith.constant 0 : i32
    %c0_i32_1 = arith.constant 0 : i32
    return %c0_i32, %c0_i32_0 : i32, i32
  }
  func.func @transform_19(%arg0: i32) -> (i32, i32) {
    %c0_i32 = arith.constant 0 : i32
    %c0_i32_0 = arith.constant 0 : i32
    %c0_i32_1 = arith.constant 0 : i32
    return %c0_i32, %c0_i32_0 : i32, i32
  }
  func.func @transform_20(%arg0: i32) -> (i32, i32) {
    %c0_i32 = arith.constant 0 : i32
    %c0_i32_0 = arith.constant 0 : i32
    %c0_i32_1 = arith.constant 0 : i32
    return %c0_i32, %c0_i32_0 : i32, i32
  }
  func.func @transform_21(%arg0: i32) -> (i32, i32) {
    %c0_i32 = arith.constant 0 : i32
    %c0_i32_0 = arith.constant 0 : i32
    %c0_i32_1 = arith.constant 0 : i32
    return %c0_i32, %c0_i32_0 : i32, i32
  }
  func.func @transform_22(%arg0: i32) -> (i32, i32) {
    %c0_i32 = arith.constant 0 : i32
    %c0_i32_0 = arith.constant 0 : i32
    %c0_i32_1 = arith.constant 0 : i32
    return %c0_i32, %c0_i32_0 : i32, i32
  }
  func.func @transform_23(%arg0: i32) -> (i32, i32) {
    %c0_i32 = arith.constant 0 : i32
    %c0_i32_0 = arith.constant 0 : i32
    %c0_i32_1 = arith.constant 0 : i32
    return %c0_i32, %c0_i32_0 : i32, i32
  }
  func.func @transform_24(%arg0: i32) -> (i32, i32) {
    %c0_i32 = arith.constant 0 : i32
    %c0_i32_0 = arith.constant 0 : i32
    %c0_i32_1 = arith.constant 0 : i32
    return %c0_i32, %c0_i32_0 : i32, i32
  }
  func.func @transform_25(%arg0: i32) -> (i32, i32) {
    %c0_i32 = arith.constant 0 : i32
    %c0_i32_0 = arith.constant 0 : i32
    %c0_i32_1 = arith.constant 0 : i32
    return %c0_i32, %c0_i32_0 : i32, i32
  }
  func.func @transform_26(%arg0: i32) -> (i32, i32) {
    %c0_i32 = arith.constant 0 : i32
    %c0_i32_0 = arith.constant 0 : i32
    %c0_i32_1 = arith.constant 0 : i32
    return %c0_i32, %c0_i32_0 : i32, i32
  }
  func.func @transform_27(%arg0: i32) -> (i32, i32) {
    %c0_i32 = arith.constant 0 : i32
    %c0_i32_0 = arith.constant 0 : i32
    %c0_i32_1 = arith.constant 0 : i32
    return %c0_i32, %c0_i32_0 : i32, i32
  }
  func.func @transform_28(%arg0: i32) -> (i32, i32) {
    %c0_i32 = arith.constant 0 : i32
    %c0_i32_0 = arith.constant 0 : i32
    %c0_i32_1 = arith.constant 0 : i32
    return %c0_i32, %c0_i32_0 : i32, i32
  }
  func.func @transform_29(%arg0: i32) -> (i32, i32) {
    %c0_i32 = arith.constant 0 : i32
    %c0_i32_0 = arith.constant 0 : i32
    %c0_i32_1 = arith.constant 0 : i32
    return %c0_i32, %c0_i32_0 : i32, i32
  }
  func.func @transform_30(%arg0: i32) -> (i32, i32) {
    %c0_i32 = arith.constant 0 : i32
    %c0_i32_0 = arith.constant 0 : i32
    %c0_i32_1 = arith.constant 0 : i32
    return %c0_i32, %c0_i32_0 : i32, i32
  }
  func.func @transform_31(%arg0: i32) -> (i32, i32) {
    %c0_i32 = arith.constant 0 : i32
    %c0_i32_0 = arith.constant 0 : i32
    %c0_i32_1 = arith.constant 0 : i32
    return %c0_i32, %c0_i32_0 : i32, i32
  }
  func.func @transform_32(%arg0: i32) -> (i32, i32) {
    %c0_i32 = arith.constant 0 : i32
    %c0_i32_0 = arith.constant 0 : i32
    %c0_i32_1 = arith.constant 0 : i32
    return %c0_i32, %c0_i32_0 : i32, i32
  }
  func.func @transform_33(%arg0: i32) -> (i32, i32) {
    %c0_i32 = arith.constant 0 : i32
    %c0_i32_0 = arith.constant 0 : i32
    %c0_i32_1 = arith.constant 0 : i32
    return %c0_i32, %c0_i32_0 : i32, i32
  }
  func.func @transform_34(%arg0: i32) -> (i32, i32) {
    %c0_i32 = arith.constant 0 : i32
    %c0_i32_0 = arith.constant 0 : i32
    %c0_i32_1 = arith.constant 0 : i32
    return %c0_i32, %c0_i32_0 : i32, i32
  }
  func.func @transform_35(%arg0: i32) -> (i32, i32) {
    %c0_i32 = arith.constant 0 : i32
    %c0_i32_0 = arith.constant 0 : i32
    %c0_i32_1 = arith.constant 0 : i32
    return %c0_i32, %c0_i32_0 : i32, i32
  }
  func.func @transform_36(%arg0: i32) -> (i32, i32) {
    %c0_i32 = arith.constant 0 : i32
    %c0_i32_0 = arith.constant 0 : i32
    %c0_i32_1 = arith.constant 0 : i32
    return %c0_i32, %c0_i32_0 : i32, i32
  }
  func.func @transform_37(%arg0: i32) -> (i32, i32) {
    %c0_i32 = arith.constant 0 : i32
    %c0_i32_0 = arith.constant 0 : i32
    %c0_i32_1 = arith.constant 0 : i32
    return %c0_i32, %c0_i32_0 : i32, i32
  }
  func.func @transform_38(%arg0: i32) -> (i32, i32) {
    %c0_i32 = arith.constant 0 : i32
    %c0_i32_0 = arith.constant 0 : i32
    %c0_i32_1 = arith.constant 0 : i32
    return %c0_i32, %c0_i32_0 : i32, i32
  }
  func.func @transform_39(%arg0: i32) -> (i32, i32) {
    %c0_i32 = arith.constant 0 : i32
    %c0_i32_0 = arith.constant 0 : i32
    %c0_i32_1 = arith.constant 0 : i32
    return %c0_i32, %c0_i32_0 : i32, i32
  }
  func.func @transform_40(%arg0: i32) -> (i32, i32) {
    %c0_i32 = arith.constant 0 : i32
    %c0_i32_0 = arith.constant 0 : i32
    %c0_i32_1 = arith.constant 0 : i32
    return %c0_i32, %c0_i32_0 : i32, i32
  }
  func.func @transform_41(%arg0: i32) -> (i32, i32) {
    %c0_i32 = arith.constant 0 : i32
    %c0_i32_0 = arith.constant 0 : i32
    %c0_i32_1 = arith.constant 0 : i32
    return %c0_i32, %c0_i32_0 : i32, i32
  }
  func.func @transform_42(%arg0: i32) -> (i32, i32) {
    %c0_i32 = arith.constant 0 : i32
    %c0_i32_0 = arith.constant 0 : i32
    %c0_i32_1 = arith.constant 0 : i32
    return %c0_i32, %c0_i32_0 : i32, i32
  }
  func.func @transform_43(%arg0: i32) -> (i32, i32) {
    %c0_i32 = arith.constant 0 : i32
    %c0_i32_0 = arith.constant 0 : i32
    %c0_i32_1 = arith.constant 0 : i32
    return %c0_i32, %c0_i32_0 : i32, i32
  }
  func.func @transform_44(%arg0: i32) -> (i32, i32) {
    %c0_i32 = arith.constant 0 : i32
    %c0_i32_0 = arith.constant 0 : i32
    %c0_i32_1 = arith.constant 0 : i32
    return %c0_i32, %c0_i32_0 : i32, i32
  }
  func.func @transform_45(%arg0: i32) -> (i32, i32) {
    %c0_i32 = arith.constant 0 : i32
    %c0_i32_0 = arith.constant 0 : i32
    %c0_i32_1 = arith.constant 0 : i32
    return %c0_i32, %c0_i32_0 : i32, i32
  }
  func.func @transform_46(%arg0: i32) -> (i32, i32) {
    %c0_i32 = arith.constant 0 : i32
    %c0_i32_0 = arith.constant 0 : i32
    %c0_i32_1 = arith.constant 0 : i32
    return %c0_i32, %c0_i32_0 : i32, i32
  }
  func.func @transform_47(%arg0: i32) -> (i32, i32) {
    %c0_i32 = arith.constant 0 : i32
    %c0_i32_0 = arith.constant 0 : i32
    %c0_i32_1 = arith.constant 0 : i32
    return %c0_i32, %c0_i32_0 : i32, i32
  }
  func.func @transform_48(%arg0: i32) -> (i32, i32) {
    %c0_i32 = arith.constant 0 : i32
    %c0_i32_0 = arith.constant 0 : i32
    %c0_i32_1 = arith.constant 0 : i32
    return %c0_i32, %c0_i32_0 : i32, i32
  }
  func.func @transform_49(%arg0: i32) -> (i32, i32) {
    %c0_i32 = arith.constant 0 : i32
    %c0_i32_0 = arith.constant 0 : i32
    %c0_i32_1 = arith.constant 0 : i32
    return %c0_i32, %c0_i32_0 : i32, i32
  }
  func.func @transform_50(%arg0: i32) -> (i32, i32, i32) {
    %c0_i32 = arith.constant 0 : i32
    %c0_i32_0 = arith.constant 0 : i32
    %c0_i32_1 = arith.constant 0 : i32
    return %arg0, %c0_i32, %c0_i32_0 : i32, i32, i32
  }
}

</mosaic_0001>

<llo_original>
// kernel: ssdnet1d_forward.1
$region0: #{ssdnet1d_forward.1}
  #allocation0 [shape = 'u32[]', space=smem, size = 0x4, offset = 0x4, fixed_abs, tag = 'smem constant byte address 0x4 - core index']
  #allocation1 [shape = 'u32[144,128]{1,0:T(1,128)}', space=vmem, size = 0x12000, scoped, tag = 'internal scratch']
  #allocation2 [shape = 'f32[1024,16]{1,0:T(8,128)}', space=vmem, size = 0x80000, scoped, tag = 'scratch operand']
  #allocation3 [shape = 'f32[258,16]{1,0:T(8,128)}', space=vmem, size = 0x21000, scoped, tag = 'scratch operand']
  #allocation4 [shape = 'f32[258,32]{1,0:T(8,128)}', space=vmem, size = 0x21000, scoped, tag = 'scratch operand']
  #allocation5 [shape = 'f32[66,32]{1,0:T(8,128)}', space=vmem, size = 0x9000, scoped, tag = 'scratch operand']
  #allocation6 [shape = 'f32[66,64]{1,0:T(8,128)}', space=vmem, size = 0x9000, scoped, tag = 'scratch operand']
  #allocation7 [shape = 'f32[18,64]{1,0:T(8,128)}', space=vmem, size = 0x3000, scoped, tag = 'scratch operand']
  #allocation8 [shape = 'f32[18,128]{1,0:T(8,128)}', space=vmem, size = 0x3000, scoped, tag = 'scratch operand']
  #allocation9 [shape = 'f32[6,128]{1,0:T(8,128)}', space=vmem, size = 0x1000, scoped, tag = 'scratch operand']
  #allocation10 [shape = 'f32[6,128]{1,0:T(8,128)}', space=vmem, size = 0x1000, scoped, tag = 'scratch operand']
  %s0 = inlined_call_operand.smem [shape: u32[51], index: -1, kind: input, shape index: {}]
  %s1 = sld [smem:[%s0]]
  %s2 = scalar_lea.smem %s0, 1
  %s3 = sld [smem:[%s2]]
  %s4 = scalar_lea.smem %s0, 2
  %s5 = sld [smem:[%s4]]
  %s6 = scalar_lea.smem %s0, 3
  %s7 = sld [smem:[%s6]]
  %s8 = scalar_lea.smem %s0, 4
  %s9 = sld [smem:[%s8]]
  %s10 = scalar_lea.smem %s0, 5
  %s11 = sld [smem:[%s10]]
  %s12 = scalar_lea.smem %s0, 6
  %s13 = sld [smem:[%s12]]
  %s14 = scalar_lea.smem %s0, 7
  %s15 = sld [smem:[%s14]]
  %s16 = scalar_lea.smem %s0, 8
  %s17 = sld [smem:[%s16]]
  %s18 = scalar_lea.smem %s0, 9
  %s19 = sld [smem:[%s18]]
  %s20 = scalar_lea.smem %s0, 10
  %s21 = sld [smem:[%s20]]
  %s22 = scalar_lea.smem %s0, 11
  %s23 = sld [smem:[%s22]]
  %s24 = scalar_lea.smem %s0, 12
  %s25 = sld [smem:[%s24]]
  %s26 = scalar_lea.smem %s0, 13
  %s27 = sld [smem:[%s26]]
  %s28 = scalar_lea.smem %s0, 14
  %s29 = sld [smem:[%s28]]
  %s30 = scalar_lea.smem %s0, 15
  %s31 = sld [smem:[%s30]]
  %s32 = scalar_lea.smem %s0, 16
  %s33 = sld [smem:[%s32]]
  %s34 = scalar_lea.smem %s0, 17
  %s35 = sld [smem:[%s34]]
  %s36 = scalar_lea.smem %s0, 18
  %s37 = sld [smem:[%s36]]
  %s38 = scalar_lea.smem %s0, 19
  %s39 = sld [smem:[%s38]]
  %s40 = scalar_lea.smem %s0, 20
  %s41 = sld [smem:[%s40]]
  %s42 = scalar_lea.smem %s0, 21
  %s43 = sld [smem:[%s42]]
  %s44 = scalar_lea.smem %s0, 22
  %s45 = sld [smem:[%s44]]
  %s46 = scalar_lea.smem %s0, 23
  %s47 = sld [smem:[%s46]]
  %s48 = scalar_lea.smem %s0, 24
  %s49 = sld [smem:[%s48]]
  %s50 = scalar_lea.smem %s0, 25
  %s51 = sld [smem:[%s50]]
  %s52 = scalar_lea.smem %s0, 26
  %s53 = sld [smem:[%s52]]
  %s54 = scalar_lea.smem %s0, 27
  %s55 = sld [smem:[%s54]]
  %s56 = scalar_lea.smem %s0, 28
  %s57 = sld [smem:[%s56]]
  %s58 = scalar_lea.smem %s0, 29
  %s59 = sld [smem:[%s58]]
  %s60 = scalar_lea.smem %s0, 30
  %s61 = sld [smem:[%s60]]
  %s62 = scalar_lea.smem %s0, 31
  %s63 = sld [smem:[%s62]]
  %s64 = scalar_lea.smem %s0, 32
  %s65 = sld [smem:[%s64]]
  %s66 = scalar_lea.smem %s0, 33
  %s67 = sld [smem:[%s66]]
  %s68 = scalar_lea.smem %s0, 34
  %s69 = sld [smem:[%s68]]
  %s70 = scalar_lea.smem %s0, 35
  %s71 = sld [smem:[%s70]]
  %s72 = scalar_lea.smem %s0, 36
  %s73 = sld [smem:[%s72]]
  %s74 = scalar_lea.smem %s0, 37
  %s75 = sld [smem:[%s74]]
  %s76 = scalar_lea.smem %s0, 38
  %s77 = sld [smem:[%s76]]
  %s78 = scalar_lea.smem %s0, 39
  %s79 = sld [smem:[%s78]]
  %s80 = scalar_lea.smem %s0, 40
  %s81 = sld [smem:[%s80]]
  %s82 = scalar_lea.smem %s0, 41
  %s83 = sld [smem:[%s82]]
  %s84 = scalar_lea.smem %s0, 42
  %s85 = sld [smem:[%s84]]
  %s86 = scalar_lea.smem %s0, 43
  %s87 = sld [smem:[%s86]]
  %s88 = scalar_lea.smem %s0, 44
  %s89 = sld [smem:[%s88]]
  %s90 = scalar_lea.smem %s0, 45
  %s91 = sld [smem:[%s90]]
  %s92 = scalar_lea.smem %s0, 46
  %s93 = sld [smem:[%s92]]
  %s94 = scalar_lea.smem %s0, 47
  %s95 = sld [smem:[%s94]]
  %s96 = scalar_lea.smem %s0, 48
  %s97 = sld [smem:[%s96]]
  %s98 = scalar_lea.smem %s0, 49
  %s99 = sld [smem:[%s98]]
  %s100 = scalar_lea.smem %s0, 50
  %s101 = sld [smem:[%s100]]
  %s102 = sld [smem:[#allocation0]]
  $region269: #{ssdnet1d_forward.1} parent=0
    _
  %s104 = ssub.s32 1, %s102
  %s105 = scalar_select 0, %s104, %s102
  $region1: #{ssdnet1d_forward.1} parent=0
    #allocation11 [shape = 'u8[512]{0}', space=vmem, size = 0x400, scoped, tag = 'input window, operand 35, single buffered']
    #allocation12 [shape = 's32[2]{0}', space=sflag, size = 0x8, scoped, tag = 'scoped memory for ssdnet1d_forward.1']
    #allocation13 [shape = 's32[2]{0}', space=sflag, size = 0x8, scoped, tag = 'scoped memory for ssdnet1d_forward.1']
    #allocation14 [shape = 'u8[512]{0}', space=vmem, size = 0x400, scoped, tag = 'input window, operand 36, single buffered']
    #allocation15 [shape = 's32[1]{0}', space=sflag, size = 0x4, scoped, tag = 'scoped memory for ssdnet1d_forward.1']
    #allocation16 [shape = 'u8[512]{0}', space=vmem, size = 0x400, scoped, tag = 'input window, operand 38, single buffered']
    #allocation17 [shape = 'u8[512]{0}', space=vmem, size = 0x400, scoped, tag = 'input window, operand 39, single buffered']
    #allocation18 [shape = 's32[1]{0}', space=sflag, size = 0x4, scoped, tag = 'scoped memory for ssdnet1d_forward.1']
    #allocation19 [shape = 'u8[512]{0}', space=vmem, size = 0x400, scoped, tag = 'input window, operand 42, single buffered']
    #allocation20 [shape = 'u8[512]{0}', space=vmem, size = 0x400, scoped, tag = 'input window, operand 43, single buffered']
    #allocation21 [shape = 's32[1]{0}', space=sflag, size = 0x4, scoped, tag = 'scoped memory for ssdnet1d_forward.1']
    #allocation22 [shape = 'u8[512]{0}', space=vmem, size = 0x400, scoped, tag = 'input window, operand 45, single buffered']
    #allocation23 [shape = 'u8[512]{0}', space=vmem, size = 0x400, scoped, tag = 'input window, operand 47, single buffered']
    #allocation24 [shape = 's32[1]{0}', space=sflag, size = 0x4, scoped, tag = 'scoped memory for ssdnet1d_forward.1']
    #allocation25 [shape = 'u8[512]{0}', space=vmem, size = 0x400, scoped, tag = 'input window, operand 49, single buffered']
    #allocation26 [shape = 'u8[1024]{0}', space=vmem, size = 0x400, scoped, tag = 'output window, operand 0']
    %106 = vsyncpa [#allocation12], 0
    %107 = vsyncpa [#allocation15], 0
    %108 = vsyncpa [#allocation18], 0
    %109 = vsyncpa [#allocation21], 0
    %110 = vsyncpa [#allocation24], 0
    %111 = vsyncpa [#allocation13], 0
    %s112 = scalar_lea.sflag [#allocation13], 1
    %113 = vsyncpa %s112, 0
    loop: start=0, step=1, limit=4
    $region2: #{ssdnet1d_forward.1} parent=1 // loop_pre_header
      _
    $region3: #{ssdnet1d_forward.1} parent=1 // loop_header
      %s115 = sphi 0, %s119
      %p116 = scmp.ge.s32.totalorder %s115, 4
      %s125 = sphi 0, %s127
      %s128 = sphi 0, %s125
      %s129 = sphi 0, %s128
      %s145 = sphi 0, %s129
      %s149 = sphi 0, %s149
      %s151 = sphi 0, %s149
      %s152 = sphi 0, %s151
      %s166 = sphi 0, %s152
      %s170 = sphi 0, %s170
      %s172 = sphi 0, %s170
      %s173 = sphi 0, %s172
      %s187 = sphi 0, %s173
      %s191 = sphi 0, %s191
      %s193 = sphi 0, %s191
      %s194 = sphi 0, %s193
      %s208 = sphi 0, %s194
      %s212 = sphi 0, %s212
      %s214 = sphi 0, %s212
      %s215 = sphi 0, %s214
      %s229 = sphi 0, %s215
      %s233 = sphi 0, %s233
      %s235 = sphi 0, %s233
      %s236 = sphi 0, %s235
      %s250 = sphi 0, %s236
      %s254 = sphi 0, %s254
      %s256 = sphi 0, %s254
      %s257 = sphi 0, %s256
      %s271 = sphi 0, %s257
      %s275 = sphi 0, %s275
      %s277 = sphi 0, %s275
      %s278 = sphi 0, %s277
      %s292 = sphi 0, %s278
      %s296 = sphi 0, %s296
      %s298 = sphi 0, %s296
      %s299 = sphi 0, %s298
      %s313 = sphi 0, %s299
      %s317 = sphi 0, %s317
      %s319 = sphi 0, %s317
      %s320 = sphi 0, %s319
      %s334 = sphi 0, %s320
      %s338 = sphi 0, %s338
      %s340 = sphi 0, %s338
      %s341 = sphi 0, %s340
      %s355 = sphi 0, %s341
      %s359 = sphi 0, %s359
      %s361 = sphi 0, %s359
      %s362 = sphi 0, %s361
      %s376 = sphi 0, %s362
      %s380 = sphi 0, %s380
      %s382 = sphi 0, %s380
      %s383 = sphi 0, %s382
      %s397 = sphi 0, %s383
      %s401 = sphi 0, %s401
      %s403 = sphi 0, %s401
      %s404 = sphi 0, %s403
      %s418 = sphi 0, %s404
      %s422 = sphi 0, %s422
      %s424 = sphi 0, %s422
      %s425 = sphi 0, %s424
      %s439 = sphi 0, %s425
      %s443 = sphi 0, %s443
      %s445 = sphi 0, %s443
      %s446 = sphi 0, %s445
      %s460 = sphi 0, %s446
      %s464 = sphi 0, %s464
      %s466 = sphi 0, %s464
      %s467 = sphi 0, %s466
      %s481 = sphi 0, %s467
      %s485 = sphi 0, %s485
      %s487 = sphi 0, %s485
      %s488 = sphi 0, %s487
      %s502 = sphi 0, %s488
      %s506 = sphi 0, %s506
      %s508 = sphi 0, %s506
      %s509 = sphi 0, %s508
      %s523 = sphi 0, %s509
      %s527 = sphi 0, %s527
      %s529 = sphi 0, %s527
      %s530 = sphi 0, %s529
      %s544 = sphi 0, %s530
      %s548 = sphi 0, %s548
      %s550 = sphi 0, %s548
      %s551 = sphi 0, %s550
      %s565 = sphi 0, %s551
      %s569 = sphi 0, %s569
      %s571 = sphi 0, %s569
      %s572 = sphi 0, %s571
      %s586 = sphi 0, %s572
      %s590 = sphi 0, %s590
      %s592 = sphi 0, %s590
      %s593 = sphi 0, %s592
      %s607 = sphi 0, %s593
      %s611 = sphi 0, %s611
      %s613 = sphi 0, %s611
      %s614 = sphi 0, %s613
      %s628 = sphi 0, %s614
      %s632 = sphi 0, %s632
      %s634 = sphi 0, %s632
      %s635 = sphi 0, %s634
      %s649 = sphi 0, %s635
      %s653 = sphi 0, %s653
      %s655 = sphi 0, %s653
      %s656 = sphi 0, %s655
      %s670 = sphi 0, %s656
      %s674 = sphi 0, %s674
      %s676 = sphi 0, %s674
      %s677 = sphi 0, %s676
      %s691 = sphi 0, %s677
      %s695 = sphi 0, %s695
      %s697 = sphi 0, %s695
      %s698 = sphi 0, %s697
      %s712 = sphi 0, %s698
      %s716 = sphi 0, %s716
      %s718 = sphi 0, %s716
      %s719 = sphi 0, %s718
      %s733 = sphi 0, %s719
      %s737 = sphi 0, %s737
      %s739 = sphi 0, %s737
      %s740 = sphi 0, %s739
      %s754 = sphi 0, %s740
      %s758 = sphi 0, %s758
      %s760 = sphi 0, %s758
      %s761 = sphi 0, %s760
      %s775 = sphi 0, %s761
      %s779 = sphi 0, %s779
      %s781 = sphi 0, %s779
      %s782 = sphi 0, %s781
      %s796 = sphi 0, %s782
      %s800 = sphi 0, %s800
      %s802 = sphi 0, %s800
      %s803 = sphi 0, %s802
      %s817 = sphi 0, %s803
      %s821 = sphi 0, %s821
      %s823 = sphi 0, %s821
      %s824 = sphi 0, %s823
      %s838 = sphi 0, %s824
      %s842 = sphi 0, %s842
      %s844 = sphi 0, %s842
      %s845 = sphi 0, %s844
      %s859 = sphi 0, %s845
      %s863 = sphi 0, %s863
      %s865 = sphi 0, %s863
      %s866 = sphi 0, %s865
      %s880 = sphi 0, %s866
      %s884 = sphi 0, %s884
      %s886 = sphi 0, %s884
      %s887 = sphi 0, %s886
      %s901 = sphi 0, %s887
      %s905 = sphi 0, %s905
      %s907 = sphi 0, %s905
      %s908 = sphi 0, %s907
      %s922 = sphi 0, %s908
      %s926 = sphi 0, %s926
      %s928 = sphi 0, %s926
      %s929 = sphi 0, %s928
      %s943 = sphi 0, %s929
      %s947 = sphi 0, %s947
      %s949 = sphi 0, %s947
      %s950 = sphi 0, %s949
      %s964 = sphi 0, %s950
      %s968 = sphi 0, %s968
      %s970 = sphi 0, %s968
      %s971 = sphi 0, %s970
      %s985 = sphi 0, %s971
      %s989 = sphi 0, %s989
      %s991 = sphi 0, %s989
      %s992 = sphi 0, %s991
      %s1006 = sphi 0, %s992
      %s1010 = sphi 0, %s1010
      %s1012 = sphi 0, %s1010
      %s1013 = sphi 0, %s1012
      %s1027 = sphi 0, %s1013
      %s1031 = sphi 0, %s1031
      %s1033 = sphi 0, %s1031
      %s1034 = sphi 0, %s1033
      %s1048 = sphi 0, %s1034
      %s1052 = sphi 0, %s1052
      %s1054 = sphi 0, %s1052
      %s1055 = sphi 0, %s1054
      %s1069 = sphi 0, %s1055
      %s1073 = sphi 0, %s1073
      %s1075 = sphi 0, %s1073
      %s1076 = sphi 0, %s1075
      %s1090 = sphi 0, %s1076
      %s1094 = sphi 0, %s1094
      %s1096 = sphi 0, %s1094
      %s1097 = sphi 0, %s1096
      %s1111 = sphi 0, %s1097
      %s1115 = sphi 0, %s1115
      %s1117 = sphi 0, %s1115
      %s1118 = sphi 0, %s1117
      %s1132 = sphi 0, %s1118
      %s1136 = sphi 0, %s1136
      %s1138 = sphi 0, %s1136
      %s1139 = sphi 0, %s1138
      %s1153 = sphi 0, %s1139
      %s1157 = sphi 0, %s1157
      %s1159 = sphi 0, %s1157
      %s1160 = sphi 0, %s1159
      %s1174 = sphi 0, %s1160
      %s1180 = sphi 0, %s1182
      %s1183 = sphi 0, %s1180
      %s1184 = sphi 0, %s1183
      %s1200 = sphi 0, %s1184
    $region4: #{ssdnet1d_forward.1} parent=1 // loop_header_branch
      %118 = sbr.rel (%p116) target = $region8
    $region5: #{ssdnet1d_forward.1} parent=1 // loop_body
      %s120 = ssub.s32 %s115, 1
      %s121 = ssub.s32 %s115, 2
      %s122 = sadd.s32 %s115, 1
      %s123 = ssub.s32 %s115, %s122
      %p124 = scmp.eq.s32.totalorder %s123, 0
      %s126 = sadd.s32 %s125, 1
      %s127 = scalar_select %p124, %s125, %s126
      %p130 = pneg %p124
      %p131 = scmp.eq.s32.totalorder %s115, 1
      %p132 = por %p130, %p131
      %p133 = scmp.ne.s32.totalorder %s125, %s128
      %p134 = scmp.eq.s32.totalorder %s115, 0
      %p135 = por %p133, %p134
      %p136 = scmp.ne.s32.totalorder %s125, %s128
      %p137 = scmp.eq.s32.totalorder %s120, 1
      %p138 = por %p136, %p137
      %p139 = scmp.ne.s32.totalorder %s128, %s129
      %p140 = scmp.eq.s32.totalorder %s120, 0
      %p141 = por %p139, %p140
      %p142 = scmp.ne.s32.totalorder %s128, %s129
      %p143 = scmp.eq.s32.totalorder %s121, 1
      %p144 = por %p142, %p143
      %p146 = scmp.ne.s32.totalorder %s129, %s145
      %p147 = scmp.eq.s32.totalorder %s121, 0
      %p148 = por %p146, %p147
      %s150 = sadd.s32 %s149, 1
      %p153 = scmp.eq.s32.totalorder %s115, 1
      %p154 = scmp.ne.s32.totalorder %s149, %s151
      %p155 = scmp.eq.s32.totalorder %s115, 0
      %p156 = por %p154, %p155
      %p157 = scmp.ne.s32.totalorder %s149, %s151
      %p158 = scmp.eq.s32.totalorder %s120, 1
      %p159 = por %p157, %p158
      %p160 = scmp.ne.s32.totalorder %s151, %s152
      %p161 = scmp.eq.s32.totalorder %s120, 0
      %p162 = por %p160, %p161
      %p163 = scmp.ne.s32.totalorder %s151, %s152
      %p164 = scmp.eq.s32.totalorder %s121, 1
      %p165 = por %p163, %p164
      %p167 = scmp.ne.s32.totalorder %s152, %s166
      %p168 = scmp.eq.s32.totalorder %s121, 0
      %p169 = por %p167, %p168
      %s171 = sadd.s32 %s170, 1
      %p174 = scmp.eq.s32.totalorder %s115, 1
      %p175 = scmp.ne.s32.totalorder %s170, %s172
      %p176 = scmp.eq.s32.totalorder %s115, 0
      %p177 = por %p175, %p176
      %p178 = scmp.ne.s32.totalorder %s170, %s172
      %p179 = scmp.eq.s32.totalorder %s120, 1
      %p180 = por %p178, %p179
      %p181 = scmp.ne.s32.totalorder %s172, %s173
      %p182 = scmp.eq.s32.totalorder %s120, 0
      %p183 = por %p181, %p182
      %p184 = scmp.ne.s32.totalorder %s172, %s173
      %p185 = scmp.eq.s32.totalorder %s121, 1
      %p186 = por %p184, %p185
      %p188 = scmp.ne.s32.totalorder %s173, %s187
      %p189 = scmp.eq.s32.totalorder %s121, 0
      %p190 = por %p188, %p189
      %s192 = sadd.s32 %s191, 1
      %p195 = scmp.eq.s32.totalorder %s115, 1
      %p196 = scmp.ne.s32.totalorder %s191, %s193
      %p197 = scmp.eq.s32.totalorder %s115, 0
      %p198 = por %p196, %p197
      %p199 = scmp.ne.s32.totalorder %s191, %s193
      %p200 = scmp.eq.s32.totalorder %s120, 1
      %p201 = por %p199, %p200
      %p202 = scmp.ne.s32.totalorder %s193, %s194
      %p203 = scmp.eq.s32.totalorder %s120, 0
      %p204 = por %p202, %p203
      %p205 = scmp.ne.s32.totalorder %s193, %s194
      %p206 = scmp.eq.s32.totalorder %s121, 1
      %p207 = por %p205, %p206
      %p209 = scmp.ne.s32.totalorder %s194, %s208
      %p210 = scmp.eq.s32.totalorder %s121, 0
      %p211 = por %p209, %p210
      %s213 = sadd.s32 %s212, 1
      %p216 = scmp.eq.s32.totalorder %s115, 1
      %p217 = scmp.ne.s32.totalorder %s212, %s214
      %p218 = scmp.eq.s32.totalorder %s115, 0
      %p219 = por %p217, %p218
      %p220 = scmp.ne.s32.totalorder %s212, %s214
      %p221 = scmp.eq.s32.totalorder %s120, 1
      %p222 = por %p220, %p221
      %p223 = scmp.ne.s32.totalorder %s214, %s215
      %p224 = scmp.eq.s32.totalorder %s120, 0
      %p225 = por %p223, %p224
      %p226 = scmp.ne.s32.totalorder %s214, %s215
      %p227 = scmp.eq.s32.totalorder %s121, 1
      %p228 = por %p226, %p227
      %p230 = scmp.ne.s32.totalorder %s215, %s229
      %p231 = scmp.eq.s32.totalorder %s121, 0
      %p232 = por %p230, %p231
      %s234 = sadd.s32 %s233, 1
      %p237 = scmp.eq.s32.totalorder %s115, 1
      %p238 = scmp.ne.s32.totalorder %s233, %s235
      %p239 = scmp.eq.s32.totalorder %s115, 0
      %p240 = por %p238, %p239
      %p241 = scmp.ne.s32.totalorder %s233, %s235
      %p242 = scmp.eq.s32.totalorder %s120, 1
      %p243 = por %p241, %p242
      %p244 = scmp.ne.s32.totalorder %s235, %s236
      %p245 = scmp.eq.s32.totalorder %s120, 0
      %p246 = por %p244, %p245
      %p247 = scmp.ne.s32.totalorder %s235, %s236
      %p248 = scmp.eq.s32.totalorder %s121, 1
      %p249 = por %p247, %p248
      %p251 = scmp.ne.s32.totalorder %s236, %s250
      %p252 = scmp.eq.s32.totalorder %s121, 0
      %p253 = por %p251, %p252
      %s255 = sadd.s32 %s254, 1
      %p258 = scmp.eq.s32.totalorder %s115, 1
      %p259 = scmp.ne.s32.totalorder %s254, %s256
      %p260 = scmp.eq.s32.totalorder %s115, 0
      %p261 = por %p259, %p260
      %p262 = scmp.ne.s32.totalorder %s254, %s256
      %p263 = scmp.eq.s32.totalorder %s120, 1
      %p264 = por %p262, %p263
      %p265 = scmp.ne.s32.totalorder %s256, %s257
      %p266 = scmp.eq.s32.totalorder %s120, 0
      %p267 = por %p265, %p266
      %p268 = scmp.ne.s32.totalorder %s256, %s257
      %p269 = scmp.eq.s32.totalorder %s121, 1
      %p270 = por %p268, %p269
      %p272 = scmp.ne.s32.totalorder %s257, %s271
      %p273 = scmp.eq.s32.totalorder %s121, 0
      %p274 = por %p272, %p273
      %s276 = sadd.s32 %s275, 1
      %p279 = scmp.eq.s32.totalorder %s115, 1
      %p280 = scmp.ne.s32.totalorder %s275, %s277
      %p281 = scmp.eq.s32.totalorder %s115, 0
      %p282 = por %p280, %p281
      %p283 = scmp.ne.s32.totalorder %s275, %s277
      %p284 = scmp.eq.s32.totalorder %s120, 1
      %p285 = por %p283, %p284
      %p286 = scmp.ne.s32.totalorder %s277, %s278
      %p287 = scmp.eq.s32.totalorder %s120, 0
      %p288 = por %p286, %p287
      %p289 = scmp.ne.s32.totalorder %s277, %s278
      %p290 = scmp.eq.s32.totalorder %s121, 1
      %p291 = por %p289, %p290
      %p293 = scmp.ne.s32.totalorder %s278, %s292
      %p294 = scmp.eq.s32.totalorder %s121, 0
      %p295 = por %p293, %p294
      %s297 = sadd.s32 %s296, 1
      %p300 = scmp.eq.s32.totalorder %s115, 1
      %p301 = scmp.ne.s32.totalorder %s296, %s298
      %p302 = scmp.eq.s32.totalorder %s115, 0
      %p303 = por %p301, %p302
      %p304 = scmp.ne.s32.totalorder %s296, %s298
      %p305 = scmp.eq.s32.totalorder %s120, 1
      %p306 = por %p304, %p305
      %p307 = scmp.ne.s32.totalorder %s298, %s299
      %p308 = scmp.eq.s32.totalorder %s120, 0
      %p309 = por %p307, %p308
      %p310 = scmp.ne.s32.totalorder %s298, %s299
      %p311 = scmp.eq.s32.totalorder %s121, 1
      %p312 = por %p310, %p311
      %p314 = scmp.ne.s32.totalorder %s299, %s313
      %p315 = scmp.eq.s32.totalorder %s121, 0
      %p316 = por %p314, %p315
      %s318 = sadd.s32 %s317, 1
      %p321 = scmp.eq.s32.totalorder %s115, 1
      %p322 = scmp.ne.s32.totalorder %s317, %s319
      %p323 = scmp.eq.s32.totalorder %s115, 0
      %p324 = por %p322, %p323
      %p325 = scmp.ne.s32.totalorder %s317, %s319
      %p326 = scmp.eq.s32.totalorder %s120, 1
      %p327 = por %p325, %p326
      %p328 = scmp.ne.s32.totalorder %s319, %s320
      %p329 = scmp.eq.s32.totalorder %s120, 0
      %p330 = por %p328, %p329
      %p331 = scmp.ne.s32.totalorder %s319, %s320
      %p332 = scmp.eq.s32.totalorder %s121, 1
      %p333 = por %p331, %p332
      %p335 = scmp.ne.s32.totalorder %s320, %s334
      %p336 = scmp.eq.s32.totalorder %s121, 0
      %p337 = por %p335, %p336
      %s339 = sadd.s32 %s338, 1
      %p342 = scmp.eq.s32.totalorder %s115, 1
      %p343 = scmp.ne.s32.totalorder %s338, %s340
      %p344 = scmp.eq.s32.totalorder %s115, 0
      %p345 = por %p343, %p344
      %p346 = scmp.ne.s32.totalorder %s338, %s340
      %p347 = scmp.eq.s32.totalorder %s120, 1
      %p348 = por %p346, %p347
      %p349 = scmp.ne.s32.totalorder %s340, %s341
      %p350 = scmp.eq.s32.totalorder %s120, 0
      %p351 = por %p349, %p350
      %p352 = scmp.ne.s32.totalorder %s340, %s341
      %p353 = scmp.eq.s32.totalorder %s121, 1
      %p354 = por %p352, %p353
      %p356 = scmp.ne.s32.totalorder %s341, %s355
      %p357 = scmp.eq.s32.totalorder %s121, 0
      %p358 = por %p356, %p357
      %s360 = sadd.s32 %s359, 1
      %p363 = scmp.eq.s32.totalorder %s115, 1
      %p364 = scmp.ne.s32.totalorder %s359, %s361
      %p365 = scmp.eq.s32.totalorder %s115, 0
      %p366 = por %p364, %p365
      %p367 = scmp.ne.s32.totalorder %s359, %s361
      %p368 = scmp.eq.s32.totalorder %s120, 1
      %p369 = por %p367, %p368
      %p370 = scmp.ne.s32.totalorder %s361, %s362
      %p371 = scmp.eq.s32.totalorder %s120, 0
      %p372 = por %p370, %p371
      %p373 = scmp.ne.s32.totalorder %s361, %s362
      %p374 = scmp.eq.s32.totalorder %s121, 1
      %p375 = por %p373, %p374
      %p377 = scmp.ne.s32.totalorder %s362, %s376
      %p378 = scmp.eq.s32.totalorder %s121, 0
      %p379 = por %p377, %p378
      %s381 = sadd.s32 %s380, 1
      %p384 = scmp.eq.s32.totalorder %s115, 1
      %p385 = scmp.ne.s32.totalorder %s380, %s382
      %p386 = scmp.eq.s32.totalorder %s115, 0
      %p387 = por %p385, %p386
      %p388 = scmp.ne.s32.totalorder %s380, %s382
      %p389 = scmp.eq.s32.totalorder %s120, 1
      %p390 = por %p388, %p389
      %p391 = scmp.ne.s32.totalorder %s382, %s383
      %p392 = scmp.eq.s32.totalorder %s120, 0
      %p393 = por %p391, %p392
      %p394 = scmp.ne.s32.totalorder %s382, %s383
      %p395 = scmp.eq.s32.totalorder %s121, 1
      %p396 = por %p394, %p395
      %p398 = scmp.ne.s32.totalorder %s383, %s397
      %p399 = scmp.eq.s32.totalorder %s121, 0
      %p400 = por %p398, %p399
      %s402 = sadd.s32 %s401, 1
      %p405 = scmp.eq.s32.totalorder %s115, 1
      %p406 = scmp.ne.s32.totalorder %s401, %s403
      %p407 = scmp.eq.s32.totalorder %s115, 0
      %p408 = por %p406, %p407
      %p409 = scmp.ne.s32.totalorder %s401, %s403
      %p410 = scmp.eq.s32.totalorder %s120, 1
      %p411 = por %p409, %p410
      %p412 = scmp.ne.s32.totalorder %s403, %s404
      %p413 = scmp.eq.s32.totalorder %s120, 0
      %p414 = por %p412, %p413
      %p415 = scmp.ne.s32.totalorder %s403, %s404
      %p416 = scmp.eq.s32.totalorder %s121, 1
      %p417 = por %p415, %p416
      %p419 = scmp.ne.s32.totalorder %s404, %s418
      %p420 = scmp.eq.s32.totalorder %s121, 0
      %p421 = por %p419, %p420
      %s423 = sadd.s32 %s422, 1
      %p426 = scmp.eq.s32.totalorder %s115, 1
      %p427 = scmp.ne.s32.totalorder %s422, %s424
      %p428 = scmp.eq.s32.totalorder %s115, 0
      %p429 = por %p427, %p428
      %p430 = scmp.ne.s32.totalorder %s422, %s424
      %p431 = scmp.eq.s32.totalorder %s120, 1
      %p432 = por %p430, %p431
      %p433 = scmp.ne.s32.totalorder %s424, %s425
      %p434 = scmp.eq.s32.totalorder %s120, 0
      %p435 = por %p433, %p434
      %p436 = scmp.ne.s32.totalorder %s424, %s425
      %p437 = scmp.eq.s32.totalorder %s121, 1
      %p438 = por %p436, %p437
      %p440 = scmp.ne.s32.totalorder %s425, %s439
      %p441 = scmp.eq.s32.totalorder %s121, 0
      %p442 = por %p440, %p441
      %s444 = sadd.s32 %s443, 1
      %p447 = scmp.eq.s32.totalorder %s115, 1
      %p448 = scmp.ne.s32.totalorder %s443, %s445
      %p449 = scmp.eq.s32.totalorder %s115, 0
      %p450 = por %p448, %p449
      %p451 = scmp.ne.s32.totalorder %s443, %s445
      %p452 = scmp.eq.s32.totalorder %s120, 1
      %p453 = por %p451, %p452
      %p454 = scmp.ne.s32.totalorder %s445, %s446
      %p455 = scmp.eq.s32.totalorder %s120, 0
      %p456 = por %p454, %p455
      %p457 = scmp.ne.s32.totalorder %s445, %s446
      %p458 = scmp.eq.s32.totalorder %s121, 1
      %p459 = por %p457, %p458
      %p461 = scmp.ne.s32.totalorder %s446, %s460
      %p462 = scmp.eq.s32.totalorder %s121, 0
      %p463 = por %p461, %p462
      %s465 = sadd.s32 %s464, 1
      %p468 = scmp.eq.s32.totalorder %s115, 1
      %p469 = scmp.ne.s32.totalorder %s464, %s466
      %p470 = scmp.eq.s32.totalorder %s115, 0
      %p471 = por %p469, %p470
      %p472 = scmp.ne.s32.totalorder %s464, %s466
      %p473 = scmp.eq.s32.totalorder %s120, 1
      %p474 = por %p472, %p473
      %p475 = scmp.ne.s32.totalorder %s466, %s467
      %p476 = scmp.eq.s32.totalorder %s120, 0
      %p477 = por %p475, %p476
      %p478 = scmp.ne.s32.totalorder %s466, %s467
      %p479 = scmp.eq.s32.totalorder %s121, 1
      %p480 = por %p478, %p479
      %p482 = scmp.ne.s32.totalorder %s467, %s481
      %p483 = scmp.eq.s32.totalorder %s121, 0
      %p484 = por %p482, %p483
      %s486 = sadd.s32 %s485, 1
      %p489 = scmp.eq.s32.totalorder %s115, 1
      %p490 = scmp.ne.s32.totalorder %s485, %s487
      %p491 = scmp.eq.s32.totalorder %s115, 0
      %p492 = por %p490, %p491
      %p493 = scmp.ne.s32.totalorder %s485, %s487
      %p494 = scmp.eq.s32.totalorder %s120, 1
      %p495 = por %p493, %p494
      %p496 = scmp.ne.s32.totalorder %s487, %s488
      %p497 = scmp.eq.s32.totalorder %s120, 0
      %p498 = por %p496, %p497
      %p499 = scmp.ne.s32.totalorder %s487, %s488
      %p500 = scmp.eq.s32.totalorder %s121, 1
      %p501 = por %p499, %p500
      %p503 = scmp.ne.s32.totalorder %s488, %s502
      %p504 = scmp.eq.s32.totalorder %s121, 0
      %p505 = por %p503, %p504
      %s507 = sadd.s32 %s506, 1
      %p510 = scmp.eq.s32.totalorder %s115, 1
      %p511 = scmp.ne.s32.totalorder %s506, %s508
      %p512 = scmp.eq.s32.totalorder %s115, 0
      %p513 = por %p511, %p512
      %p514 = scmp.ne.s32.totalorder %s506, %s508
      %p515 = scmp.eq.s32.totalorder %s120, 1
      %p516 = por %p514, %p515
      %p517 = scmp.ne.s32.totalorder %s508, %s509
      %p518 = scmp.eq.s32.totalorder %s120, 0
      %p519 = por %p517, %p518
      %p520 = scmp.ne.s32.totalorder %s508, %s509
      %p521 = scmp.eq.s32.totalorder %s121, 1
      %p522 = por %p520, %p521
      %p524 = scmp.ne.s32.totalorder %s509, %s523
      %p525 = scmp.eq.s32.totalorder %s121, 0
      %p526 = por %p524, %p525
      %s528 = sadd.s32 %s527, 1
      %p531 = scmp.eq.s32.totalorder %s115, 1
      %p532 = scmp.ne.s32.totalorder %s527, %s529
      %p533 = scmp.eq.s32.totalorder %s115, 0
      %p534 = por %p532, %p533
      %p535 = scmp.ne.s32.totalorder %s527, %s529
      %p536 = scmp.eq.s32.totalorder %s120, 1
      %p537 = por %p535, %p536
      %p538 = scmp.ne.s32.totalorder %s529, %s530
      %p539 = scmp.eq.s32.totalorder %s120, 0
      %p540 = por %p538, %p539
      %p541 = scmp.ne.s32.totalorder %s529, %s530
      %p542 = scmp.eq.s32.totalorder %s121, 1
      %p543 = por %p541, %p542
      %p545 = scmp.ne.s32.totalorder %s530, %s544
      %p546 = scmp.eq.s32.totalorder %s121, 0
      %p547 = por %p545, %p546
      %s549 = sadd.s32 %s548, 1
      %p552 = scmp.eq.s32.totalorder %s115, 1
      %p553 = scmp.ne.s32.totalorder %s548, %s550
      %p554 = scmp.eq.s32.totalorder %s115, 0
      %p555 = por %p553, %p554
      %p556 = scmp.ne.s32.totalorder %s548, %s550
      %p557 = scmp.eq.s32.totalorder %s120, 1
      %p558 = por %p556, %p557
      %p559 = scmp.ne.s32.totalorder %s550, %s551
      %p560 = scmp.eq.s32.totalorder %s120, 0
      %p561 = por %p559, %p560
      %p562 = scmp.ne.s32.totalorder %s550, %s551
      %p563 = scmp.eq.s32.totalorder %s121, 1
      %p564 = por %p562, %p563
      %p566 = scmp.ne.s32.totalorder %s551, %s565
      %p567 = scmp.eq.s32.totalorder %s121, 0
      %p568 = por %p566, %p567
      %s570 = sadd.s32 %s569, 1
      %p573 = scmp.eq.s32.totalorder %s115, 1
      %p574 = scmp.ne.s32.totalorder %s569, %s571
      %p575 = scmp.eq.s32.totalorder %s115, 0
      %p576 = por %p574, %p575
      %p577 = scmp.ne.s32.totalorder %s569, %s571
      %p578 = scmp.eq.s32.totalorder %s120, 1
      %p579 = por %p577, %p578
      %p580 = scmp.ne.s32.totalorder %s571, %s572
      %p581 = scmp.eq.s32.totalorder %s120, 0
      %p582 = por %p580, %p581
      %p583 = scmp.ne.s32.totalorder %s571, %s572
      %p584 = scmp.eq.s32.totalorder %s121, 1
      %p585 = por %p583, %p584
      %p587 = scmp.ne.s32.totalorder %s572, %s586
      %p588 = scmp.eq.s32.totalorder %s121, 0
      %p589 = por %p587, %p588
      %s591 = sadd.s32 %s590, 1
      %p594 = scmp.eq.s32.totalorder %s115, 1
      %p595 = scmp.ne.s32.totalorder %s590, %s592
      %p596 = scmp.eq.s32.totalorder %s115, 0
      %p597 = por %p595, %p596
      %p598 = scmp.ne.s32.totalorder %s590, %s592
      %p599 = scmp.eq.s32.totalorder %s120, 1
      %p600 = por %p598, %p599
      %p601 = scmp.ne.s32.totalorder %s592, %s593
      %p602 = scmp.eq.s32.totalorder %s120, 0
      %p603 = por %p601, %p602
      %p604 = scmp.ne.s32.totalorder %s592, %s593
      %p605 = scmp.eq.s32.totalorder %s121, 1
      %p606 = por %p604, %p605
      %p608 = scmp.ne.s32.totalorder %s593, %s607
      %p609 = scmp.eq.s32.totalorder %s121, 0
      %p610 = por %p608, %p609
      %s612 = sadd.s32 %s611, 1
      %p615 = scmp.eq.s32.totalorder %s115, 1
      %p616 = scmp.ne.s32.totalorder %s611, %s613
      %p617 = scmp.eq.s32.totalorder %s115, 0
      %p618 = por %p616, %p617
      %p619 = scmp.ne.s32.totalorder %s611, %s613
      %p620 = scmp.eq.s32.totalorder %s120, 1
      %p621 = por %p619, %p620
      %p622 = scmp.ne.s32.totalorder %s613, %s614
      %p623 = scmp.eq.s32.totalorder %s120, 0
      %p624 = por %p622, %p623
      %p625 = scmp.ne.s32.totalorder %s613, %s614
      %p626 = scmp.eq.s32.totalorder %s121, 1
      %p627 = por %p625, %p626
      %p629 = scmp.ne.s32.totalorder %s614, %s628
      %p630 = scmp.eq.s32.totalorder %s121, 0
      %p631 = por %p629, %p630
      %s633 = sadd.s32 %s632, 1
      %p636 = scmp.eq.s32.totalorder %s115, 1
      %p637 = scmp.ne.s32.totalorder %s632, %s634
      %p638 = scmp.eq.s32.totalorder %s115, 0
      %p639 = por %p637, %p638
      %p640 = scmp.ne.s32.totalorder %s632, %s634
      %p641 = scmp.eq.s32.totalorder %s120, 1
      %p642 = por %p640, %p641
      %p643 = scmp.ne.s32.totalorder %s634, %s635
      %p644 = scmp.eq.s32.totalorder %s120, 0
      %p645 = por %p643, %p644
      %p646 = scmp.ne.s32.totalorder %s634, %s635
      %p647 = scmp.eq.s32.totalorder %s121, 1
      %p648 = por %p646, %p647
      %p650 = scmp.ne.s32.totalorder %s635, %s649
      %p651 = scmp.eq.s32.totalorder %s121, 0
      %p652 = por %p650, %p651
      %s654 = sadd.s32 %s653, 1
      %p657 = scmp.eq.s32.totalorder %s115, 1
      %p658 = scmp.ne.s32.totalorder %s653, %s655
      %p659 = scmp.eq.s32.totalorder %s115, 0
      %p660 = por %p658, %p659
      %p661 = scmp.ne.s32.totalorder %s653, %s655
      %p662 = scmp.eq.s32.totalorder %s120, 1
      %p663 = por %p661, %p662
      %p664 = scmp.ne.s32.totalorder %s655, %s656
      %p665 = scmp.eq.s32.totalorder %s120, 0
      %p666 = por %p664, %p665
      %p667 = scmp.ne.s32.totalorder %s655, %s656
      %p668 = scmp.eq.s32.totalorder %s121, 1
      %p669 = por %p667, %p668
      %p671 = scmp.ne.s32.totalorder %s656, %s670
      %p672 = scmp.eq.s32.totalorder %s121, 0
      %p673 = por %p671, %p672
      %s675 = sadd.s32 %s674, 1
      %p678 = scmp.eq.s32.totalorder %s115, 1
      %p679 = scmp.ne.s32.totalorder %s674, %s676
      %p680 = scmp.eq.s32.totalorder %s115, 0
      %p681 = por %p679, %p680
      %p682 = scmp.ne.s32.totalorder %s674, %s676
      %p683 = scmp.eq.s32.totalorder %s120, 1
      %p684 = por %p682, %p683
      %p685 = scmp.ne.s32.totalorder %s676, %s677
      %p686 = scmp.eq.s32.totalorder %s120, 0
      %p687 = por %p685, %p686
      %p688 = scmp.ne.s32.totalorder %s676, %s677
      %p689 = scmp.eq.s32.totalorder %s121, 1
      %p690 = por %p688, %p689
      %p692 = scmp.ne.s32.totalorder %s677, %s691
      %p693 = scmp.eq.s32.totalorder %s121, 0
      %p694 = por %p692, %p693
      %s696 = sadd.s32 %s695, 1
      %p699 = scmp.eq.s32.totalorder %s115, 1
      %p700 = scmp.ne.s32.totalorder %s695, %s697
      %p701 = scmp.eq.s32.totalorder %s115, 0
      %p702 = por %p700, %p701
      %p703 = scmp.ne.s32.totalorder %s695, %s697
      %p704 = scmp.eq.s32.totalorder %s120, 1
      %p705 = por %p703, %p704
      %p706 = scmp.ne.s32.totalorder %s697, %s698
      %p707 = scmp.eq.s32.totalorder %s120, 0
      %p708 = por %p706, %p707
      %p709 = scmp.ne.s32.totalorder %s697, %s698
      %p710 = scmp.eq.s32.totalorder %s121, 1
      %p711 = por %p709, %p710
      %p713 = scmp.ne.s32.totalorder %s698, %s712
      %p714 = scmp.eq.s32.totalorder %s121, 0
      %p715 = por %p713, %p714
      %s717 = sadd.s32 %s716, 1
      %p720 = scmp.eq.s32.totalorder %s115, 1
      %p721 = scmp.ne.s32.totalorder %s716, %s718
      %p722 = scmp.eq.s32.totalorder %s115, 0
      %p723 = por %p721, %p722
      %p724 = scmp.ne.s32.totalorder %s716, %s718
      %p725 = scmp.eq.s32.totalorder %s120, 1
      %p726 = por %p724, %p725
      %p727 = scmp.ne.s32.totalorder %s718, %s719
      %p728 = scmp.eq.s32.totalorder %s120, 0
      %p729 = por %p727, %p728
      %p730 = scmp.ne.s32.totalorder %s718, %s719
      %p731 = scmp.eq.s32.totalorder %s121, 1
      %p732 = por %p730, %p731
      %p734 = scmp.ne.s32.totalorder %s719, %s733
      %p735 = scmp.eq.s32.totalorder %s121, 0
      %p736 = por %p734, %p735
      %s738 = sadd.s32 %s737, 1
      %p741 = scmp.eq.s32.totalorder %s115, 1
      %p742 = scmp.ne.s32.totalorder %s737, %s739
      %p743 = scmp.eq.s32.totalorder %s115, 0
      %p744 = por %p742, %p743
      %p745 = scmp.ne.s32.totalorder %s737, %s739
      %p746 = scmp.eq.s32.totalorder %s120, 1
      %p747 = por %p745, %p746
      %p748 = scmp.ne.s32.totalorder %s739, %s740
      %p749 = scmp.eq.s32.totalorder %s120, 0
      %p750 = por %p748, %p749
      %p751 = scmp.ne.s32.totalorder %s739, %s740
      %p752 = scmp.eq.s32.totalorder %s121, 1
      %p753 = por %p751, %p752
      %p755 = scmp.ne.s32.totalorder %s740, %s754
      %p756 = scmp.eq.s32.totalorder %s121, 0
      %p757 = por %p755, %p756
      %s759 = sadd.s32 %s758, 1
      %p762 = scmp.eq.s32.totalorder %s115, 1
      %p763 = scmp.ne.s32.totalorder %s758, %s760
      %p764 = scmp.eq.s32.totalorder %s115, 0
      %p765 = por %p763, %p764
      %p766 = scmp.ne.s32.totalorder %s758, %s760
      %p767 = scmp.eq.s32.totalorder %s120, 1
      %p768 = por %p766, %p767
      %p769 = scmp.ne.s32.totalorder %s760, %s761
      %p770 = scmp.eq.s32.totalorder %s120, 0
      %p771 = por %p769, %p770
      %p772 = scmp.ne.s32.totalorder %s760, %s761
      %p773 = scmp.eq.s32.totalorder %s121, 1
      %p774 = por %p772, %p773
      %p776 = scmp.ne.s32.totalorder %s761, %s775
      %p777 = scmp.eq.s32.totalorder %s121, 0
      %p778 = por %p776, %p777
      %s780 = sadd.s32 %s779, 1
      %p783 = scmp.eq.s32.totalorder %s115, 1
      %p784 = scmp.ne.s32.totalorder %s779, %s781
      %p785 = scmp.eq.s32.totalorder %s115, 0
      %p786 = por %p784, %p785
      %p787 = scmp.ne.s32.totalorder %s779, %s781
      %p788 = scmp.eq.s32.totalorder %s120, 1
      %p789 = por %p787, %p788
      %p790 = scmp.ne.s32.totalorder %s781, %s782
      %p791 = scmp.eq.s32.totalorder %s120, 0
      %p792 = por %p790, %p791
      %p793 = scmp.ne.s32.totalorder %s781, %s782
      %p794 = scmp.eq.s32.totalorder %s121, 1
      %p795 = por %p793, %p794
      %p797 = scmp.ne.s32.totalorder %s782, %s796
      %p798 = scmp.eq.s32.totalorder %s121, 0
      %p799 = por %p797, %p798
      %s801 = sadd.s32 %s800, 1
      %p804 = scmp.eq.s32.totalorder %s115, 1
      %p805 = scmp.ne.s32.totalorder %s800, %s802
      %p806 = scmp.eq.s32.totalorder %s115, 0
      %p807 = por %p805, %p806
      %p808 = scmp.ne.s32.totalorder %s800, %s802
      %p809 = scmp.eq.s32.totalorder %s120, 1
      %p810 = por %p808, %p809
      %p811 = scmp.ne.s32.totalorder %s802, %s803
      %p812 = scmp.eq.s32.totalorder %s120, 0
      %p813 = por %p811, %p812
      %p814 = scmp.ne.s32.totalorder %s802, %s803
      %p815 = scmp.eq.s32.totalorder %s121, 1
      %p816 = por %p814, %p815
      %p818 = scmp.ne.s32.totalorder %s803, %s817
      %p819 = scmp.eq.s32.totalorder %s121, 0
      %p820 = por %p818, %p819
      %s822 = sadd.s32 %s821, 1
      %p825 = scmp.eq.s32.totalorder %s115, 1
      %p826 = scmp.ne.s32.totalorder %s821, %s823
      %p827 = scmp.eq.s32.totalorder %s115, 0
      %p828 = por %p826, %p827
      %p829 = scmp.ne.s32.totalorder %s821, %s823
      %p830 = scmp.eq.s32.totalorder %s120, 1
      %p831 = por %p829, %p830
      %p832 = scmp.ne.s32.totalorder %s823, %s824
      %p833 = scmp.eq.s32.totalorder %s120, 0
      %p834 = por %p832, %p833
      %p835 = scmp.ne.s32.totalorder %s823, %s824
      %p836 = scmp.eq.s32.totalorder %s121, 1
      %p837 = por %p835, %p836
      %p839 = scmp.ne.s32.totalorder %s824, %s838
      %p840 = scmp.eq.s32.totalorder %s121, 0
      %p841 = por %p839, %p840
      %s843 = sadd.s32 %s842, 1
      %p846 = scmp.eq.s32.totalorder %s115, 1
      %p847 = scmp.ne.s32.totalorder %s842, %s844
      %p848 = scmp.eq.s32.totalorder %s115, 0
      %p849 = por %p847, %p848
      %p850 = scmp.ne.s32.totalorder %s842, %s844
      %p851 = scmp.eq.s32.totalorder %s120, 1
      %p852 = por %p850, %p851
      %p853 = scmp.ne.s32.totalorder %s844, %s845
      %p854 = scmp.eq.s32.totalorder %s120, 0
      %p855 = por %p853, %p854
      %p856 = scmp.ne.s32.totalorder %s844, %s845
      %p857 = scmp.eq.s32.totalorder %s121, 1
      %p858 = por %p856, %p857
      %p860 = scmp.ne.s32.totalorder %s845, %s859
      %p861 = scmp.eq.s32.totalorder %s121, 0
      %p862 = por %p860, %p861
      %s864 = sadd.s32 %s863, 1
      %p867 = scmp.eq.s32.totalorder %s115, 1
      %p868 = scmp.ne.s32.totalorder %s863, %s865
      %p869 = scmp.eq.s32.totalorder %s115, 0
      %p870 = por %p868, %p869
      %p871 = scmp.ne.s32.totalorder %s863, %s865
      %p872 = scmp.eq.s32.totalorder %s120, 1
      %p873 = por %p871, %p872
      %p874 = scmp.ne.s32.totalorder %s865, %s866
      %p875 = scmp.eq.s32.totalorder %s120, 0
      %p876 = por %p874, %p875
      %p877 = scmp.ne.s32.totalorder %s865, %s866
      %p878 = scmp.eq.s32.totalorder %s121, 1
      %p879 = por %p877, %p878
      %p881 = scmp.ne.s32.totalorder %s866, %s880
      %p882 = scmp.eq.s32.totalorder %s121, 0
      %p883 = por %p881, %p882
      %s885 = sadd.s32 %s884, 1
      %p888 = scmp.eq.s32.totalorder %s115, 1
      %p889 = scmp.ne.s32.totalorder %s884, %s886
      %p890 = scmp.eq.s32.totalorder %s115, 0
      %p891 = por %p889, %p890
      %p892 = scmp.ne.s32.totalorder %s884, %s886
      %p893 = scmp.eq.s32.totalorder %s120, 1
      %p894 = por %p892, %p893
      %p895 = scmp.ne.s32.totalorder %s886, %s887
      %p896 = scmp.eq.s32.totalorder %s120, 0
      %p897 = por %p895, %p896
      %p898 = scmp.ne.s32.totalorder %s886, %s887
      %p899 = scmp.eq.s32.totalorder %s121, 1
      %p900 = por %p898, %p899
      %p902 = scmp.ne.s32.totalorder %s887, %s901
      %p903 = scmp.eq.s32.totalorder %s121, 0
      %p904 = por %p902, %p903
      %s906 = sadd.s32 %s905, 1
      %p909 = scmp.eq.s32.totalorder %s115, 1
      %p910 = scmp.ne.s32.totalorder %s905, %s907
      %p911 = scmp.eq.s32.totalorder %s115, 0
      %p912 = por %p910, %p911
      %p913 = scmp.ne.s32.totalorder %s905, %s907
      %p914 = scmp.eq.s32.totalorder %s120, 1
      %p915 = por %p913, %p914
      %p916 = scmp.ne.s32.totalorder %s907, %s908
      %p917 = scmp.eq.s32.totalorder %s120, 0
      %p918 = por %p916, %p917
      %p919 = scmp.ne.s32.totalorder %s907, %s908
      %p920 = scmp.eq.s32.totalorder %s121, 1
      %p921 = por %p919, %p920
      %p923 = scmp.ne.s32.totalorder %s908, %s922
      %p924 = scmp.eq.s32.totalorder %s121, 0
      %p925 = por %p923, %p924
      %s927 = sadd.s32 %s926, 1
      %p930 = scmp.eq.s32.totalorder %s115, 1
      %p931 = scmp.ne.s32.totalorder %s926, %s928
      %p932 = scmp.eq.s32.totalorder %s115, 0
      %p933 = por %p931, %p932
      %p934 = scmp.ne.s32.totalorder %s926, %s928
      %p935 = scmp.eq.s32.totalorder %s120, 1
      %p936 = por %p934, %p935
      %p937 = scmp.ne.s32.totalorder %s928, %s929
      %p938 = scmp.eq.s32.totalorder %s120, 0
      %p939 = por %p937, %p938
      %p940 = scmp.ne.s32.totalorder %s928, %s929
      %p941 = scmp.eq.s32.totalorder %s121, 1
      %p942 = por %p940, %p941
      %p944 = scmp.ne.s32.totalorder %s929, %s943
      %p945 = scmp.eq.s32.totalorder %s121, 0
      %p946 = por %p944, %p945
      %s948 = sadd.s32 %s947, 1
      %p951 = scmp.eq.s32.totalorder %s115, 1
      %p952 = scmp.ne.s32.totalorder %s947, %s949
      %p953 = scmp.eq.s32.totalorder %s115, 0
      %p954 = por %p952, %p953
      %p955 = scmp.ne.s32.totalorder %s947, %s949
      %p956 = scmp.eq.s32.totalorder %s120, 1
      %p957 = por %p955, %p956
      %p958 = scmp.ne.s32.totalorder %s949, %s950
      %p959 = scmp.eq.s32.totalorder %s120, 0
      %p960 = por %p958, %p959
      %p961 = scmp.ne.s32.totalorder %s949, %s950
      %p962 = scmp.eq.s32.totalorder %s121, 1
      %p963 = por %p961, %p962
      %p965 = scmp.ne.s32.totalorder %s950, %s964
      %p966 = scmp.eq.s32.totalorder %s121, 0
      %p967 = por %p965, %p966
      %s969 = sadd.s32 %s968, 1
      %p972 = scmp.eq.s32.totalorder %s115, 1
      %p973 = scmp.ne.s32.totalorder %s968, %s970
      %p974 = scmp.eq.s32.totalorder %s115, 0
      %p975 = por %p973, %p974
      %p976 = scmp.ne.s32.totalorder %s968, %s970
      %p977 = scmp.eq.s32.totalorder %s120, 1
      %p978 = por %p976, %p977
      %p979 = scmp.ne.s32.totalorder %s970, %s971
      %p980 = scmp.eq.s32.totalorder %s120, 0
      %p981 = por %p979, %p980
      %p982 = scmp.ne.s32.totalorder %s970, %s971
      %p983 = scmp.eq.s32.totalorder %s121, 1
      %p984 = por %p982, %p983
      %p986 = scmp.ne.s32.totalorder %s971, %s985
      %p987 = scmp.eq.s32.totalorder %s121, 0
      %p988 = por %p986, %p987
      %s990 = sadd.s32 %s989, 1
      %p993 = scmp.eq.s32.totalorder %s115, 1
      %p994 = scmp.ne.s32.totalorder %s989, %s991
      %p995 = scmp.eq.s32.totalorder %s115, 0
      %p996 = por %p994, %p995
      %p997 = scmp.ne.s32.totalorder %s989, %s991
      %p998 = scmp.eq.s32.totalorder %s120, 1
      %p999 = por %p997, %p998
      %p1000 = scmp.ne.s32.totalorder %s991, %s992
      %p1001 = scmp.eq.s32.totalorder %s120, 0
      %p1002 = por %p1000, %p1001
      %p1003 = scmp.ne.s32.totalorder %s991, %s992
      %p1004 = scmp.eq.s32.totalorder %s121, 1
      %p1005 = por %p1003, %p1004
      %p1007 = scmp.ne.s32.totalorder %s992, %s1006
      %p1008 = scmp.eq.s32.totalorder %s121, 0
      %p1009 = por %p1007, %p1008
      %s1011 = sadd.s32 %s1010, 1
      %p1014 = scmp.eq.s32.totalorder %s115, 1
      %p1015 = scmp.ne.s32.totalorder %s1010, %s1012
      %p1016 = scmp.eq.s32.totalorder %s115, 0
      %p1017 = por %p1015, %p1016
      %p1018 = scmp.ne.s32.totalorder %s1010, %s1012
      %p1019 = scmp.eq.s32.totalorder %s120, 1
      %p1020 = por %p1018, %p1019
      %p1021 = scmp.ne.s32.totalorder %s1012, %s1013
      %p1022 = scmp.eq.s32.totalorder %s120, 0
      %p1023 = por %p1021, %p1022
      %p1024 = scmp.ne.s32.totalorder %s1012, %s1013
      %p1025 = scmp.eq.s32.totalorder %s121, 1
      %p1026 = por %p1024, %p1025
      %p1028 = scmp.ne.s32.totalorder %s1013, %s1027
      %p1029 = scmp.eq.s32.totalorder %s121, 0
      %p1030 = por %p1028, %p1029
      %s1032 = sadd.s32 %s1031, 1
      %p1035 = scmp.eq.s32.totalorder %s115, 1
      %p1036 = scmp.ne.s32.totalorder %s1031, %s1033
      %p1037 = scmp.eq.s32.totalorder %s115, 0
      %p1038 = por %p1036, %p1037
      %p1039 = scmp.ne.s32.totalorder %s1031, %s1033
      %p1040 = scmp.eq.s32.totalorder %s120, 1
      %p1041 = por %p1039, %p1040
      %p1042 = scmp.ne.s32.totalorder %s1033, %s1034
      %p1043 = scmp.eq.s32.totalorder %s120, 0
      %p1044 = por %p1042, %p1043
      %p1045 = scmp.ne.s32.totalorder %s1033, %s1034
      %p1046 = scmp.eq.s32.totalorder %s121, 1
      %p1047 = por %p1045, %p1046
      %p1049 = scmp.ne.s32.totalorder %s1034, %s1048
      %p1050 = scmp.eq.s32.totalorder %s121, 0
      %p1051 = por %p1049, %p1050
      %s1053 = sadd.s32 %s1052, 1
      %p1056 = scmp.eq.s32.totalorder %s115, 1
      %p1057 = scmp.ne.s32.totalorder %s1052, %s1054
      %p1058 = scmp.eq.s32.totalorder %s115, 0
      %p1059 = por %p1057, %p1058
      %p1060 = scmp.ne.s32.totalorder %s1052, %s1054
      %p1061 = scmp.eq.s32.totalorder %s120, 1
      %p1062 = por %p1060, %p1061
      %p1063 = scmp.ne.s32.totalorder %s1054, %s1055
      %p1064 = scmp.eq.s32.totalorder %s120, 0
      %p1065 = por %p1063, %p1064
      %p1066 = scmp.ne.s32.totalorder %s1054, %s1055
      %p1067 = scmp.eq.s32.totalorder %s121, 1
      %p1068 = por %p1066, %p1067
      %p1070 = scmp.ne.s32.totalorder %s1055, %s1069
      %p1071 = scmp.eq.s32.totalorder %s121, 0
      %p1072 = por %p1070, %p1071
      %s1074 = sadd.s32 %s1073, 1
      %p1077 = scmp.eq.s32.totalorder %s115, 1
      %p1078 = scmp.ne.s32.totalorder %s1073, %s1075
      %p1079 = scmp.eq.s32.totalorder %s115, 0
      %p1080 = por %p1078, %p1079
      %p1081 = scmp.ne.s32.totalorder %s1073, %s1075
      %p1082 = scmp.eq.s32.totalorder %s120, 1
      %p1083 = por %p1081, %p1082
      %p1084 = scmp.ne.s32.totalorder %s1075, %s1076
      %p1085 = scmp.eq.s32.totalorder %s120, 0
      %p1086 = por %p1084, %p1085
      %p1087 = scmp.ne.s32.totalorder %s1075, %s1076
      %p1088 = scmp.eq.s32.totalorder %s121, 1
      %p1089 = por %p1087, %p1088
      %p1091 = scmp.ne.s32.totalorder %s1076, %s1090
      %p1092 = scmp.eq.s32.totalorder %s121, 0
      %p1093 = por %p1091, %p1092
      %s1095 = sadd.s32 %s1094, 1
      %p1098 = scmp.eq.s32.totalorder %s115, 1
      %p1099 = scmp.ne.s32.totalorder %s1094, %s1096
      %p1100 = scmp.eq.s32.totalorder %s115, 0
      %p1101 = por %p1099, %p1100
      %p1102 = scmp.ne.s32.totalorder %s1094, %s1096
      %p1103 = scmp.eq.s32.totalorder %s120, 1
      %p1104 = por %p1102, %p1103
      %p1105 = scmp.ne.s32.totalorder %s1096, %s1097
      %p1106 = scmp.eq.s32.totalorder %s120, 0
      %p1107 = por %p1105, %p1106
      %p1108 = scmp.ne.s32.totalorder %s1096, %s1097
      %p1109 = scmp.eq.s32.totalorder %s121, 1
      %p1110 = por %p1108, %p1109
      %p1112 = scmp.ne.s32.totalorder %s1097, %s1111
      %p1113 = scmp.eq.s32.totalorder %s121, 0
      %p1114 = por %p1112, %p1113
      %s1116 = sadd.s32 %s1115, 1
      %p1119 = scmp.eq.s32.totalorder %s115, 1
      %p1120 = scmp.ne.s32.totalorder %s1115, %s1117
      %p1121 = scmp.eq.s32.totalorder %s115, 0
      %p1122 = por %p1120, %p1121
      %p1123 = scmp.ne.s32.totalorder %s1115, %s1117
      %p1124 = scmp.eq.s32.totalorder %s120, 1
      %p1125 = por %p1123, %p1124
      %p1126 = scmp.ne.s32.totalorder %s1117, %s1118
      %p1127 = scmp.eq.s32.totalorder %s120, 0
      %p1128 = por %p1126, %p1127
      %p1129 = scmp.ne.s32.totalorder %s1117, %s1118
      %p1130 = scmp.eq.s32.totalorder %s121, 1
      %p1131 = por %p1129, %p1130
      %p1133 = scmp.ne.s32.totalorder %s1118, %s1132
      %p1134 = scmp.eq.s32.totalorder %s121, 0
      %p1135 = por %p1133, %p1134
      %s1137 = sadd.s32 %s1136, 1
      %p1140 = scmp.eq.s32.totalorder %s115, 1
      %p1141 = scmp.ne.s32.totalorder %s1136, %s1138
      %p1142 = scmp.eq.s32.totalorder %s115, 0
      %p1143 = por %p1141, %p1142
      %p1144 = scmp.ne.s32.totalorder %s1136, %s1138
      %p1145 = scmp.eq.s32.totalorder %s120, 1
      %p1146 = por %p1144, %p1145
      %p1147 = scmp.ne.s32.totalorder %s1138, %s1139
      %p1148 = scmp.eq.s32.totalorder %s120, 0
      %p1149 = por %p1147, %p1148
      %p1150 = scmp.ne.s32.totalorder %s1138, %s1139
      %p1151 = scmp.eq.s32.totalorder %s121, 1
      %p1152 = por %p1150, %p1151
      %p1154 = scmp.ne.s32.totalorder %s1139, %s1153
      %p1155 = scmp.eq.s32.totalorder %s121, 0
      %p1156 = por %p1154, %p1155
      %s1158 = sadd.s32 %s1157, 1
      %p1161 = scmp.eq.s32.totalorder %s115, 1
      %p1162 = scmp.ne.s32.totalorder %s1157, %s1159
      %p1163 = scmp.eq.s32.totalorder %s115, 0
      %p1164 = por %p1162, %p1163
      %p1165 = scmp.ne.s32.totalorder %s1157, %s1159
      %p1166 = scmp.eq.s32.totalorder %s120, 1
      %p1167 = por %p1165, %p1166
      %p1168 = scmp.ne.s32.totalorder %s1159, %s1160
      %p1169 = scmp.eq.s32.totalorder %s120, 0
      %p1170 = por %p1168, %p1169
      %p1171 = scmp.ne.s32.totalorder %s1159, %s1160
      %p1172 = scmp.eq.s32.totalorder %s121, 1
      %p1173 = por %p1171, %p1172
      %p1175 = scmp.ne.s32.totalorder %s1160, %s1174
      %p1176 = scmp.eq.s32.totalorder %s121, 0
      %p1177 = por %p1175, %p1176
      %s1178 = ssub.s32 %s115, %s122
      %p1179 = scmp.eq.s32.totalorder %s1178, 0
      %s1181 = sadd.s32 %s1180, 1
      %s1182 = scalar_select %p1179, %s1180, %s1181
      %p1185 = pneg %p1179
      %p1186 = scmp.eq.s32.totalorder %s115, 1
      %p1187 = por %p1185, %p1186
      %p1188 = scmp.ne.s32.totalorder %s1180, %s1183
      %p1189 = scmp.eq.s32.totalorder %s115, 0
      %p1190 = por %p1188, %p1189
      %p1191 = scmp.ne.s32.totalorder %s1180, %s1183
      %p1192 = scmp.eq.s32.totalorder %s120, 1
      %p1193 = por %p1191, %p1192
      %p1194 = scmp.ne.s32.totalorder %s1183, %s1184
      %p1195 = scmp.eq.s32.totalorder %s120, 0
      %p1196 = por %p1194, %p1195
      %p1197 = scmp.ne.s32.totalorder %s1183, %s1184
      %p1198 = scmp.eq.s32.totalorder %s121, 1
      %p1199 = por %p1197, %p1198
      %p1201 = scmp.ne.s32.totalorder %s1184, %s1200
      %p1202 = scmp.eq.s32.totalorder %s121, 0
      %p1203 = por %p1201, %p1202
      %p1204 = scmp.le.s32.totalorder 1, %s115
      %p1205 = scmp.lt.s32.totalorder %s115, 3
      %p1206 = pnand %p1204, %p1205
      %p1207 = pneg %p1206
      // Predicated region
      $region9: #{ssdnet1d_forward.1} parent=5 // pred_check
        _
      $region10: #{ssdnet1d_forward.1} parent=5 // pred_check_branch
        %1209 = sbr.rel (%p1206) target = $region12
      $region11: #{ssdnet1d_forward.1} parent=5 // pred_region
        %s1210 = ssub.s32 %s115, 1
        // Predicated region
        $region13: #{ssdnet1d_forward.1} parent=11 // pred_check
          %p1211 = pneg %p162
        $region14: #{ssdnet1d_forward.1} parent=11 // pred_check_branch
          %1213 = sbr.rel (%p1211) target = $region16
        $region15: #{ssdnet1d_forward.1} parent=11 // pred_region
          _
        $region16: #{ssdnet1d_forward.1} parent=11 // pred_fallthru
          _
        // Predicated region
        $region17: #{ssdnet1d_forward.1} parent=11 // pred_check
          %p1214 = pneg %p183
        $region18: #{ssdnet1d_forward.1} parent=11 // pred_check_branch
          %1216 = sbr.rel (%p1214) target = $region20
        $region19: #{ssdnet1d_forward.1} parent=11 // pred_region
          _
        $region20: #{ssdnet1d_forward.1} parent=11 // pred_fallthru
          _
        // Predicated region
        $region21: #{ssdnet1d_forward.1} parent=11 // pred_check
          %p1217 = pneg %p204
        $region22: #{ssdnet1d_forward.1} parent=11 // pred_check_branch
          %1219 = sbr.rel (%p1217) target = $region24
        $region23: #{ssdnet1d_forward.1} parent=11 // pred_region
          _
        $region24: #{ssdnet1d_forward.1} parent=11 // pred_fallthru
          _
        // Predicated region
        $region25: #{ssdnet1d_forward.1} parent=11 // pred_check
          %p1220 = pneg %p225
        $region26: #{ssdnet1d_forward.1} parent=11 // pred_check_branch
          %1222 = sbr.rel (%p1220) target = $region28
        $region27: #{ssdnet1d_forward.1} parent=11 // pred_region
          _
        $region28: #{ssdnet1d_forward.1} parent=11 // pred_fallthru
          _
        // Predicated region
        $region29: #{ssdnet1d_forward.1} parent=11 // pred_check
          %p1223 = pneg %p246
        $region30: #{ssdnet1d_forward.1} parent=11 // pred_check_branch
          %1225 = sbr.rel (%p1223) target = $region32
        $region31: #{ssdnet1d_forward.1} parent=11 // pred_region
          _
        $region32: #{ssdnet1d_forward.1} parent=11 // pred_fallthru
          _
        // Predicated region
        $region33: #{ssdnet1d_forward.1} parent=11 // pred_check
          %p1226 = pneg %p267
        $region34: #{ssdnet1d_forward.1} parent=11 // pred_check_branch
          %1228 = sbr.rel (%p1226) target = $region36
        $region35: #{ssdnet1d_forward.1} parent=11 // pred_region
          _
        $region36: #{ssdnet1d_forward.1} parent=11 // pred_fallthru
          _
        // Predicated region
        $region37: #{ssdnet1d_forward.1} parent=11 // pred_check
          %p1229 = pneg %p288
        $region38: #{ssdnet1d_forward.1} parent=11 // pred_check_branch
          %1231 = sbr.rel (%p1229) target = $region40
        $region39: #{ssdnet1d_forward.1} parent=11 // pred_region
          _
        $region40: #{ssdnet1d_forward.1} parent=11 // pred_fallthru
          _
        // Predicated region
        $region41: #{ssdnet1d_forward.1} parent=11 // pred_check
          %p1232 = pneg %p309
        $region42: #{ssdnet1d_forward.1} parent=11 // pred_check_branch
          %1234 = sbr.rel (%p1232) target = $region44
        $region43: #{ssdnet1d_forward.1} parent=11 // pred_region
          _
        $region44: #{ssdnet1d_forward.1} parent=11 // pred_fallthru
          _
        // Predicated region
        $region45: #{ssdnet1d_forward.1} parent=11 // pred_check
          %p1235 = pneg %p330
        $region46: #{ssdnet1d_forward.1} parent=11 // pred_check_branch
          %1237 = sbr.rel (%p1235) target = $region48
        $region47: #{ssdnet1d_forward.1} parent=11 // pred_region
          _
        $region48: #{ssdnet1d_forward.1} parent=11 // pred_fallthru
          _
        // Predicated region
        $region49: #{ssdnet1d_forward.1} parent=11 // pred_check
          %p1238 = pneg %p351
        $region50: #{ssdnet1d_forward.1} parent=11 // pred_check_branch
          %1240 = sbr.rel (%p1238) target = $region52
        $region51: #{ssdnet1d_forward.1} parent=11 // pred_region
          _
        $region52: #{ssdnet1d_forward.1} parent=11 // pred_fallthru
          _
        // Predicated region
        $region53: #{ssdnet1d_forward.1} parent=11 // pred_check
          %p1241 = pneg %p372
        $region54: #{ssdnet1d_forward.1} parent=11 // pred_check_branch
          %1243 = sbr.rel (%p1241) target = $region56
        $region55: #{ssdnet1d_forward.1} parent=11 // pred_region
          _
        $region56: #{ssdnet1d_forward.1} parent=11 // pred_fallthru
          _
        // Predicated region
        $region57: #{ssdnet1d_forward.1} parent=11 // pred_check
          %p1244 = pneg %p393
        $region58: #{ssdnet1d_forward.1} parent=11 // pred_check_branch
          %1246 = sbr.rel (%p1244) target = $region60
        $region59: #{ssdnet1d_forward.1} parent=11 // pred_region
          _
        $region60: #{ssdnet1d_forward.1} parent=11 // pred_fallthru
          _
        // Predicated region
        $region61: #{ssdnet1d_forward.1} parent=11 // pred_check
          %p1247 = pneg %p414
        $region62: #{ssdnet1d_forward.1} parent=11 // pred_check_branch
          %1249 = sbr.rel (%p1247) target = $region64
        $region63: #{ssdnet1d_forward.1} parent=11 // pred_region
          _
        $region64: #{ssdnet1d_forward.1} parent=11 // pred_fallthru
          _
        // Predicated region
        $region65: #{ssdnet1d_forward.1} parent=11 // pred_check
          %p1250 = pneg %p435
        $region66: #{ssdnet1d_forward.1} parent=11 // pred_check_branch
          %1252 = sbr.rel (%p1250) target = $region68
        $region67: #{ssdnet1d_forward.1} parent=11 // pred_region
          _
        $region68: #{ssdnet1d_forward.1} parent=11 // pred_fallthru
          _
        // Predicated region
        $region69: #{ssdnet1d_forward.1} parent=11 // pred_check
          %p1253 = pneg %p456
        $region70: #{ssdnet1d_forward.1} parent=11 // pred_check_branch
          %1255 = sbr.rel (%p1253) target = $region72
        $region71: #{ssdnet1d_forward.1} parent=11 // pred_region
          _
        $region72: #{ssdnet1d_forward.1} parent=11 // pred_fallthru
          _
        // Predicated region
        $region73: #{ssdnet1d_forward.1} parent=11 // pred_check
          %p1256 = pneg %p477
        $region74: #{ssdnet1d_forward.1} parent=11 // pred_check_branch
          %1258 = sbr.rel (%p1256) target = $region76
        $region75: #{ssdnet1d_forward.1} parent=11 // pred_region
          _
        $region76: #{ssdnet1d_forward.1} parent=11 // pred_fallthru
          _
        // Predicated region
        $region77: #{ssdnet1d_forward.1} parent=11 // pred_check
          %p1259 = pneg %p498
        $region78: #{ssdnet1d_forward.1} parent=11 // pred_check_branch
          %1261 = sbr.rel (%p1259) target = $region80
        $region79: #{ssdnet1d_forward.1} parent=11 // pred_region
          _
        $region80: #{ssdnet1d_forward.1} parent=11 // pred_fallthru
          _
        // Predicated region
        $region81: #{ssdnet1d_forward.1} parent=11 // pred_check
          %p1262 = pneg %p519
        $region82: #{ssdnet1d_forward.1} parent=11 // pred_check_branch
          %1264 = sbr.rel (%p1262) target = $region84
        $region83: #{ssdnet1d_forward.1} parent=11 // pred_region
          _
        $region84: #{ssdnet1d_forward.1} parent=11 // pred_fallthru
          _
        // Predicated region
        $region85: #{ssdnet1d_forward.1} parent=11 // pred_check
          %p1265 = pneg %p540
        $region86: #{ssdnet1d_forward.1} parent=11 // pred_check_branch
          %1267 = sbr.rel (%p1265) target = $region88
        $region87: #{ssdnet1d_forward.1} parent=11 // pred_region
          _
        $region88: #{ssdnet1d_forward.1} parent=11 // pred_fallthru
          _
        // Predicated region
        $region89: #{ssdnet1d_forward.1} parent=11 // pred_check
          %p1268 = pneg %p561
        $region90: #{ssdnet1d_forward.1} parent=11 // pred_check_branch
          %1270 = sbr.rel (%p1268) target = $region92
        $region91: #{ssdnet1d_forward.1} parent=11 // pred_region
          _
        $region92: #{ssdnet1d_forward.1} parent=11 // pred_fallthru
          _
        // Predicated region
        $region93: #{ssdnet1d_forward.1} parent=11 // pred_check
          %p1271 = pneg %p582
        $region94: #{ssdnet1d_forward.1} parent=11 // pred_check_branch
          %1273 = sbr.rel (%p1271) target = $region96
        $region95: #{ssdnet1d_forward.1} parent=11 // pred_region
          _
        $region96: #{ssdnet1d_forward.1} parent=11 // pred_fallthru
          _
        // Predicated region
        $region97: #{ssdnet1d_forward.1} parent=11 // pred_check
          %p1274 = pneg %p603
        $region98: #{ssdnet1d_forward.1} parent=11 // pred_check_branch
          %1276 = sbr.rel (%p1274) target = $region100
        $region99: #{ssdnet1d_forward.1} parent=11 // pred_region
          _
        $region100: #{ssdnet1d_forward.1} parent=11 // pred_fallthru
          _
        // Predicated region
        $region101: #{ssdnet1d_forward.1} parent=11 // pred_check
          %p1277 = pneg %p624
        $region102: #{ssdnet1d_forward.1} parent=11 // pred_check_branch
          %1279 = sbr.rel (%p1277) target = $region104
        $region103: #{ssdnet1d_forward.1} parent=11 // pred_region
          _
        $region104: #{ssdnet1d_forward.1} parent=11 // pred_fallthru
          _
        // Predicated region
        $region105: #{ssdnet1d_forward.1} parent=11 // pred_check
          %p1280 = pneg %p645
        $region106: #{ssdnet1d_forward.1} parent=11 // pred_check_branch
          %1282 = sbr.rel (%p1280) target = $region108
        $region107: #{ssdnet1d_forward.1} parent=11 // pred_region
          _
        $region108: #{ssdnet1d_forward.1} parent=11 // pred_fallthru
          _
        // Predicated region
        $region109: #{ssdnet1d_forward.1} parent=11 // pred_check
          %p1283 = pneg %p666
        $region110: #{ssdnet1d_forward.1} parent=11 // pred_check_branch
          %1285 = sbr.rel (%p1283) target = $region112
        $region111: #{ssdnet1d_forward.1} parent=11 // pred_region
          _
        $region112: #{ssdnet1d_forward.1} parent=11 // pred_fallthru
          _
        // Predicated region
        $region113: #{ssdnet1d_forward.1} parent=11 // pred_check
          %p1286 = pneg %p687
        $region114: #{ssdnet1d_forward.1} parent=11 // pred_check_branch
          %1288 = sbr.rel (%p1286) target = $region116
        $region115: #{ssdnet1d_forward.1} parent=11 // pred_region
          _
        $region116: #{ssdnet1d_forward.1} parent=11 // pred_fallthru
          _
        // Predicated region
        $region117: #{ssdnet1d_forward.1} parent=11 // pred_check
          %p1289 = pneg %p708
        $region118: #{ssdnet1d_forward.1} parent=11 // pred_check_branch
          %1291 = sbr.rel (%p1289) target = $region120
        $region119: #{ssdnet1d_forward.1} parent=11 // pred_region
          _
        $region120: #{ssdnet1d_forward.1} parent=11 // pred_fallthru
          _
        // Predicated region
        $region121: #{ssdnet1d_forward.1} parent=11 // pred_check
          %p1292 = pneg %p729
        $region122: #{ssdnet1d_forward.1} parent=11 // pred_check_branch
          %1294 = sbr.rel (%p1292) target = $region124
        $region123: #{ssdnet1d_forward.1} parent=11 // pred_region
          _
        $region124: #{ssdnet1d_forward.1} parent=11 // pred_fallthru
          _
        // Predicated region
        $region125: #{ssdnet1d_forward.1} parent=11 // pred_check
          %p1295 = pneg %p750
        $region126: #{ssdnet1d_forward.1} parent=11 // pred_check_branch
          %1297 = sbr.rel (%p1295) target = $region128
        $region127: #{ssdnet1d_forward.1} parent=11 // pred_region
          _
        $region128: #{ssdnet1d_forward.1} parent=11 // pred_fallthru
          _
        // Predicated region
        $region129: #{ssdnet1d_forward.1} parent=11 // pred_check
          %p1298 = pneg %p771
        $region130: #{ssdnet1d_forward.1} parent=11 // pred_check_branch
          %1300 = sbr.rel (%p1298) target = $region132
        $region131: #{ssdnet1d_forward.1} parent=11 // pred_region
          _
        $region132: #{ssdnet1d_forward.1} parent=11 // pred_fallthru
          _
        // Predicated region
        $region133: #{ssdnet1d_forward.1} parent=11 // pred_check
          %p1301 = pneg %p792
        $region134: #{ssdnet1d_forward.1} parent=11 // pred_check_branch
          %1303 = sbr.rel (%p1301) target = $region136
        $region135: #{ssdnet1d_forward.1} parent=11 // pred_region
          _
        $region136: #{ssdnet1d_forward.1} parent=11 // pred_fallthru
          _
        // Predicated region
        $region137: #{ssdnet1d_forward.1} parent=11 // pred_check
          %p1304 = pneg %p813
        $region138: #{ssdnet1d_forward.1} parent=11 // pred_check_branch
          %1306 = sbr.rel (%p1304) target = $region140
        $region139: #{ssdnet1d_forward.1} parent=11 // pred_region
          _
        $region140: #{ssdnet1d_forward.1} parent=11 // pred_fallthru
          _
        // Predicated region
        $region141: #{ssdnet1d_forward.1} parent=11 // pred_check
          %p1307 = pneg %p834
        $region142: #{ssdnet1d_forward.1} parent=11 // pred_check_branch
          %1309 = sbr.rel (%p1307) target = $region144
        $region143: #{ssdnet1d_forward.1} parent=11 // pred_region
          _
        $region144: #{ssdnet1d_forward.1} parent=11 // pred_fallthru
          _
        // Predicated region
        $region145: #{ssdnet1d_forward.1} parent=11 // pred_check
          %p1310 = pneg %p855
        $region146: #{ssdnet1d_forward.1} parent=11 // pred_check_branch
          %1312 = sbr.rel (%p1310) target = $region148
        $region147: #{ssdnet1d_forward.1} parent=11 // pred_region
          _
        $region148: #{ssdnet1d_forward.1} parent=11 // pred_fallthru
          _
        // Predicated region
        $region149: #{ssdnet1d_forward.1} parent=11 // pred_check
          %p1313 = pneg %p876
        $region150: #{ssdnet1d_forward.1} parent=11 // pred_check_branch
          %1315 = sbr.rel (%p1313) target = $region152
        $region151: #{ssdnet1d_forward.1} parent=11 // pred_region
          %s1317 = ssub.s32 16, 16
          %1318 = vsyncadd [#allocation12], %s1317
          %s1320 = sshll.u32 [#allocation11], 4
          %s1321 = int_to_ptr.vmem [resolvable:$true] %s1320
          %1323 = dma.hbm_to_vmem [thread:$0]  %s71, 16, %s1321, [#allocation12]
        $region152: #{ssdnet1d_forward.1} parent=11 // pred_fallthru
          _
        // Predicated region
        $region153: #{ssdnet1d_forward.1} parent=11 // pred_check
          %p1324 = pneg %p897
        $region154: #{ssdnet1d_forward.1} parent=11 // pred_check_branch
          %1326 = sbr.rel (%p1324) target = $region156
        $region155: #{ssdnet1d_forward.1} parent=11 // pred_region
          %s1328 = ssub.s32 16, 16
          %1329 = vsyncadd [#allocation15], %s1328
          %s1331 = sshll.u32 [#allocation14], 4
          %s1332 = int_to_ptr.vmem [resolvable:$true] %s1331
          %1334 = dma.hbm_to_vmem [thread:$0]  %s73, 16, %s1332, [#allocation15]
        $region156: #{ssdnet1d_forward.1} parent=11 // pred_fallthru
          _
        // Predicated region
        $region157: #{ssdnet1d_forward.1} parent=11 // pred_check
          %p1335 = pneg %p918
        $region158: #{ssdnet1d_forward.1} parent=11 // pred_check_branch
          %1337 = sbr.rel (%p1335) target = $region160
        $region159: #{ssdnet1d_forward.1} parent=11 // pred_region
          _
        $region160: #{ssdnet1d_forward.1} parent=11 // pred_fallthru
          _
        // Predicated region
        $region161: #{ssdnet1d_forward.1} parent=11 // pred_check
          %p1338 = pneg %p939
        $region162: #{ssdnet1d_forward.1} parent=11 // pred_check_branch
          %1340 = sbr.rel (%p1338) target = $region164
        $region163: #{ssdnet1d_forward.1} parent=11 // pred_region
          %s1342 = ssub.s32 16, 16
          %1343 = vsyncadd [#allocation15], %s1342
          %s1345 = sshll.u32 [#allocation16], 4
          %s1346 = int_to_ptr.vmem [resolvable:$true] %s1345
          %1348 = dma.hbm_to_vmem [thread:$0]  %s77, 16, %s1346, [#allocation15]
        $region164: #{ssdnet1d_forward.1} parent=11 // pred_fallthru
          _
        // Predicated region
        $region165: #{ssdnet1d_forward.1} parent=11 // pred_check
          %p1349 = pneg %p960
        $region166: #{ssdnet1d_forward.1} parent=11 // pred_check_branch
          %1351 = sbr.rel (%p1349) target = $region168
        $region167: #{ssdnet1d_forward.1} parent=11 // pred_region
          %s1353 = ssub.s32 16, 16
          %1354 = vsyncadd [#allocation18], %s1353
          %s1356 = sshll.u32 [#allocation17], 4
          %s1357 = int_to_ptr.vmem [resolvable:$true] %s1356
          %1359 = dma.hbm_to_vmem [thread:$0]  %s79, 16, %s1357, [#allocation18]
        $region168: #{ssdnet1d_forward.1} parent=11 // pred_fallthru
          _
        // Predicated region
        $region169: #{ssdnet1d_forward.1} parent=11 // pred_check
          %p1360 = pneg %p981
        $region170: #{ssdnet1d_forward.1} parent=11 // pred_check_branch
          %1362 = sbr.rel (%p1360) target = $region172
        $region171: #{ssdnet1d_forward.1} parent=11 // pred_region
          _
        $region172: #{ssdnet1d_forward.1} parent=11 // pred_fallthru
          _
        // Predicated region
        $region173: #{ssdnet1d_forward.1} parent=11 // pred_check
          %p1363 = pneg %p1002
        $region174: #{ssdnet1d_forward.1} parent=11 // pred_check_branch
          %1365 = sbr.rel (%p1363) target = $region176
        $region175: #{ssdnet1d_forward.1} parent=11 // pred_region
          _
        $region176: #{ssdnet1d_forward.1} parent=11 // pred_fallthru
          _
        // Predicated region
        $region177: #{ssdnet1d_forward.1} parent=11 // pred_check
          %p1366 = pneg %p1023
        $region178: #{ssdnet1d_forward.1} parent=11 // pred_check_branch
          %1368 = sbr.rel (%p1366) target = $region180
        $region179: #{ssdnet1d_forward.1} parent=11 // pred_region
          %s1370 = ssub.s32 16, 16
          %1371 = vsyncadd [#allocation18], %s1370
          %s1373 = sshll.u32 [#allocation19], 4
          %s1374 = int_to_ptr.vmem [resolvable:$true] %s1373
          %1376 = dma.hbm_to_vmem [thread:$0]  %s85, 16, %s1374, [#allocation18]
        $region180: #{ssdnet1d_forward.1} parent=11 // pred_fallthru
          _
        // Predicated region
        $region181: #{ssdnet1d_forward.1} parent=11 // pred_check
          %p1377 = pneg %p1044
        $region182: #{ssdnet1d_forward.1} parent=11 // pred_check_branch
          %1379 = sbr.rel (%p1377) target = $region184
        $region183: #{ssdnet1d_forward.1} parent=11 // pred_region
          %s1381 = ssub.s32 16, 16
          %1382 = vsyncadd [#allocation21], %s1381
          %s1384 = sshll.u32 [#allocation20], 4
          %s1385 = int_to_ptr.vmem [resolvable:$true] %s1384
          %1387 = dma.hbm_to_vmem [thread:$0]  %s87, 16, %s1385, [#allocation21]
        $region184: #{ssdnet1d_forward.1} parent=11 // pred_fallthru
          _
        // Predicated region
        $region185: #{ssdnet1d_forward.1} parent=11 // pred_check
          %p1388 = pneg %p1065
        $region186: #{ssdnet1d_forward.1} parent=11 // pred_check_branch
          %1390 = sbr.rel (%p1388) target = $region188
        $region187: #{ssdnet1d_forward.1} parent=11 // pred_region
          _
        $region188: #{ssdnet1d_forward.1} parent=11 // pred_fallthru
          _
        // Predicated region
        $region189: #{ssdnet1d_forward.1} parent=11 // pred_check
          %p1391 = pneg %p1086
        $region190: #{ssdnet1d_forward.1} parent=11 // pred_check_branch
          %1393 = sbr.rel (%p1391) target = $region192
        $region191: #{ssdnet1d_forward.1} parent=11 // pred_region
          %s1395 = ssub.s32 16, 16
          %1396 = vsyncadd [#allocation21], %s1395
          %s1398 = sshll.u32 [#allocation22], 4
          %s1399 = int_to_ptr.vmem [resolvable:$true] %s1398
          %1401 = dma.hbm_to_vmem [thread:$0]  %s91, 16, %s1399, [#allocation21]
        $region192: #{ssdnet1d_forward.1} parent=11 // pred_fallthru
          _
        // Predicated region
        $region193: #{ssdnet1d_forward.1} parent=11 // pred_check
          %p1402 = pneg %p1107
        $region194: #{ssdnet1d_forward.1} parent=11 // pred_check_branch
          %1404 = sbr.rel (%p1402) target = $region196
        $region195: #{ssdnet1d_forward.1} parent=11 // pred_region
          _
        $region196: #{ssdnet1d_forward.1} parent=11 // pred_fallthru
          _
        // Predicated region
        $region197: #{ssdnet1d_forward.1} parent=11 // pred_check
          %p1405 = pneg %p1128
        $region198: #{ssdnet1d_forward.1} parent=11 // pred_check_branch
          %1407 = sbr.rel (%p1405) target = $region200
        $region199: #{ssdnet1d_forward.1} parent=11 // pred_region
          %s1409 = ssub.s32 16, 16
          %1410 = vsyncadd [#allocation24], %s1409
          %s1412 = sshll.u32 [#allocation23], 4
          %s1413 = int_to_ptr.vmem [resolvable:$true] %s1412
          %1415 = dma.hbm_to_vmem [thread:$0]  %s95, 16, %s1413, [#allocation24]
        $region200: #{ssdnet1d_forward.1} parent=11 // pred_fallthru
          _
        // Predicated region
        $region201: #{ssdnet1d_forward.1} parent=11 // pred_check
          %p1416 = pneg %p1149
        $region202: #{ssdnet1d_forward.1} parent=11 // pred_check_branch
          %1418 = sbr.rel (%p1416) target = $region204
        $region203: #{ssdnet1d_forward.1} parent=11 // pred_region
          _
        $region204: #{ssdnet1d_forward.1} parent=11 // pred_fallthru
          _
        // Predicated region
        $region205: #{ssdnet1d_forward.1} parent=11 // pred_check
          %p1419 = pneg %p1170
        $region206: #{ssdnet1d_forward.1} parent=11 // pred_check_branch
          %1421 = sbr.rel (%p1419) target = $region208
        $region207: #{ssdnet1d_forward.1} parent=11 // pred_region
          %s1423 = ssub.s32 16, 16
          %1424 = vsyncadd [#allocation24], %s1423
          %s1426 = sshll.u32 [#allocation25], 4
          %s1427 = int_to_ptr.vmem [resolvable:$true] %s1426
          %1429 = dma.hbm_to_vmem [thread:$0]  %s99, 16, %s1427, [#allocation24]
        $region208: #{ssdnet1d_forward.1} parent=11 // pred_fallthru
          _
      $region12: #{ssdnet1d_forward.1} parent=5 // pred_fallthru
        _
      %p1430 = scmp.lt.s32.totalorder %s115, 2
      // Predicated region
      $region209: #{ssdnet1d_forward.1} parent=5 // pred_check
        %p1431 = pneg %p1430
      $region210: #{ssdnet1d_forward.1} parent=5 // pred_check_branch
        %1433 = sbr.rel (%p1431) target = $region212
      $region211: #{ssdnet1d_forward.1} parent=5 // pred_region
        // Predicated region
        $region213: #{ssdnet1d_forward.1} parent=211 // pred_check
          %p1434 = pneg %p135
        $region214: #{ssdnet1d_forward.1} parent=211 // pred_check_branch
          %1436 = sbr.rel (%p1434) target = $region216
        $region215: #{ssdnet1d_forward.1} parent=211 // pred_region
          %p1437 = scmp.lt.s32.totalorder %s115, 1
          %s1438 = scalar_select %p1437, %s115, 1
          %s1439 = smul.addr %s1438, 128
          %s1440 = smul.addr %s1439, 8
          %s1441 = scalar_lea.vmem %s1, %s1440
        $region216: #{ssdnet1d_forward.1} parent=211 // pred_fallthru
          _
      $region212: #{ssdnet1d_forward.1} parent=5 // pred_fallthru
        _
      %p1442 = scmp.le.s32.totalorder 1, %s115
      %p1443 = scmp.lt.s32.totalorder %s115, 3
      %p1444 = pnand %p1442, %p1443
      %p1445 = pneg %p1444
      // Predicated region
      $region217: #{ssdnet1d_forward.1} parent=5 // pred_check
        _
      $region218: #{ssdnet1d_forward.1} parent=5 // pred_check_branch
        %1447 = sbr.rel (%p1444) target = $region220
      $region219: #{ssdnet1d_forward.1} parent=5 // pred_region
        %s1448 = ssub.s32 %s115, 1
        // Predicated region
        $region221: #{ssdnet1d_forward.1} parent=219 // pred_check
          %p1449 = pneg %p876
        $region222: #{ssdnet1d_forward.1} parent=219 // pred_check_branch
          %1451 = sbr.rel (%p1449) target = $region224
        $region223: #{ssdnet1d_forward.1} parent=219 // pred_region
          %1452 = dma.done [#allocation12], 16
        $region224: #{ssdnet1d_forward.1} parent=219 // pred_fallthru
          _
        // Predicated region
        $region225: #{ssdnet1d_forward.1} parent=219 // pred_check
          %p1453 = pneg %p897
        $region226: #{ssdnet1d_forward.1} parent=219 // pred_check_branch
          %1455 = sbr.rel (%p1453) target = $region228
        $region227: #{ssdnet1d_forward.1} parent=219 // pred_region
          %1456 = dma.done [#allocation15], 16
        $region228: #{ssdnet1d_forward.1} parent=219 // pred_fallthru
          _
        // Predicated region
        $region229: #{ssdnet1d_forward.1} parent=219 // pred_check
          %p1457 = pneg %p939
        $region230: #{ssdnet1d_forward.1} parent=219 // pred_check_branch
          %1459 = sbr.rel (%p1457) target = $region232
        $region231: #{ssdnet1d_forward.1} parent=219 // pred_region
          %1460 = dma.done [#allocation15], 16
        $region232: #{ssdnet1d_forward.1} parent=219 // pred_fallthru
          _
        // Predicated region
        $region233: #{ssdnet1d_forward.1} parent=219 // pred_check
          %p1461 = pneg %p960
        $region234: #{ssdnet1d_forward.1} parent=219 // pred_check_branch
          %1463 = sbr.rel (%p1461) target = $region236
        $region235: #{ssdnet1d_forward.1} parent=219 // pred_region
          %1464 = dma.done [#allocation18], 16
        $region236: #{ssdnet1d_forward.1} parent=219 // pred_fallthru
          _
        // Predicated region
        $region237: #{ssdnet1d_forward.1} parent=219 // pred_check
          %p1465 = pneg %p1023
        $region238: #{ssdnet1d_forward.1} parent=219 // pred_check_branch
          %1467 = sbr.rel (%p1465) target = $region240
        $region239: #{ssdnet1d_forward.1} parent=219 // pred_region
          %1468 = dma.done [#allocation18], 16
        $region240: #{ssdnet1d_forward.1} parent=219 // pred_fallthru
          _
        // Predicated region
        $region241: #{ssdnet1d_forward.1} parent=219 // pred_check
          %p1469 = pneg %p1044
        $region242: #{ssdnet1d_forward.1} parent=219 // pred_check_branch
          %1471 = sbr.rel (%p1469) target = $region244
        $region243: #{ssdnet1d_forward.1} parent=219 // pred_region
          %1472 = dma.done [#allocation21], 16
        $region244: #{ssdnet1d_forward.1} parent=219 // pred_fallthru
          _
        // Predicated region
        $region245: #{ssdnet1d_forward.1} parent=219 // pred_check
          %p1473 = pneg %p1086
        $region246: #{ssdnet1d_forward.1} parent=219 // pred_check_branch
          %1475 = sbr.rel (%p1473) target = $region248
        $region247: #{ssdnet1d_forward.1} parent=219 // pred_region
          %1476 = dma.done [#allocation21], 16
        $region248: #{ssdnet1d_forward.1} parent=219 // pred_fallthru
          _
        // Predicated region
        $region249: #{ssdnet1d_forward.1} parent=219 // pred_check
          %p1477 = pneg %p1128
        $region250: #{ssdnet1d_forward.1} parent=219 // pred_check_branch
          %1479 = sbr.rel (%p1477) target = $region252
        $region251: #{ssdnet1d_forward.1} parent=219 // pred_region
          %1480 = dma.done [#allocation24], 16
        $region252: #{ssdnet1d_forward.1} parent=219 // pred_fallthru
          _
        // Predicated region
        $region253: #{ssdnet1d_forward.1} parent=219 // pred_check
          %p1481 = pneg %p1170
        $region254: #{ssdnet1d_forward.1} parent=219 // pred_check_branch
          %1483 = sbr.rel (%p1481) target = $region256
        $region255: #{ssdnet1d_forward.1} parent=219 // pred_region
          %1484 = dma.done [#allocation24], 16
        $region256: #{ssdnet1d_forward.1} parent=219 // pred_fallthru
          _
        %p1485 = scmp.lt.s32.totalorder %s120, 1
        %s1486 = scalar_select %p1485, %s120, 1
        %s1487 = smul.addr %s1486, 128
        %s1488 = smul.addr %s1487, 8
        %s1489 = scalar_lea.vmem %s1, %s1488
        %p1490 = pneg %p141
        %p1491 = pneg %p138
        %p1492 = pneg %p162
        %p1493 = pneg %p159
        %p1494 = pneg %p183
        %p1495 = pneg %p180
        %p1496 = pneg %p204
        %p1497 = pneg %p201
        %p1498 = pneg %p225
        %p1499 = pneg %p222
        %p1500 = pneg %p246
        %p1501 = pneg %p243
        %p1502 = pneg %p267
        %p1503 = pneg %p264
        %p1504 = pneg %p288
        %p1505 = pneg %p285
        %p1506 = pneg %p309
        %p1507 = pneg %p306
        %p1508 = pneg %p330
        %p1509 = pneg %p327
        %p1510 = pneg %p351
        %p1511 = pneg %p348
        %p1512 = pneg %p372
        %p1513 = pneg %p369
        %p1514 = pneg %p393
        %p1515 = pneg %p390
        %p1516 = pneg %p414
        %p1517 = pneg %p411
        %p1518 = pneg %p435
        %p1519 = pneg %p432
        %p1520 = pneg %p456
        %p1521 = pneg %p453
        %p1522 = pneg %p477
        %p1523 = pneg %p474
        %p1524 = pneg %p498
        %p1525 = pneg %p495
        %p1526 = pneg %p519
        %p1527 = pneg %p516
        %p1528 = pneg %p540
        %p1529 = pneg %p537
        %p1530 = pneg %p561
        %p1531 = pneg %p558
        %p1532 = pneg %p582
        %p1533 = pneg %p579
        %p1534 = pneg %p603
        %p1535 = pneg %p600
        %p1536 = pneg %p624
        %p1537 = pneg %p621
        %p1538 = pneg %p645
        %p1539 = pneg %p642
        %p1540 = pneg %p666
        %p1541 = pneg %p663
        %p1542 = pneg %p687
        %p1543 = pneg %p684
        %p1544 = pneg %p708
        %p1545 = pneg %p705
        %p1546 = pneg %p729
        %p1547 = pneg %p726
        %p1548 = pneg %p750
        %p1549 = pneg %p747
        %p1550 = pneg %p771
        %p1551 = pneg %p768
        %p1552 = pneg %p792
        %p1553 = pneg %p789
        %p1554 = pneg %p813
        %p1555 = pneg %p810
        %p1556 = pneg %p834
        %p1557 = pneg %p831
        %p1558 = pneg %p855
        %p1559 = pneg %p852
        %p1560 = pneg %p876
        %p1561 = pneg %p873
        %p1562 = pneg %p897
        %p1563 = pneg %p894
        %p1564 = pneg %p918
        %p1565 = pneg %p915
        %p1566 = pneg %p939
        %p1567 = pneg %p936
        %p1568 = pneg %p960
        %p1569 = pneg %p957
        %p1570 = pneg %p981
        %p1571 = pneg %p978
        %p1572 = pneg %p1002
        %p1573 = pneg %p999
        %p1574 = pneg %p1023
        %p1575 = pneg %p1020
        %p1576 = pneg %p1044
        %p1577 = pneg %p1041
        %p1578 = pneg %p1065
        %p1579 = pneg %p1062
        %p1580 = pneg %p1086
        %p1581 = pneg %p1083
        %p1582 = pneg %p1107
        %p1583 = pneg %p1104
        %p1584 = pneg %p1128
        %p1585 = pneg %p1125
        %p1586 = pneg %p1149
        %p1587 = pneg %p1146
        %p1588 = pneg %p1170
        %p1589 = pneg %p1167
        %p1590 = pneg %p1196
        %p1591 = pneg %p1193
        %s1592 = sand.u32 %s1183, 1
        %s1593 = scalar_lea.sflag [#allocation13], %s1592
        %s1594 = sand.u32 %s1183, 1
        %s1595 = scalar_lea.vmem [#allocation26], %s1594
        %p1596 = scmp.lt.s32.totalorder %s120, 1
        %s1597 = scalar_select %p1596, %s120, 1
        %s1598 = smul.addr %s1597, 128
        %s1599 = smul.addr %s1598, 8
        %s1600 = scalar_lea.vmem %s1, %s1599
        %vm1601 = vcmask 122880
        %1602 = vst.msk [vmem:[#allocation3] sm:$0x1] %vm1601, 0.0
        %1603 = vst.msk [vmem:[#allocation3 + $0x101] sm:$0x1] %vm1601, 0.0
        %vm1604 = vcmask 253952
        %1605 = vst.msk [vmem:[#allocation4] sm:$0x1] %vm1604, 0.0
        %1606 = vst.msk [vmem:[#allocation4 + $0x101] sm:$0x1] %vm1604, 0.0
        %1607 = vst.msk [vmem:[#allocation5] sm:$0x1] %vm1604, 0.0
        %1608 = vst.msk [vmem:[#allocation5 + $0x41] sm:$0x1] %vm1604, 0.0
        %vm1609 = vcmask 516096
        %1610 = vst.msk [vmem:[#allocation6] sm:$0x1] %vm1609, 0.0
        %1611 = vst.msk [vmem:[#allocation6 + $0x41] sm:$0x1] %vm1609, 0.0
        %1612 = vst.msk [vmem:[#allocation7] sm:$0x1] %vm1609, 0.0
        %1613 = vst.msk [vmem:[#allocation7 + $0x11] sm:$0x1] %vm1609, 0.0
        %1614 = vst [vmem:[#allocation8] sm:$0x1] 0.0
        %1615 = vst [vmem:[#allocation8 + $0x11] sm:$0x1] 0.0
        %1616 = vst [vmem:[#allocation9] sm:$0x1] 0.0
        %1617 = vst [vmem:[#allocation9 + $0x5] sm:$0x1] 0.0
        %1618 = vst [vmem:[#allocation10] sm:$0x1] 0.0
        %1619 = vst [vmem:[#allocation10 + $0x5] sm:$0x1] 0.0
        %v1620 = vld [vmem:[%s1600] sm:$0xff]
        %v1621 = vld [vmem:[%s1600 + $0x8] sm:$0xff]
        %v1622 = vld [vmem:[%s1600 + $0x10] sm:$0xff]
        %v1623 = vld [vmem:[%s1600 + $0x18] sm:$0xff]
        %v1624 = vld [vmem:[%s1600 + $0x20] sm:$0xff]
        %v1625 = vld [vmem:[%s1600 + $0x28] sm:$0xff]
        %v1626 = vld [vmem:[%s1600 + $0x30] sm:$0xff]
        %v1627 = vld [vmem:[%s1600 + $0x38] sm:$0xff]
        %v1628 = vld [vmem:[%s1600 + $0x40] sm:$0xff]
        %v1629 = vld [vmem:[%s1600 + $0x48] sm:$0xff]
        %v1630 = vld [vmem:[%s1600 + $0x50] sm:$0xff]
        %v1631 = vld [vmem:[%s1600 + $0x58] sm:$0xff]
        %v1632 = vld [vmem:[%s1600 + $0x60] sm:$0xff]
        %v1633 = vld [vmem:[%s1600 + $0x68] sm:$0xff]
        %v1634 = vld [vmem:[%s1600 + $0x70] sm:$0xff]
        %v1635 = vld [vmem:[%s1600 + $0x78] sm:$0xff]
        %v1636 = vld [vmem:[%s1600 + $0x80] sm:$0xff]
        %v1637 = vld [vmem:[%s1600 + $0x88] sm:$0xff]
        %v1638 = vld [vmem:[%s1600 + $0x90] sm:$0xff]
        %v1639 = vld [vmem:[%s1600 + $0x98] sm:$0xff]
        %v1640 = vld [vmem:[%s1600 + $0xa0] sm:$0xff]
        %v1641 = vld [vmem:[%s1600 + $0xa8] sm:$0xff]
        %v1642 = vld [vmem:[%s1600 + $0xb0] sm:$0xff]
        %v1643 = vld [vmem:[%s1600 + $0xb8] sm:$0xff]
        %v1644 = vld [vmem:[%s1600 + $0xc0] sm:$0xff]
        %v1645 = vld [vmem:[%s1600 + $0xc8] sm:$0xff]
        %v1646 = vld [vmem:[%s1600 + $0xd0] sm:$0xff]
        %v1647 = vld [vmem:[%s1600 + $0xd8] sm:$0xff]
        %v1648 = vld [vmem:[%s1600 + $0xe0] sm:$0xff]
        %v1649 = vld [vmem:[%s1600 + $0xe8] sm:$0xff]
        %v1650 = vld [vmem:[%s1600 + $0xf0] sm:$0xff]
        %v1651 = vld [vmem:[%s1600 + $0xf8] sm:$0xff]
        %v1652 = vld [vmem:[%s1600 + $0x100] sm:$0xff]
        %v1653 = vld [vmem:[%s1600 + $0x108] sm:$0xff]
        %v1654 = vld [vmem:[%s1600 + $0x110] sm:$0xff]
        %v1655 = vld [vmem:[%s1600 + $0x118] sm:$0xff]
        %v1656 = vld [vmem:[%s1600 + $0x120] sm:$0xff]
        %v1657 = vld [vmem:[%s1600 + $0x128] sm:$0xff]
        %v1658 = vld [vmem:[%s1600 + $0x130] sm:$0xff]
        %v1659 = vld [vmem:[%s1600 + $0x138] sm:$0xff]
        %v1660 = vld [vmem:[%s1600 + $0x140] sm:$0xff]
        %v1661 = vld [vmem:[%s1600 + $0x148] sm:$0xff]
        %v1662 = vld [vmem:[%s1600 + $0x150] sm:$0xff]
        %v1663 = vld [vmem:[%s1600 + $0x158] sm:$0xff]
        %v1664 = vld [vmem:[%s1600 + $0x160] sm:$0xff]
        %v1665 = vld [vmem:[%s1600 + $0x168] sm:$0xff]
        %v1666 = vld [vmem:[%s1600 + $0x170] sm:$0xff]
        %v1667 = vld [vmem:[%s1600 + $0x178] sm:$0xff]
        %v1668 = vld [vmem:[%s1600 + $0x180] sm:$0xff]
        %v1669 = vld [vmem:[%s1600 + $0x188] sm:$0xff]
        %v1670 = vld [vmem:[%s1600 + $0x190] sm:$0xff]
        %v1671 = vld [vmem:[%s1600 + $0x198] sm:$0xff]
        %v1672 = vld [vmem:[%s1600 + $0x1a0] sm:$0xff]
        %v1673 = vld [vmem:[%s1600 + $0x1a8] sm:$0xff]
        %v1674 = vld [vmem:[%s1600 + $0x1b0] sm:$0xff]
        %v1675 = vld [vmem:[%s1600 + $0x1b8] sm:$0xff]
        %v1676 = vld [vmem:[%s1600 + $0x1c0] sm:$0xff]
        %v1677 = vld [vmem:[%s1600 + $0x1c8] sm:$0xff]
        %v1678 = vld [vmem:[%s1600 + $0x1d0] sm:$0xff]
        %v1679 = vld [vmem:[%s1600 + $0x1d8] sm:$0xff]
        %v1680 = vld [vmem:[%s1600 + $0x1e0] sm:$0xff]
        %v1681 = vld [vmem:[%s1600 + $0x1e8] sm:$0xff]
        %v1682 = vld [vmem:[%s1600 + $0x1f0] sm:$0xff]
        %v1683 = vld [vmem:[%s1600 + $0x1f8] sm:$0xff]
        %v1684 = vld [vmem:[%s1600 + $0x200] sm:$0xff]
        %v1685 = vld [vmem:[%s1600 + $0x208] sm:$0xff]
        %v1686 = vld [vmem:[%s1600 + $0x210] sm:$0xff]
        %v1687 = vld [vmem:[%s1600 + $0x218] sm:$0xff]
        %v1688 = vld [vmem:[%s1600 + $0x220] sm:$0xff]
        %v1689 = vld [vmem:[%s1600 + $0x228] sm:$0xff]
        %v1690 = vld [vmem:[%s1600 + $0x230] sm:$0xff]
        %v1691 = vld [vmem:[%s1600 + $0x238] sm:$0xff]
        %v1692 = vld [vmem:[%s1600 + $0x240] sm:$0xff]
        %v1693 = vld [vmem:[%s1600 + $0x248] sm:$0xff]
        %v1694 = vld [vmem:[%s1600 + $0x250] sm:$0xff]
        %v1695 = vld [vmem:[%s1600 + $0x258] sm:$0xff]
        %v1696 = vld [vmem:[%s1600 + $0x260] sm:$0xff]
        %v1697 = vld [vmem:[%s1600 + $0x268] sm:$0xff]
        %v1698 = vld [vmem:[%s1600 + $0x270] sm:$0xff]
        %v1699 = vld [vmem:[%s1600 + $0x278] sm:$0xff]
        %v1700 = vld [vmem:[%s1600 + $0x280] sm:$0xff]
        %v1701 = vld [vmem:[%s1600 + $0x288] sm:$0xff]
        %v1702 = vld [vmem:[%s1600 + $0x290] sm:$0xff]
        %v1703 = vld [vmem:[%s1600 + $0x298] sm:$0xff]
        %v1704 = vld [vmem:[%s1600 + $0x2a0] sm:$0xff]
        %v1705 = vld [vmem:[%s1600 + $0x2a8] sm:$0xff]
        %v1706 = vld [vmem:[%s1600 + $0x2b0] sm:$0xff]
        %v1707 = vld [vmem:[%s1600 + $0x2b8] sm:$0xff]
        %v1708 = vld [vmem:[%s1600 + $0x2c0] sm:$0xff]
        %v1709 = vld [vmem:[%s1600 + $0x2c8] sm:$0xff]
        %v1710 = vld [vmem:[%s1600 + $0x2d0] sm:$0xff]
        %v1711 = vld [vmem:[%s1600 + $0x2d8] sm:$0xff]
        %v1712 = vld [vmem:[%s1600 + $0x2e0] sm:$0xff]
        %v1713 = vld [vmem:[%s1600 + $0x2e8] sm:$0xff]
        %v1714 = vld [vmem:[%s1600 + $0x2f0] sm:$0xff]
        %v1715 = vld [vmem:[%s1600 + $0x2f8] sm:$0xff]
        %v1716 = vld [vmem:[%s1600 + $0x300] sm:$0xff]
        %v1717 = vld [vmem:[%s1600 + $0x308] sm:$0xff]
        %v1718 = vld [vmem:[%s1600 + $0x310] sm:$0xff]
        %v1719 = vld [vmem:[%s1600 + $0x318] sm:$0xff]
        %v1720 = vld [vmem:[%s1600 + $0x320] sm:$0xff]
        %v1721 = vld [vmem:[%s1600 + $0x328] sm:$0xff]
        %v1722 = vld [vmem:[%s1600 + $0x330] sm:$0xff]
        %v1723 = vld [vmem:[%s1600 + $0x338] sm:$0xff]
        %v1724 = vld [vmem:[%s1600 + $0x340] sm:$0xff]
        %v1725 = vld [vmem:[%s1600 + $0x348] sm:$0xff]
        %v1726 = vld [vmem:[%s1600 + $0x350] sm:$0xff]
        %v1727 = vld [vmem:[%s1600 + $0x358] sm:$0xff]
        %v1728 = vld [vmem:[%s1600 + $0x360] sm:$0xff]
        %v1729 = vld [vmem:[%s1600 + $0x368] sm:$0xff]
        %v1730 = vld [vmem:[%s1600 + $0x370] sm:$0xff]
        %v1731 = vld [vmem:[%s1600 + $0x378] sm:$0xff]
        %v1732 = vld [vmem:[%s1600 + $0x380] sm:$0xff]
        %v1733 = vld [vmem:[%s1600 + $0x388] sm:$0xff]
        %v1734 = vld [vmem:[%s1600 + $0x390] sm:$0xff]
        %v1735 = vld [vmem:[%s1600 + $0x398] sm:$0xff]
        %v1736 = vld [vmem:[%s1600 + $0x3a0] sm:$0xff]
        %v1737 = vld [vmem:[%s1600 + $0x3a8] sm:$0xff]
        %v1738 = vld [vmem:[%s1600 + $0x3b0] sm:$0xff]
        %v1739 = vld [vmem:[%s1600 + $0x3b8] sm:$0xff]
        %v1740 = vld [vmem:[%s1600 + $0x3c0] sm:$0xff]
        %v1741 = vld [vmem:[%s1600 + $0x3c8] sm:$0xff]
        %v1742 = vld [vmem:[%s1600 + $0x3d0] sm:$0xff]
        %v1743 = vld [vmem:[%s1600 + $0x3d8] sm:$0xff]
        %v1744 = vld [vmem:[%s1600 + $0x3e0] sm:$0xff]
        %v1745 = vld [vmem:[%s1600 + $0x3e8] sm:$0xff]
        %v1746 = vld [vmem:[%s1600 + $0x3f0] sm:$0xff]
        %v1747 = vld [vmem:[%s1600 + $0x3f8] sm:$0xff]
        %v1748 = vld [vmem:[%s3] sm:$0x7f]
        %vm1749 = vcmask 56320
        %v1751 = vsel %vm1749, %v1620, 0
        %v1754 = vsel %vm1749, %v1621, 0
        %v1757 = vsel %vm1749, %v1622, 0
        %v1760 = vsel %vm1749, %v1623, 0
        %v1763 = vsel %vm1749, %v1624, 0
        %v1766 = vsel %vm1749, %v1625, 0
        %v1769 = vsel %vm1749, %v1626, 0
        %v1772 = vsel %vm1749, %v1627, 0
        %v1775 = vsel %vm1749, %v1628, 0
        %v1778 = vsel %vm1749, %v1629, 0
        %v1781 = vsel %vm1749, %v1630, 0
        %v1784 = vsel %vm1749, %v1631, 0
        %v1787 = vsel %vm1749, %v1632, 0
        %v1790 = vsel %vm1749, %v1633, 0
        %v1793 = vsel %vm1749, %v1634, 0
        %v1796 = vsel %vm1749, %v1635, 0
        %v1799 = vsel %vm1749, %v1636, 0
        %v1802 = vsel %vm1749, %v1637, 0
        %v1805 = vsel %vm1749, %v1638, 0
        %v1808 = vsel %vm1749, %v1639, 0
        %v1811 = vsel %vm1749, %v1640, 0
        %v1814 = vsel %vm1749, %v1641, 0
        %v1817 = vsel %vm1749, %v1642, 0
        %v1820 = vsel %vm1749, %v1643, 0
        %v1823 = vsel %vm1749, %v1644, 0
        %v1826 = vsel %vm1749, %v1645, 0
        %v1829 = vsel %vm1749, %v1646, 0
        %v1832 = vsel %vm1749, %v1647, 0
        %v1835 = vsel %vm1749, %v1648, 0
        %v1838 = vsel %vm1749, %v1649, 0
        %v1841 = vsel %vm1749, %v1650, 0
        %v1844 = vsel %vm1749, %v1651, 0
        %v1847 = vsel %vm1749, %v1652, 0
        %v1850 = vsel %vm1749, %v1653, 0
        %v1853 = vsel %vm1749, %v1654, 0
        %v1856 = vsel %vm1749, %v1655, 0
        %v1859 = vsel %vm1749, %v1656, 0
        %v1862 = vsel %vm1749, %v1657, 0
        %v1865 = vsel %vm1749, %v1658, 0
        %v1868 = vsel %vm1749, %v1659, 0
        %v1871 = vsel %vm1749, %v1660, 0
        %v1874 = vsel %vm1749, %v1661, 0
        %v1877 = vsel %vm1749, %v1662, 0
        %v1880 = vsel %vm1749, %v1663, 0
        %v1883 = vsel %vm1749, %v1664, 0
        %v1886 = vsel %vm1749, %v1665, 0
        %v1889 = vsel %vm1749, %v1666, 0
        %v1892 = vsel %vm1749, %v1667, 0
        %v1895 = vsel %vm1749, %v1668, 0
        %v1898 = vsel %vm1749, %v1669, 0
        %v1901 = vsel %vm1749, %v1670, 0
        %v1904 = vsel %vm1749, %v1671, 0
        %v1907 = vsel %vm1749, %v1672, 0
        %v1910 = vsel %vm1749, %v1673, 0
        %v1913 = vsel %vm1749, %v1674, 0
        %v1916 = vsel %vm1749, %v1675, 0
        %v1919 = vsel %vm1749, %v1676, 0
        %v1922 = vsel %vm1749, %v1677, 0
        %v1925 = vsel %vm1749, %v1678, 0
        %v1928 = vsel %vm1749, %v1679, 0
        %v1931 = vsel %vm1749, %v1680, 0
        %v1934 = vsel %vm1749, %v1681, 0
        %v1937 = vsel %vm1749, %v1682, 0
        %v1940 = vsel %vm1749, %v1683, 0
        %v1943 = vsel %vm1749, %v1684, 0
        %v1946 = vsel %vm1749, %v1685, 0
        %v1949 = vsel %vm1749, %v1686, 0
        %v1952 = vsel %vm1749, %v1687, 0
        %v1955 = vsel %vm1749, %v1688, 0
        %v1958 = vsel %vm1749, %v1689, 0
        %v1961 = vsel %vm1749, %v1690, 0
        %v1964 = vsel %vm1749, %v1691, 0
        %v1967 = vsel %vm1749, %v1692, 0
        %v1970 = vsel %vm1749, %v1693, 0
        %v1973 = vsel %vm1749, %v1694, 0
        %v1976 = vsel %vm1749, %v1695, 0
        %v1979 = vsel %vm1749, %v1696, 0
        %v1982 = vsel %vm1749, %v1697, 0
        %v1985 = vsel %vm1749, %v1698, 0
        %v1988 = vsel %vm1749, %v1699, 0
        %v1991 = vsel %vm1749, %v1700, 0
        %v1994 = vsel %vm1749, %v1701, 0
        %v1997 = vsel %vm1749, %v1702, 0
        %v2000 = vsel %vm1749, %v1703, 0
        %v2003 = vsel %vm1749, %v1704, 0
        %v2006 = vsel %vm1749, %v1705, 0
        %v2009 = vsel %vm1749, %v1706, 0
        %v2012 = vsel %vm1749, %v1707, 0
        %v2015 = vsel %vm1749, %v1708, 0
        %v2018 = vsel %vm1749, %v1709, 0
        %v2021 = vsel %vm1749, %v1710, 0
        %v2024 = vsel %vm1749, %v1711, 0
        %v2027 = vsel %vm1749, %v1712, 0
        %v2030 = vsel %vm1749, %v1713, 0
        %v2033 = vsel %vm1749, %v1714, 0
        %v2036 = vsel %vm1749, %v1715, 0
        %v2039 = vsel %vm1749, %v1716, 0
        %v2042 = vsel %vm1749, %v1717, 0
        %v2045 = vsel %vm1749, %v1718, 0
        %v2048 = vsel %vm1749, %v1719, 0
        %v2051 = vsel %vm1749, %v1720, 0
        %v2054 = vsel %vm1749, %v1721, 0
        %v2057 = vsel %vm1749, %v1722, 0
        %v2060 = vsel %vm1749, %v1723, 0
        %v2063 = vsel %vm1749, %v1724, 0
        %v2066 = vsel %vm1749, %v1725, 0
        %v2069 = vsel %vm1749, %v1726, 0
        %v2072 = vsel %vm1749, %v1727, 0
        %v2075 = vsel %vm1749, %v1728, 0
        %v2078 = vsel %vm1749, %v1729, 0
        %v2081 = vsel %vm1749, %v1730, 0
        %v2084 = vsel %vm1749, %v1731, 0
        %v2087 = vsel %vm1749, %v1732, 0
        %v2090 = vsel %vm1749, %v1733, 0
        %v2093 = vsel %vm1749, %v1734, 0
        %v2096 = vsel %vm1749, %v1735, 0
        %v2099 = vsel %vm1749, %v1736, 0
        %v2102 = vsel %vm1749, %v1737, 0
        %v2105 = vsel %vm1749, %v1738, 0
        %v2108 = vsel %vm1749, %v1739, 0
        %v2111 = vsel %vm1749, %v1740, 0
        %v2114 = vsel %vm1749, %v1741, 0
        %v2117 = vsel %vm1749, %v1742, 0
        %v2120 = vsel %vm1749, %v1743, 0
        %v2123 = vsel %vm1749, %v1744, 0
        %v2126 = vsel %vm1749, %v1745, 0
        %v2129 = vsel %vm1749, %v1746, 0
        %v2132 = vsel %vm1749, %v1747, 0
        %vm2134 = vcmask 1046528
        %v2136 = vsel %vm2134, %v1748, 0
        %2138 = vmatprep.subr.mxu0 0.0
        %2139 = vmatpush1.msra.mxu0 0.0
        %2140 = vmatprep.subr.mxu0 0.0
        %2141 = vmatpush1.msra.mxu0 0.0
        %2142 = vmatprep.subr.mxu0 0.0
        %2143 = vmatpush1.msra.mxu0 0.0
        %2144 = vmatprep.subr.mxu0 0.0
        %2145 = vmatpush1.msra.mxu0 0.0
        %2146 = vmatprep.subr.mxu0 0.0
        %2147 = vmatpush1.msra.mxu0 0.0
        %2148 = vmatprep.subr.mxu0 0.0
        %2149 = vmatpush1.msra.mxu0 0.0
        %2150 = vmatprep.subr.mxu0 0.0
        %2151 = vmatpush1.msra.mxu0 0.0
        %2152 = vmatprep.subr.mxu0 0.0
        %2153 = vmatpush1.msra.mxu0 0.0
        %2154 = vmatprep.subr.mxu0 0.0
        %2155 = vmatpush1.msra.mxu0 0.0
        %2156 = vmatprep.subr.mxu0 0.0
        %2157 = vmatpush1.msra.mxu0 0.0
        %2158 = vmatprep.subr.mxu0 0.0
        %2159 = vmatpush1.msra.mxu0 0.0
        %2160 = vmatprep.subr.mxu0 0.0
        %2161 = vmatpush1.msra.mxu0 0.0
        %2162 = vmatprep.subr.mxu0 0.0
        %2163 = vmatpush1.msra.mxu0 0.0
        %2164 = vmatprep.subr.mxu0 0.0
        %2165 = vmatpush1.msra.mxu0 0.0
        %2166 = vmatprep.subr.mxu0 0.0
        %2167 = vmatpush1.msra.mxu0 0.0
        %2168 = vmatprep.subr.mxu0 0.0
        %2169 = vmatpush1.msra.mxu0 %v2136
        %2170 = vmatprep.subr.mxu0 0.0
        %2171 = vmatpush2.msra.mxu0 0.0
        %2172 = vmatprep.subr.mxu0 0.0
        %2173 = vmatpush2.msra.mxu0 0.0
        %2174 = vmatprep.subr.mxu0 0.0
        %2175 = vmatpush2.msra.mxu0 0.0
        %2176 = vmatprep.subr.mxu0 0.0
        %2177 = vmatpush2.msra.mxu0 0.0
        %2178 = vmatprep.subr.mxu0 0.0
        %2179 = vmatpush2.msra.mxu0 0.0
        %2180 = vmatprep.subr.mxu0 0.0
        %2181 = vmatpush2.msra.mxu0 0.0
        %2182 = vmatprep.subr.mxu0 0.0
        %2183 = vmatpush2.msra.mxu0 0.0
        %2184 = vmatprep.subr.mxu0 0.0
        %2185 = vmatpush2.msra.mxu0 0.0
        %2186 = vmatprep.subr.mxu0 0.0
        %2187 = vmatpush2.msra.mxu0 0.0
        %2188 = vmatprep.subr.mxu0 0.0
        %2189 = vmatpush2.msra.mxu0 0.0
        %2190 = vmatprep.subr.mxu0 0.0
        %2191 = vmatpush2.msra.mxu0 0.0
        %2192 = vmatprep.subr.mxu0 0.0
        %2193 = vmatpush2.msra.mxu0 0.0
        %2194 = vmatprep.subr.mxu0 0.0
        %2195 = vmatpush2.msra.mxu0 0.0
        %2196 = vmatprep.subr.mxu0 0.0
        %2197 = vmatpush2.msra.mxu0 0.0
        %2198 = vmatprep.subr.mxu0 0.0
        %2199 = vmatpush2.msra.mxu0 0.0
        %2200 = vmatprep.subr.mxu0 0.0
        %2201 = vmatpush2.msra.mxu0 0.0
        %2202 = vmatprep.mubr.f32.mxu0 0.0
        %2203 = vmatmul.mubr.f32.gmra.mxu0 %v1751
        %v2204 = vpop.f32.mrf.mxu0
        %v2205 = vadd.f32 0.0, %v2204
        %v2206 = vpop.f32.mrf.mxu0
        %2207 = vmatprep.mubr.f32.mxu0 0.0
        %2208 = vmatmul.mubr.f32.gmra.mxu0 %v1754
        %v2209 = vpop.f32.mrf.mxu0
        %v2210 = vadd.f32 0.0, %v2209
        %v2211 = vpop.f32.mrf.mxu0
        %2212 = vmatprep.mubr.f32.mxu0 0.0
        %2213 = vmatmul.mubr.f32.gmra.mxu0 %v1757
        %v2214 = vpop.f32.mrf.mxu0
        %v2215 = vadd.f32 0.0, %v2214
        %v2216 = vpop.f32.mrf.mxu0
        %2217 = vmatprep.mubr.f32.mxu0 0.0
        %2218 = vmatmul.mubr.f32.gmra.mxu0 %v1760
        %v2219 = vpop.f32.mrf.mxu0
        %v2220 = vadd.f32 0.0, %v2219
        %v2221 = vpop.f32.mrf.mxu0
        %2222 = vmatprep.mubr.f32.mxu0 0.0
        %2223 = vmatmul.mubr.f32.gmra.mxu0 %v1763
        %v2224 = vpop.f32.mrf.mxu0
        %v2225 = vadd.f32 0.0, %v2224
        %v2226 = vpop.f32.mrf.mxu0
        %2227 = vmatprep.mubr.f32.mxu0 0.0
        %2228 = vmatmul.mubr.f32.gmra.mxu0 %v1766
        %v2229 = vpop.f32.mrf.mxu0
        %v2230 = vadd.f32 0.0, %v2229
        %v2231 = vpop.f32.mrf.mxu0
        %2232 = vmatprep.mubr.f32.mxu0 0.0
        %2233 = vmatmul.mubr.f32.gmra.mxu0 %v1769
        %v2234 = vpop.f32.mrf.mxu0
        %v2235 = vadd.f32 0.0, %v2234
        %v2236 = vpop.f32.mrf.mxu0
        %2237 = vmatprep.mubr.f32.mxu0 0.0
        %2238 = vmatmul.mubr.f32.gmra.mxu0 %v1772
        %v2239 = vpop.f32.mrf.mxu0
        %v2240 = vadd.f32 0.0, %v2239
        %v2241 = vpop.f32.mrf.mxu0
        %2242 = vmatprep.mubr.f32.mxu0 0.0
        %2243 = vmatmul.mubr.f32.gmra.mxu0 %v1775
        %v2244 = vpop.f32.mrf.mxu0
        %v2245 = vadd.f32 0.0, %v2244
        %v2246 = vpop.f32.mrf.mxu0
        %2247 = vmatprep.mubr.f32.mxu0 0.0
        %2248 = vmatmul.mubr.f32.gmra.mxu0 %v1778
        %v2249 = vpop.f32.mrf.mxu0
        %v2250 = vadd.f32 0.0, %v2249
        %v2251 = vpop.f32.mrf.mxu0
        %2252 = vmatprep.mubr.f32.mxu0 0.0
        %2253 = vmatmul.mubr.f32.gmra.mxu0 %v1781
        %v2254 = vpop.f32.mrf.mxu0
        %v2255 = vadd.f32 0.0, %v2254
        %v2256 = vpop.f32.mrf.mxu0
        %2257 = vmatprep.mubr.f32.mxu0 0.0
        %2258 = vmatmul.mubr.f32.gmra.mxu0 %v1784
        %v2259 = vpop.f32.mrf.mxu0
        %v2260 = vadd.f32 0.0, %v2259
        %v2261 = vpop.f32.mrf.mxu0
        %2262 = vmatprep.mubr.f32.mxu0 0.0
        %2263 = vmatmul.mubr.f32.gmra.mxu0 %v1787
        %v2264 = vpop.f32.mrf.mxu0
        %v2265 = vadd.f32 0.0, %v2264
        %v2266 = vpop.f32.mrf.mxu0
        %2267 = vmatprep.mubr.f32.mxu0 0.0
        %2268 = vmatmul.mubr.f32.gmra.mxu0 %v1790
        %v2269 = vpop.f32.mrf.mxu0
        %v2270 = vadd.f32 0.0, %v2269
        %v2271 = vpop.f32.mrf.mxu0
        %2272 = vmatprep.mubr.f32.mxu0 0.0
        %2273 = vmatmul.mubr.f32.gmra.mxu0 %v1793
        %v2274 = vpop.f32.mrf.mxu0
        %v2275 = vadd.f32 0.0, %v2274
        %v2276 = vpop.f32.mrf.mxu0
        %2277 = vmatprep.mubr.f32.mxu0 0.0
        %2278 = vmatmul.mubr.f32.gmra.mxu0 %v1796
        %v2279 = vpop.f32.mrf.mxu0
        %v2280 = vadd.f32 0.0, %v2279
        %v2281 = vpop.f32.mrf.mxu0
        %2282 = vmatprep.mubr.f32.mxu0 0.0
        %2283 = vmatmul.mubr.f32.gmra.mxu0 %v1799
        %v2284 = vpop.f32.mrf.mxu0
        %v2285 = vadd.f32 0.0, %v2284
        %v2286 = vpop.f32.mrf.mxu0
        %2287 = vmatprep.mubr.f32.mxu0 0.0
        %2288 = vmatmul.mubr.f32.gmra.mxu0 %v1802
        %v2289 = vpop.f32.mrf.mxu0
        %v2290 = vadd.f32 0.0, %v2289
        %v2291 = vpop.f32.mrf.mxu0
        %2292 = vmatprep.mubr.f32.mxu0 0.0
        %2293 = vmatmul.mubr.f32.gmra.mxu0 %v1805
        %v2294 = vpop.f32.mrf.mxu0
        %v2295 = vadd.f32 0.0, %v2294
        %v2296 = vpop.f32.mrf.mxu0
        %2297 = vmatprep.mubr.f32.mxu0 0.0
        %2298 = vmatmul.mubr.f32.gmra.mxu0 %v1808
        %v2299 = vpop.f32.mrf.mxu0
        %v2300 = vadd.f32 0.0, %v2299
        %v2301 = vpop.f32.mrf.mxu0
        %2302 = vmatprep.mubr.f32.mxu0 0.0
        %2303 = vmatmul.mubr.f32.gmra.mxu0 %v1811
        %v2304 = vpop.f32.mrf.mxu0
        %v2305 = vadd.f32 0.0, %v2304
        %v2306 = vpop.f32.mrf.mxu0
        %2307 = vmatprep.mubr.f32.mxu0 0.0
        %2308 = vmatmul.mubr.f32.gmra.mxu0 %v1814
        %v2309 = vpop.f32.mrf.mxu0
        %v2310 = vadd.f32 0.0, %v2309
        %v2311 = vpop.f32.mrf.mxu0
        %2312 = vmatprep.mubr.f32.mxu0 0.0
        %2313 = vmatmul.mubr.f32.gmra.mxu0 %v1817
        %v2314 = vpop.f32.mrf.mxu0
        %v2315 = vadd.f32 0.0, %v2314
        %v2316 = vpop.f32.mrf.mxu0
        %2317 = vmatprep.mubr.f32.mxu0 0.0
        %2318 = vmatmul.mubr.f32.gmra.mxu0 %v1820
        %v2319 = vpop.f32.mrf.mxu0
        %v2320 = vadd.f32 0.0, %v2319
        %v2321 = vpop.f32.mrf.mxu0
        %2322 = vmatprep.mubr.f32.mxu0 0.0
        %2323 = vmatmul.mubr.f32.gmra.mxu0 %v1823
        %v2324 = vpop.f32.mrf.mxu0
        %v2325 = vadd.f32 0.0, %v2324
        %v2326 = vpop.f32.mrf.mxu0
        %2327 = vmatprep.mubr.f32.mxu0 0.0
        %2328 = vmatmul.mubr.f32.gmra.mxu0 %v1826
        %v2329 = vpop.f32.mrf.mxu0
        %v2330 = vadd.f32 0.0, %v2329
        %v2331 = vpop.f32.mrf.mxu0
        %2332 = vmatprep.mubr.f32.mxu0 0.0
        %2333 = vmatmul.mubr.f32.gmra.mxu0 %v1829
        %v2334 = vpop.f32.mrf.mxu0
        %v2335 = vadd.f32 0.0, %v2334
        %v2336 = vpop.f32.mrf.mxu0
        %2337 = vmatprep.mubr.f32.mxu0 0.0
        %2338 = vmatmul.mubr.f32.gmra.mxu0 %v1832
        %v2339 = vpop.f32.mrf.mxu0
        %v2340 = vadd.f32 0.0, %v2339
        %v2341 = vpop.f32.mrf.mxu0
        %2342 = vmatprep.mubr.f32.mxu0 0.0
        %2343 = vmatmul.mubr.f32.gmra.mxu0 %v1835
        %v2344 = vpop.f32.mrf.mxu0
        %v2345 = vadd.f32 0.0, %v2344
        %v2346 = vpop.f32.mrf.mxu0
        %2347 = vmatprep.mubr.f32.mxu0 0.0
        %2348 = vmatmul.mubr.f32.gmra.mxu0 %v1838
        %v2349 = vpop.f32.mrf.mxu0
        %v2350 = vadd.f32 0.0, %v2349
        %v2351 = vpop.f32.mrf.mxu0
        %2352 = vmatprep.mubr.f32.mxu0 0.0
        %2353 = vmatmul.mubr.f32.gmra.mxu0 %v1841
        %v2354 = vpop.f32.mrf.mxu0
        %v2355 = vadd.f32 0.0, %v2354
        %v2356 = vpop.f32.mrf.mxu0
        %2357 = vmatprep.mubr.f32.mxu0 0.0
        %2358 = vmatmul.mubr.f32.gmra.mxu0 %v1844
        %v2359 = vpop.f32.mrf.mxu0
        %v2360 = vadd.f32 0.0, %v2359
        %v2361 = vpop.f32.mrf.mxu0
        %2362 = vmatprep.mubr.f32.mxu0 0.0
        %2363 = vmatmul.mubr.f32.gmra.mxu0 %v1847
        %v2364 = vpop.f32.mrf.mxu0
        %v2365 = vadd.f32 0.0, %v2364
        %v2366 = vpop.f32.mrf.mxu0
        %2367 = vmatprep.mubr.f32.mxu0 0.0
        %2368 = vmatmul.mubr.f32.gmra.mxu0 %v1850
        %v2369 = vpop.f32.mrf.mxu0
        %v2370 = vadd.f32 0.0, %v2369
        %v2371 = vpop.f32.mrf.mxu0
        %2372 = vmatprep.mubr.f32.mxu0 0.0
        %2373 = vmatmul.mubr.f32.gmra.mxu0 %v1853
        %v2374 = vpop.f32.mrf.mxu0
        %v2375 = vadd.f32 0.0, %v2374
        %v2376 = vpop.f32.mrf.mxu0
        %2377 = vmatprep.mubr.f32.mxu0 0.0
        %2378 = vmatmul.mubr.f32.gmra.mxu0 %v1856
        %v2379 = vpop.f32.mrf.mxu0
        %v2380 = vadd.f32 0.0, %v2379
        %v2381 = vpop.f32.mrf.mxu0
        %2382 = vmatprep.mubr.f32.mxu0 0.0
        %2383 = vmatmul.mubr.f32.gmra.mxu0 %v1859
        %v2384 = vpop.f32.mrf.mxu0
        %v2385 = vadd.f32 0.0, %v2384
        %v2386 = vpop.f32.mrf.mxu0
        %2387 = vmatprep.mubr.f32.mxu0 0.0
        %2388 = vmatmul.mubr.f32.gmra.mxu0 %v1862
        %v2389 = vpop.f32.mrf.mxu0
        %v2390 = vadd.f32 0.0, %v2389
        %v2391 = vpop.f32.mrf.mxu0
        %2392 = vmatprep.mubr.f32.mxu0 0.0
        %2393 = vmatmul.mubr.f32.gmra.mxu0 %v1865
        %v2394 = vpop.f32.mrf.mxu0
        %v2395 = vadd.f32 0.0, %v2394
        %v2396 = vpop.f32.mrf.mxu0
        %2397 = vmatprep.mubr.f32.mxu0 0.0
        %2398 = vmatmul.mubr.f32.gmra.mxu0 %v1868
        %v2399 = vpop.f32.mrf.mxu0
        %v2400 = vadd.f32 0.0, %v2399
        %v2401 = vpop.f32.mrf.mxu0
        %2402 = vmatprep.mubr.f32.mxu0 0.0
        %2403 = vmatmul.mubr.f32.gmra.mxu0 %v1871
        %v2404 = vpop.f32.mrf.mxu0
        %v2405 = vadd.f32 0.0, %v2404
        %v2406 = vpop.f32.mrf.mxu0
        %2407 = vmatprep.mubr.f32.mxu0 0.0
        %2408 = vmatmul.mubr.f32.gmra.mxu0 %v1874
        %v2409 = vpop.f32.mrf.mxu0
        %v2410 = vadd.f32 0.0, %v2409
        %v2411 = vpop.f32.mrf.mxu0
        %2412 = vmatprep.mubr.f32.mxu0 0.0
        %2413 = vmatmul.mubr.f32.gmra.mxu0 %v1877
        %v2414 = vpop.f32.mrf.mxu0
        %v2415 = vadd.f32 0.0, %v2414
        %v2416 = vpop.f32.mrf.mxu0
        %2417 = vmatprep.mubr.f32.mxu0 0.0
        %2418 = vmatmul.mubr.f32.gmra.mxu0 %v1880
        %v2419 = vpop.f32.mrf.mxu0
        %v2420 = vadd.f32 0.0, %v2419
        %v2421 = vpop.f32.mrf.mxu0
        %2422 = vmatprep.mubr.f32.mxu0 0.0
        %2423 = vmatmul.mubr.f32.gmra.mxu0 %v1883
        %v2424 = vpop.f32.mrf.mxu0
        %v2425 = vadd.f32 0.0, %v2424
        %v2426 = vpop.f32.mrf.mxu0
        %2427 = vmatprep.mubr.f32.mxu0 0.0
        %2428 = vmatmul.mubr.f32.gmra.mxu0 %v1886
        %v2429 = vpop.f32.mrf.mxu0
        %v2430 = vadd.f32 0.0, %v2429
        %v2431 = vpop.f32.mrf.mxu0
        %2432 = vmatprep.mubr.f32.mxu0 0.0
        %2433 = vmatmul.mubr.f32.gmra.mxu0 %v1889
        %v2434 = vpop.f32.mrf.mxu0
        %v2435 = vadd.f32 0.0, %v2434
        %v2436 = vpop.f32.mrf.mxu0
        %2437 = vmatprep.mubr.f32.mxu0 0.0
        %2438 = vmatmul.mubr.f32.gmra.mxu0 %v1892
        %v2439 = vpop.f32.mrf.mxu0
        %v2440 = vadd.f32 0.0, %v2439
        %v2441 = vpop.f32.mrf.mxu0
        %2442 = vmatprep.mubr.f32.mxu0 0.0
        %2443 = vmatmul.mubr.f32.gmra.mxu0 %v1895
        %v2444 = vpop.f32.mrf.mxu0
        %v2445 = vadd.f32 0.0, %v2444
        %v2446 = vpop.f32.mrf.mxu0
        %2447 = vmatprep.mubr.f32.mxu0 0.0
        %2448 = vmatmul.mubr.f32.gmra.mxu0 %v1898
        %v2449 = vpop.f32.mrf.mxu0
        %v2450 = vadd.f32 0.0, %v2449
        %v2451 = vpop.f32.mrf.mxu0
        %2452 = vmatprep.mubr.f32.mxu0 0.0
        %2453 = vmatmul.mubr.f32.gmra.mxu0 %v1901
        %v2454 = vpop.f32.mrf.mxu0
        %v2455 = vadd.f32 0.0, %v2454
        %v2456 = vpop.f32.mrf.mxu0
        %2457 = vmatprep.mubr.f32.mxu0 0.0
        %2458 = vmatmul.mubr.f32.gmra.mxu0 %v1904
        %v2459 = vpop.f32.mrf.mxu0
        %v2460 = vadd.f32 0.0, %v2459
        %v2461 = vpop.f32.mrf.mxu0
        %2462 = vmatprep.mubr.f32.mxu0 0.0
        %2463 = vmatmul.mubr.f32.gmra.mxu0 %v1907
        %v2464 = vpop.f32.mrf.mxu0
        %v2465 = vadd.f32 0.0, %v2464
        %v2466 = vpop.f32.mrf.mxu0
        %2467 = vmatprep.mubr.f32.mxu0 0.0
        %2468 = vmatmul.mubr.f32.gmra.mxu0 %v1910
        %v2469 = vpop.f32.mrf.mxu0
        %v2470 = vadd.f32 0.0, %v2469
        %v2471 = vpop.f32.mrf.mxu0
        %2472 = vmatprep.mubr.f32.mxu0 0.0
        %2473 = vmatmul.mubr.f32.gmra.mxu0 %v1913
        %v2474 = vpop.f32.mrf.mxu0
        %v2475 = vadd.f32 0.0, %v2474
        %v2476 = vpop.f32.mrf.mxu0
        %2477 = vmatprep.mubr.f32.mxu0 0.0
        %2478 = vmatmul.mubr.f32.gmra.mxu0 %v1916
        %v2479 = vpop.f32.mrf.mxu0
        %v2480 = vadd.f32 0.0, %v2479
        %v2481 = vpop.f32.mrf.mxu0
        %2482 = vmatprep.mubr.f32.mxu0 0.0
        %2483 = vmatmul.mubr.f32.gmra.mxu0 %v1919
        %v2484 = vpop.f32.mrf.mxu0
        %v2485 = vadd.f32 0.0, %v2484
        %v2486 = vpop.f32.mrf.mxu0
        %2487 = vmatprep.mubr.f32.mxu0 0.0
        %2488 = vmatmul.mubr.f32.gmra.mxu0 %v1922
        %v2489 = vpop.f32.mrf.mxu0
        %v2490 = vadd.f32 0.0, %v2489
        %v2491 = vpop.f32.mrf.mxu0
        %2492 = vmatprep.mubr.f32.mxu0 0.0
        %2493 = vmatmul.mubr.f32.gmra.mxu0 %v1925
        %v2494 = vpop.f32.mrf.mxu0
        %v2495 = vadd.f32 0.0, %v2494
        %v2496 = vpop.f32.mrf.mxu0
        %2497 = vmatprep.mubr.f32.mxu0 0.0
        %2498 = vmatmul.mubr.f32.gmra.mxu0 %v1928
        %v2499 = vpop.f32.mrf.mxu0
        %v2500 = vadd.f32 0.0, %v2499
        %v2501 = vpop.f32.mrf.mxu0
        %2502 = vmatprep.mubr.f32.mxu0 0.0
        %2503 = vmatmul.mubr.f32.gmra.mxu0 %v1931
        %v2504 = vpop.f32.mrf.mxu0
        %v2505 = vadd.f32 0.0, %v2504
        %v2506 = vpop.f32.mrf.mxu0
        %2507 = vmatprep.mubr.f32.mxu0 0.0
        %2508 = vmatmul.mubr.f32.gmra.mxu0 %v1934
        %v2509 = vpop.f32.mrf.mxu0
        %v2510 = vadd.f32 0.0, %v2509
        %v2511 = vpop.f32.mrf.mxu0
        %2512 = vmatprep.mubr.f32.mxu0 0.0
        %2513 = vmatmul.mubr.f32.gmra.mxu0 %v1937
        %v2514 = vpop.f32.mrf.mxu0
        %v2515 = vadd.f32 0.0, %v2514
        %v2516 = vpop.f32.mrf.mxu0
        %2517 = vmatprep.mubr.f32.mxu0 0.0
        %2518 = vmatmul.mubr.f32.gmra.mxu0 %v1940
        %v2519 = vpop.f32.mrf.mxu0
        %v2520 = vadd.f32 0.0, %v2519
        %v2521 = vpop.f32.mrf.mxu0
        %2522 = vmatprep.mubr.f32.mxu0 0.0
        %2523 = vmatmul.mubr.f32.gmra.mxu0 %v1943
        %v2524 = vpop.f32.mrf.mxu0
        %v2525 = vadd.f32 0.0, %v2524
        %v2526 = vpop.f32.mrf.mxu0
        %2527 = vmatprep.mubr.f32.mxu0 0.0
        %2528 = vmatmul.mubr.f32.gmra.mxu0 %v1946
        %v2529 = vpop.f32.mrf.mxu0
        %v2530 = vadd.f32 0.0, %v2529
        %v2531 = vpop.f32.mrf.mxu0
        %2532 = vmatprep.mubr.f32.mxu0 0.0
        %2533 = vmatmul.mubr.f32.gmra.mxu0 %v1949
        %v2534 = vpop.f32.mrf.mxu0
        %v2535 = vadd.f32 0.0, %v2534
        %v2536 = vpop.f32.mrf.mxu0
        %2537 = vmatprep.mubr.f32.mxu0 0.0
        %2538 = vmatmul.mubr.f32.gmra.mxu0 %v1952
        %v2539 = vpop.f32.mrf.mxu0
        %v2540 = vadd.f32 0.0, %v2539
        %v2541 = vpop.f32.mrf.mxu0
        %2542 = vmatprep.mubr.f32.mxu0 0.0
        %2543 = vmatmul.mubr.f32.gmra.mxu0 %v1955
        %v2544 = vpop.f32.mrf.mxu0
        %v2545 = vadd.f32 0.0, %v2544
        %v2546 = vpop.f32.mrf.mxu0
        %2547 = vmatprep.mubr.f32.mxu0 0.0
        %2548 = vmatmul.mubr.f32.gmra.mxu0 %v1958
        %v2549 = vpop.f32.mrf.mxu0
        %v2550 = vadd.f32 0.0, %v2549
        %v2551 = vpop.f32.mrf.mxu0
        %2552 = vmatprep.mubr.f32.mxu0 0.0
        %2553 = vmatmul.mubr.f32.gmra.mxu0 %v1961
        %v2554 = vpop.f32.mrf.mxu0
        %v2555 = vadd.f32 0.0, %v2554
        %v2556 = vpop.f32.mrf.mxu0
        %2557 = vmatprep.mubr.f32.mxu0 0.0
        %2558 = vmatmul.mubr.f32.gmra.mxu0 %v1964
        %v2559 = vpop.f32.mrf.mxu0
        %v2560 = vadd.f32 0.0, %v2559
        %v2561 = vpop.f32.mrf.mxu0
        %2562 = vmatprep.mubr.f32.mxu0 0.0
        %2563 = vmatmul.mubr.f32.gmra.mxu0 %v1967
        %v2564 = vpop.f32.mrf.mxu0
        %v2565 = vadd.f32 0.0, %v2564
        %v2566 = vpop.f32.mrf.mxu0
        %2567 = vmatprep.mubr.f32.mxu0 0.0
        %2568 = vmatmul.mubr.f32.gmra.mxu0 %v1970
        %v2569 = vpop.f32.mrf.mxu0
        %v2570 = vadd.f32 0.0, %v2569
        %v2571 = vpop.f32.mrf.mxu0
        %2572 = vmatprep.mubr.f32.mxu0 0.0
        %2573 = vmatmul.mubr.f32.gmra.mxu0 %v1973
        %v2574 = vpop.f32.mrf.mxu0
        %v2575 = vadd.f32 0.0, %v2574
        %v2576 = vpop.f32.mrf.mxu0
        %2577 = vmatprep.mubr.f32.mxu0 0.0
        %2578 = vmatmul.mubr.f32.gmra.mxu0 %v1976
        %v2579 = vpop.f32.mrf.mxu0
        %v2580 = vadd.f32 0.0, %v2579
        %v2581 = vpop.f32.mrf.mxu0
        %2582 = vmatprep.mubr.f32.mxu0 0.0
        %2583 = vmatmul.mubr.f32.gmra.mxu0 %v1979
        %v2584 = vpop.f32.mrf.mxu0
        %v2585 = vadd.f32 0.0, %v2584
        %v2586 = vpop.f32.mrf.mxu0
        %2587 = vmatprep.mubr.f32.mxu0 0.0
        %2588 = vmatmul.mubr.f32.gmra.mxu0 %v1982
        %v2589 = vpop.f32.mrf.mxu0
        %v2590 = vadd.f32 0.0, %v2589
        %v2591 = vpop.f32.mrf.mxu0
        %2592 = vmatprep.mubr.f32.mxu0 0.0
        %2593 = vmatmul.mubr.f32.gmra.mxu0 %v1985
        %v2594 = vpop.f32.mrf.mxu0
        %v2595 = vadd.f32 0.0, %v2594
        %v2596 = vpop.f32.mrf.mxu0
        %2597 = vmatprep.mubr.f32.mxu0 0.0
        %2598 = vmatmul.mubr.f32.gmra.mxu0 %v1988
        %v2599 = vpop.f32.mrf.mxu0
        %v2600 = vadd.f32 0.0, %v2599
        %v2601 = vpop.f32.mrf.mxu0
        %2602 = vmatprep.mubr.f32.mxu0 0.0
        %2603 = vmatmul.mubr.f32.gmra.mxu0 %v1991
        %v2604 = vpop.f32.mrf.mxu0
        %v2605 = vadd.f32 0.0, %v2604
        %v2606 = vpop.f32.mrf.mxu0
        %2607 = vmatprep.mubr.f32.mxu0 0.0
        %2608 = vmatmul.mubr.f32.gmra.mxu0 %v1994
        %v2609 = vpop.f32.mrf.mxu0
        %v2610 = vadd.f32 0.0, %v2609
        %v2611 = vpop.f32.mrf.mxu0
        %2612 = vmatprep.mubr.f32.mxu0 0.0
        %2613 = vmatmul.mubr.f32.gmra.mxu0 %v1997
        %v2614 = vpop.f32.mrf.mxu0
        %v2615 = vadd.f32 0.0, %v2614
        %v2616 = vpop.f32.mrf.mxu0
        %2617 = vmatprep.mubr.f32.mxu0 0.0
        %2618 = vmatmul.mubr.f32.gmra.mxu0 %v2000
        %v2619 = vpop.f32.mrf.mxu0
        %v2620 = vadd.f32 0.0, %v2619
        %v2621 = vpop.f32.mrf.mxu0
        %2622 = vmatprep.mubr.f32.mxu0 0.0
        %2623 = vmatmul.mubr.f32.gmra.mxu0 %v2003
        %v2624 = vpop.f32.mrf.mxu0
        %v2625 = vadd.f32 0.0, %v2624
        %v2626 = vpop.f32.mrf.mxu0
        %2627 = vmatprep.mubr.f32.mxu0 0.0
        %2628 = vmatmul.mubr.f32.gmra.mxu0 %v2006
        %v2629 = vpop.f32.mrf.mxu0
        %v2630 = vadd.f32 0.0, %v2629
        %v2631 = vpop.f32.mrf.mxu0
        %2632 = vmatprep.mubr.f32.mxu0 0.0
        %2633 = vmatmul.mubr.f32.gmra.mxu0 %v2009
        %v2634 = vpop.f32.mrf.mxu0
        %v2635 = vadd.f32 0.0, %v2634
        %v2636 = vpop.f32.mrf.mxu0
        %2637 = vmatprep.mubr.f32.mxu0 0.0
        %2638 = vmatmul.mubr.f32.gmra.mxu0 %v2012
        %v2639 = vpop.f32.mrf.mxu0
        %v2640 = vadd.f32 0.0, %v2639
        %v2641 = vpop.f32.mrf.mxu0
        %2642 = vmatprep.mubr.f32.mxu0 0.0
        %2643 = vmatmul.mubr.f32.gmra.mxu0 %v2015
        %v2644 = vpop.f32.mrf.mxu0
        %v2645 = vadd.f32 0.0, %v2644
        %v2646 = vpop.f32.mrf.mxu0
        %2647 = vmatprep.mubr.f32.mxu0 0.0
        %2648 = vmatmul.mubr.f32.gmra.mxu0 %v2018
        %v2649 = vpop.f32.mrf.mxu0
        %v2650 = vadd.f32 0.0, %v2649
        %v2651 = vpop.f32.mrf.mxu0
        %2652 = vmatprep.mubr.f32.mxu0 0.0
        %2653 = vmatmul.mubr.f32.gmra.mxu0 %v2021
        %v2654 = vpop.f32.mrf.mxu0
        %v2655 = vadd.f32 0.0, %v2654
        %v2656 = vpop.f32.mrf.mxu0
        %2657 = vmatprep.mubr.f32.mxu0 0.0
        %2658 = vmatmul.mubr.f32.gmra.mxu0 %v2024
        %v2659 = vpop.f32.mrf.mxu0
        %v2660 = vadd.f32 0.0, %v2659
        %v2661 = vpop.f32.mrf.mxu0
        %2662 = vmatprep.mubr.f32.mxu0 0.0
        %2663 = vmatmul.mubr.f32.gmra.mxu0 %v2027
        %v2664 = vpop.f32.mrf.mxu0
        %v2665 = vadd.f32 0.0, %v2664
        %v2666 = vpop.f32.mrf.mxu0
        %2667 = vmatprep.mubr.f32.mxu0 0.0
        %2668 = vmatmul.mubr.f32.gmra.mxu0 %v2030
        %v2669 = vpop.f32.mrf.mxu0
        %v2670 = vadd.f32 0.0, %v2669
        %v2671 = vpop.f32.mrf.mxu0
        %2672 = vmatprep.mubr.f32.mxu0 0.0
        %2673 = vmatmul.mubr.f32.gmra.mxu0 %v2033
        %v2674 = vpop.f32.mrf.mxu0
        %v2675 = vadd.f32 0.0, %v2674
        %v2676 = vpop.f32.mrf.mxu0
        %2677 = vmatprep.mubr.f32.mxu0 0.0
        %2678 = vmatmul.mubr.f32.gmra.mxu0 %v2036
        %v2679 = vpop.f32.mrf.mxu0
        %v2680 = vadd.f32 0.0, %v2679
        %v2681 = vpop.f32.mrf.mxu0
        %2682 = vmatprep.mubr.f32.mxu0 0.0
        %2683 = vmatmul.mubr.f32.gmra.mxu0 %v2039
        %v2684 = vpop.f32.mrf.mxu0
        %v2685 = vadd.f32 0.0, %v2684
        %v2686 = vpop.f32.mrf.mxu0
        %2687 = vmatprep.mubr.f32.mxu0 0.0
        %2688 = vmatmul.mubr.f32.gmra.mxu0 %v2042
        %v2689 = vpop.f32.mrf.mxu0
        %v2690 = vadd.f32 0.0, %v2689
        %v2691 = vpop.f32.mrf.mxu0
        %2692 = vmatprep.mubr.f32.mxu0 0.0
        %2693 = vmatmul.mubr.f32.gmra.mxu0 %v2045
        %v2694 = vpop.f32.mrf.mxu0
        %v2695 = vadd.f32 0.0, %v2694
        %v2696 = vpop.f32.mrf.mxu0
        %2697 = vmatprep.mubr.f32.mxu0 0.0
        %2698 = vmatmul.mubr.f32.gmra.mxu0 %v2048
        %v2699 = vpop.f32.mrf.mxu0
        %v2700 = vadd.f32 0.0, %v2699
        %v2701 = vpop.f32.mrf.mxu0
        %2702 = vmatprep.mubr.f32.mxu0 0.0
        %2703 = vmatmul.mubr.f32.gmra.mxu0 %v2051
        %v2704 = vpop.f32.mrf.mxu0
        %v2705 = vadd.f32 0.0, %v2704
        %v2706 = vpop.f32.mrf.mxu0
        %2707 = vmatprep.mubr.f32.mxu0 0.0
        %2708 = vmatmul.mubr.f32.gmra.mxu0 %v2054
        %v2709 = vpop.f32.mrf.mxu0
        %v2710 = vadd.f32 0.0, %v2709
        %v2711 = vpop.f32.mrf.mxu0
        %2712 = vmatprep.mubr.f32.mxu0 0.0
        %2713 = vmatmul.mubr.f32.gmra.mxu0 %v2057
        %v2714 = vpop.f32.mrf.mxu0
        %v2715 = vadd.f32 0.0, %v2714
        %v2716 = vpop.f32.mrf.mxu0
        %2717 = vmatprep.mubr.f32.mxu0 0.0
        %2718 = vmatmul.mubr.f32.gmra.mxu0 %v2060
        %v2719 = vpop.f32.mrf.mxu0
        %v2720 = vadd.f32 0.0, %v2719
        %v2721 = vpop.f32.mrf.mxu0
        %2722 = vmatprep.mubr.f32.mxu0 0.0
        %2723 = vmatmul.mubr.f32.gmra.mxu0 %v2063
        %v2724 = vpop.f32.mrf.mxu0
        %v2725 = vadd.f32 0.0, %v2724
        %v2726 = vpop.f32.mrf.mxu0
        %2727 = vmatprep.mubr.f32.mxu0 0.0
        %2728 = vmatmul.mubr.f32.gmra.mxu0 %v2066
        %v2729 = vpop.f32.mrf.mxu0
        %v2730 = vadd.f32 0.0, %v2729
        %v2731 = vpop.f32.mrf.mxu0
        %2732 = vmatprep.mubr.f32.mxu0 0.0
        %2733 = vmatmul.mubr.f32.gmra.mxu0 %v2069
        %v2734 = vpop.f32.mrf.mxu0
        %v2735 = vadd.f32 0.0, %v2734
        %v2736 = vpop.f32.mrf.mxu0
        %2737 = vmatprep.mubr.f32.mxu0 0.0
        %2738 = vmatmul.mubr.f32.gmra.mxu0 %v2072
        %v2739 = vpop.f32.mrf.mxu0
        %v2740 = vadd.f32 0.0, %v2739
        %v2741 = vpop.f32.mrf.mxu0
        %2742 = vmatprep.mubr.f32.mxu0 0.0
        %2743 = vmatmul.mubr.f32.gmra.mxu0 %v2075
        %v2744 = vpop.f32.mrf.mxu0
        %v2745 = vadd.f32 0.0, %v2744
        %v2746 = vpop.f32.mrf.mxu0
        %2747 = vmatprep.mubr.f32.mxu0 0.0
        %2748 = vmatmul.mubr.f32.gmra.mxu0 %v2078
        %v2749 = vpop.f32.mrf.mxu0
        %v2750 = vadd.f32 0.0, %v2749
        %v2751 = vpop.f32.mrf.mxu0
        %2752 = vmatprep.mubr.f32.mxu0 0.0
        %2753 = vmatmul.mubr.f32.gmra.mxu0 %v2081
        %v2754 = vpop.f32.mrf.mxu0
        %v2755 = vadd.f32 0.0, %v2754
        %v2756 = vpop.f32.mrf.mxu0
        %2757 = vmatprep.mubr.f32.mxu0 0.0
        %2758 = vmatmul.mubr.f32.gmra.mxu0 %v2084
        %v2759 = vpop.f32.mrf.mxu0
        %v2760 = vadd.f32 0.0, %v2759
        %v2761 = vpop.f32.mrf.mxu0
        %2762 = vmatprep.mubr.f32.mxu0 0.0
        %2763 = vmatmul.mubr.f32.gmra.mxu0 %v2087
        %v2764 = vpop.f32.mrf.mxu0
        %v2765 = vadd.f32 0.0, %v2764
        %v2766 = vpop.f32.mrf.mxu0
        %2767 = vmatprep.mubr.f32.mxu0 0.0
        %2768 = vmatmul.mubr.f32.gmra.mxu0 %v2090
        %v2769 = vpop.f32.mrf.mxu0
        %v2770 = vadd.f32 0.0, %v2769
        %v2771 = vpop.f32.mrf.mxu0
        %2772 = vmatprep.mubr.f32.mxu0 0.0
        %2773 = vmatmul.mubr.f32.gmra.mxu0 %v2093
        %v2774 = vpop.f32.mrf.mxu0
        %v2775 = vadd.f32 0.0, %v2774
        %v2776 = vpop.f32.mrf.mxu0
        %2777 = vmatprep.mubr.f32.mxu0 0.0
        %2778 = vmatmul.mubr.f32.gmra.mxu0 %v2096
        %v2779 = vpop.f32.mrf.mxu0
        %v2780 = vadd.f32 0.0, %v2779
        %v2781 = vpop.f32.mrf.mxu0
        %2782 = vmatprep.mubr.f32.mxu0 0.0
        %2783 = vmatmul.mubr.f32.gmra.mxu0 %v2099
        %v2784 = vpop.f32.mrf.mxu0
        %v2785 = vadd.f32 0.0, %v2784
        %v2786 = vpop.f32.mrf.mxu0
        %2787 = vmatprep.mubr.f32.mxu0 0.0
        %2788 = vmatmul.mubr.f32.gmra.mxu0 %v2102
        %v2789 = vpop.f32.mrf.mxu0
        %v2790 = vadd.f32 0.0, %v2789
        %v2791 = vpop.f32.mrf.mxu0
        %2792 = vmatprep.mubr.f32.mxu0 0.0
        %2793 = vmatmul.mubr.f32.gmra.mxu0 %v2105
        %v2794 = vpop.f32.mrf.mxu0
        %v2795 = vadd.f32 0.0, %v2794
        %v2796 = vpop.f32.mrf.mxu0
        %2797 = vmatprep.mubr.f32.mxu0 0.0
        %2798 = vmatmul.mubr.f32.gmra.mxu0 %v2108
        %v2799 = vpop.f32.mrf.mxu0
        %v2800 = vadd.f32 0.0, %v2799
        %v2801 = vpop.f32.mrf.mxu0
        %2802 = vmatprep.mubr.f32.mxu0 0.0
        %2803 = vmatmul.mubr.f32.gmra.mxu0 %v2111
        %v2804 = vpop.f32.mrf.mxu0
        %v2805 = vadd.f32 0.0, %v2804
        %v2806 = vpop.f32.mrf.mxu0
        %2807 = vmatprep.mubr.f32.mxu0 0.0
        %2808 = vmatmul.mubr.f32.gmra.mxu0 %v2114
        %v2809 = vpop.f32.mrf.mxu0
        %v2810 = vadd.f32 0.0, %v2809
        %v2811 = vpop.f32.mrf.mxu0
        %2812 = vmatprep.mubr.f32.mxu0 0.0
        %2813 = vmatmul.mubr.f32.gmra.mxu0 %v2117
        %v2814 = vpop.f32.mrf.mxu0
        %v2815 = vadd.f32 0.0, %v2814
        %v2816 = vpop.f32.mrf.mxu0
        %2817 = vmatprep.mubr.f32.mxu0 0.0
        %2818 = vmatmul.mubr.f32.gmra.mxu0 %v2120
        %v2819 = vpop.f32.mrf.mxu0
        %v2820 = vadd.f32 0.0, %v2819
        %v2821 = vpop.f32.mrf.mxu0
        %2822 = vmatprep.mubr.f32.mxu0 0.0
        %2823 = vmatmul.mubr.f32.gmra.mxu0 %v2123
        %v2824 = vpop.f32.mrf.mxu0
        %v2825 = vadd.f32 0.0, %v2824
        %v2826 = vpop.f32.mrf.mxu0
        %2827 = vmatprep.mubr.f32.mxu0 0.0
        %2828 = vmatmul.mubr.f32.gmra.mxu0 %v2126
        %v2829 = vpop.f32.mrf.mxu0
        %v2830 = vadd.f32 0.0, %v2829
        %v2831 = vpop.f32.mrf.mxu0
        %2832 = vmatprep.mubr.f32.mxu0 0.0
        %2833 = vmatmul.mubr.f32.gmra.mxu0 %v2129
        %v2834 = vpop.f32.mrf.mxu0
        %v2835 = vadd.f32 0.0, %v2834
        %v2836 = vpop.f32.mrf.mxu0
        %2837 = vmatprep.mubr.f32.mxu0 0.0
        %2838 = vmatmul.mubr.f32.gmra.mxu0 %v2132
        %v2839 = vpop.f32.mrf.mxu0
        %v2840 = vadd.f32 0.0, %v2839
        %v2841 = vpop.f32.mrf.mxu0
        %2842 = vdwg.mxu0
        %v2843 = vld [vmem:[%s5] sm:$0x1]
        %v2845 = vlaneseq
        %v2846 = vshrl.u32 %v2845, 7
        %v2847 = vsub.s32 0, %v2846
        %v2848 = vrot.slane %v2843, %v2847
        %v2850 = vmul.f32 %v2205, %v2848
        %v2851 = vmul.f32 %v2210, %v2848
        %v2852 = vmul.f32 %v2215, %v2848
        %v2853 = vmul.f32 %v2220, %v2848
        %v2854 = vmul.f32 %v2225, %v2848
        %v2855 = vmul.f32 %v2230, %v2848
        %v2856 = vmul.f32 %v2235, %v2848
        %v2857 = vmul.f32 %v2240, %v2848
        %v2858 = vmul.f32 %v2245, %v2848
        %v2859 = vmul.f32 %v2250, %v2848
        %v2860 = vmul.f32 %v2255, %v2848
        %v2861 = vmul.f32 %v2260, %v2848
        %v2862 = vmul.f32 %v2265, %v2848
        %v2863 = vmul.f32 %v2270, %v2848
        %v2864 = vmul.f32 %v2275, %v2848
        %v2865 = vmul.f32 %v2280, %v2848
        %v2866 = vmul.f32 %v2285, %v2848
        %v2867 = vmul.f32 %v2290, %v2848
        %v2868 = vmul.f32 %v2295, %v2848
        %v2869 = vmul.f32 %v2300, %v2848
        %v2870 = vmul.f32 %v2305, %v2848
        %v2871 = vmul.f32 %v2310, %v2848
        %v2872 = vmul.f32 %v2315, %v2848
        %v2873 = vmul.f32 %v2320, %v2848
        %v2874 = vmul.f32 %v2325, %v2848
        %v2875 = vmul.f32 %v2330, %v2848
        %v2876 = vmul.f32 %v2335, %v2848
        %v2877 = vmul.f32 %v2340, %v2848
        %v2878 = vmul.f32 %v2345, %v2848
        %v2879 = vmul.f32 %v2350, %v2848
        %v2880 = vmul.f32 %v2355, %v2848
        %v2881 = vmul.f32 %v2360, %v2848
        %v2882 = vmul.f32 %v2365, %v2848
        %v2883 = vmul.f32 %v2370, %v2848
        %v2884 = vmul.f32 %v2375, %v2848
        %v2885 = vmul.f32 %v2380, %v2848
        %v2886 = vmul.f32 %v2385, %v2848
        %v2887 = vmul.f32 %v2390, %v2848
        %v2888 = vmul.f32 %v2395, %v2848
        %v2889 = vmul.f32 %v2400, %v2848
        %v2890 = vmul.f32 %v2405, %v2848
        %v2891 = vmul.f32 %v2410, %v2848
        %v2892 = vmul.f32 %v2415, %v2848
        %v2893 = vmul.f32 %v2420, %v2848
        %v2894 = vmul.f32 %v2425, %v2848
        %v2895 = vmul.f32 %v2430, %v2848
        %v2896 = vmul.f32 %v2435, %v2848
        %v2897 = vmul.f32 %v2440, %v2848
        %v2898 = vmul.f32 %v2445, %v2848
        %v2899 = vmul.f32 %v2450, %v2848
        %v2900 = vmul.f32 %v2455, %v2848
        %v2901 = vmul.f32 %v2460, %v2848
        %v2902 = vmul.f32 %v2465, %v2848
        %v2903 = vmul.f32 %v2470, %v2848
        %v2904 = vmul.f32 %v2475, %v2848
        %v2905 = vmul.f32 %v2480, %v2848
        %v2906 = vmul.f32 %v2485, %v2848
        %v2907 = vmul.f32 %v2490, %v2848
        %v2908 = vmul.f32 %v2495, %v2848
        %v2909 = vmul.f32 %v2500, %v2848
        %v2910 = vmul.f32 %v2505, %v2848
        %v2911 = vmul.f32 %v2510, %v2848
        %v2912 = vmul.f32 %v2515, %v2848
        %v2913 = vmul.f32 %v2520, %v2848
        %v2914 = vmul.f32 %v2525, %v2848
        %v2915 = vmul.f32 %v2530, %v2848
        %v2916 = vmul.f32 %v2535, %v2848
        %v2917 = vmul.f32 %v2540, %v2848
        %v2918 = vmul.f32 %v2545, %v2848
        %v2919 = vmul.f32 %v2550, %v2848
        %v2920 = vmul.f32 %v2555, %v2848
        %v2921 = vmul.f32 %v2560, %v2848
        %v2922 = vmul.f32 %v2565, %v2848
        %v2923 = vmul.f32 %v2570, %v2848
        %v2924 = vmul.f32 %v2575, %v2848
        %v2925 = vmul.f32 %v2580, %v2848
        %v2926 = vmul.f32 %v2585, %v2848
        %v2927 = vmul.f32 %v2590, %v2848
        %v2928 = vmul.f32 %v2595, %v2848
        %v2929 = vmul.f32 %v2600, %v2848
        %v2930 = vmul.f32 %v2605, %v2848
        %v2931 = vmul.f32 %v2610, %v2848
        %v2932 = vmul.f32 %v2615, %v2848
        %v2933 = vmul.f32 %v2620, %v2848
        %v2934 = vmul.f32 %v2625, %v2848
        %v2935 = vmul.f32 %v2630, %v2848
        %v2936 = vmul.f32 %v2635, %v2848
        %v2937 = vmul.f32 %v2640, %v2848
        %v2938 = vmul.f32 %v2645, %v2848
        %v2939 = vmul.f32 %v2650, %v2848
        %v2940 = vmul.f32 %v2655, %v2848
        %v2941 = vmul.f32 %v2660, %v2848
        %v2942 = vmul.f32 %v2665, %v2848
        %v2943 = vmul.f32 %v2670, %v2848
        %v2944 = vmul.f32 %v2675, %v2848
        %v2945 = vmul.f32 %v2680, %v2848
        %v2946 = vmul.f32 %v2685, %v2848
        %v2947 = vmul.f32 %v2690, %v2848
        %v2948 = vmul.f32 %v2695, %v2848
        %v2949 = vmul.f32 %v2700, %v2848
        %v2950 = vmul.f32 %v2705, %v2848
        %v2951 = vmul.f32 %v2710, %v2848
        %v2952 = vmul.f32 %v2715, %v2848
        %v2953 = vmul.f32 %v2720, %v2848
        %v2954 = vmul.f32 %v2725, %v2848
        %v2955 = vmul.f32 %v2730, %v2848
        %v2956 = vmul.f32 %v2735, %v2848
        %v2957 = vmul.f32 %v2740, %v2848
        %v2958 = vmul.f32 %v2745, %v2848
        %v2959 = vmul.f32 %v2750, %v2848
        %v2960 = vmul.f32 %v2755, %v2848
        %v2961 = vmul.f32 %v2760, %v2848
        %v2962 = vmul.f32 %v2765, %v2848
        %v2963 = vmul.f32 %v2770, %v2848
        %v2964 = vmul.f32 %v2775, %v2848
        %v2965 = vmul.f32 %v2780, %v2848
        %v2966 = vmul.f32 %v2785, %v2848
        %v2967 = vmul.f32 %v2790, %v2848
        %v2968 = vmul.f32 %v2795, %v2848
        %v2969 = vmul.f32 %v2800, %v2848
        %v2970 = vmul.f32 %v2805, %v2848
        %v2971 = vmul.f32 %v2810, %v2848
        %v2972 = vmul.f32 %v2815, %v2848
        %v2973 = vmul.f32 %v2820, %v2848
        %v2974 = vmul.f32 %v2825, %v2848
        %v2975 = vmul.f32 %v2830, %v2848
        %v2976 = vmul.f32 %v2835, %v2848
        %v2977 = vmul.f32 %v2840, %v2848
        %v2978 = vld [vmem:[%s7] sm:$0x1]
        %v2980 = vlaneseq
        %v2981 = vshrl.u32 %v2980, 7
        %v2982 = vsub.s32 0, %v2981
        %v2983 = vrot.slane %v2978, %v2982
        %v2985 = vadd.f32 %v2850, %v2983
        %v2986 = vadd.f32 %v2851, %v2983
        %v2987 = vadd.f32 %v2852, %v2983
        %v2988 = vadd.f32 %v2853, %v2983
        %v2989 = vadd.f32 %v2854, %v2983
        %v2990 = vadd.f32 %v2855, %v2983
        %v2991 = vadd.f32 %v2856, %v2983
        %v2992 = vadd.f32 %v2857, %v2983
        %v2993 = vadd.f32 %v2858, %v2983
        %v2994 = vadd.f32 %v2859, %v2983
        %v2995 = vadd.f32 %v2860, %v2983
        %v2996 = vadd.f32 %v2861, %v2983
        %v2997 = vadd.f32 %v2862, %v2983
        %v2998 = vadd.f32 %v2863, %v2983
        %v2999 = vadd.f32 %v2864, %v2983
        %v3000 = vadd.f32 %v2865, %v2983
        %v3001 = vadd.f32 %v2866, %v2983
        %v3002 = vadd.f32 %v2867, %v2983
        %v3003 = vadd.f32 %v2868, %v2983
        %v3004 = vadd.f32 %v2869, %v2983
        %v3005 = vadd.f32 %v2870, %v2983
        %v3006 = vadd.f32 %v2871, %v2983
        %v3007 = vadd.f32 %v2872, %v2983
        %v3008 = vadd.f32 %v2873, %v2983
        %v3009 = vadd.f32 %v2874, %v2983
        %v3010 = vadd.f32 %v2875, %v2983
        %v3011 = vadd.f32 %v2876, %v2983
        %v3012 = vadd.f32 %v2877, %v2983
        %v3013 = vadd.f32 %v2878, %v2983
        %v3014 = vadd.f32 %v2879, %v2983
        %v3015 = vadd.f32 %v2880, %v2983
        %v3016 = vadd.f32 %v2881, %v2983
        %v3017 = vadd.f32 %v2882, %v2983
        %v3018 = vadd.f32 %v2883, %v2983
        %v3019 = vadd.f32 %v2884, %v2983
        %v3020 = vadd.f32 %v2885, %v2983
        %v3021 = vadd.f32 %v2886, %v2983
        %v3022 = vadd.f32 %v2887, %v2983
        %v3023 = vadd.f32 %v2888, %v2983
        %v3024 = vadd.f32 %v2889, %v2983
        %v3025 = vadd.f32 %v2890, %v2983
        %v3026 = vadd.f32 %v2891, %v2983
        %v3027 = vadd.f32 %v2892, %v2983
        %v3028 = vadd.f32 %v2893, %v2983
        %v3029 = vadd.f32 %v2894, %v2983
        %v3030 = vadd.f32 %v2895, %v2983
        %v3031 = vadd.f32 %v2896, %v2983
        %v3032 = vadd.f32 %v2897, %v2983
        %v3033 = vadd.f32 %v2898, %v2983
        %v3034 = vadd.f32 %v2899, %v2983
        %v3035 = vadd.f32 %v2900, %v2983
        %v3036 = vadd.f32 %v2901, %v2983
        %v3037 = vadd.f32 %v2902, %v2983
        %v3038 = vadd.f32 %v2903, %v2983
        %v3039 = vadd.f32 %v2904, %v2983
        %v3040 = vadd.f32 %v2905, %v2983
        %v3041 = vadd.f32 %v2906, %v2983
        %v3042 = vadd.f32 %v2907, %v2983
        %v3043 = vadd.f32 %v2908, %v2983
        %v3044 = vadd.f32 %v2909, %v2983
        %v3045 = vadd.f32 %v2910, %v2983
        %v3046 = vadd.f32 %v2911, %v2983
        %v3047 = vadd.f32 %v2912, %v2983
        %v3048 = vadd.f32 %v2913, %v2983
        %v3049 = vadd.f32 %v2914, %v2983
        %v3050 = vadd.f32 %v2915, %v2983
        %v3051 = vadd.f32 %v2916, %v2983
        %v3052 = vadd.f32 %v2917, %v2983
        %v3053 = vadd.f32 %v2918, %v2983
        %v3054 = vadd.f32 %v2919, %v2983
        %v3055 = vadd.f32 %v2920, %v2983
        %v3056 = vadd.f32 %v2921, %v2983
        %v3057 = vadd.f32 %v2922, %v2983
        %v3058 = vadd.f32 %v2923, %v2983
        %v3059 = vadd.f32 %v2924, %v2983
        %v3060 = vadd.f32 %v2925, %v2983
        %v3061 = vadd.f32 %v2926, %v2983
        %v3062 = vadd.f32 %v2927, %v2983
        %v3063 = vadd.f32 %v2928, %v2983
        %v3064 = vadd.f32 %v2929, %v2983
        %v3065 = vadd.f32 %v2930, %v2983
        %v3066 = vadd.f32 %v2931, %v2983
        %v3067 = vadd.f32 %v2932, %v2983
        %v3068 = vadd.f32 %v2933, %v2983
        %v3069 = vadd.f32 %v2934, %v2983
        %v3070 = vadd.f32 %v2935, %v2983
        %v3071 = vadd.f32 %v2936, %v2983
        %v3072 = vadd.f32 %v2937, %v2983
        %v3073 = vadd.f32 %v2938, %v2983
        %v3074 = vadd.f32 %v2939, %v2983
        %v3075 = vadd.f32 %v2940, %v2983
        %v3076 = vadd.f32 %v2941, %v2983
        %v3077 = vadd.f32 %v2942, %v2983
        %v3078 = vadd.f32 %v2943, %v2983
        %v3079 = vadd.f32 %v2944, %v2983
        %v3080 = vadd.f32 %v2945, %v2983
        %v3081 = vadd.f32 %v2946, %v2983
        %v3082 = vadd.f32 %v2947, %v2983
        %v3083 = vadd.f32 %v2948, %v2983
        %v3084 = vadd.f32 %v2949, %v2983
        %v3085 = vadd.f32 %v2950, %v2983
        %v3086 = vadd.f32 %v2951, %v2983
        %v3087 = vadd.f32 %v2952, %v2983
        %v3088 = vadd.f32 %v2953, %v2983
        %v3089 = vadd.f32 %v2954, %v2983
        %v3090 = vadd.f32 %v2955, %v2983
        %v3091 = vadd.f32 %v2956, %v2983
        %v3092 = vadd.f32 %v2957, %v2983
        %v3093 = vadd.f32 %v2958, %v2983
        %v3094 = vadd.f32 %v2959, %v2983
        %v3095 = vadd.f32 %v2960, %v2983
        %v3096 = vadd.f32 %v2961, %v2983
        %v3097 = vadd.f32 %v2962, %v2983
        %v3098 = vadd.f32 %v2963, %v2983
        %v3099 = vadd.f32 %v2964, %v2983
        %v3100 = vadd.f32 %v2965, %v2983
        %v3101 = vadd.f32 %v2966, %v2983
        %v3102 = vadd.f32 %v2967, %v2983
        %v3103 = vadd.f32 %v2968, %v2983
        %v3104 = vadd.f32 %v2969, %v2983
        %v3105 = vadd.f32 %v2970, %v2983
        %v3106 = vadd.f32 %v2971, %v2983
        %v3107 = vadd.f32 %v2972, %v2983
        %v3108 = vadd.f32 %v2973, %v2983
        %v3109 = vadd.f32 %v2974, %v2983
        %v3110 = vadd.f32 %v2975, %v2983
        %v3111 = vadd.f32 %v2976, %v2983
        %v3112 = vadd.f32 %v2977, %v2983
        %v3113 = vmax.f32 %v2985, 0.0
        %v3114 = vmax.f32 %v2986, 0.0
        %v3115 = vmax.f32 %v2987, 0.0
        %v3116 = vmax.f32 %v2988, 0.0
        %v3117 = vmax.f32 %v2989, 0.0
        %v3118 = vmax.f32 %v2990, 0.0
        %v3119 = vmax.f32 %v2991, 0.0
        %v3120 = vmax.f32 %v2992, 0.0
        %v3121 = vmax.f32 %v2993, 0.0
        %v3122 = vmax.f32 %v2994, 0.0
        %v3123 = vmax.f32 %v2995, 0.0
        %v3124 = vmax.f32 %v2996, 0.0
        %v3125 = vmax.f32 %v2997, 0.0
        %v3126 = vmax.f32 %v2998, 0.0
        %v3127 = vmax.f32 %v2999, 0.0
        %v3128 = vmax.f32 %v3000, 0.0
        %v3129 = vmax.f32 %v3001, 0.0
        %v3130 = vmax.f32 %v3002, 0.0
        %v3131 = vmax.f32 %v3003, 0.0
        %v3132 = vmax.f32 %v3004, 0.0
        %v3133 = vmax.f32 %v3005, 0.0
        %v3134 = vmax.f32 %v3006, 0.0
        %v3135 = vmax.f32 %v3007, 0.0
        %v3136 = vmax.f32 %v3008, 0.0
        %v3137 = vmax.f32 %v3009, 0.0
        %v3138 = vmax.f32 %v3010, 0.0
        %v3139 = vmax.f32 %v3011, 0.0
        %v3140 = vmax.f32 %v3012, 0.0
        %v3141 = vmax.f32 %v3013, 0.0
        %v3142 = vmax.f32 %v3014, 0.0
        %v3143 = vmax.f32 %v3015, 0.0
        %v3144 = vmax.f32 %v3016, 0.0
        %v3145 = vmax.f32 %v3017, 0.0
        %v3146 = vmax.f32 %v3018, 0.0
        %v3147 = vmax.f32 %v3019, 0.0
        %v3148 = vmax.f32 %v3020, 0.0
        %v3149 = vmax.f32 %v3021, 0.0
        %v3150 = vmax.f32 %v3022, 0.0
        %v3151 = vmax.f32 %v3023, 0.0
        %v3152 = vmax.f32 %v3024, 0.0
        %v3153 = vmax.f32 %v3025, 0.0
        %v3154 = vmax.f32 %v3026, 0.0
        %v3155 = vmax.f32 %v3027, 0.0
        %v3156 = vmax.f32 %v3028, 0.0
        %v3157 = vmax.f32 %v3029, 0.0
        %v3158 = vmax.f32 %v3030, 0.0
        %v3159 = vmax.f32 %v3031, 0.0
        %v3160 = vmax.f32 %v3032, 0.0
        %v3161 = vmax.f32 %v3033, 0.0
        %v3162 = vmax.f32 %v3034, 0.0
        %v3163 = vmax.f32 %v3035, 0.0
        %v3164 = vmax.f32 %v3036, 0.0
        %v3165 = vmax.f32 %v3037, 0.0
        %v3166 = vmax.f32 %v3038, 0.0
        %v3167 = vmax.f32 %v3039, 0.0
        %v3168 = vmax.f32 %v3040, 0.0
        %v3169 = vmax.f32 %v3041, 0.0
        %v3170 = vmax.f32 %v3042, 0.0
        %v3171 = vmax.f32 %v3043, 0.0
        %v3172 = vmax.f32 %v3044, 0.0
        %v3173 = vmax.f32 %v3045, 0.0
        %v3174 = vmax.f32 %v3046, 0.0
        %v3175 = vmax.f32 %v3047, 0.0
        %v3176 = vmax.f32 %v3048, 0.0
        %v3177 = vmax.f32 %v3049, 0.0
        %v3178 = vmax.f32 %v3050, 0.0
        %v3179 = vmax.f32 %v3051, 0.0
        %v3180 = vmax.f32 %v3052, 0.0
        %v3181 = vmax.f32 %v3053, 0.0
        %v3182 = vmax.f32 %v3054, 0.0
        %v3183 = vmax.f32 %v3055, 0.0
        %v3184 = vmax.f32 %v3056, 0.0
        %v3185 = vmax.f32 %v3057, 0.0
        %v3186 = vmax.f32 %v3058, 0.0
        %v3187 = vmax.f32 %v3059, 0.0
        %v3188 = vmax.f32 %v3060, 0.0
        %v3189 = vmax.f32 %v3061, 0.0
        %v3190 = vmax.f32 %v3062, 0.0
        %v3191 = vmax.f32 %v3063, 0.0
        %v3192 = vmax.f32 %v3064, 0.0
        %v3193 = vmax.f32 %v3065, 0.0
        %v3194 = vmax.f32 %v3066, 0.0
        %v3195 = vmax.f32 %v3067, 0.0
        %v3196 = vmax.f32 %v3068, 0.0
        %v3197 = vmax.f32 %v3069, 0.0
        %v3198 = vmax.f32 %v3070, 0.0
        %v3199 = vmax.f32 %v3071, 0.0
        %v3200 = vmax.f32 %v3072, 0.0
        %v3201 = vmax.f32 %v3073, 0.0
        %v3202 = vmax.f32 %v3074, 0.0
        %v3203 = vmax.f32 %v3075, 0.0
        %v3204 = vmax.f32 %v3076, 0.0
        %v3205 = vmax.f32 %v3077, 0.0
        %v3206 = vmax.f32 %v3078, 0.0
        %v3207 = vmax.f32 %v3079, 0.0
        %v3208 = vmax.f32 %v3080, 0.0
        %v3209 = vmax.f32 %v3081, 0.0
        %v3210 = vmax.f32 %v3082, 0.0
        %v3211 = vmax.f32 %v3083, 0.0
        %v3212 = vmax.f32 %v3084, 0.0
        %v3213 = vmax.f32 %v3085, 0.0
        %v3214 = vmax.f32 %v3086, 0.0
        %v3215 = vmax.f32 %v3087, 0.0
        %v3216 = vmax.f32 %v3088, 0.0
        %v3217 = vmax.f32 %v3089, 0.0
        %v3218 = vmax.f32 %v3090, 0.0
        %v3219 = vmax.f32 %v3091, 0.0
        %v3220 = vmax.f32 %v3092, 0.0
        %v3221 = vmax.f32 %v3093, 0.0
        %v3222 = vmax.f32 %v3094, 0.0
        %v3223 = vmax.f32 %v3095, 0.0
        %v3224 = vmax.f32 %v3096, 0.0
        %v3225 = vmax.f32 %v3097, 0.0
        %v3226 = vmax.f32 %v3098, 0.0
        %v3227 = vmax.f32 %v3099, 0.0
        %v3228 = vmax.f32 %v3100, 0.0
        %v3229 = vmax.f32 %v3101, 0.0
        %v3230 = vmax.f32 %v3102, 0.0
        %v3231 = vmax.f32 %v3103, 0.0
        %v3232 = vmax.f32 %v3104, 0.0
        %v3233 = vmax.f32 %v3105, 0.0
        %v3234 = vmax.f32 %v3106, 0.0
        %v3235 = vmax.f32 %v3107, 0.0
        %v3236 = vmax.f32 %v3108, 0.0
        %v3237 = vmax.f32 %v3109, 0.0
        %v3238 = vmax.f32 %v3110, 0.0
        %v3239 = vmax.f32 %v3111, 0.0
        %v3240 = vmax.f32 %v3112, 0.0
        %vm3241 = vcmask 130048
        %3242 = vst.msk [vmem:[#allocation2] sm:$0xff] %vm3241, %v3113
        %3243 = vst.msk [vmem:[#allocation2 + $0x8] sm:$0xff] %vm3241, %v3114
        %3244 = vst.msk [vmem:[#allocation2 + $0x10] sm:$0xff] %vm3241, %v3115
        %3245 = vst.msk [vmem:[#allocation2 + $0x18] sm:$0xff] %vm3241, %v3116
        %3246 = vst.msk [vmem:[#allocation2 + $0x20] sm:$0xff] %vm3241, %v3117
        %3247 = vst.msk [vmem:[#allocation2 + $0x28] sm:$0xff] %vm3241, %v3118
        %3248 = vst.msk [vmem:[#allocation2 + $0x30] sm:$0xff] %vm3241, %v3119
        %3249 = vst.msk [vmem:[#allocation2 + $0x38] sm:$0xff] %vm3241, %v3120
        %3250 = vst.msk [vmem:[#allocation2 + $0x40] sm:$0xff] %vm3241, %v3121
        %3251 = vst.msk [vmem:[#allocation2 + $0x48] sm:$0xff] %vm3241, %v3122
        %3252 = vst.msk [vmem:[#allocation2 + $0x50] sm:$0xff] %vm3241, %v3123
        %3253 = vst.msk [vmem:[#allocation2 + $0x58] sm:$0xff] %vm3241, %v3124
        %3254 = vst.msk [vmem:[#allocation2 + $0x60] sm:$0xff] %vm3241, %v3125
        %3255 = vst.msk [vmem:[#allocation2 + $0x68] sm:$0xff] %vm3241, %v3126
        %3256 = vst.msk [vmem:[#allocation2 + $0x70] sm:$0xff] %vm3241, %v3127
        %3257 = vst.msk [vmem:[#allocation2 + $0x78] sm:$0xff] %vm3241, %v3128
        %3258 = vst.msk [vmem:[#allocation2 + $0x80] sm:$0xff] %vm3241, %v3129
        %3259 = vst.msk [vmem:[#allocation2 + $0x88] sm:$0xff] %vm3241, %v3130
        %3260 = vst.msk [vmem:[#allocation2 + $0x90] sm:$0xff] %vm3241, %v3131
        %3261 = vst.msk [vmem:[#allocation2 + $0x98] sm:$0xff] %vm3241, %v3132
        %3262 = vst.msk [vmem:[#allocation2 + $0xa0] sm:$0xff] %vm3241, %v3133
        %3263 = vst.msk [vmem:[#allocation2 + $0xa8] sm:$0xff] %vm3241, %v3134
        %3264 = vst.msk [vmem:[#allocation2 + $0xb0] sm:$0xff] %vm3241, %v3135
        %3265 = vst.msk [vmem:[#allocation2 + $0xb8] sm:$0xff] %vm3241, %v3136
        %3266 = vst.msk [vmem:[#allocation2 + $0xc0] sm:$0xff] %vm3241, %v3137
        %3267 = vst.msk [vmem:[#allocation2 + $0xc8] sm:$0xff] %vm3241, %v3138
        %3268 = vst.msk [vmem:[#allocation2 + $0xd0] sm:$0xff] %vm3241, %v3139
        %3269 = vst.msk [vmem:[#allocation2 + $0xd8] sm:$0xff] %vm3241, %v3140
        %3270 = vst.msk [vmem:[#allocation2 + $0xe0] sm:$0xff] %vm3241, %v3141
        %3271 = vst.msk [vmem:[#allocation2 + $0xe8] sm:$0xff] %vm3241, %v3142
        %3272 = vst.msk [vmem:[#allocation2 + $0xf0] sm:$0xff] %vm3241, %v3143
        %3273 = vst.msk [vmem:[#allocation2 + $0xf8] sm:$0xff] %vm3241, %v3144
        %3274 = vst.msk [vmem:[#allocation2 + $0x100] sm:$0xff] %vm3241, %v3145
        %3275 = vst.msk [vmem:[#allocation2 + $0x108] sm:$0xff] %vm3241, %v3146
        %3276 = vst.msk [vmem:[#allocation2 + $0x110] sm:$0xff] %vm3241, %v3147
        %3277 = vst.msk [vmem:[#allocation2 + $0x118] sm:$0xff] %vm3241, %v3148
        %3278 = vst.msk [vmem:[#allocation2 + $0x120] sm:$0xff] %vm3241, %v3149
        %3279 = vst.msk [vmem:[#allocation2 + $0x128] sm:$0xff] %vm3241, %v3150
        %3280 = vst.msk [vmem:[#allocation2 + $0x130] sm:$0xff] %vm3241, %v3151
        %3281 = vst.msk [vmem:[#allocation2 + $0x138] sm:$0xff] %vm3241, %v3152
        %3282 = vst.msk [vmem:[#allocation2 + $0x140] sm:$0xff] %vm3241, %v3153
        %3283 = vst.msk [vmem:[#allocation2 + $0x148] sm:$0xff] %vm3241, %v3154
        %3284 = vst.msk [vmem:[#allocation2 + $0x150] sm:$0xff] %vm3241, %v3155
        %3285 = vst.msk [vmem:[#allocation2 + $0x158] sm:$0xff] %vm3241, %v3156
        %3286 = vst.msk [vmem:[#allocation2 + $0x160] sm:$0xff] %vm3241, %v3157
        %3287 = vst.msk [vmem:[#allocation2 + $0x168] sm:$0xff] %vm3241, %v3158
        %3288 = vst.msk [vmem:[#allocation2 + $0x170] sm:$0xff] %vm3241, %v3159
        %3289 = vst.msk [vmem:[#allocation2 + $0x178] sm:$0xff] %vm3241, %v3160
        %3290 = vst.msk [vmem:[#allocation2 + $0x180] sm:$0xff] %vm3241, %v3161
        %3291 = vst.msk [vmem:[#allocation2 + $0x188] sm:$0xff] %vm3241, %v3162
        %3292 = vst.msk [vmem:[#allocation2 + $0x190] sm:$0xff] %vm3241, %v3163
        %3293 = vst.msk [vmem:[#allocation2 + $0x198] sm:$0xff] %vm3241, %v3164
        %3294 = vst.msk [vmem:[#allocation2 + $0x1a0] sm:$0xff] %vm3241, %v3165
        %3295 = vst.msk [vmem:[#allocation2 + $0x1a8] sm:$0xff] %vm3241, %v3166
        %3296 = vst.msk [vmem:[#allocation2 + $0x1b0] sm:$0xff] %vm3241, %v3167
        %3297 = vst.msk [vmem:[#allocation2 + $0x1b8] sm:$0xff] %vm3241, %v3168
        %3298 = vst.msk [vmem:[#allocation2 + $0x1c0] sm:$0xff] %vm3241, %v3169
        %3299 = vst.msk [vmem:[#allocation2 + $0x1c8] sm:$0xff] %vm3241, %v3170
        %3300 = vst.msk [vmem:[#allocation2 + $0x1d0] sm:$0xff] %vm3241, %v3171
        %3301 = vst.msk [vmem:[#allocation2 + $0x1d8] sm:$0xff] %vm3241, %v3172
        %3302 = vst.msk [vmem:[#allocation2 + $0x1e0] sm:$0xff] %vm3241, %v3173
        %3303 = vst.msk [vmem:[#allocation2 + $0x1e8] sm:$0xff] %vm3241, %v3174
        %3304 = vst.msk [vmem:[#allocation2 + $0x1f0] sm:$0xff] %vm3241, %v3175
        %3305 = vst.msk [vmem:[#allocation2 + $0x1f8] sm:$0xff] %vm3241, %v3176
        %3306 = vst.msk [vmem:[#allocation2 + $0x200] sm:$0xff] %vm3241, %v3177
        %3307 = vst.msk [vmem:[#allocation2 + $0x208] sm:$0xff] %vm3241, %v3178
        %3308 = vst.msk [vmem:[#allocation2 + $0x210] sm:$0xff] %vm3241, %v3179
        %3309 = vst.msk [vmem:[#allocation2 + $0x218] sm:$0xff] %vm3241, %v3180
        %3310 = vst.msk [vmem:[#allocation2 + $0x220] sm:$0xff] %vm3241, %v3181
        %3311 = vst.msk [vmem:[#allocation2 + $0x228] sm:$0xff] %vm3241, %v3182
        %3312 = vst.msk [vmem:[#allocation2 + $0x230] sm:$0xff] %vm3241, %v3183
        %3313 = vst.msk [vmem:[#allocation2 + $0x238] sm:$0xff] %vm3241, %v3184
        %3314 = vst.msk [vmem:[#allocation2 + $0x240] sm:$0xff] %vm3241, %v3185
        %3315 = vst.msk [vmem:[#allocation2 + $0x248] sm:$0xff] %vm3241, %v3186
        %3316 = vst.msk [vmem:[#allocation2 + $0x250] sm:$0xff] %vm3241, %v3187
        %3317 = vst.msk [vmem:[#allocation2 + $0x258] sm:$0xff] %vm3241, %v3188
        %3318 = vst.msk [vmem:[#allocation2 + $0x260] sm:$0xff] %vm3241, %v3189
        %3319 = vst.msk [vmem:[#allocation2 + $0x268] sm:$0xff] %vm3241, %v3190
        %3320 = vst.msk [vmem:[#allocation2 + $0x270] sm:$0xff] %vm3241, %v3191
        %3321 = vst.msk [vmem:[#allocation2 + $0x278] sm:$0xff] %vm3241, %v3192
        %3322 = vst.msk [vmem:[#allocation2 + $0x280] sm:$0xff] %vm3241, %v3193
        %3323 = vst.msk [vmem:[#allocation2 + $0x288] sm:$0xff] %vm3241, %v3194
        %3324 = vst.msk [vmem:[#allocation2 + $0x290] sm:$0xff] %vm3241, %v3195
        %3325 = vst.msk [vmem:[#allocation2 + $0x298] sm:$0xff] %vm3241, %v3196
        %3326 = vst.msk [vmem:[#allocation2 + $0x2a0] sm:$0xff] %vm3241, %v3197
        %3327 = vst.msk [vmem:[#allocation2 + $0x2a8] sm:$0xff] %vm3241, %v3198
        %3328 = vst.msk [vmem:[#allocation2 + $0x2b0] sm:$0xff] %vm3241, %v3199
        %3329 = vst.msk [vmem:[#allocation2 + $0x2b8] sm:$0xff] %vm3241, %v3200
        %3330 = vst.msk [vmem:[#allocation2 + $0x2c0] sm:$0xff] %vm3241, %v3201
        %3331 = vst.msk [vmem:[#allocation2 + $0x2c8] sm:$0xff] %vm3241, %v3202
        %3332 = vst.msk [vmem:[#allocation2 + $0x2d0] sm:$0xff] %vm3241, %v3203
        %3333 = vst.msk [vmem:[#allocation2 + $0x2d8] sm:$0xff] %vm3241, %v3204
        %3334 = vst.msk [vmem:[#allocation2 + $0x2e0] sm:$0xff] %vm3241, %v3205
        %3335 = vst.msk [vmem:[#allocation2 + $0x2e8] sm:$0xff] %vm3241, %v3206
        %3336 = vst.msk [vmem:[#allocation2 + $0x2f0] sm:$0xff] %vm3241, %v3207
        %3337 = vst.msk [vmem:[#allocation2 + $0x2f8] sm:$0xff] %vm3241, %v3208
        %3338 = vst.msk [vmem:[#allocation2 + $0x300] sm:$0xff] %vm3241, %v3209
        %3339 = vst.msk [vmem:[#allocation2 + $0x308] sm:$0xff] %vm3241, %v3210
        %3340 = vst.msk [vmem:[#allocation2 + $0x310] sm:$0xff] %vm3241, %v3211
        %3341 = vst.msk [vmem:[#allocation2 + $0x318] sm:$0xff] %vm3241, %v3212
        %3342 = vst.msk [vmem:[#allocation2 + $0x320] sm:$0xff] %vm3241, %v3213
        %3343 = vst.msk [vmem:[#allocation2 + $0x328] sm:$0xff] %vm3241, %v3214
        %3344 = vst.msk [vmem:[#allocation2 + $0x330] sm:$0xff] %vm3241, %v3215
        %3345 = vst.msk [vmem:[#allocation2 + $0x338] sm:$0xff] %vm3241, %v3216
        %3346 = vst.msk [vmem:[#allocation2 + $0x340] sm:$0xff] %vm3241, %v3217
        %3347 = vst.msk [vmem:[#allocation2 + $0x348] sm:$0xff] %vm3241, %v3218
        %3348 = vst.msk [vmem:[#allocation2 + $0x350] sm:$0xff] %vm3241, %v3219
        %3349 = vst.msk [vmem:[#allocation2 + $0x358] sm:$0xff] %vm3241, %v3220
        %3350 = vst.msk [vmem:[#allocation2 + $0x360] sm:$0xff] %vm3241, %v3221
        %3351 = vst.msk [vmem:[#allocation2 + $0x368] sm:$0xff] %vm3241, %v3222
        %3352 = vst.msk [vmem:[#allocation2 + $0x370] sm:$0xff] %vm3241, %v3223
        %3353 = vst.msk [vmem:[#allocation2 + $0x378] sm:$0xff] %vm3241, %v3224
        %3354 = vst.msk [vmem:[#allocation2 + $0x380] sm:$0xff] %vm3241, %v3225
        %3355 = vst.msk [vmem:[#allocation2 + $0x388] sm:$0xff] %vm3241, %v3226
        %3356 = vst.msk [vmem:[#allocation2 + $0x390] sm:$0xff] %vm3241, %v3227
        %3357 = vst.msk [vmem:[#allocation2 + $0x398] sm:$0xff] %vm3241, %v3228
        %3358 = vst.msk [vmem:[#allocation2 + $0x3a0] sm:$0xff] %vm3241, %v3229
        %3359 = vst.msk [vmem:[#allocation2 + $0x3a8] sm:$0xff] %vm3241, %v3230
        %3360 = vst.msk [vmem:[#allocation2 + $0x3b0] sm:$0xff] %vm3241, %v3231
        %3361 = vst.msk [vmem:[#allocation2 + $0x3b8] sm:$0xff] %vm3241, %v3232
        %3362 = vst.msk [vmem:[#allocation2 + $0x3c0] sm:$0xff] %vm3241, %v3233
        %3363 = vst.msk [vmem:[#allocation2 + $0x3c8] sm:$0xff] %vm3241, %v3234
        %3364 = vst.msk [vmem:[#allocation2 + $0x3d0] sm:$0xff] %vm3241, %v3235
        %3365 = vst.msk [vmem:[#allocation2 + $0x3d8] sm:$0xff] %vm3241, %v3236
        %3366 = vst.msk [vmem:[#allocation2 + $0x3e0] sm:$0xff] %vm3241, %v3237
        %3367 = vst.msk [vmem:[#allocation2 + $0x3e8] sm:$0xff] %vm3241, %v3238
        %3368 = vst.msk [vmem:[#allocation2 + $0x3f0] sm:$0xff] %vm3241, %v3239
        %3369 = vst.msk [vmem:[#allocation2 + $0x3f8] sm:$0xff] %vm3241, %v3240
        %v3370 = vld [vmem:[#allocation2] ss:$4 sm:$0xff]
        %s3371 = scalar_lea.vmem [#allocation2], 32
        %v3372 = vld [vmem:[%s3371] ss:$4 sm:$0xff]
        %s3373 = scalar_lea.vmem [#allocation2], 64
        %v3374 = vld [vmem:[%s3373] ss:$4 sm:$0xff]
        %s3375 = scalar_lea.vmem [#allocation2], 96
        %v3376 = vld [vmem:[%s3375] ss:$4 sm:$0xff]
        %s3377 = scalar_lea.vmem [#allocation2], 128
        %v3378 = vld [vmem:[%s3377] ss:$4 sm:$0xff]
        %s3379 = scalar_lea.vmem [#allocation2], 160
        %v3380 = vld [vmem:[%s3379] ss:$4 sm:$0xff]
        %s3381 = scalar_lea.vmem [#allocation2], 192
        %v3382 = vld [vmem:[%s3381] ss:$4 sm:$0xff]
        %s3383 = scalar_lea.vmem [#allocation2], 224
        %v3384 = vld [vmem:[%s3383] ss:$4 sm:$0xff]
        %s3385 = scalar_lea.vmem [#allocation2], 256
        %v3386 = vld [vmem:[%s3385] ss:$4 sm:$0xff]
        %s3387 = scalar_lea.vmem [#allocation2], 288
        %v3388 = vld [vmem:[%s3387] ss:$4 sm:$0xff]
        %s3389 = scalar_lea.vmem [#allocation2], 320
        %v3390 = vld [vmem:[%s3389] ss:$4 sm:$0xff]
        %s3391 = scalar_lea.vmem [#allocation2], 352
        %v3392 = vld [vmem:[%s3391] ss:$4 sm:$0xff]
        %s3393 = scalar_lea.vmem [#allocation2], 384
        %v3394 = vld [vmem:[%s3393] ss:$4 sm:$0xff]
        %s3395 = scalar_lea.vmem [#allocation2], 416
        %v3396 = vld [vmem:[%s3395] ss:$4 sm:$0xff]
        %s3397 = scalar_lea.vmem [#allocation2], 448
        %v3398 = vld [vmem:[%s3397] ss:$4 sm:$0xff]
        %s3399 = scalar_lea.vmem [#allocation2], 480
        %v3400 = vld [vmem:[%s3399] ss:$4 sm:$0xff]
        %s3401 = scalar_lea.vmem [#allocation2], 512
        %v3402 = vld [vmem:[%s3401] ss:$4 sm:$0xff]
        %s3403 = scalar_lea.vmem [#allocation2], 544
        %v3404 = vld [vmem:[%s3403] ss:$4 sm:$0xff]
        %s3405 = scalar_lea.vmem [#allocation2], 576
        %v3406 = vld [vmem:[%s3405] ss:$4 sm:$0xff]
        %s3407 = scalar_lea.vmem [#allocation2], 608
        %v3408 = vld [vmem:[%s3407] ss:$4 sm:$0xff]
        %s3409 = scalar_lea.vmem [#allocation2], 640
        %v3410 = vld [vmem:[%s3409] ss:$4 sm:$0xff]
        %s3411 = scalar_lea.vmem [#allocation2], 672
        %v3412 = vld [vmem:[%s3411] ss:$4 sm:$0xff]
        %s3413 = scalar_lea.vmem [#allocation2], 704
        %v3414 = vld [vmem:[%s3413] ss:$4 sm:$0xff]
        %s3415 = scalar_lea.vmem [#allocation2], 736
        %v3416 = vld [vmem:[%s3415] ss:$4 sm:$0xff]
        %s3417 = scalar_lea.vmem [#allocation2], 768
        %v3418 = vld [vmem:[%s3417] ss:$4 sm:$0xff]
        %s3419 = scalar_lea.vmem [#allocation2], 800
        %v3420 = vld [vmem:[%s3419] ss:$4 sm:$0xff]
        %s3421 = scalar_lea.vmem [#allocation2], 832
        %v3422 = vld [vmem:[%s3421] ss:$4 sm:$0xff]
        %s3423 = scalar_lea.vmem [#allocation2], 864
        %v3424 = vld [vmem:[%s3423] ss:$4 sm:$0xff]
        %s3425 = scalar_lea.vmem [#allocation2], 896
        %v3426 = vld [vmem:[%s3425] ss:$4 sm:$0xff]
        %s3427 = scalar_lea.vmem [#allocation2], 928
        %v3428 = vld [vmem:[%s3427] ss:$4 sm:$0xff]
        %s3429 = scalar_lea.vmem [#allocation2], 960
        %v3430 = vld [vmem:[%s3429] ss:$4 sm:$0xff]
        %s3431 = scalar_lea.vmem [#allocation2], 992
        %v3432 = vld [vmem:[%s3431] ss:$4 sm:$0xff]
        %s3433 = scalar_lea.vmem [#allocation2], 1
        %v3434 = vld [vmem:[%s3433] ss:$4 sm:$0xff]
        %s3435 = scalar_lea.vmem [#allocation2], 33
        %v3436 = vld [vmem:[%s3435] ss:$4 sm:$0xff]
        %s3437 = scalar_lea.vmem [#allocation2], 65
        %v3438 = vld [vmem:[%s3437] ss:$4 sm:$0xff]
        %s3439 = scalar_lea.vmem [#allocation2], 97
        %v3440 = vld [vmem:[%s3439] ss:$4 sm:$0xff]
        %s3441 = scalar_lea.vmem [#allocation2], 129
        %v3442 = vld [vmem:[%s3441] ss:$4 sm:$0xff]
        %s3443 = scalar_lea.vmem [#allocation2], 161
        %v3444 = vld [vmem:[%s3443] ss:$4 sm:$0xff]
        %s3445 = scalar_lea.vmem [#allocation2], 193
        %v3446 = vld [vmem:[%s3445] ss:$4 sm:$0xff]
        %s3447 = scalar_lea.vmem [#allocation2], 225
        %v3448 = vld [vmem:[%s3447] ss:$4 sm:$0xff]
        %s3449 = scalar_lea.vmem [#allocation2], 257
        %v3450 = vld [vmem:[%s3449] ss:$4 sm:$0xff]
        %s3451 = scalar_lea.vmem [#allocation2], 289
        %v3452 = vld [vmem:[%s3451] ss:$4 sm:$0xff]
        %s3453 = scalar_lea.vmem [#allocation2], 321
        %v3454 = vld [vmem:[%s3453] ss:$4 sm:$0xff]
        %s3455 = scalar_lea.vmem [#allocation2], 353
        %v3456 = vld [vmem:[%s3455] ss:$4 sm:$0xff]
        %s3457 = scalar_lea.vmem [#allocation2], 385
        %v3458 = vld [vmem:[%s3457] ss:$4 sm:$0xff]
        %s3459 = scalar_lea.vmem [#allocation2], 417
        %v3460 = vld [vmem:[%s3459] ss:$4 sm:$0xff]
        %s3461 = scalar_lea.vmem [#allocation2], 449
        %v3462 = vld [vmem:[%s3461] ss:$4 sm:$0xff]
        %s3463 = scalar_lea.vmem [#allocation2], 481
        %v3464 = vld [vmem:[%s3463] ss:$4 sm:$0xff]
        %s3465 = scalar_lea.vmem [#allocation2], 513
        %v3466 = vld [vmem:[%s3465] ss:$4 sm:$0xff]
        %s3467 = scalar_lea.vmem [#allocation2], 545
        %v3468 = vld [vmem:[%s3467] ss:$4 sm:$0xff]
        %s3469 = scalar_lea.vmem [#allocation2], 577
        %v3470 = vld [vmem:[%s3469] ss:$4 sm:$0xff]
        %s3471 = scalar_lea.vmem [#allocation2], 609
        %v3472 = vld [vmem:[%s3471] ss:$4 sm:$0xff]
        %s3473 = scalar_lea.vmem [#allocation2], 641
        %v3474 = vld [vmem:[%s3473] ss:$4 sm:$0xff]
        %s3475 = scalar_lea.vmem [#allocation2], 673
        %v3476 = vld [vmem:[%s3475] ss:$4 sm:$0xff]
        %s3477 = scalar_lea.vmem [#allocation2], 705
        %v3478 = vld [vmem:[%s3477] ss:$4 sm:$0xff]
        %s3479 = scalar_lea.vmem [#allocation2], 737
        %v3480 = vld [vmem:[%s3479] ss:$4 sm:$0xff]
        %s3481 = scalar_lea.vmem [#allocation2], 769
        %v3482 = vld [vmem:[%s3481] ss:$4 sm:$0xff]
        %s3483 = scalar_lea.vmem [#allocation2], 801
        %v3484 = vld [vmem:[%s3483] ss:$4 sm:$0xff]
        %s3485 = scalar_lea.vmem [#allocation2], 833
        %v3486 = vld [vmem:[%s3485] ss:$4 sm:$0xff]
        %s3487 = scalar_lea.vmem [#allocation2], 865
        %v3488 = vld [vmem:[%s3487] ss:$4 sm:$0xff]
        %s3489 = scalar_lea.vmem [#allocation2], 897
        %v3490 = vld [vmem:[%s3489] ss:$4 sm:$0xff]
        %s3491 = scalar_lea.vmem [#allocation2], 929
        %v3492 = vld [vmem:[%s3491] ss:$4 sm:$0xff]
        %s3493 = scalar_lea.vmem [#allocation2], 961
        %v3494 = vld [vmem:[%s3493] ss:$4 sm:$0xff]
        %s3495 = scalar_lea.vmem [#allocation2], 993
        %v3496 = vld [vmem:[%s3495] ss:$4 sm:$0xff]
        %v3497 = vmax.f32 %v3370, %v3434
        %v3498 = vmax.f32 %v3372, %v3436
        %v3499 = vmax.f32 %v3374, %v3438
        %v3500 = vmax.f32 %v3376, %v3440
        %v3501 = vmax.f32 %v3378, %v3442
        %v3502 = vmax.f32 %v3380, %v3444
        %v3503 = vmax.f32 %v3382, %v3446
        %v3504 = vmax.f32 %v3384, %v3448
        %v3505 = vmax.f32 %v3386, %v3450
        %v3506 = vmax.f32 %v3388, %v3452
        %v3507 = vmax.f32 %v3390, %v3454
        %v3508 = vmax.f32 %v3392, %v3456
        %v3509 = vmax.f32 %v3394, %v3458
        %v3510 = vmax.f32 %v3396, %v3460
        %v3511 = vmax.f32 %v3398, %v3462
        %v3512 = vmax.f32 %v3400, %v3464
        %v3513 = vmax.f32 %v3402, %v3466
        %v3514 = vmax.f32 %v3404, %v3468
        %v3515 = vmax.f32 %v3406, %v3470
        %v3516 = vmax.f32 %v3408, %v3472
        %v3517 = vmax.f32 %v3410, %v3474
        %v3518 = vmax.f32 %v3412, %v3476
        %v3519 = vmax.f32 %v3414, %v3478
        %v3520 = vmax.f32 %v3416, %v3480
        %v3521 = vmax.f32 %v3418, %v3482
        %v3522 = vmax.f32 %v3420, %v3484
        %v3523 = vmax.f32 %v3422, %v3486
        %v3524 = vmax.f32 %v3424, %v3488
        %v3525 = vmax.f32 %v3426, %v3490
        %v3526 = vmax.f32 %v3428, %v3492
        %v3527 = vmax.f32 %v3430, %v3494
        %v3528 = vmax.f32 %v3432, %v3496
        %s3529 = scalar_lea.vmem [#allocation2], 2
        %v3530 = vld [vmem:[%s3529] ss:$4 sm:$0xff]
        %s3531 = scalar_lea.vmem [#allocation2], 34
        %v3532 = vld [vmem:[%s3531] ss:$4 sm:$0xff]
        %s3533 = scalar_lea.vmem [#allocation2], 66
        %v3534 = vld [vmem:[%s3533] ss:$4 sm:$0xff]
        %s3535 = scalar_lea.vmem [#allocation2], 98
        %v3536 = vld [vmem:[%s3535] ss:$4 sm:$0xff]
        %s3537 = scalar_lea.vmem [#allocation2], 130
        %v3538 = vld [vmem:[%s3537] ss:$4 sm:$0xff]
        %s3539 = scalar_lea.vmem [#allocation2], 162
        %v3540 = vld [vmem:[%s3539] ss:$4 sm:$0xff]
        %s3541 = scalar_lea.vmem [#allocation2], 194
        %v3542 = vld [vmem:[%s3541] ss:$4 sm:$0xff]
        %s3543 = scalar_lea.vmem [#allocation2], 226
        %v3544 = vld [vmem:[%s3543] ss:$4 sm:$0xff]
        %s3545 = scalar_lea.vmem [#allocation2], 258
        %v3546 = vld [vmem:[%s3545] ss:$4 sm:$0xff]
        %s3547 = scalar_lea.vmem [#allocation2], 290
        %v3548 = vld [vmem:[%s3547] ss:$4 sm:$0xff]
        %s3549 = scalar_lea.vmem [#allocation2], 322
        %v3550 = vld [vmem:[%s3549] ss:$4 sm:$0xff]
        %s3551 = scalar_lea.vmem [#allocation2], 354
        %v3552 = vld [vmem:[%s3551] ss:$4 sm:$0xff]
        %s3553 = scalar_lea.vmem [#allocation2], 386
        %v3554 = vld [vmem:[%s3553] ss:$4 sm:$0xff]
        %s3555 = scalar_lea.vmem [#allocation2], 418
        %v3556 = vld [vmem:[%s3555] ss:$4 sm:$0xff]
        %s3557 = scalar_lea.vmem [#allocation2], 450
        %v3558 = vld [vmem:[%s3557] ss:$4 sm:$0xff]
        %s3559 = scalar_lea.vmem [#allocation2], 482
        %v3560 = vld [vmem:[%s3559] ss:$4 sm:$0xff]
        %s3561 = scalar_lea.vmem [#allocation2], 514
        %v3562 = vld [vmem:[%s3561] ss:$4 sm:$0xff]
        %s3563 = scalar_lea.vmem [#allocation2], 546
        %v3564 = vld [vmem:[%s3563] ss:$4 sm:$0xff]
        %s3565 = scalar_lea.vmem [#allocation2], 578
        %v3566 = vld [vmem:[%s3565] ss:$4 sm:$0xff]
        %s3567 = scalar_lea.vmem [#allocation2], 610
        %v3568 = vld [vmem:[%s3567] ss:$4 sm:$0xff]
        %s3569 = scalar_lea.vmem [#allocation2], 642
        %v3570 = vld [vmem:[%s3569] ss:$4 sm:$0xff]
        %s3571 = scalar_lea.vmem [#allocation2], 674
        %v3572 = vld [vmem:[%s3571] ss:$4 sm:$0xff]
        %s3573 = scalar_lea.vmem [#allocation2], 706
        %v3574 = vld [vmem:[%s3573] ss:$4 sm:$0xff]
        %s3575 = scalar_lea.vmem [#allocation2], 738
        %v3576 = vld [vmem:[%s3575] ss:$4 sm:$0xff]
        %s3577 = scalar_lea.vmem [#allocation2], 770
        %v3578 = vld [vmem:[%s3577] ss:$4 sm:$0xff]
        %s3579 = scalar_lea.vmem [#allocation2], 802
        %v3580 = vld [vmem:[%s3579] ss:$4 sm:$0xff]
        %s3581 = scalar_lea.vmem [#allocation2], 834
        %v3582 = vld [vmem:[%s3581] ss:$4 sm:$0xff]
        %s3583 = scalar_lea.vmem [#allocation2], 866
        %v3584 = vld [vmem:[%s3583] ss:$4 sm:$0xff]
        %s3585 = scalar_lea.vmem [#allocation2], 898
        %v3586 = vld [vmem:[%s3585] ss:$4 sm:$0xff]
        %s3587 = scalar_lea.vmem [#allocation2], 930
        %v3588 = vld [vmem:[%s3587] ss:$4 sm:$0xff]
        %s3589 = scalar_lea.vmem [#allocation2], 962
        %v3590 = vld [vmem:[%s3589] ss:$4 sm:$0xff]
        %s3591 = scalar_lea.vmem [#allocation2], 994
        %v3592 = vld [vmem:[%s3591] ss:$4 sm:$0xff]
        %v3593 = vmax.f32 %v3497, %v3530
        %v3594 = vmax.f32 %v3498, %v3532
        %v3595 = vmax.f32 %v3499, %v3534
        %v3596 = vmax.f32 %v3500, %v3536
        %v3597 = vmax.f32 %v3501, %v3538
        %v3598 = vmax.f32 %v3502, %v3540
        %v3599 = vmax.f32 %v3503, %v3542
        %v3600 = vmax.f32 %v3504, %v3544
        %v3601 = vmax.f32 %v3505, %v3546
        %v3602 = vmax.f32 %v3506, %v3548
        %v3603 = vmax.f32 %v3507, %v3550
        %v3604 = vmax.f32 %v3508, %v3552
        %v3605 = vmax.f32 %v3509, %v3554
        %v3606 = vmax.f32 %v3510, %v3556
        %v3607 = vmax.f32 %v3511, %v3558
        %v3608 = vmax.f32 %v3512, %v3560
        %v3609 = vmax.f32 %v3513, %v3562
        %v3610 = vmax.f32 %v3514, %v3564
        %v3611 = vmax.f32 %v3515, %v3566
        %v3612 = vmax.f32 %v3516, %v3568
        %v3613 = vmax.f32 %v3517, %v3570
        %v3614 = vmax.f32 %v3518, %v3572
        %v3615 = vmax.f32 %v3519, %v3574
        %v3616 = vmax.f32 %v3520, %v3576
        %v3617 = vmax.f32 %v3521, %v3578
        %v3618 = vmax.f32 %v3522, %v3580
        %v3619 = vmax.f32 %v3523, %v3582
        %v3620 = vmax.f32 %v3524, %v3584
        %v3621 = vmax.f32 %v3525, %v3586
        %v3622 = vmax.f32 %v3526, %v3588
        %v3623 = vmax.f32 %v3527, %v3590
        %v3624 = vmax.f32 %v3528, %v3592
        %s3625 = scalar_lea.vmem [#allocation2], 3
        %v3626 = vld [vmem:[%s3625] ss:$4 sm:$0xff]
        %s3627 = scalar_lea.vmem [#allocation2], 35
        %v3628 = vld [vmem:[%s3627] ss:$4 sm:$0xff]
        %s3629 = scalar_lea.vmem [#allocation2], 67
        %v3630 = vld [vmem:[%s3629] ss:$4 sm:$0xff]
        %s3631 = scalar_lea.vmem [#allocation2], 99
        %v3632 = vld [vmem:[%s3631] ss:$4 sm:$0xff]
        %s3633 = scalar_lea.vmem [#allocation2], 131
        %v3634 = vld [vmem:[%s3633] ss:$4 sm:$0xff]
        %s3635 = scalar_lea.vmem [#allocation2], 163
        %v3636 = vld [vmem:[%s3635] ss:$4 sm:$0xff]
        %s3637 = scalar_lea.vmem [#allocation2], 195
        %v3638 = vld [vmem:[%s3637] ss:$4 sm:$0xff]
        %s3639 = scalar_lea.vmem [#allocation2], 227
        %v3640 = vld [vmem:[%s3639] ss:$4 sm:$0xff]
        %s3641 = scalar_lea.vmem [#allocation2], 259
        %v3642 = vld [vmem:[%s3641] ss:$4 sm:$0xff]
        %s3643 = scalar_lea.vmem [#allocation2], 291
        %v3644 = vld [vmem:[%s3643] ss:$4 sm:$0xff]
        %s3645 = scalar_lea.vmem [#allocation2], 323
        %v3646 = vld [vmem:[%s3645] ss:$4 sm:$0xff]
        %s3647 = scalar_lea.vmem [#allocation2], 355
        %v3648 = vld [vmem:[%s3647] ss:$4 sm:$0xff]
        %s3649 = scalar_lea.vmem [#allocation2], 387
        %v3650 = vld [vmem:[%s3649] ss:$4 sm:$0xff]
        %s3651 = scalar_lea.vmem [#allocation2], 419
        %v3652 = vld [vmem:[%s3651] ss:$4 sm:$0xff]
        %s3653 = scalar_lea.vmem [#allocation2], 451
        %v3654 = vld [vmem:[%s3653] ss:$4 sm:$0xff]
        %s3655 = scalar_lea.vmem [#allocation2], 483
        %v3656 = vld [vmem:[%s3655] ss:$4 sm:$0xff]
        %s3657 = scalar_lea.vmem [#allocation2], 515
        %v3658 = vld [vmem:[%s3657] ss:$4 sm:$0xff]
        %s3659 = scalar_lea.vmem [#allocation2], 547
        %v3660 = vld [vmem:[%s3659] ss:$4 sm:$0xff]
        %s3661 = scalar_lea.vmem [#allocation2], 579
        %v3662 = vld [vmem:[%s3661] ss:$4 sm:$0xff]
        %s3663 = scalar_lea.vmem [#allocation2], 611
        %v3664 = vld [vmem:[%s3663] ss:$4 sm:$0xff]
        %s3665 = scalar_lea.vmem [#allocation2], 643
        %v3666 = vld [vmem:[%s3665] ss:$4 sm:$0xff]
        %s3667 = scalar_lea.vmem [#allocation2], 675
        %v3668 = vld [vmem:[%s3667] ss:$4 sm:$0xff]
        %s3669 = scalar_lea.vmem [#allocation2], 707
        %v3670 = vld [vmem:[%s3669] ss:$4 sm:$0xff]
        %s3671 = scalar_lea.vmem [#allocation2], 739
        %v3672 = vld [vmem:[%s3671] ss:$4 sm:$0xff]
        %s3673 = scalar_lea.vmem [#allocation2], 771
        %v3674 = vld [vmem:[%s3673] ss:$4 sm:$0xff]
        %s3675 = scalar_lea.vmem [#allocation2], 803
        %v3676 = vld [vmem:[%s3675] ss:$4 sm:$0xff]
        %s3677 = scalar_lea.vmem [#allocation2], 835
        %v3678 = vld [vmem:[%s3677] ss:$4 sm:$0xff]
        %s3679 = scalar_lea.vmem [#allocation2], 867
        %v3680 = vld [vmem:[%s3679] ss:$4 sm:$0xff]
        %s3681 = scalar_lea.vmem [#allocation2], 899
        %v3682 = vld [vmem:[%s3681] ss:$4 sm:$0xff]
        %s3683 = scalar_lea.vmem [#allocation2], 931
        %v3684 = vld [vmem:[%s3683] ss:$4 sm:$0xff]
        %s3685 = scalar_lea.vmem [#allocation2], 963
        %v3686 = vld [vmem:[%s3685] ss:$4 sm:$0xff]
        %s3687 = scalar_lea.vmem [#allocation2], 995
        %v3688 = vld [vmem:[%s3687] ss:$4 sm:$0xff]
        %v3689 = vmax.f32 %v3593, %v3626
        %v3690 = vmax.f32 %v3594, %v3628
        %v3691 = vmax.f32 %v3595, %v3630
        %v3692 = vmax.f32 %v3596, %v3632
        %v3693 = vmax.f32 %v3597, %v3634
        %v3694 = vmax.f32 %v3598, %v3636
        %v3695 = vmax.f32 %v3599, %v3638
        %v3696 = vmax.f32 %v3600, %v3640
        %v3697 = vmax.f32 %v3601, %v3642
        %v3698 = vmax.f32 %v3602, %v3644
        %v3699 = vmax.f32 %v3603, %v3646
        %v3700 = vmax.f32 %v3604, %v3648
        %v3701 = vmax.f32 %v3605, %v3650
        %v3702 = vmax.f32 %v3606, %v3652
        %v3703 = vmax.f32 %v3607, %v3654
        %v3704 = vmax.f32 %v3608, %v3656
        %v3705 = vmax.f32 %v3609, %v3658
        %v3706 = vmax.f32 %v3610, %v3660
        %v3707 = vmax.f32 %v3611, %v3662
        %v3708 = vmax.f32 %v3612, %v3664
        %v3709 = vmax.f32 %v3613, %v3666
        %v3710 = vmax.f32 %v3614, %v3668
        %v3711 = vmax.f32 %v3615, %v3670
        %v3712 = vmax.f32 %v3616, %v3672
        %v3713 = vmax.f32 %v3617, %v3674
        %v3714 = vmax.f32 %v3618, %v3676
        %v3715 = vmax.f32 %v3619, %v3678
        %v3716 = vmax.f32 %v3620, %v3680
        %v3717 = vmax.f32 %v3621, %v3682
        %v3718 = vmax.f32 %v3622, %v3684
        %v3719 = vmax.f32 %v3623, %v3686
        %v3720 = vmax.f32 %v3624, %v3688
        %3721 = vst.msk [vmem:[#allocation3 + $0x1] sm:$0xff] %vm3241, %v3689
        %3722 = vst.msk [vmem:[#allocation3 + $0x9] sm:$0xff] %vm3241, %v3690
        %3723 = vst.msk [vmem:[#allocation3 + $0x11] sm:$0xff] %vm3241, %v3691
        %3724 = vst.msk [vmem:[#allocation3 + $0x19] sm:$0xff] %vm3241, %v3692
        %3725 = vst.msk [vmem:[#allocation3 + $0x21] sm:$0xff] %vm3241, %v3693
        %3726 = vst.msk [vmem:[#allocation3 + $0x29] sm:$0xff] %vm3241, %v3694
        %3727 = vst.msk [vmem:[#allocation3 + $0x31] sm:$0xff] %vm3241, %v3695
        %3728 = vst.msk [vmem:[#allocation3 + $0x39] sm:$0xff] %vm3241, %v3696
        %3729 = vst.msk [vmem:[#allocation3 + $0x41] sm:$0xff] %vm3241, %v3697
        %3730 = vst.msk [vmem:[#allocation3 + $0x49] sm:$0xff] %vm3241, %v3698
        %3731 = vst.msk [vmem:[#allocation3 + $0x51] sm:$0xff] %vm3241, %v3699
        %3732 = vst.msk [vmem:[#allocation3 + $0x59] sm:$0xff] %vm3241, %v3700
        %3733 = vst.msk [vmem:[#allocation3 + $0x61] sm:$0xff] %vm3241, %v3701
        %3734 = vst.msk [vmem:[#allocation3 + $0x69] sm:$0xff] %vm3241, %v3702
        %3735 = vst.msk [vmem:[#allocation3 + $0x71] sm:$0xff] %vm3241, %v3703
        %3736 = vst.msk [vmem:[#allocation3 + $0x79] sm:$0xff] %vm3241, %v3704
        %3737 = vst.msk [vmem:[#allocation3 + $0x81] sm:$0xff] %vm3241, %v3705
        %3738 = vst.msk [vmem:[#allocation3 + $0x89] sm:$0xff] %vm3241, %v3706
        %3739 = vst.msk [vmem:[#allocation3 + $0x91] sm:$0xff] %vm3241, %v3707
        %3740 = vst.msk [vmem:[#allocation3 + $0x99] sm:$0xff] %vm3241, %v3708
        %3741 = vst.msk [vmem:[#allocation3 + $0xa1] sm:$0xff] %vm3241, %v3709
        %3742 = vst.msk [vmem:[#allocation3 + $0xa9] sm:$0xff] %vm3241, %v3710
        %3743 = vst.msk [vmem:[#allocation3 + $0xb1] sm:$0xff] %vm3241, %v3711
        %3744 = vst.msk [vmem:[#allocation3 + $0xb9] sm:$0xff] %vm3241, %v3712
        %3745 = vst.msk [vmem:[#allocation3 + $0xc1] sm:$0xff] %vm3241, %v3713
        %3746 = vst.msk [vmem:[#allocation3 + $0xc9] sm:$0xff] %vm3241, %v3714
        %3747 = vst.msk [vmem:[#allocation3 + $0xd1] sm:$0xff] %vm3241, %v3715
        %3748 = vst.msk [vmem:[#allocation3 + $0xd9] sm:$0xff] %vm3241, %v3716
        %3749 = vst.msk [vmem:[#allocation3 + $0xe1] sm:$0xff] %vm3241, %v3717
        %3750 = vst.msk [vmem:[#allocation3 + $0xe9] sm:$0xff] %vm3241, %v3718
        %3751 = vst.msk [vmem:[#allocation3 + $0xf1] sm:$0xff] %vm3241, %v3719
        %3752 = vst.msk [vmem:[#allocation3 + $0xf9] sm:$0xff] %vm3241, %v3720
        %v3753 = vld [vmem:[#allocation3] sm:$0xff]
        %v3754 = vld [vmem:[#allocation3 + $0x8] sm:$0xff]
        %v3755 = vld [vmem:[#allocation3 + $0x10] sm:$0xff]
        %v3756 = vld [vmem:[#allocation3 + $0x18] sm:$0xff]
        %v3757 = vld [vmem:[#allocation3 + $0x20] sm:$0xff]
        %v3758 = vld [vmem:[#allocation3 + $0x28] sm:$0xff]
        %v3759 = vld [vmem:[#allocation3 + $0x30] sm:$0xff]
        %v3760 = vld [vmem:[#allocation3 + $0x38] sm:$0xff]
        %v3761 = vld [vmem:[#allocation3 + $0x40] sm:$0xff]
        %v3762 = vld [vmem:[#allocation3 + $0x48] sm:$0xff]
        %v3763 = vld [vmem:[#allocation3 + $0x50] sm:$0xff]
        %v3764 = vld [vmem:[#allocation3 + $0x58] sm:$0xff]
        %v3765 = vld [vmem:[#allocation3 + $0x60] sm:$0xff]
        %v3766 = vld [vmem:[#allocation3 + $0x68] sm:$0xff]
        %v3767 = vld [vmem:[#allocation3 + $0x70] sm:$0xff]
        %v3768 = vld [vmem:[#allocation3 + $0x78] sm:$0xff]
        %v3769 = vld [vmem:[#allocation3 + $0x80] sm:$0xff]
        %v3770 = vld [vmem:[#allocation3 + $0x88] sm:$0xff]
        %v3771 = vld [vmem:[#allocation3 + $0x90] sm:$0xff]
        %v3772 = vld [vmem:[#allocation3 + $0x98] sm:$0xff]
        %v3773 = vld [vmem:[#allocation3 + $0xa0] sm:$0xff]
        %v3774 = vld [vmem:[#allocation3 + $0xa8] sm:$0xff]
        %v3775 = vld [vmem:[#allocation3 + $0xb0] sm:$0xff]
        %v3776 = vld [vmem:[#allocation3 + $0xb8] sm:$0xff]
        %v3777 = vld [vmem:[#allocation3 + $0xc0] sm:$0xff]
        %v3778 = vld [vmem:[#allocation3 + $0xc8] sm:$0xff]
        %v3779 = vld [vmem:[#allocation3 + $0xd0] sm:$0xff]
        %v3780 = vld [vmem:[#allocation3 + $0xd8] sm:$0xff]
        %v3781 = vld [vmem:[#allocation3 + $0xe0] sm:$0xff]
        %v3782 = vld [vmem:[#allocation3 + $0xe8] sm:$0xff]
        %v3783 = vld [vmem:[#allocation3 + $0xf0] sm:$0xff]
        %v3784 = vld [vmem:[#allocation3 + $0xf8] sm:$0xff]
        %v3785 = vld [vmem:[#allocation3 + $0x1] sm:$0xff]
        %v3786 = vld [vmem:[#allocation3 + $0x9] sm:$0xff]
        %v3787 = vld [vmem:[#allocation3 + $0x11] sm:$0xff]
        %v3788 = vld [vmem:[#allocation3 + $0x19] sm:$0xff]
        %v3789 = vld [vmem:[#allocation3 + $0x21] sm:$0xff]
        %v3790 = vld [vmem:[#allocation3 + $0x29] sm:$0xff]
        %v3791 = vld [vmem:[#allocation3 + $0x31] sm:$0xff]
        %v3792 = vld [vmem:[#allocation3 + $0x39] sm:$0xff]
        %v3793 = vld [vmem:[#allocation3 + $0x41] sm:$0xff]
        %v3794 = vld [vmem:[#allocation3 + $0x49] sm:$0xff]
        %v3795 = vld [vmem:[#allocation3 + $0x51] sm:$0xff]
        %v3796 = vld [vmem:[#allocation3 + $0x59] sm:$0xff]
        %v3797 = vld [vmem:[#allocation3 + $0x61] sm:$0xff]
        %v3798 = vld [vmem:[#allocation3 + $0x69] sm:$0xff]
        %v3799 = vld [vmem:[#allocation3 + $0x71] sm:$0xff]
        %v3800 = vld [vmem:[#allocation3 + $0x79] sm:$0xff]
        %v3801 = vld [vmem:[#allocation3 + $0x81] sm:$0xff]
        %v3802 = vld [vmem:[#allocation3 + $0x89] sm:$0xff]
        %v3803 = vld [vmem:[#allocation3 + $0x91] sm:$0xff]
        %v3804 = vld [vmem:[#allocation3 + $0x99] sm:$0xff]
        %v3805 = vld [vmem:[#allocation3 + $0xa1] sm:$0xff]
        %v3806 = vld [vmem:[#allocation3 + $0xa9] sm:$0xff]
        %v3807 = vld [vmem:[#allocation3 + $0xb1] sm:$0xff]
        %v3808 = vld [vmem:[#allocation3 + $0xb9] sm:$0xff]
        %v3809 = vld [vmem:[#allocation3 + $0xc1] sm:$0xff]
        %v3810 = vld [vmem:[#allocation3 + $0xc9] sm:$0xff]
        %v3811 = vld [vmem:[#allocation3 + $0xd1] sm:$0xff]
        %v3812 = vld [vmem:[#allocation3 + $0xd9] sm:$0xff]
        %v3813 = vld [vmem:[#allocation3 + $0xe1] sm:$0xff]
        %v3814 = vld [vmem:[#allocation3 + $0xe9] sm:$0xff]
        %v3815 = vld [vmem:[#allocation3 + $0xf1] sm:$0xff]
        %v3816 = vld [vmem:[#allocation3 + $0xf9] sm:$0xff]
        %v3817 = vld [vmem:[#allocation3 + $0x2] sm:$0xff]
        %v3818 = vld [vmem:[#allocation3 + $0xa] sm:$0xff]
        %v3819 = vld [vmem:[#allocation3 + $0x12] sm:$0xff]
        %v3820 = vld [vmem:[#allocation3 + $0x1a] sm:$0xff]
        %v3821 = vld [vmem:[#allocation3 + $0x22] sm:$0xff]
        %v3822 = vld [vmem:[#allocation3 + $0x2a] sm:$0xff]
        %v3823 = vld [vmem:[#allocation3 + $0x32] sm:$0xff]
        %v3824 = vld [vmem:[#allocation3 + $0x3a] sm:$0xff]
        %v3825 = vld [vmem:[#allocation3 + $0x42] sm:$0xff]
        %v3826 = vld [vmem:[#allocation3 + $0x4a] sm:$0xff]
        %v3827 = vld [vmem:[#allocation3 + $0x52] sm:$0xff]
        %v3828 = vld [vmem:[#allocation3 + $0x5a] sm:$0xff]
        %v3829 = vld [vmem:[#allocation3 + $0x62] sm:$0xff]
        %v3830 = vld [vmem:[#allocation3 + $0x6a] sm:$0xff]
        %v3831 = vld [vmem:[#allocation3 + $0x72] sm:$0xff]
        %v3832 = vld [vmem:[#allocation3 + $0x7a] sm:$0xff]
        %v3833 = vld [vmem:[#allocation3 + $0x82] sm:$0xff]
        %v3834 = vld [vmem:[#allocation3 + $0x8a] sm:$0xff]
        %v3835 = vld [vmem:[#allocation3 + $0x92] sm:$0xff]
        %v3836 = vld [vmem:[#allocation3 + $0x9a] sm:$0xff]
        %v3837 = vld [vmem:[#allocation3 + $0xa2] sm:$0xff]
        %v3838 = vld [vmem:[#allocation3 + $0xaa] sm:$0xff]
        %v3839 = vld [vmem:[#allocation3 + $0xb2] sm:$0xff]
        %v3840 = vld [vmem:[#allocation3 + $0xba] sm:$0xff]
        %v3841 = vld [vmem:[#allocation3 + $0xc2] sm:$0xff]
        %v3842 = vld [vmem:[#allocation3 + $0xca] sm:$0xff]
        %v3843 = vld [vmem:[#allocation3 + $0xd2] sm:$0xff]
        %v3844 = vld [vmem:[#allocation3 + $0xda] sm:$0xff]
        %v3845 = vld [vmem:[#allocation3 + $0xe2] sm:$0xff]
        %v3846 = vld [vmem:[#allocation3 + $0xea] sm:$0xff]
        %v3847 = vld [vmem:[#allocation3 + $0xf2] sm:$0xff]
        %v3848 = vld [vmem:[#allocation3 + $0xfa] sm:$0xff]
        %3881 = vrot.lane.b32.xlu0 %v3785, 16
        %v3882 = vpop.permute.xlu0 %3881
        %3883 = vrot.lane.b32.xlu0 %v3786, 16
        %v3884 = vpop.permute.xlu0 %3883
        %3885 = vrot.lane.b32.xlu0 %v3787, 16
        %v3886 = vpop.permute.xlu0 %3885
        %3887 = vrot.lane.b32.xlu0 %v3788, 16
        %v3888 = vpop.permute.xlu0 %3887
        %3889 = vrot.lane.b32.xlu0 %v3789, 16
        %v3890 = vpop.permute.xlu0 %3889
        %3891 = vrot.lane.b32.xlu0 %v3790, 16
        %v3892 = vpop.permute.xlu0 %3891
        %3893 = vrot.lane.b32.xlu0 %v3791, 16
        %v3894 = vpop.permute.xlu0 %3893
        %3895 = vrot.lane.b32.xlu0 %v3792, 16
        %v3896 = vpop.permute.xlu0 %3895
        %3897 = vrot.lane.b32.xlu0 %v3793, 16
        %v3898 = vpop.permute.xlu0 %3897
        %3899 = vrot.lane.b32.xlu0 %v3794, 16
        %v3900 = vpop.permute.xlu0 %3899
        %3901 = vrot.lane.b32.xlu0 %v3795, 16
        %v3902 = vpop.permute.xlu0 %3901
        %3903 = vrot.lane.b32.xlu0 %v3796, 16
        %v3904 = vpop.permute.xlu0 %3903
        %3905 = vrot.lane.b32.xlu0 %v3797, 16
        %v3906 = vpop.permute.xlu0 %3905
        %3907 = vrot.lane.b32.xlu0 %v3798, 16
        %v3908 = vpop.permute.xlu0 %3907
        %3909 = vrot.lane.b32.xlu0 %v3799, 16
        %v3910 = vpop.permute.xlu0 %3909
        %3911 = vrot.lane.b32.xlu0 %v3800, 16
        %v3912 = vpop.permute.xlu0 %3911
        %3913 = vrot.lane.b32.xlu0 %v3801, 16
        %v3914 = vpop.permute.xlu0 %3913
        %3915 = vrot.lane.b32.xlu0 %v3802, 16
        %v3916 = vpop.permute.xlu0 %3915
        %3917 = vrot.lane.b32.xlu0 %v3803, 16
        %v3918 = vpop.permute.xlu0 %3917
        %3919 = vrot.lane.b32.xlu0 %v3804, 16
        %v3920 = vpop.permute.xlu0 %3919
        %3921 = vrot.lane.b32.xlu0 %v3805, 16
        %v3922 = vpop.permute.xlu0 %3921
        %3923 = vrot.lane.b32.xlu0 %v3806, 16
        %v3924 = vpop.permute.xlu0 %3923
        %3925 = vrot.lane.b32.xlu0 %v3807, 16
        %v3926 = vpop.permute.xlu0 %3925
        %3927 = vrot.lane.b32.xlu0 %v3808, 16
        %v3928 = vpop.permute.xlu0 %3927
        %3929 = vrot.lane.b32.xlu0 %v3809, 16
        %v3930 = vpop.permute.xlu0 %3929
        %3931 = vrot.lane.b32.xlu0 %v3810, 16
        %v3932 = vpop.permute.xlu0 %3931
        %3933 = vrot.lane.b32.xlu0 %v3811, 16
        %v3934 = vpop.permute.xlu0 %3933
        %3935 = vrot.lane.b32.xlu0 %v3812, 16
        %v3936 = vpop.permute.xlu0 %3935
        %3937 = vrot.lane.b32.xlu0 %v3813, 16
        %v3938 = vpop.permute.xlu0 %3937
        %3939 = vrot.lane.b32.xlu0 %v3814, 16
        %v3940 = vpop.permute.xlu0 %3939
        %3941 = vrot.lane.b32.xlu0 %v3815, 16
        %v3942 = vpop.permute.xlu0 %3941
        %3943 = vrot.lane.b32.xlu0 %v3816, 16
        %v3944 = vpop.permute.xlu0 %3943
        %4009 = vrot.lane.b32.xlu0 %v3817, 32
        %v4010 = vpop.permute.xlu0 %4009
        %4011 = vrot.lane.b32.xlu0 %v3818, 32
        %v4012 = vpop.permute.xlu0 %4011
        %4013 = vrot.lane.b32.xlu0 %v3819, 32
        %v4014 = vpop.permute.xlu0 %4013
        %4015 = vrot.lane.b32.xlu0 %v3820, 32
        %v4016 = vpop.permute.xlu0 %4015
        %4017 = vrot.lane.b32.xlu0 %v3821, 32
        %v4018 = vpop.permute.xlu0 %4017
        %4019 = vrot.lane.b32.xlu0 %v3822, 32
        %v4020 = vpop.permute.xlu0 %4019
        %4021 = vrot.lane.b32.xlu0 %v3823, 32
        %v4022 = vpop.permute.xlu0 %4021
        %4023 = vrot.lane.b32.xlu0 %v3824, 32
        %v4024 = vpop.permute.xlu0 %4023
        %4025 = vrot.lane.b32.xlu0 %v3825, 32
        %v4026 = vpop.permute.xlu0 %4025
        %4027 = vrot.lane.b32.xlu0 %v3826, 32
        %v4028 = vpop.permute.xlu0 %4027
        %4029 = vrot.lane.b32.xlu0 %v3827, 32
        %v4030 = vpop.permute.xlu0 %4029
        %4031 = vrot.lane.b32.xlu0 %v3828, 32
        %v4032 = vpop.permute.xlu0 %4031
        %4033 = vrot.lane.b32.xlu0 %v3829, 32
        %v4034 = vpop.permute.xlu0 %4033
        %4035 = vrot.lane.b32.xlu0 %v3830, 32
        %v4036 = vpop.permute.xlu0 %4035
        %4037 = vrot.lane.b32.xlu0 %v3831, 32
        %v4038 = vpop.permute.xlu0 %4037
        %4039 = vrot.lane.b32.xlu0 %v3832, 32
        %v4040 = vpop.permute.xlu0 %4039
        %4041 = vrot.lane.b32.xlu0 %v3833, 32
        %v4042 = vpop.permute.xlu0 %4041
        %4043 = vrot.lane.b32.xlu0 %v3834, 32
        %v4044 = vpop.permute.xlu0 %4043
        %4045 = vrot.lane.b32.xlu0 %v3835, 32
        %v4046 = vpop.permute.xlu0 %4045
        %4047 = vrot.lane.b32.xlu0 %v3836, 32
        %v4048 = vpop.permute.xlu0 %4047
        %4049 = vrot.lane.b32.xlu0 %v3837, 32
        %v4050 = vpop.permute.xlu0 %4049
        %4051 = vrot.lane.b32.xlu0 %v3838, 32
        %v4052 = vpop.permute.xlu0 %4051
        %4053 = vrot.lane.b32.xlu0 %v3839, 32
        %v4054 = vpop.permute.xlu0 %4053
        %4055 = vrot.lane.b32.xlu0 %v3840, 32
        %v4056 = vpop.permute.xlu0 %4055
        %4057 = vrot.lane.b32.xlu0 %v3841, 32
        %v4058 = vpop.permute.xlu0 %4057
        %4059 = vrot.lane.b32.xlu0 %v3842, 32
        %v4060 = vpop.permute.xlu0 %4059
        %4061 = vrot.lane.b32.xlu0 %v3843, 32
        %v4062 = vpop.permute.xlu0 %4061
        %4063 = vrot.lane.b32.xlu0 %v3844, 32
        %v4064 = vpop.permute.xlu0 %4063
        %4065 = vrot.lane.b32.xlu0 %v3845, 32
        %v4066 = vpop.permute.xlu0 %4065
        %4067 = vrot.lane.b32.xlu0 %v3846, 32
        %v4068 = vpop.permute.xlu0 %4067
        %4069 = vrot.lane.b32.xlu0 %v3847, 32
        %v4070 = vpop.permute.xlu0 %4069
        %4071 = vrot.lane.b32.xlu0 %v3848, 32
        %v4072 = vpop.permute.xlu0 %4071
        %v4105 = vsel %vm3241, %v3753, %v3882
        %v4106 = vsel %vm3241, %v3754, %v3884
        %v4107 = vsel %vm3241, %v3755, %v3886
        %v4108 = vsel %vm3241, %v3756, %v3888
        %v4109 = vsel %vm3241, %v3757, %v3890
        %v4110 = vsel %vm3241, %v3758, %v3892
        %v4111 = vsel %vm3241, %v3759, %v3894
        %v4112 = vsel %vm3241, %v3760, %v3896
        %v4113 = vsel %vm3241, %v3761, %v3898
        %v4114 = vsel %vm3241, %v3762, %v3900
        %v4115 = vsel %vm3241, %v3763, %v3902
        %v4116 = vsel %vm3241, %v3764, %v3904
        %v4117 = vsel %vm3241, %v3765, %v3906
        %v4118 = vsel %vm3241, %v3766, %v3908
        %v4119 = vsel %vm3241, %v3767, %v3910
        %v4120 = vsel %vm3241, %v3768, %v3912
        %v4121 = vsel %vm3241, %v3769, %v3914
        %v4122 = vsel %vm3241, %v3770, %v3916
        %v4123 = vsel %vm3241, %v3771, %v3918
        %v4124 = vsel %vm3241, %v3772, %v3920
        %v4125 = vsel %vm3241, %v3773, %v3922
        %v4126 = vsel %vm3241, %v3774, %v3924
        %v4127 = vsel %vm3241, %v3775, %v3926
        %v4128 = vsel %vm3241, %v3776, %v3928
        %v4129 = vsel %vm3241, %v3777, %v3930
        %v4130 = vsel %vm3241, %v3778, %v3932
        %v4131 = vsel %vm3241, %v3779, %v3934
        %v4132 = vsel %vm3241, %v3780, %v3936
        %v4133 = vsel %vm3241, %v3781, %v3938
        %v4134 = vsel %vm3241, %v3782, %v3940
        %v4135 = vsel %vm3241, %v3783, %v3942
        %v4136 = vsel %vm3241, %v3784, %v3944
        %vm4137 = vcmask 261120
        %v4138 = vsel %vm4137, %v4105, %v4010
        %v4139 = vsel %vm4137, %v4106, %v4012
        %v4140 = vsel %vm4137, %v4107, %v4014
        %v4141 = vsel %vm4137, %v4108, %v4016
        %v4142 = vsel %vm4137, %v4109, %v4018
        %v4143 = vsel %vm4137, %v4110, %v4020
        %v4144 = vsel %vm4137, %v4111, %v4022
        %v4145 = vsel %vm4137, %v4112, %v4024
        %v4146 = vsel %vm4137, %v4113, %v4026
        %v4147 = vsel %vm4137, %v4114, %v4028
        %v4148 = vsel %vm4137, %v4115, %v4030
        %v4149 = vsel %vm4137, %v4116, %v4032
        %v4150 = vsel %vm4137, %v4117, %v4034
        %v4151 = vsel %vm4137, %v4118, %v4036
        %v4152 = vsel %vm4137, %v4119, %v4038
        %v4153 = vsel %vm4137, %v4120, %v4040
        %v4154 = vsel %vm4137, %v4121, %v4042
        %v4155 = vsel %vm4137, %v4122, %v4044
        %v4156 = vsel %vm4137, %v4123, %v4046
        %v4157 = vsel %vm4137, %v4124, %v4048
        %v4158 = vsel %vm4137, %v4125, %v4050
        %v4159 = vsel %vm4137, %v4126, %v4052
        %v4160 = vsel %vm4137, %v4127, %v4054
        %v4161 = vsel %vm4137, %v4128, %v4056
        %v4162 = vsel %vm4137, %v4129, %v4058
        %v4163 = vsel %vm4137, %v4130, %v4060
        %v4164 = vsel %vm4137, %v4131, %v4062
        %v4165 = vsel %vm4137, %v4132, %v4064
        %v4166 = vsel %vm4137, %v4133, %v4066
        %v4167 = vsel %vm4137, %v4134, %v4068
        %v4168 = vsel %vm4137, %v4135, %v4070
        %v4169 = vsel %vm4137, %v4136, %v4072
        %v4170 = vld [vmem:[%s9] sm:$0xff]
        %v4171 = vld [vmem:[%s9 + $0x8] sm:$0xff]
        %v4172 = vld [vmem:[%s9 + $0x10] sm:$0xff]
        %v4173 = vld [vmem:[%s9 + $0x18] sm:$0xff]
        %v4174 = vld [vmem:[%s9 + $0x20] sm:$0xff]
        %v4175 = vld [vmem:[%s9 + $0x28] sm:$0xff]
        %vm4176 = vcmask 392192
        %v4178 = vsel %vm4176, %v4138, 0
        %v4181 = vsel %vm4176, %v4139, 0
        %v4184 = vsel %vm4176, %v4140, 0
        %v4187 = vsel %vm4176, %v4141, 0
        %v4190 = vsel %vm4176, %v4142, 0
        %v4193 = vsel %vm4176, %v4143, 0
        %v4196 = vsel %vm4176, %v4144, 0
        %v4199 = vsel %vm4176, %v4145, 0
        %v4202 = vsel %vm4176, %v4146, 0
        %v4205 = vsel %vm4176, %v4147, 0
        %v4208 = vsel %vm4176, %v4148, 0
        %v4211 = vsel %vm4176, %v4149, 0
        %v4214 = vsel %vm4176, %v4150, 0
        %v4217 = vsel %vm4176, %v4151, 0
        %v4220 = vsel %vm4176, %v4152, 0
        %v4223 = vsel %vm4176, %v4153, 0
        %v4226 = vsel %vm4176, %v4154, 0
        %v4229 = vsel %vm4176, %v4155, 0
        %v4232 = vsel %vm4176, %v4156, 0
        %v4235 = vsel %vm4176, %v4157, 0
        %v4238 = vsel %vm4176, %v4158, 0
        %v4241 = vsel %vm4176, %v4159, 0
        %v4244 = vsel %vm4176, %v4160, 0
        %v4247 = vsel %vm4176, %v4161, 0
        %v4250 = vsel %vm4176, %v4162, 0
        %v4253 = vsel %vm4176, %v4163, 0
        %v4256 = vsel %vm4176, %v4164, 0
        %v4259 = vsel %vm4176, %v4165, 0
        %v4262 = vsel %vm4176, %v4166, 0
        %v4265 = vsel %vm4176, %v4167, 0
        %v4268 = vsel %vm4176, %v4168, 0
        %v4271 = vsel %vm4176, %v4169, 0
        %4273 = vmatprep.subr.mxu0 0.0
        %4274 = vmatpush1.msra.mxu0 0.0
        %4275 = vmatprep.subr.mxu0 0.0
        %4276 = vmatpush1.msra.mxu0 0.0
        %4277 = vmatprep.subr.mxu0 0.0
        %4278 = vmatpush1.msra.mxu0 0.0
        %4279 = vmatprep.subr.mxu0 0.0
        %4280 = vmatpush1.msra.mxu0 0.0
        %4281 = vmatprep.subr.mxu0 0.0
        %4282 = vmatpush1.msra.mxu0 0.0
        %4283 = vmatprep.subr.mxu0 0.0
        %4284 = vmatpush1.msra.mxu0 0.0
        %4285 = vmatprep.subr.mxu0 0.0
        %4286 = vmatpush1.msra.mxu0 0.0
        %4287 = vmatprep.subr.mxu0 0.0
        %4288 = vmatpush1.msra.mxu0 0.0
        %4289 = vmatprep.subr.mxu0 0.0
        %4290 = vmatpush1.msra.mxu0 0.0
        %4291 = vmatprep.subr.mxu0 0.0
        %4292 = vmatpush1.msra.mxu0 0.0
        %4293 = vmatprep.subr.mxu0 0.0
        %4294 = vmatpush1.msra.mxu0 %v4175
        %4295 = vmatprep.subr.mxu0 0.0
        %4296 = vmatpush1.msra.mxu0 %v4174
        %4297 = vmatprep.subr.mxu0 0.0
        %4298 = vmatpush1.msra.mxu0 %v4173
        %4299 = vmatprep.subr.mxu0 0.0
        %4300 = vmatpush1.msra.mxu0 %v4172
        %4301 = vmatprep.subr.mxu0 0.0
        %4302 = vmatpush1.msra.mxu0 %v4171
        %4303 = vmatprep.subr.mxu0 0.0
        %4304 = vmatpush1.msra.mxu0 %v4170
        %4305 = vmatprep.subr.mxu0 0.0
        %4306 = vmatpush2.msra.mxu0 0.0
        %4307 = vmatprep.subr.mxu0 0.0
        %4308 = vmatpush2.msra.mxu0 0.0
        %4309 = vmatprep.subr.mxu0 0.0
        %4310 = vmatpush2.msra.mxu0 0.0
        %4311 = vmatprep.subr.mxu0 0.0
        %4312 = vmatpush2.msra.mxu0 0.0
        %4313 = vmatprep.subr.mxu0 0.0
        %4314 = vmatpush2.msra.mxu0 0.0
        %4315 = vmatprep.subr.mxu0 0.0
        %4316 = vmatpush2.msra.mxu0 0.0
        %4317 = vmatprep.subr.mxu0 0.0
        %4318 = vmatpush2.msra.mxu0 0.0
        %4319 = vmatprep.subr.mxu0 0.0
        %4320 = vmatpush2.msra.mxu0 0.0
        %4321 = vmatprep.subr.mxu0 0.0
        %4322 = vmatpush2.msra.mxu0 0.0
        %4323 = vmatprep.subr.mxu0 0.0
        %4324 = vmatpush2.msra.mxu0 0.0
        %4325 = vmatprep.subr.mxu0 0.0
        %4326 = vmatpush2.msra.mxu0 0.0
        %4327 = vmatprep.subr.mxu0 0.0
        %4328 = vmatpush2.msra.mxu0 0.0
        %4329 = vmatprep.subr.mxu0 0.0
        %4330 = vmatpush2.msra.mxu0 0.0
        %4331 = vmatprep.subr.mxu0 0.0
        %4332 = vmatpush2.msra.mxu0 0.0
        %4333 = vmatprep.subr.mxu0 0.0
        %4334 = vmatpush2.msra.mxu0 0.0
        %4335 = vmatprep.subr.mxu0 0.0
        %4336 = vmatpush2.msra.mxu0 0.0
        %4337 = vmatprep.mubr.f32.mxu0 0.0
        %4338 = vmatmul.mubr.f32.gmra.mxu0 %v4178
        %v4339 = vpop.f32.mrf.mxu0
        %v4340 = vadd.f32 0.0, %v4339
        %v4341 = vpop.f32.mrf.mxu0
        %4342 = vmatprep.mubr.f32.mxu0 0.0
        %4343 = vmatmul.mubr.f32.gmra.mxu0 %v4181
        %v4344 = vpop.f32.mrf.mxu0
        %v4345 = vadd.f32 0.0, %v4344
        %v4346 = vpop.f32.mrf.mxu0
        %4347 = vmatprep.mubr.f32.mxu0 0.0
        %4348 = vmatmul.mubr.f32.gmra.mxu0 %v4184
        %v4349 = vpop.f32.mrf.mxu0
        %v4350 = vadd.f32 0.0, %v4349
        %v4351 = vpop.f32.mrf.mxu0
        %4352 = vmatprep.mubr.f32.mxu0 0.0
        %4353 = vmatmul.mubr.f32.gmra.mxu0 %v4187
        %v4354 = vpop.f32.mrf.mxu0
        %v4355 = vadd.f32 0.0, %v4354
        %v4356 = vpop.f32.mrf.mxu0
        %4357 = vmatprep.mubr.f32.mxu0 0.0
        %4358 = vmatmul.mubr.f32.gmra.mxu0 %v4190
        %v4359 = vpop.f32.mrf.mxu0
        %v4360 = vadd.f32 0.0, %v4359
        %v4361 = vpop.f32.mrf.mxu0
        %4362 = vmatprep.mubr.f32.mxu0 0.0
        %4363 = vmatmul.mubr.f32.gmra.mxu0 %v4193
        %v4364 = vpop.f32.mrf.mxu0
        %v4365 = vadd.f32 0.0, %v4364
        %v4366 = vpop.f32.mrf.mxu0
        %4367 = vmatprep.mubr.f32.mxu0 0.0
        %4368 = vmatmul.mubr.f32.gmra.mxu0 %v4196
        %v4369 = vpop.f32.mrf.mxu0
        %v4370 = vadd.f32 0.0, %v4369
        %v4371 = vpop.f32.mrf.mxu0
        %4372 = vmatprep.mubr.f32.mxu0 0.0
        %4373 = vmatmul.mubr.f32.gmra.mxu0 %v4199
        %v4374 = vpop.f32.mrf.mxu0
        %v4375 = vadd.f32 0.0, %v4374
        %v4376 = vpop.f32.mrf.mxu0
        %4377 = vmatprep.mubr.f32.mxu0 0.0
        %4378 = vmatmul.mubr.f32.gmra.mxu0 %v4202
        %v4379 = vpop.f32.mrf.mxu0
        %v4380 = vadd.f32 0.0, %v4379
        %v4381 = vpop.f32.mrf.mxu0
        %4382 = vmatprep.mubr.f32.mxu0 0.0
        %4383 = vmatmul.mubr.f32.gmra.mxu0 %v4205
        %v4384 = vpop.f32.mrf.mxu0
        %v4385 = vadd.f32 0.0, %v4384
        %v4386 = vpop.f32.mrf.mxu0
        %4387 = vmatprep.mubr.f32.mxu0 0.0
        %4388 = vmatmul.mubr.f32.gmra.mxu0 %v4208
        %v4389 = vpop.f32.mrf.mxu0
        %v4390 = vadd.f32 0.0, %v4389
        %v4391 = vpop.f32.mrf.mxu0
        %4392 = vmatprep.mubr.f32.mxu0 0.0
        %4393 = vmatmul.mubr.f32.gmra.mxu0 %v4211
        %v4394 = vpop.f32.mrf.mxu0
        %v4395 = vadd.f32 0.0, %v4394
        %v4396 = vpop.f32.mrf.mxu0
        %4397 = vmatprep.mubr.f32.mxu0 0.0
        %4398 = vmatmul.mubr.f32.gmra.mxu0 %v4214
        %v4399 = vpop.f32.mrf.mxu0
        %v4400 = vadd.f32 0.0, %v4399
        %v4401 = vpop.f32.mrf.mxu0
        %4402 = vmatprep.mubr.f32.mxu0 0.0
        %4403 = vmatmul.mubr.f32.gmra.mxu0 %v4217
        %v4404 = vpop.f32.mrf.mxu0
        %v4405 = vadd.f32 0.0, %v4404
        %v4406 = vpop.f32.mrf.mxu0
        %4407 = vmatprep.mubr.f32.mxu0 0.0
        %4408 = vmatmul.mubr.f32.gmra.mxu0 %v4220
        %v4409 = vpop.f32.mrf.mxu0
        %v4410 = vadd.f32 0.0, %v4409
        %v4411 = vpop.f32.mrf.mxu0
        %4412 = vmatprep.mubr.f32.mxu0 0.0
        %4413 = vmatmul.mubr.f32.gmra.mxu0 %v4223
        %v4414 = vpop.f32.mrf.mxu0
        %v4415 = vadd.f32 0.0, %v4414
        %v4416 = vpop.f32.mrf.mxu0
        %4417 = vmatprep.mubr.f32.mxu0 0.0
        %4418 = vmatmul.mubr.f32.gmra.mxu0 %v4226
        %v4419 = vpop.f32.mrf.mxu0
        %v4420 = vadd.f32 0.0, %v4419
        %v4421 = vpop.f32.mrf.mxu0
        %4422 = vmatprep.mubr.f32.mxu0 0.0
        %4423 = vmatmul.mubr.f32.gmra.mxu0 %v4229
        %v4424 = vpop.f32.mrf.mxu0
        %v4425 = vadd.f32 0.0, %v4424
        %v4426 = vpop.f32.mrf.mxu0
        %4427 = vmatprep.mubr.f32.mxu0 0.0
        %4428 = vmatmul.mubr.f32.gmra.mxu0 %v4232
        %v4429 = vpop.f32.mrf.mxu0
        %v4430 = vadd.f32 0.0, %v4429
        %v4431 = vpop.f32.mrf.mxu0
        %4432 = vmatprep.mubr.f32.mxu0 0.0
        %4433 = vmatmul.mubr.f32.gmra.mxu0 %v4235
        %v4434 = vpop.f32.mrf.mxu0
        %v4435 = vadd.f32 0.0, %v4434
        %v4436 = vpop.f32.mrf.mxu0
        %4437 = vmatprep.mubr.f32.mxu0 0.0
        %4438 = vmatmul.mubr.f32.gmra.mxu0 %v4238
        %v4439 = vpop.f32.mrf.mxu0
        %v4440 = vadd.f32 0.0, %v4439
        %v4441 = vpop.f32.mrf.mxu0
        %4442 = vmatprep.mubr.f32.mxu0 0.0
        %4443 = vmatmul.mubr.f32.gmra.mxu0 %v4241
        %v4444 = vpop.f32.mrf.mxu0
        %v4445 = vadd.f32 0.0, %v4444
        %v4446 = vpop.f32.mrf.mxu0
        %4447 = vmatprep.mubr.f32.mxu0 0.0
        %4448 = vmatmul.mubr.f32.gmra.mxu0 %v4244
        %v4449 = vpop.f32.mrf.mxu0
        %v4450 = vadd.f32 0.0, %v4449
        %v4451 = vpop.f32.mrf.mxu0
        %4452 = vmatprep.mubr.f32.mxu0 0.0
        %4453 = vmatmul.mubr.f32.gmra.mxu0 %v4247
        %v4454 = vpop.f32.mrf.mxu0
        %v4455 = vadd.f32 0.0, %v4454
        %v4456 = vpop.f32.mrf.mxu0
        %4457 = vmatprep.mubr.f32.mxu0 0.0
        %4458 = vmatmul.mubr.f32.gmra.mxu0 %v4250
        %v4459 = vpop.f32.mrf.mxu0
        %v4460 = vadd.f32 0.0, %v4459
        %v4461 = vpop.f32.mrf.mxu0
        %4462 = vmatprep.mubr.f32.mxu0 0.0
        %4463 = vmatmul.mubr.f32.gmra.mxu0 %v4253
        %v4464 = vpop.f32.mrf.mxu0
        %v4465 = vadd.f32 0.0, %v4464
        %v4466 = vpop.f32.mrf.mxu0
        %4467 = vmatprep.mubr.f32.mxu0 0.0
        %4468 = vmatmul.mubr.f32.gmra.mxu0 %v4256
        %v4469 = vpop.f32.mrf.mxu0
        %v4470 = vadd.f32 0.0, %v4469
        %v4471 = vpop.f32.mrf.mxu0
        %4472 = vmatprep.mubr.f32.mxu0 0.0
        %4473 = vmatmul.mubr.f32.gmra.mxu0 %v4259
        %v4474 = vpop.f32.mrf.mxu0
        %v4475 = vadd.f32 0.0, %v4474
        %v4476 = vpop.f32.mrf.mxu0
        %4477 = vmatprep.mubr.f32.mxu0 0.0
        %4478 = vmatmul.mubr.f32.gmra.mxu0 %v4262
        %v4479 = vpop.f32.mrf.mxu0
        %v4480 = vadd.f32 0.0, %v4479
        %v4481 = vpop.f32.mrf.mxu0
        %4482 = vmatprep.mubr.f32.mxu0 0.0
        %4483 = vmatmul.mubr.f32.gmra.mxu0 %v4265
        %v4484 = vpop.f32.mrf.mxu0
        %v4485 = vadd.f32 0.0, %v4484
        %v4486 = vpop.f32.mrf.mxu0
        %4487 = vmatprep.mubr.f32.mxu0 0.0
        %4488 = vmatmul.mubr.f32.gmra.mxu0 %v4268
        %v4489 = vpop.f32.mrf.mxu0
        %v4490 = vadd.f32 0.0, %v4489
        %v4491 = vpop.f32.mrf.mxu0
        %4492 = vmatprep.mubr.f32.mxu0 0.0
        %4493 = vmatmul.mubr.f32.gmra.mxu0 %v4271
        %v4494 = vpop.f32.mrf.mxu0
        %v4495 = vadd.f32 0.0, %v4494
        %v4496 = vpop.f32.mrf.mxu0
        %4497 = vdwg.mxu0
        %v4498 = vld [vmem:[%s11] sm:$0x1]
        %v4500 = vlaneseq
        %v4501 = vshrl.u32 %v4500, 7
        %v4502 = vsub.s32 0, %v4501
        %v4503 = vrot.slane %v4498, %v4502
        %v4505 = vmul.f32 %v4340, %v4503
        %v4506 = vmul.f32 %v4345, %v4503
        %v4507 = vmul.f32 %v4350, %v4503
        %v4508 = vmul.f32 %v4355, %v4503
        %v4509 = vmul.f32 %v4360, %v4503
        %v4510 = vmul.f32 %v4365, %v4503
        %v4511 = vmul.f32 %v4370, %v4503
        %v4512 = vmul.f32 %v4375, %v4503
        %v4513 = vmul.f32 %v4380, %v4503
        %v4514 = vmul.f32 %v4385, %v4503
        %v4515 = vmul.f32 %v4390, %v4503
        %v4516 = vmul.f32 %v4395, %v4503
        %v4517 = vmul.f32 %v4400, %v4503
        %v4518 = vmul.f32 %v4405, %v4503
        %v4519 = vmul.f32 %v4410, %v4503
        %v4520 = vmul.f32 %v4415, %v4503
        %v4521 = vmul.f32 %v4420, %v4503
        %v4522 = vmul.f32 %v4425, %v4503
        %v4523 = vmul.f32 %v4430, %v4503
        %v4524 = vmul.f32 %v4435, %v4503
        %v4525 = vmul.f32 %v4440, %v4503
        %v4526 = vmul.f32 %v4445, %v4503
        %v4527 = vmul.f32 %v4450, %v4503
        %v4528 = vmul.f32 %v4455, %v4503
        %v4529 = vmul.f32 %v4460, %v4503
        %v4530 = vmul.f32 %v4465, %v4503
        %v4531 = vmul.f32 %v4470, %v4503
        %v4532 = vmul.f32 %v4475, %v4503
        %v4533 = vmul.f32 %v4480, %v4503
        %v4534 = vmul.f32 %v4485, %v4503
        %v4535 = vmul.f32 %v4490, %v4503
        %v4536 = vmul.f32 %v4495, %v4503
        %v4537 = vld [vmem:[%s13] sm:$0x1]
        %v4539 = vlaneseq
        %v4540 = vshrl.u32 %v4539, 7
        %v4541 = vsub.s32 0, %v4540
        %v4542 = vrot.slane %v4537, %v4541
        %v4544 = vadd.f32 %v4505, %v4542
        %v4545 = vadd.f32 %v4506, %v4542
        %v4546 = vadd.f32 %v4507, %v4542
        %v4547 = vadd.f32 %v4508, %v4542
        %v4548 = vadd.f32 %v4509, %v4542
        %v4549 = vadd.f32 %v4510, %v4542
        %v4550 = vadd.f32 %v4511, %v4542
        %v4551 = vadd.f32 %v4512, %v4542
        %v4552 = vadd.f32 %v4513, %v4542
        %v4553 = vadd.f32 %v4514, %v4542
        %v4554 = vadd.f32 %v4515, %v4542
        %v4555 = vadd.f32 %v4516, %v4542
        %v4556 = vadd.f32 %v4517, %v4542
        %v4557 = vadd.f32 %v4518, %v4542
        %v4558 = vadd.f32 %v4519, %v4542
        %v4559 = vadd.f32 %v4520, %v4542
        %v4560 = vadd.f32 %v4521, %v4542
        %v4561 = vadd.f32 %v4522, %v4542
        %v4562 = vadd.f32 %v4523, %v4542
        %v4563 = vadd.f32 %v4524, %v4542
        %v4564 = vadd.f32 %v4525, %v4542
        %v4565 = vadd.f32 %v4526, %v4542
        %v4566 = vadd.f32 %v4527, %v4542
        %v4567 = vadd.f32 %v4528, %v4542
        %v4568 = vadd.f32 %v4529, %v4542
        %v4569 = vadd.f32 %v4530, %v4542
        %v4570 = vadd.f32 %v4531, %v4542
        %v4571 = vadd.f32 %v4532, %v4542
        %v4572 = vadd.f32 %v4533, %v4542
        %v4573 = vadd.f32 %v4534, %v4542
        %v4574 = vadd.f32 %v4535, %v4542
        %v4575 = vadd.f32 %v4536, %v4542
        %v4576 = vmax.f32 %v4544, 0.0
        %v4577 = vmax.f32 %v4545, 0.0
        %v4578 = vmax.f32 %v4546, 0.0
        %v4579 = vmax.f32 %v4547, 0.0
        %v4580 = vmax.f32 %v4548, 0.0
        %v4581 = vmax.f32 %v4549, 0.0
        %v4582 = vmax.f32 %v4550, 0.0
        %v4583 = vmax.f32 %v4551, 0.0
        %v4584 = vmax.f32 %v4552, 0.0
        %v4585 = vmax.f32 %v4553, 0.0
        %v4586 = vmax.f32 %v4554, 0.0
        %v4587 = vmax.f32 %v4555, 0.0
        %v4588 = vmax.f32 %v4556, 0.0
        %v4589 = vmax.f32 %v4557, 0.0
        %v4590 = vmax.f32 %v4558, 0.0
        %v4591 = vmax.f32 %v4559, 0.0
        %v4592 = vmax.f32 %v4560, 0.0
        %v4593 = vmax.f32 %v4561, 0.0
        %v4594 = vmax.f32 %v4562, 0.0
        %v4595 = vmax.f32 %v4563, 0.0
        %v4596 = vmax.f32 %v4564, 0.0
        %v4597 = vmax.f32 %v4565, 0.0
        %v4598 = vmax.f32 %v4566, 0.0
        %v4599 = vmax.f32 %v4567, 0.0
        %v4600 = vmax.f32 %v4568, 0.0
        %v4601 = vmax.f32 %v4569, 0.0
        %v4602 = vmax.f32 %v4570, 0.0
        %v4603 = vmax.f32 %v4571, 0.0
        %v4604 = vmax.f32 %v4572, 0.0
        %v4605 = vmax.f32 %v4573, 0.0
        %v4606 = vmax.f32 %v4574, 0.0
        %v4607 = vmax.f32 %v4575, 0.0
        %4608 = vst.msk [vmem:[#allocation4 + $0x1] sm:$0xff] %vm4137, %v4576
        %4609 = vst.msk [vmem:[#allocation4 + $0x9] sm:$0xff] %vm4137, %v4577
        %4610 = vst.msk [vmem:[#allocation4 + $0x11] sm:$0xff] %vm4137, %v4578
        %4611 = vst.msk [vmem:[#allocation4 + $0x19] sm:$0xff] %vm4137, %v4579
        %4612 = vst.msk [vmem:[#allocation4 + $0x21] sm:$0xff] %vm4137, %v4580
        %4613 = vst.msk [vmem:[#allocation4 + $0x29] sm:$0xff] %vm4137, %v4581
        %4614 = vst.msk [vmem:[#allocation4 + $0x31] sm:$0xff] %vm4137, %v4582
        %4615 = vst.msk [vmem:[#allocation4 + $0x39] sm:$0xff] %vm4137, %v4583
        %4616 = vst.msk [vmem:[#allocation4 + $0x41] sm:$0xff] %vm4137, %v4584
        %4617 = vst.msk [vmem:[#allocation4 + $0x49] sm:$0xff] %vm4137, %v4585
        %4618 = vst.msk [vmem:[#allocation4 + $0x51] sm:$0xff] %vm4137, %v4586
        %4619 = vst.msk [vmem:[#allocation4 + $0x59] sm:$0xff] %vm4137, %v4587
        %4620 = vst.msk [vmem:[#allocation4 + $0x61] sm:$0xff] %vm4137, %v4588
        %4621 = vst.msk [vmem:[#allocation4 + $0x69] sm:$0xff] %vm4137, %v4589
        %4622 = vst.msk [vmem:[#allocation4 + $0x71] sm:$0xff] %vm4137, %v4590
        %4623 = vst.msk [vmem:[#allocation4 + $0x79] sm:$0xff] %vm4137, %v4591
        %4624 = vst.msk [vmem:[#allocation4 + $0x81] sm:$0xff] %vm4137, %v4592
        %4625 = vst.msk [vmem:[#allocation4 + $0x89] sm:$0xff] %vm4137, %v4593
        %4626 = vst.msk [vmem:[#allocation4 + $0x91] sm:$0xff] %vm4137, %v4594
        %4627 = vst.msk [vmem:[#allocation4 + $0x99] sm:$0xff] %vm4137, %v4595
        %4628 = vst.msk [vmem:[#allocation4 + $0xa1] sm:$0xff] %vm4137, %v4596
        %4629 = vst.msk [vmem:[#allocation4 + $0xa9] sm:$0xff] %vm4137, %v4597
        %4630 = vst.msk [vmem:[#allocation4 + $0xb1] sm:$0xff] %vm4137, %v4598
        %4631 = vst.msk [vmem:[#allocation4 + $0xb9] sm:$0xff] %vm4137, %v4599
        %4632 = vst.msk [vmem:[#allocation4 + $0xc1] sm:$0xff] %vm4137, %v4600
        %4633 = vst.msk [vmem:[#allocation4 + $0xc9] sm:$0xff] %vm4137, %v4601
        %4634 = vst.msk [vmem:[#allocation4 + $0xd1] sm:$0xff] %vm4137, %v4602
        %4635 = vst.msk [vmem:[#allocation4 + $0xd9] sm:$0xff] %vm4137, %v4603
        %4636 = vst.msk [vmem:[#allocation4 + $0xe1] sm:$0xff] %vm4137, %v4604
        %4637 = vst.msk [vmem:[#allocation4 + $0xe9] sm:$0xff] %vm4137, %v4605
        %4638 = vst.msk [vmem:[#allocation4 + $0xf1] sm:$0xff] %vm4137, %v4606
        %4639 = vst.msk [vmem:[#allocation4 + $0xf9] sm:$0xff] %vm4137, %v4607
        %v4640 = vld [vmem:[#allocation4] sm:$0xff]
        %v4641 = vld [vmem:[#allocation4 + $0x8] sm:$0xff]
        %v4642 = vld [vmem:[#allocation4 + $0x10] sm:$0xff]
        %v4643 = vld [vmem:[#allocation4 + $0x18] sm:$0xff]
        %v4644 = vld [vmem:[#allocation4 + $0x20] sm:$0xff]
        %v4645 = vld [vmem:[#allocation4 + $0x28] sm:$0xff]
        %v4646 = vld [vmem:[#allocation4 + $0x30] sm:$0xff]
        %v4647 = vld [vmem:[#allocation4 + $0x38] sm:$0xff]
        %v4648 = vld [vmem:[#allocation4 + $0x40] sm:$0xff]
        %v4649 = vld [vmem:[#allocation4 + $0x48] sm:$0xff]
        %v4650 = vld [vmem:[#allocation4 + $0x50] sm:$0xff]
        %v4651 = vld [vmem:[#allocation4 + $0x58] sm:$0xff]
        %v4652 = vld [vmem:[#allocation4 + $0x60] sm:$0xff]
        %v4653 = vld [vmem:[#allocation4 + $0x68] sm:$0xff]
        %v4654 = vld [vmem:[#allocation4 + $0x70] sm:$0xff]
        %v4655 = vld [vmem:[#allocation4 + $0x78] sm:$0xff]
        %v4656 = vld [vmem:[#allocation4 + $0x80] sm:$0xff]
        %v4657 = vld [vmem:[#allocation4 + $0x88] sm:$0xff]
        %v4658 = vld [vmem:[#allocation4 + $0x90] sm:$0xff]
        %v4659 = vld [vmem:[#allocation4 + $0x98] sm:$0xff]
        %v4660 = vld [vmem:[#allocation4 + $0xa0] sm:$0xff]
        %v4661 = vld [vmem:[#allocation4 + $0xa8] sm:$0xff]
        %v4662 = vld [vmem:[#allocation4 + $0xb0] sm:$0xff]
        %v4663 = vld [vmem:[#allocation4 + $0xb8] sm:$0xff]
        %v4664 = vld [vmem:[#allocation4 + $0xc0] sm:$0xff]
        %v4665 = vld [vmem:[#allocation4 + $0xc8] sm:$0xff]
        %v4666 = vld [vmem:[#allocation4 + $0xd0] sm:$0xff]
        %v4667 = vld [vmem:[#allocation4 + $0xd8] sm:$0xff]
        %v4668 = vld [vmem:[#allocation4 + $0xe0] sm:$0xff]
        %v4669 = vld [vmem:[#allocation4 + $0xe8] sm:$0xff]
        %v4670 = vld [vmem:[#allocation4 + $0xf0] sm:$0xff]
        %v4671 = vld [vmem:[#allocation4 + $0xf8] sm:$0xff]
        %v4672 = vld [vmem:[#allocation4 + $0x1] sm:$0xff]
        %v4673 = vld [vmem:[#allocation4 + $0x9] sm:$0xff]
        %v4674 = vld [vmem:[#allocation4 + $0x11] sm:$0xff]
        %v4675 = vld [vmem:[#allocation4 + $0x19] sm:$0xff]
        %v4676 = vld [vmem:[#allocation4 + $0x21] sm:$0xff]
        %v4677 = vld [vmem:[#allocation4 + $0x29] sm:$0xff]
        %v4678 = vld [vmem:[#allocation4 + $0x31] sm:$0xff]
        %v4679 = vld [vmem:[#allocation4 + $0x39] sm:$0xff]
        %v4680 = vld [vmem:[#allocation4 + $0x41] sm:$0xff]
        %v4681 = vld [vmem:[#allocation4 + $0x49] sm:$0xff]
        %v4682 = vld [vmem:[#allocation4 + $0x51] sm:$0xff]
        %v4683 = vld [vmem:[#allocation4 + $0x59] sm:$0xff]
        %v4684 = vld [vmem:[#allocation4 + $0x61] sm:$0xff]
        %v4685 = vld [vmem:[#allocation4 + $0x69] sm:$0xff]
        %v4686 = vld [vmem:[#allocation4 + $0x71] sm:$0xff]
        %v4687 = vld [vmem:[#allocation4 + $0x79] sm:$0xff]
        %v4688 = vld [vmem:[#allocation4 + $0x81] sm:$0xff]
        %v4689 = vld [vmem:[#allocation4 + $0x89] sm:$0xff]
        %v4690 = vld [vmem:[#allocation4 + $0x91] sm:$0xff]
        %v4691 = vld [vmem:[#allocation4 + $0x99] sm:$0xff]
        %v4692 = vld [vmem:[#allocation4 + $0xa1] sm:$0xff]
        %v4693 = vld [vmem:[#allocation4 + $0xa9] sm:$0xff]
        %v4694 = vld [vmem:[#allocation4 + $0xb1] sm:$0xff]
        %v4695 = vld [vmem:[#allocation4 + $0xb9] sm:$0xff]
        %v4696 = vld [vmem:[#allocation4 + $0xc1] sm:$0xff]
        %v4697 = vld [vmem:[#allocation4 + $0xc9] sm:$0xff]
        %v4698 = vld [vmem:[#allocation4 + $0xd1] sm:$0xff]
        %v4699 = vld [vmem:[#allocation4 + $0xd9] sm:$0xff]
        %v4700 = vld [vmem:[#allocation4 + $0xe1] sm:$0xff]
        %v4701 = vld [vmem:[#allocation4 + $0xe9] sm:$0xff]
        %v4702 = vld [vmem:[#allocation4 + $0xf1] sm:$0xff]
        %v4703 = vld [vmem:[#allocation4 + $0xf9] sm:$0xff]
        %v4704 = vld [vmem:[#allocation4 + $0x2] sm:$0xff]
        %v4705 = vld [vmem:[#allocation4 + $0xa] sm:$0xff]
        %v4706 = vld [vmem:[#allocation4 + $0x12] sm:$0xff]
        %v4707 = vld [vmem:[#allocation4 + $0x1a] sm:$0xff]
        %v4708 = vld [vmem:[#allocation4 + $0x22] sm:$0xff]
        %v4709 = vld [vmem:[#allocation4 + $0x2a] sm:$0xff]
        %v4710 = vld [vmem:[#allocation4 + $0x32] sm:$0xff]
        %v4711 = vld [vmem:[#allocation4 + $0x3a] sm:$0xff]
        %v4712 = vld [vmem:[#allocation4 + $0x42] sm:$0xff]
        %v4713 = vld [vmem:[#allocation4 + $0x4a] sm:$0xff]
        %v4714 = vld [vmem:[#allocation4 + $0x52] sm:$0xff]
        %v4715 = vld [vmem:[#allocation4 + $0x5a] sm:$0xff]
        %v4716 = vld [vmem:[#allocation4 + $0x62] sm:$0xff]
        %v4717 = vld [vmem:[#allocation4 + $0x6a] sm:$0xff]
        %v4718 = vld [vmem:[#allocation4 + $0x72] sm:$0xff]
        %v4719 = vld [vmem:[#allocation4 + $0x7a] sm:$0xff]
        %v4720 = vld [vmem:[#allocation4 + $0x82] sm:$0xff]
        %v4721 = vld [vmem:[#allocation4 + $0x8a] sm:$0xff]
        %v4722 = vld [vmem:[#allocation4 + $0x92] sm:$0xff]
        %v4723 = vld [vmem:[#allocation4 + $0x9a] sm:$0xff]
        %v4724 = vld [vmem:[#allocation4 + $0xa2] sm:$0xff]
        %v4725 = vld [vmem:[#allocation4 + $0xaa] sm:$0xff]
        %v4726 = vld [vmem:[#allocation4 + $0xb2] sm:$0xff]
        %v4727 = vld [vmem:[#allocation4 + $0xba] sm:$0xff]
        %v4728 = vld [vmem:[#allocation4 + $0xc2] sm:$0xff]
        %v4729 = vld [vmem:[#allocation4 + $0xca] sm:$0xff]
        %v4730 = vld [vmem:[#allocation4 + $0xd2] sm:$0xff]
        %v4731 = vld [vmem:[#allocation4 + $0xda] sm:$0xff]
        %v4732 = vld [vmem:[#allocation4 + $0xe2] sm:$0xff]
        %v4733 = vld [vmem:[#allocation4 + $0xea] sm:$0xff]
        %v4734 = vld [vmem:[#allocation4 + $0xf2] sm:$0xff]
        %v4735 = vld [vmem:[#allocation4 + $0xfa] sm:$0xff]
        %4768 = vrot.lane.b32.xlu0 %v4672, 32
        %v4769 = vpop.permute.xlu0 %4768
        %4770 = vrot.lane.b32.xlu0 %v4673, 32
        %v4771 = vpop.permute.xlu0 %4770
        %4772 = vrot.lane.b32.xlu0 %v4674, 32
        %v4773 = vpop.permute.xlu0 %4772
        %4774 = vrot.lane.b32.xlu0 %v4675, 32
        %v4775 = vpop.permute.xlu0 %4774
        %4776 = vrot.lane.b32.xlu0 %v4676, 32
        %v4777 = vpop.permute.xlu0 %4776
        %4778 = vrot.lane.b32.xlu0 %v4677, 32
        %v4779 = vpop.permute.xlu0 %4778
        %4780 = vrot.lane.b32.xlu0 %v4678, 32
        %v4781 = vpop.permute.xlu0 %4780
        %4782 = vrot.lane.b32.xlu0 %v4679, 32
        %v4783 = vpop.permute.xlu0 %4782
        %4784 = vrot.lane.b32.xlu0 %v4680, 32
        %v4785 = vpop.permute.xlu0 %4784
        %4786 = vrot.lane.b32.xlu0 %v4681, 32
        %v4787 = vpop.permute.xlu0 %4786
        %4788 = vrot.lane.b32.xlu0 %v4682, 32
        %v4789 = vpop.permute.xlu0 %4788
        %4790 = vrot.lane.b32.xlu0 %v4683, 32
        %v4791 = vpop.permute.xlu0 %4790
        %4792 = vrot.lane.b32.xlu0 %v4684, 32
        %v4793 = vpop.permute.xlu0 %4792
        %4794 = vrot.lane.b32.xlu0 %v4685, 32
        %v4795 = vpop.permute.xlu0 %4794
        %4796 = vrot.lane.b32.xlu0 %v4686, 32
        %v4797 = vpop.permute.xlu0 %4796
        %4798 = vrot.lane.b32.xlu0 %v4687, 32
        %v4799 = vpop.permute.xlu0 %4798
        %4800 = vrot.lane.b32.xlu0 %v4688, 32
        %v4801 = vpop.permute.xlu0 %4800
        %4802 = vrot.lane.b32.xlu0 %v4689, 32
        %v4803 = vpop.permute.xlu0 %4802
        %4804 = vrot.lane.b32.xlu0 %v4690, 32
        %v4805 = vpop.permute.xlu0 %4804
        %4806 = vrot.lane.b32.xlu0 %v4691, 32
        %v4807 = vpop.permute.xlu0 %4806
        %4808 = vrot.lane.b32.xlu0 %v4692, 32
        %v4809 = vpop.permute.xlu0 %4808
        %4810 = vrot.lane.b32.xlu0 %v4693, 32
        %v4811 = vpop.permute.xlu0 %4810
        %4812 = vrot.lane.b32.xlu0 %v4694, 32
        %v4813 = vpop.permute.xlu0 %4812
        %4814 = vrot.lane.b32.xlu0 %v4695, 32
        %v4815 = vpop.permute.xlu0 %4814
        %4816 = vrot.lane.b32.xlu0 %v4696, 32
        %v4817 = vpop.permute.xlu0 %4816
        %4818 = vrot.lane.b32.xlu0 %v4697, 32
        %v4819 = vpop.permute.xlu0 %4818
        %4820 = vrot.lane.b32.xlu0 %v4698, 32
        %v4821 = vpop.permute.xlu0 %4820
        %4822 = vrot.lane.b32.xlu0 %v4699, 32
        %v4823 = vpop.permute.xlu0 %4822
        %4824 = vrot.lane.b32.xlu0 %v4700, 32
        %v4825 = vpop.permute.xlu0 %4824
        %4826 = vrot.lane.b32.xlu0 %v4701, 32
        %v4827 = vpop.permute.xlu0 %4826
        %4828 = vrot.lane.b32.xlu0 %v4702, 32
        %v4829 = vpop.permute.xlu0 %4828
        %4830 = vrot.lane.b32.xlu0 %v4703, 32
        %v4831 = vpop.permute.xlu0 %4830
        %4896 = vrot.lane.b32.xlu0 %v4704, 64
        %v4897 = vpop.permute.xlu0 %4896
        %4898 = vrot.lane.b32.xlu0 %v4705, 64
        %v4899 = vpop.permute.xlu0 %4898
        %4900 = vrot.lane.b32.xlu0 %v4706, 64
        %v4901 = vpop.permute.xlu0 %4900
        %4902 = vrot.lane.b32.xlu0 %v4707, 64
        %v4903 = vpop.permute.xlu0 %4902
        %4904 = vrot.lane.b32.xlu0 %v4708, 64
        %v4905 = vpop.permute.xlu0 %4904
        %4906 = vrot.lane.b32.xlu0 %v4709, 64
        %v4907 = vpop.permute.xlu0 %4906
        %4908 = vrot.lane.b32.xlu0 %v4710, 64
        %v4909 = vpop.permute.xlu0 %4908
        %4910 = vrot.lane.b32.xlu0 %v4711, 64
        %v4911 = vpop.permute.xlu0 %4910
        %4912 = vrot.lane.b32.xlu0 %v4712, 64
        %v4913 = vpop.permute.xlu0 %4912
        %4914 = vrot.lane.b32.xlu0 %v4713, 64
        %v4915 = vpop.permute.xlu0 %4914
        %4916 = vrot.lane.b32.xlu0 %v4714, 64
        %v4917 = vpop.permute.xlu0 %4916
        %4918 = vrot.lane.b32.xlu0 %v4715, 64
        %v4919 = vpop.permute.xlu0 %4918
        %4920 = vrot.lane.b32.xlu0 %v4716, 64
        %v4921 = vpop.permute.xlu0 %4920
        %4922 = vrot.lane.b32.xlu0 %v4717, 64
        %v4923 = vpop.permute.xlu0 %4922
        %4924 = vrot.lane.b32.xlu0 %v4718, 64
        %v4925 = vpop.permute.xlu0 %4924
        %4926 = vrot.lane.b32.xlu0 %v4719, 64
        %v4927 = vpop.permute.xlu0 %4926
        %4928 = vrot.lane.b32.xlu0 %v4720, 64
        %v4929 = vpop.permute.xlu0 %4928
        %4930 = vrot.lane.b32.xlu0 %v4721, 64
        %v4931 = vpop.permute.xlu0 %4930
        %4932 = vrot.lane.b32.xlu0 %v4722, 64
        %v4933 = vpop.permute.xlu0 %4932
        %4934 = vrot.lane.b32.xlu0 %v4723, 64
        %v4935 = vpop.permute.xlu0 %4934
        %4936 = vrot.lane.b32.xlu0 %v4724, 64
        %v4937 = vpop.permute.xlu0 %4936
        %4938 = vrot.lane.b32.xlu0 %v4725, 64
        %v4939 = vpop.permute.xlu0 %4938
        %4940 = vrot.lane.b32.xlu0 %v4726, 64
        %v4941 = vpop.permute.xlu0 %4940
        %4942 = vrot.lane.b32.xlu0 %v4727, 64
        %v4943 = vpop.permute.xlu0 %4942
        %4944 = vrot.lane.b32.xlu0 %v4728, 64
        %v4945 = vpop.permute.xlu0 %4944
        %4946 = vrot.lane.b32.xlu0 %v4729, 64
        %v4947 = vpop.permute.xlu0 %4946
        %4948 = vrot.lane.b32.xlu0 %v4730, 64
        %v4949 = vpop.permute.xlu0 %4948
        %4950 = vrot.lane.b32.xlu0 %v4731, 64
        %v4951 = vpop.permute.xlu0 %4950
        %4952 = vrot.lane.b32.xlu0 %v4732, 64
        %v4953 = vpop.permute.xlu0 %4952
        %4954 = vrot.lane.b32.xlu0 %v4733, 64
        %v4955 = vpop.permute.xlu0 %4954
        %4956 = vrot.lane.b32.xlu0 %v4734, 64
        %v4957 = vpop.permute.xlu0 %4956
        %4958 = vrot.lane.b32.xlu0 %v4735, 64
        %v4959 = vpop.permute.xlu0 %4958
        %v4992 = vsel %vm4137, %v4640, %v4769
        %v4993 = vsel %vm4137, %v4641, %v4771
        %v4994 = vsel %vm4137, %v4642, %v4773
        %v4995 = vsel %vm4137, %v4643, %v4775
        %v4996 = vsel %vm4137, %v4644, %v4777
        %v4997 = vsel %vm4137, %v4645, %v4779
        %v4998 = vsel %vm4137, %v4646, %v4781
        %v4999 = vsel %vm4137, %v4647, %v4783
        %v5000 = vsel %vm4137, %v4648, %v4785
        %v5001 = vsel %vm4137, %v4649, %v4787
        %v5002 = vsel %vm4137, %v4650, %v4789
        %v5003 = vsel %vm4137, %v4651, %v4791
        %v5004 = vsel %vm4137, %v4652, %v4793
        %v5005 = vsel %vm4137, %v4653, %v4795
        %v5006 = vsel %vm4137, %v4654, %v4797
        %v5007 = vsel %vm4137, %v4655, %v4799
        %v5008 = vsel %vm4137, %v4656, %v4801
        %v5009 = vsel %vm4137, %v4657, %v4803
        %v5010 = vsel %vm4137, %v4658, %v4805
        %v5011 = vsel %vm4137, %v4659, %v4807
        %v5012 = vsel %vm4137, %v4660, %v4809
        %v5013 = vsel %vm4137, %v4661, %v4811
        %v5014 = vsel %vm4137, %v4662, %v4813
        %v5015 = vsel %vm4137, %v4663, %v4815
        %v5016 = vsel %vm4137, %v4664, %v4817
        %v5017 = vsel %vm4137, %v4665, %v4819
        %v5018 = vsel %vm4137, %v4666, %v4821
        %v5019 = vsel %vm4137, %v4667, %v4823
        %v5020 = vsel %vm4137, %v4668, %v4825
        %v5021 = vsel %vm4137, %v4669, %v4827
        %v5022 = vsel %vm4137, %v4670, %v4829
        %v5023 = vsel %vm4137, %v4671, %v4831
        %vm5024 = vcmask 523264
        %v5025 = vsel %vm5024, %v4992, %v4897
        %v5026 = vsel %vm5024, %v4993, %v4899
        %v5027 = vsel %vm5024, %v4994, %v4901
        %v5028 = vsel %vm5024, %v4995, %v4903
        %v5029 = vsel %vm5024, %v4996, %v4905
        %v5030 = vsel %vm5024, %v4997, %v4907
        %v5031 = vsel %vm5024, %v4998, %v4909
        %v5032 = vsel %vm5024, %v4999, %v4911
        %v5033 = vsel %vm5024, %v5000, %v4913
        %v5034 = vsel %vm5024, %v5001, %v4915
        %v5035 = vsel %vm5024, %v5002, %v4917
        %v5036 = vsel %vm5024, %v5003, %v4919
        %v5037 = vsel %vm5024, %v5004, %v4921
        %v5038 = vsel %vm5024, %v5005, %v4923
        %v5039 = vsel %vm5024, %v5006, %v4925
        %v5040 = vsel %vm5024, %v5007, %v4927
        %v5041 = vsel %vm5024, %v5008, %v4929
        %v5042 = vsel %vm5024, %v5009, %v4931
        %v5043 = vsel %vm5024, %v5010, %v4933
        %v5044 = vsel %vm5024, %v5011, %v4935
        %v5045 = vsel %vm5024, %v5012, %v4937
        %v5046 = vsel %vm5024, %v5013, %v4939
        %v5047 = vsel %vm5024, %v5014, %v4941
        %v5048 = vsel %vm5024, %v5015, %v4943
        %v5049 = vsel %vm5024, %v5016, %v4945
        %v5050 = vsel %vm5024, %v5017, %v4947
        %v5051 = vsel %vm5024, %v5018, %v4949
        %v5052 = vsel %vm5024, %v5019, %v4951
        %v5053 = vsel %vm5024, %v5020, %v4953
        %v5054 = vsel %vm5024, %v5021, %v4955
        %v5055 = vsel %vm5024, %v5022, %v4957
        %v5056 = vsel %vm5024, %v5023, %v4959
        %v5057 = vld [vmem:[%s15] sm:$0xff]
        %v5058 = vld [vmem:[%s15 + $0x8] sm:$0xff]
        %v5059 = vld [vmem:[%s15 + $0x10] sm:$0xff]
        %v5060 = vld [vmem:[%s15 + $0x18] sm:$0xff]
        %v5061 = vld [vmem:[%s15 + $0x20] sm:$0xff]
        %v5062 = vld [vmem:[%s15 + $0x28] sm:$0xff]
        %v5063 = vld [vmem:[%s15 + $0x30] sm:$0xff]
        %v5064 = vld [vmem:[%s15 + $0x38] sm:$0xff]
        %v5065 = vld [vmem:[%s15 + $0x40] sm:$0xff]
        %v5066 = vld [vmem:[%s15 + $0x48] sm:$0xff]
        %v5067 = vld [vmem:[%s15 + $0x50] sm:$0xff]
        %v5068 = vld [vmem:[%s15 + $0x58] sm:$0xff]
        %vm5069 = vcmask 785408
        %v5071 = vsel %vm5069, %v5025, 0
        %v5074 = vsel %vm5069, %v5026, 0
        %v5077 = vsel %vm5069, %v5027, 0
        %v5080 = vsel %vm5069, %v5028, 0
        %v5083 = vsel %vm5069, %v5029, 0
        %v5086 = vsel %vm5069, %v5030, 0
        %v5089 = vsel %vm5069, %v5031, 0
        %v5092 = vsel %vm5069, %v5032, 0
        %v5095 = vsel %vm5069, %v5033, 0
        %v5098 = vsel %vm5069, %v5034, 0
        %v5101 = vsel %vm5069, %v5035, 0
        %v5104 = vsel %vm5069, %v5036, 0
        %v5107 = vsel %vm5069, %v5037, 0
        %v5110 = vsel %vm5069, %v5038, 0
        %v5113 = vsel %vm5069, %v5039, 0
        %v5116 = vsel %vm5069, %v5040, 0
        %v5119 = vsel %vm5069, %v5041, 0
        %v5122 = vsel %vm5069, %v5042, 0
        %v5125 = vsel %vm5069, %v5043, 0
        %v5128 = vsel %vm5069, %v5044, 0
        %v5131 = vsel %vm5069, %v5045, 0
        %v5134 = vsel %vm5069, %v5046, 0
        %v5137 = vsel %vm5069, %v5047, 0
        %v5140 = vsel %vm5069, %v5048, 0
        %v5143 = vsel %vm5069, %v5049, 0
        %v5146 = vsel %vm5069, %v5050, 0
        %v5149 = vsel %vm5069, %v5051, 0
        %v5152 = vsel %vm5069, %v5052, 0
        %v5155 = vsel %vm5069, %v5053, 0
        %v5158 = vsel %vm5069, %v5054, 0
        %v5161 = vsel %vm5069, %v5055, 0
        %v5164 = vsel %vm5069, %v5056, 0
        %5166 = vmatprep.subr.mxu0 0.0
        %5167 = vmatpush1.msra.mxu0 0.0
        %5168 = vmatprep.subr.mxu0 0.0
        %5169 = vmatpush1.msra.mxu0 0.0
        %5170 = vmatprep.subr.mxu0 0.0
        %5171 = vmatpush1.msra.mxu0 0.0
        %5172 = vmatprep.subr.mxu0 0.0
        %5173 = vmatpush1.msra.mxu0 0.0
        %5174 = vmatprep.subr.mxu0 0.0
        %5175 = vmatpush1.msra.mxu0 %v5068
        %5176 = vmatprep.subr.mxu0 0.0
        %5177 = vmatpush1.msra.mxu0 %v5067
        %5178 = vmatprep.subr.mxu0 0.0
        %5179 = vmatpush1.msra.mxu0 %v5066
        %5180 = vmatprep.subr.mxu0 0.0
        %5181 = vmatpush1.msra.mxu0 %v5065
        %5182 = vmatprep.subr.mxu0 0.0
        %5183 = vmatpush1.msra.mxu0 %v5064
        %5184 = vmatprep.subr.mxu0 0.0
        %5185 = vmatpush1.msra.mxu0 %v5063
        %5186 = vmatprep.subr.mxu0 0.0
        %5187 = vmatpush1.msra.mxu0 %v5062
        %5188 = vmatprep.subr.mxu0 0.0
        %5189 = vmatpush1.msra.mxu0 %v5061
        %5190 = vmatprep.subr.mxu0 0.0
        %5191 = vmatpush1.msra.mxu0 %v5060
        %5192 = vmatprep.subr.mxu0 0.0
        %5193 = vmatpush1.msra.mxu0 %v5059
        %5194 = vmatprep.subr.mxu0 0.0
        %5195 = vmatpush1.msra.mxu0 %v5058
        %5196 = vmatprep.subr.mxu0 0.0
        %5197 = vmatpush1.msra.mxu0 %v5057
        %5198 = vmatprep.subr.mxu0 0.0
        %5199 = vmatpush2.msra.mxu0 0.0
        %5200 = vmatprep.subr.mxu0 0.0
        %5201 = vmatpush2.msra.mxu0 0.0
        %5202 = vmatprep.subr.mxu0 0.0
        %5203 = vmatpush2.msra.mxu0 0.0
        %5204 = vmatprep.subr.mxu0 0.0
        %5205 = vmatpush2.msra.mxu0 0.0
        %5206 = vmatprep.subr.mxu0 0.0
        %5207 = vmatpush2.msra.mxu0 0.0
        %5208 = vmatprep.subr.mxu0 0.0
        %5209 = vmatpush2.msra.mxu0 0.0
        %5210 = vmatprep.subr.mxu0 0.0
        %5211 = vmatpush2.msra.mxu0 0.0
        %5212 = vmatprep.subr.mxu0 0.0
        %5213 = vmatpush2.msra.mxu0 0.0
        %5214 = vmatprep.subr.mxu0 0.0
        %5215 = vmatpush2.msra.mxu0 0.0
        %5216 = vmatprep.subr.mxu0 0.0
        %5217 = vmatpush2.msra.mxu0 0.0
        %5218 = vmatprep.subr.mxu0 0.0
        %5219 = vmatpush2.msra.mxu0 0.0
        %5220 = vmatprep.subr.mxu0 0.0
        %5221 = vmatpush2.msra.mxu0 0.0
        %5222 = vmatprep.subr.mxu0 0.0
        %5223 = vmatpush2.msra.mxu0 0.0
        %5224 = vmatprep.subr.mxu0 0.0
        %5225 = vmatpush2.msra.mxu0 0.0
        %5226 = vmatprep.subr.mxu0 0.0
        %5227 = vmatpush2.msra.mxu0 0.0
        %5228 = vmatprep.subr.mxu0 0.0
        %5229 = vmatpush2.msra.mxu0 0.0
        %5230 = vmatprep.mubr.f32.mxu0 0.0
        %5231 = vmatmul.mubr.f32.gmra.mxu0 %v5071
        %v5232 = vpop.f32.mrf.mxu0
        %v5233 = vadd.f32 0.0, %v5232
        %v5234 = vpop.f32.mrf.mxu0
        %5235 = vmatprep.mubr.f32.mxu0 0.0
        %5236 = vmatmul.mubr.f32.gmra.mxu0 %v5074
        %v5237 = vpop.f32.mrf.mxu0
        %v5238 = vadd.f32 0.0, %v5237
        %v5239 = vpop.f32.mrf.mxu0
        %5240 = vmatprep.mubr.f32.mxu0 0.0
        %5241 = vmatmul.mubr.f32.gmra.mxu0 %v5077
        %v5242 = vpop.f32.mrf.mxu0
        %v5243 = vadd.f32 0.0, %v5242
        %v5244 = vpop.f32.mrf.mxu0
        %5245 = vmatprep.mubr.f32.mxu0 0.0
        %5246 = vmatmul.mubr.f32.gmra.mxu0 %v5080
        %v5247 = vpop.f32.mrf.mxu0
        %v5248 = vadd.f32 0.0, %v5247
        %v5249 = vpop.f32.mrf.mxu0
        %5250 = vmatprep.mubr.f32.mxu0 0.0
        %5251 = vmatmul.mubr.f32.gmra.mxu0 %v5083
        %v5252 = vpop.f32.mrf.mxu0
        %v5253 = vadd.f32 0.0, %v5252
        %v5254 = vpop.f32.mrf.mxu0
        %5255 = vmatprep.mubr.f32.mxu0 0.0
        %5256 = vmatmul.mubr.f32.gmra.mxu0 %v5086
        %v5257 = vpop.f32.mrf.mxu0
        %v5258 = vadd.f32 0.0, %v5257
        %v5259 = vpop.f32.mrf.mxu0
        %5260 = vmatprep.mubr.f32.mxu0 0.0
        %5261 = vmatmul.mubr.f32.gmra.mxu0 %v5089
        %v5262 = vpop.f32.mrf.mxu0
        %v5263 = vadd.f32 0.0, %v5262
        %v5264 = vpop.f32.mrf.mxu0
        %5265 = vmatprep.mubr.f32.mxu0 0.0
        %5266 = vmatmul.mubr.f32.gmra.mxu0 %v5092
        %v5267 = vpop.f32.mrf.mxu0
        %v5268 = vadd.f32 0.0, %v5267
        %v5269 = vpop.f32.mrf.mxu0
        %5270 = vmatprep.mubr.f32.mxu0 0.0
        %5271 = vmatmul.mubr.f32.gmra.mxu0 %v5095
        %v5272 = vpop.f32.mrf.mxu0
        %v5273 = vadd.f32 0.0, %v5272
        %v5274 = vpop.f32.mrf.mxu0
        %5275 = vmatprep.mubr.f32.mxu0 0.0
        %5276 = vmatmul.mubr.f32.gmra.mxu0 %v5098
        %v5277 = vpop.f32.mrf.mxu0
        %v5278 = vadd.f32 0.0, %v5277
        %v5279 = vpop.f32.mrf.mxu0
        %5280 = vmatprep.mubr.f32.mxu0 0.0
        %5281 = vmatmul.mubr.f32.gmra.mxu0 %v5101
        %v5282 = vpop.f32.mrf.mxu0
        %v5283 = vadd.f32 0.0, %v5282
        %v5284 = vpop.f32.mrf.mxu0
        %5285 = vmatprep.mubr.f32.mxu0 0.0
        %5286 = vmatmul.mubr.f32.gmra.mxu0 %v5104
        %v5287 = vpop.f32.mrf.mxu0
        %v5288 = vadd.f32 0.0, %v5287
        %v5289 = vpop.f32.mrf.mxu0
        %5290 = vmatprep.mubr.f32.mxu0 0.0
        %5291 = vmatmul.mubr.f32.gmra.mxu0 %v5107
        %v5292 = vpop.f32.mrf.mxu0
        %v5293 = vadd.f32 0.0, %v5292
        %v5294 = vpop.f32.mrf.mxu0
        %5295 = vmatprep.mubr.f32.mxu0 0.0
        %5296 = vmatmul.mubr.f32.gmra.mxu0 %v5110
        %v5297 = vpop.f32.mrf.mxu0
        %v5298 = vadd.f32 0.0, %v5297
        %v5299 = vpop.f32.mrf.mxu0
        %5300 = vmatprep.mubr.f32.mxu0 0.0
        %5301 = vmatmul.mubr.f32.gmra.mxu0 %v5113
        %v5302 = vpop.f32.mrf.mxu0
        %v5303 = vadd.f32 0.0, %v5302
        %v5304 = vpop.f32.mrf.mxu0
        %5305 = vmatprep.mubr.f32.mxu0 0.0
        %5306 = vmatmul.mubr.f32.gmra.mxu0 %v5116
        %v5307 = vpop.f32.mrf.mxu0
        %v5308 = vadd.f32 0.0, %v5307
        %v5309 = vpop.f32.mrf.mxu0
        %5310 = vmatprep.mubr.f32.mxu0 0.0
        %5311 = vmatmul.mubr.f32.gmra.mxu0 %v5119
        %v5312 = vpop.f32.mrf.mxu0
        %v5313 = vadd.f32 0.0, %v5312
        %v5314 = vpop.f32.mrf.mxu0
        %5315 = vmatprep.mubr.f32.mxu0 0.0
        %5316 = vmatmul.mubr.f32.gmra.mxu0 %v5122
        %v5317 = vpop.f32.mrf.mxu0
        %v5318 = vadd.f32 0.0, %v5317
        %v5319 = vpop.f32.mrf.mxu0
        %5320 = vmatprep.mubr.f32.mxu0 0.0
        %5321 = vmatmul.mubr.f32.gmra.mxu0 %v5125
        %v5322 = vpop.f32.mrf.mxu0
        %v5323 = vadd.f32 0.0, %v5322
        %v5324 = vpop.f32.mrf.mxu0
        %5325 = vmatprep.mubr.f32.mxu0 0.0
        %5326 = vmatmul.mubr.f32.gmra.mxu0 %v5128
        %v5327 = vpop.f32.mrf.mxu0
        %v5328 = vadd.f32 0.0, %v5327
        %v5329 = vpop.f32.mrf.mxu0
        %5330 = vmatprep.mubr.f32.mxu0 0.0
        %5331 = vmatmul.mubr.f32.gmra.mxu0 %v5131
        %v5332 = vpop.f32.mrf.mxu0
        %v5333 = vadd.f32 0.0, %v5332
        %v5334 = vpop.f32.mrf.mxu0
        %5335 = vmatprep.mubr.f32.mxu0 0.0
        %5336 = vmatmul.mubr.f32.gmra.mxu0 %v5134
        %v5337 = vpop.f32.mrf.mxu0
        %v5338 = vadd.f32 0.0, %v5337
        %v5339 = vpop.f32.mrf.mxu0
        %5340 = vmatprep.mubr.f32.mxu0 0.0
        %5341 = vmatmul.mubr.f32.gmra.mxu0 %v5137
        %v5342 = vpop.f32.mrf.mxu0
        %v5343 = vadd.f32 0.0, %v5342
        %v5344 = vpop.f32.mrf.mxu0
        %5345 = vmatprep.mubr.f32.mxu0 0.0
        %5346 = vmatmul.mubr.f32.gmra.mxu0 %v5140
        %v5347 = vpop.f32.mrf.mxu0
        %v5348 = vadd.f32 0.0, %v5347
        %v5349 = vpop.f32.mrf.mxu0
        %5350 = vmatprep.mubr.f32.mxu0 0.0
        %5351 = vmatmul.mubr.f32.gmra.mxu0 %v5143
        %v5352 = vpop.f32.mrf.mxu0
        %v5353 = vadd.f32 0.0, %v5352
        %v5354 = vpop.f32.mrf.mxu0
        %5355 = vmatprep.mubr.f32.mxu0 0.0
        %5356 = vmatmul.mubr.f32.gmra.mxu0 %v5146
        %v5357 = vpop.f32.mrf.mxu0
        %v5358 = vadd.f32 0.0, %v5357
        %v5359 = vpop.f32.mrf.mxu0
        %5360 = vmatprep.mubr.f32.mxu0 0.0
        %5361 = vmatmul.mubr.f32.gmra.mxu0 %v5149
        %v5362 = vpop.f32.mrf.mxu0
        %v5363 = vadd.f32 0.0, %v5362
        %v5364 = vpop.f32.mrf.mxu0
        %5365 = vmatprep.mubr.f32.mxu0 0.0
        %5366 = vmatmul.mubr.f32.gmra.mxu0 %v5152
        %v5367 = vpop.f32.mrf.mxu0
        %v5368 = vadd.f32 0.0, %v5367
        %v5369 = vpop.f32.mrf.mxu0
        %5370 = vmatprep.mubr.f32.mxu0 0.0
        %5371 = vmatmul.mubr.f32.gmra.mxu0 %v5155
        %v5372 = vpop.f32.mrf.mxu0
        %v5373 = vadd.f32 0.0, %v5372
        %v5374 = vpop.f32.mrf.mxu0
        %5375 = vmatprep.mubr.f32.mxu0 0.0
        %5376 = vmatmul.mubr.f32.gmra.mxu0 %v5158
        %v5377 = vpop.f32.mrf.mxu0
        %v5378 = vadd.f32 0.0, %v5377
        %v5379 = vpop.f32.mrf.mxu0
        %5380 = vmatprep.mubr.f32.mxu0 0.0
        %5381 = vmatmul.mubr.f32.gmra.mxu0 %v5161
        %v5382 = vpop.f32.mrf.mxu0
        %v5383 = vadd.f32 0.0, %v5382
        %v5384 = vpop.f32.mrf.mxu0
        %5385 = vmatprep.mubr.f32.mxu0 0.0
        %5386 = vmatmul.mubr.f32.gmra.mxu0 %v5164
        %v5387 = vpop.f32.mrf.mxu0
        %v5388 = vadd.f32 0.0, %v5387
        %v5389 = vpop.f32.mrf.mxu0
        %5390 = vdwg.mxu0
        %v5391 = vld [vmem:[%s17] sm:$0x1]
        %v5393 = vlaneseq
        %v5394 = vshrl.u32 %v5393, 7
        %v5395 = vsub.s32 0, %v5394
        %v5396 = vrot.slane %v5391, %v5395
        %v5398 = vmul.f32 %v5233, %v5396
        %v5399 = vmul.f32 %v5238, %v5396
        %v5400 = vmul.f32 %v5243, %v5396
        %v5401 = vmul.f32 %v5248, %v5396
        %v5402 = vmul.f32 %v5253, %v5396
        %v5403 = vmul.f32 %v5258, %v5396
        %v5404 = vmul.f32 %v5263, %v5396
        %v5405 = vmul.f32 %v5268, %v5396
        %v5406 = vmul.f32 %v5273, %v5396
        %v5407 = vmul.f32 %v5278, %v5396
        %v5408 = vmul.f32 %v5283, %v5396
        %v5409 = vmul.f32 %v5288, %v5396
        %v5410 = vmul.f32 %v5293, %v5396
        %v5411 = vmul.f32 %v5298, %v5396
        %v5412 = vmul.f32 %v5303, %v5396
        %v5413 = vmul.f32 %v5308, %v5396
        %v5414 = vmul.f32 %v5313, %v5396
        %v5415 = vmul.f32 %v5318, %v5396
        %v5416 = vmul.f32 %v5323, %v5396
        %v5417 = vmul.f32 %v5328, %v5396
        %v5418 = vmul.f32 %v5333, %v5396
        %v5419 = vmul.f32 %v5338, %v5396
        %v5420 = vmul.f32 %v5343, %v5396
        %v5421 = vmul.f32 %v5348, %v5396
        %v5422 = vmul.f32 %v5353, %v5396
        %v5423 = vmul.f32 %v5358, %v5396
        %v5424 = vmul.f32 %v5363, %v5396
        %v5425 = vmul.f32 %v5368, %v5396
        %v5426 = vmul.f32 %v5373, %v5396
        %v5427 = vmul.f32 %v5378, %v5396
        %v5428 = vmul.f32 %v5383, %v5396
        %v5429 = vmul.f32 %v5388, %v5396
        %v5430 = vld [vmem:[%s19] sm:$0x1]
        %v5432 = vlaneseq
        %v5433 = vshrl.u32 %v5432, 7
        %v5434 = vsub.s32 0, %v5433
        %v5435 = vrot.slane %v5430, %v5434
        %v5437 = vadd.f32 %v5398, %v5435
        %v5438 = vadd.f32 %v5399, %v5435
        %v5439 = vadd.f32 %v5400, %v5435
        %v5440 = vadd.f32 %v5401, %v5435
        %v5441 = vadd.f32 %v5402, %v5435
        %v5442 = vadd.f32 %v5403, %v5435
        %v5443 = vadd.f32 %v5404, %v5435
        %v5444 = vadd.f32 %v5405, %v5435
        %v5445 = vadd.f32 %v5406, %v5435
        %v5446 = vadd.f32 %v5407, %v5435
        %v5447 = vadd.f32 %v5408, %v5435
        %v5448 = vadd.f32 %v5409, %v5435
        %v5449 = vadd.f32 %v5410, %v5435
        %v5450 = vadd.f32 %v5411, %v5435
        %v5451 = vadd.f32 %v5412, %v5435
        %v5452 = vadd.f32 %v5413, %v5435
        %v5453 = vadd.f32 %v5414, %v5435
        %v5454 = vadd.f32 %v5415, %v5435
        %v5455 = vadd.f32 %v5416, %v5435
        %v5456 = vadd.f32 %v5417, %v5435
        %v5457 = vadd.f32 %v5418, %v5435
        %v5458 = vadd.f32 %v5419, %v5435
        %v5459 = vadd.f32 %v5420, %v5435
        %v5460 = vadd.f32 %v5421, %v5435
        %v5461 = vadd.f32 %v5422, %v5435
        %v5462 = vadd.f32 %v5423, %v5435
        %v5463 = vadd.f32 %v5424, %v5435
        %v5464 = vadd.f32 %v5425, %v5435
        %v5465 = vadd.f32 %v5426, %v5435
        %v5466 = vadd.f32 %v5427, %v5435
        %v5467 = vadd.f32 %v5428, %v5435
        %v5468 = vadd.f32 %v5429, %v5435
        %v5469 = vmax.f32 %v5437, 0.0
        %v5470 = vmax.f32 %v5438, 0.0
        %v5471 = vmax.f32 %v5439, 0.0
        %v5472 = vmax.f32 %v5440, 0.0
        %v5473 = vmax.f32 %v5441, 0.0
        %v5474 = vmax.f32 %v5442, 0.0
        %v5475 = vmax.f32 %v5443, 0.0
        %v5476 = vmax.f32 %v5444, 0.0
        %v5477 = vmax.f32 %v5445, 0.0
        %v5478 = vmax.f32 %v5446, 0.0
        %v5479 = vmax.f32 %v5447, 0.0
        %v5480 = vmax.f32 %v5448, 0.0
        %v5481 = vmax.f32 %v5449, 0.0
        %v5482 = vmax.f32 %v5450, 0.0
        %v5483 = vmax.f32 %v5451, 0.0
        %v5484 = vmax.f32 %v5452, 0.0
        %v5485 = vmax.f32 %v5453, 0.0
        %v5486 = vmax.f32 %v5454, 0.0
        %v5487 = vmax.f32 %v5455, 0.0
        %v5488 = vmax.f32 %v5456, 0.0
        %v5489 = vmax.f32 %v5457, 0.0
        %v5490 = vmax.f32 %v5458, 0.0
        %v5491 = vmax.f32 %v5459, 0.0
        %v5492 = vmax.f32 %v5460, 0.0
        %v5493 = vmax.f32 %v5461, 0.0
        %v5494 = vmax.f32 %v5462, 0.0
        %v5495 = vmax.f32 %v5463, 0.0
        %v5496 = vmax.f32 %v5464, 0.0
        %v5497 = vmax.f32 %v5465, 0.0
        %v5498 = vmax.f32 %v5466, 0.0
        %v5499 = vmax.f32 %v5467, 0.0
        %v5500 = vmax.f32 %v5468, 0.0
        %5501 = vst.msk [vmem:[#allocation4 + $0x1] sm:$0xff] %vm4137, %v5469
        %5502 = vst.msk [vmem:[#allocation4 + $0x9] sm:$0xff] %vm4137, %v5470
        %5503 = vst.msk [vmem:[#allocation4 + $0x11] sm:$0xff] %vm4137, %v5471
        %5504 = vst.msk [vmem:[#allocation4 + $0x19] sm:$0xff] %vm4137, %v5472
        %5505 = vst.msk [vmem:[#allocation4 + $0x21] sm:$0xff] %vm4137, %v5473
        %5506 = vst.msk [vmem:[#allocation4 + $0x29] sm:$0xff] %vm4137, %v5474
        %5507 = vst.msk [vmem:[#allocation4 + $0x31] sm:$0xff] %vm4137, %v5475
        %5508 = vst.msk [vmem:[#allocation4 + $0x39] sm:$0xff] %vm4137, %v5476
        %5509 = vst.msk [vmem:[#allocation4 + $0x41] sm:$0xff] %vm4137, %v5477
        %5510 = vst.msk [vmem:[#allocation4 + $0x49] sm:$0xff] %vm4137, %v5478
        %5511 = vst.msk [vmem:[#allocation4 + $0x51] sm:$0xff] %vm4137, %v5479
        %5512 = vst.msk [vmem:[#allocation4 + $0x59] sm:$0xff] %vm4137, %v5480
        %5513 = vst.msk [vmem:[#allocation4 + $0x61] sm:$0xff] %vm4137, %v5481
        %5514 = vst.msk [vmem:[#allocation4 + $0x69] sm:$0xff] %vm4137, %v5482
        %5515 = vst.msk [vmem:[#allocation4 + $0x71] sm:$0xff] %vm4137, %v5483
        %5516 = vst.msk [vmem:[#allocation4 + $0x79] sm:$0xff] %vm4137, %v5484
        %5517 = vst.msk [vmem:[#allocation4 + $0x81] sm:$0xff] %vm4137, %v5485
        %5518 = vst.msk [vmem:[#allocation4 + $0x89] sm:$0xff] %vm4137, %v5486
        %5519 = vst.msk [vmem:[#allocation4 + $0x91] sm:$0xff] %vm4137, %v5487
        %5520 = vst.msk [vmem:[#allocation4 + $0x99] sm:$0xff] %vm4137, %v5488
        %5521 = vst.msk [vmem:[#allocation4 + $0xa1] sm:$0xff] %vm4137, %v5489
        %5522 = vst.msk [vmem:[#allocation4 + $0xa9] sm:$0xff] %vm4137, %v5490
        %5523 = vst.msk [vmem:[#allocation4 + $0xb1] sm:$0xff] %vm4137, %v5491
        %5524 = vst.msk [vmem:[#allocation4 + $0xb9] sm:$0xff] %vm4137, %v5492
        %5525 = vst.msk [vmem:[#allocation4 + $0xc1] sm:$0xff] %vm4137, %v5493
        %5526 = vst.msk [vmem:[#allocation4 + $0xc9] sm:$0xff] %vm4137, %v5494
        %5527 = vst.msk [vmem:[#allocation4 + $0xd1] sm:$0xff] %vm4137, %v5495
        %5528 = vst.msk [vmem:[#allocation4 + $0xd9] sm:$0xff] %vm4137, %v5496
        %5529 = vst.msk [vmem:[#allocation4 + $0xe1] sm:$0xff] %vm4137, %v5497
        %5530 = vst.msk [vmem:[#allocation4 + $0xe9] sm:$0xff] %vm4137, %v5498
        %5531 = vst.msk [vmem:[#allocation4 + $0xf1] sm:$0xff] %vm4137, %v5499
        %5532 = vst.msk [vmem:[#allocation4 + $0xf9] sm:$0xff] %vm4137, %v5500
        %v5533 = vld [vmem:[#allocation4] sm:$0xff]
        %v5534 = vld [vmem:[#allocation4 + $0x8] sm:$0xff]
        %v5535 = vld [vmem:[#allocation4 + $0x10] sm:$0xff]
        %v5536 = vld [vmem:[#allocation4 + $0x18] sm:$0xff]
        %v5537 = vld [vmem:[#allocation4 + $0x20] sm:$0xff]
        %v5538 = vld [vmem:[#allocation4 + $0x28] sm:$0xff]
        %v5539 = vld [vmem:[#allocation4 + $0x30] sm:$0xff]
        %v5540 = vld [vmem:[#allocation4 + $0x38] sm:$0xff]
        %v5541 = vld [vmem:[#allocation4 + $0x40] sm:$0xff]
        %v5542 = vld [vmem:[#allocation4 + $0x48] sm:$0xff]
        %v5543 = vld [vmem:[#allocation4 + $0x50] sm:$0xff]
        %v5544 = vld [vmem:[#allocation4 + $0x58] sm:$0xff]
        %v5545 = vld [vmem:[#allocation4 + $0x60] sm:$0xff]
        %v5546 = vld [vmem:[#allocation4 + $0x68] sm:$0xff]
        %v5547 = vld [vmem:[#allocation4 + $0x70] sm:$0xff]
        %v5548 = vld [vmem:[#allocation4 + $0x78] sm:$0xff]
        %v5549 = vld [vmem:[#allocation4 + $0x80] sm:$0xff]
        %v5550 = vld [vmem:[#allocation4 + $0x88] sm:$0xff]
        %v5551 = vld [vmem:[#allocation4 + $0x90] sm:$0xff]
        %v5552 = vld [vmem:[#allocation4 + $0x98] sm:$0xff]
        %v5553 = vld [vmem:[#allocation4 + $0xa0] sm:$0xff]
        %v5554 = vld [vmem:[#allocation4 + $0xa8] sm:$0xff]
        %v5555 = vld [vmem:[#allocation4 + $0xb0] sm:$0xff]
        %v5556 = vld [vmem:[#allocation4 + $0xb8] sm:$0xff]
        %v5557 = vld [vmem:[#allocation4 + $0xc0] sm:$0xff]
        %v5558 = vld [vmem:[#allocation4 + $0xc8] sm:$0xff]
        %v5559 = vld [vmem:[#allocation4 + $0xd0] sm:$0xff]
        %v5560 = vld [vmem:[#allocation4 + $0xd8] sm:$0xff]
        %v5561 = vld [vmem:[#allocation4 + $0xe0] sm:$0xff]
        %v5562 = vld [vmem:[#allocation4 + $0xe8] sm:$0xff]
        %v5563 = vld [vmem:[#allocation4 + $0xf0] sm:$0xff]
        %v5564 = vld [vmem:[#allocation4 + $0xf8] sm:$0xff]
        %v5565 = vld [vmem:[#allocation4 + $0x1] sm:$0xff]
        %v5566 = vld [vmem:[#allocation4 + $0x9] sm:$0xff]
        %v5567 = vld [vmem:[#allocation4 + $0x11] sm:$0xff]
        %v5568 = vld [vmem:[#allocation4 + $0x19] sm:$0xff]
        %v5569 = vld [vmem:[#allocation4 + $0x21] sm:$0xff]
        %v5570 = vld [vmem:[#allocation4 + $0x29] sm:$0xff]
        %v5571 = vld [vmem:[#allocation4 + $0x31] sm:$0xff]
        %v5572 = vld [vmem:[#allocation4 + $0x39] sm:$0xff]
        %v5573 = vld [vmem:[#allocation4 + $0x41] sm:$0xff]
        %v5574 = vld [vmem:[#allocation4 + $0x49] sm:$0xff]
        %v5575 = vld [vmem:[#allocation4 + $0x51] sm:$0xff]
        %v5576 = vld [vmem:[#allocation4 + $0x59] sm:$0xff]
        %v5577 = vld [vmem:[#allocation4 + $0x61] sm:$0xff]
        %v5578 = vld [vmem:[#allocation4 + $0x69] sm:$0xff]
        %v5579 = vld [vmem:[#allocation4 + $0x71] sm:$0xff]
        %v5580 = vld [vmem:[#allocation4 + $0x79] sm:$0xff]
        %v5581 = vld [vmem:[#allocation4 + $0x81] sm:$0xff]
        %v5582 = vld [vmem:[#allocation4 + $0x89] sm:$0xff]
        %v5583 = vld [vmem:[#allocation4 + $0x91] sm:$0xff]
        %v5584 = vld [vmem:[#allocation4 + $0x99] sm:$0xff]
        %v5585 = vld [vmem:[#allocation4 + $0xa1] sm:$0xff]
        %v5586 = vld [vmem:[#allocation4 + $0xa9] sm:$0xff]
        %v5587 = vld [vmem:[#allocation4 + $0xb1] sm:$0xff]
        %v5588 = vld [vmem:[#allocation4 + $0xb9] sm:$0xff]
        %v5589 = vld [vmem:[#allocation4 + $0xc1] sm:$0xff]
        %v5590 = vld [vmem:[#allocation4 + $0xc9] sm:$0xff]
        %v5591 = vld [vmem:[#allocation4 + $0xd1] sm:$0xff]
        %v5592 = vld [vmem:[#allocation4 + $0xd9] sm:$0xff]
        %v5593 = vld [vmem:[#allocation4 + $0xe1] sm:$0xff]
        %v5594 = vld [vmem:[#allocation4 + $0xe9] sm:$0xff]
        %v5595 = vld [vmem:[#allocation4 + $0xf1] sm:$0xff]
        %v5596 = vld [vmem:[#allocation4 + $0xf9] sm:$0xff]
        %v5597 = vld [vmem:[#allocation4 + $0x2] sm:$0xff]
        %v5598 = vld [vmem:[#allocation4 + $0xa] sm:$0xff]
        %v5599 = vld [vmem:[#allocation4 + $0x12] sm:$0xff]
        %v5600 = vld [vmem:[#allocation4 + $0x1a] sm:$0xff]
        %v5601 = vld [vmem:[#allocation4 + $0x22] sm:$0xff]
        %v5602 = vld [vmem:[#allocation4 + $0x2a] sm:$0xff]
        %v5603 = vld [vmem:[#allocation4 + $0x32] sm:$0xff]
        %v5604 = vld [vmem:[#allocation4 + $0x3a] sm:$0xff]
        %v5605 = vld [vmem:[#allocation4 + $0x42] sm:$0xff]
        %v5606 = vld [vmem:[#allocation4 + $0x4a] sm:$0xff]
        %v5607 = vld [vmem:[#allocation4 + $0x52] sm:$0xff]
        %v5608 = vld [vmem:[#allocation4 + $0x5a] sm:$0xff]
        %v5609 = vld [vmem:[#allocation4 + $0x62] sm:$0xff]
        %v5610 = vld [vmem:[#allocation4 + $0x6a] sm:$0xff]
        %v5611 = vld [vmem:[#allocation4 + $0x72] sm:$0xff]
        %v5612 = vld [vmem:[#allocation4 + $0x7a] sm:$0xff]
        %v5613 = vld [vmem:[#allocation4 + $0x82] sm:$0xff]
        %v5614 = vld [vmem:[#allocation4 + $0x8a] sm:$0xff]
        %v5615 = vld [vmem:[#allocation4 + $0x92] sm:$0xff]
        %v5616 = vld [vmem:[#allocation4 + $0x9a] sm:$0xff]
        %v5617 = vld [vmem:[#allocation4 + $0xa2] sm:$0xff]
        %v5618 = vld [vmem:[#allocation4 + $0xaa] sm:$0xff]
        %v5619 = vld [vmem:[#allocation4 + $0xb2] sm:$0xff]
        %v5620 = vld [vmem:[#allocation4 + $0xba] sm:$0xff]
        %v5621 = vld [vmem:[#allocation4 + $0xc2] sm:$0xff]
        %v5622 = vld [vmem:[#allocation4 + $0xca] sm:$0xff]
        %v5623 = vld [vmem:[#allocation4 + $0xd2] sm:$0xff]
        %v5624 = vld [vmem:[#allocation4 + $0xda] sm:$0xff]
        %v5625 = vld [vmem:[#allocation4 + $0xe2] sm:$0xff]
        %v5626 = vld [vmem:[#allocation4 + $0xea] sm:$0xff]
        %v5627 = vld [vmem:[#allocation4 + $0xf2] sm:$0xff]
        %v5628 = vld [vmem:[#allocation4 + $0xfa] sm:$0xff]
        %5661 = vrot.lane.b32.xlu0 %v5565, 32
        %v5662 = vpop.permute.xlu0 %5661
        %5663 = vrot.lane.b32.xlu0 %v5566, 32
        %v5664 = vpop.permute.xlu0 %5663
        %5665 = vrot.lane.b32.xlu0 %v5567, 32
        %v5666 = vpop.permute.xlu0 %5665
        %5667 = vrot.lane.b32.xlu0 %v5568, 32
        %v5668 = vpop.permute.xlu0 %5667
        %5669 = vrot.lane.b32.xlu0 %v5569, 32
        %v5670 = vpop.permute.xlu0 %5669
        %5671 = vrot.lane.b32.xlu0 %v5570, 32
        %v5672 = vpop.permute.xlu0 %5671
        %5673 = vrot.lane.b32.xlu0 %v5571, 32
        %v5674 = vpop.permute.xlu0 %5673
        %5675 = vrot.lane.b32.xlu0 %v5572, 32
        %v5676 = vpop.permute.xlu0 %5675
        %5677 = vrot.lane.b32.xlu0 %v5573, 32
        %v5678 = vpop.permute.xlu0 %5677
        %5679 = vrot.lane.b32.xlu0 %v5574, 32
        %v5680 = vpop.permute.xlu0 %5679
        %5681 = vrot.lane.b32.xlu0 %v5575, 32
        %v5682 = vpop.permute.xlu0 %5681
        %5683 = vrot.lane.b32.xlu0 %v5576, 32
        %v5684 = vpop.permute.xlu0 %5683
        %5685 = vrot.lane.b32.xlu0 %v5577, 32
        %v5686 = vpop.permute.xlu0 %5685
        %5687 = vrot.lane.b32.xlu0 %v5578, 32
        %v5688 = vpop.permute.xlu0 %5687
        %5689 = vrot.lane.b32.xlu0 %v5579, 32
        %v5690 = vpop.permute.xlu0 %5689
        %5691 = vrot.lane.b32.xlu0 %v5580, 32
        %v5692 = vpop.permute.xlu0 %5691
        %5693 = vrot.lane.b32.xlu0 %v5581, 32
        %v5694 = vpop.permute.xlu0 %5693
        %5695 = vrot.lane.b32.xlu0 %v5582, 32
        %v5696 = vpop.permute.xlu0 %5695
        %5697 = vrot.lane.b32.xlu0 %v5583, 32
        %v5698 = vpop.permute.xlu0 %5697
        %5699 = vrot.lane.b32.xlu0 %v5584, 32
        %v5700 = vpop.permute.xlu0 %5699
        %5701 = vrot.lane.b32.xlu0 %v5585, 32
        %v5702 = vpop.permute.xlu0 %5701
        %5703 = vrot.lane.b32.xlu0 %v5586, 32
        %v5704 = vpop.permute.xlu0 %5703
        %5705 = vrot.lane.b32.xlu0 %v5587, 32
        %v5706 = vpop.permute.xlu0 %5705
        %5707 = vrot.lane.b32.xlu0 %v5588, 32
        %v5708 = vpop.permute.xlu0 %5707
        %5709 = vrot.lane.b32.xlu0 %v5589, 32
        %v5710 = vpop.permute.xlu0 %5709
        %5711 = vrot.lane.b32.xlu0 %v5590, 32
        %v5712 = vpop.permute.xlu0 %5711
        %5713 = vrot.lane.b32.xlu0 %v5591, 32
        %v5714 = vpop.permute.xlu0 %5713
        %5715 = vrot.lane.b32.xlu0 %v5592, 32
        %v5716 = vpop.permute.xlu0 %5715
        %5717 = vrot.lane.b32.xlu0 %v5593, 32
        %v5718 = vpop.permute.xlu0 %5717
        %5719 = vrot.lane.b32.xlu0 %v5594, 32
        %v5720 = vpop.permute.xlu0 %5719
        %5721 = vrot.lane.b32.xlu0 %v5595, 32
        %v5722 = vpop.permute.xlu0 %5721
        %5723 = vrot.lane.b32.xlu0 %v5596, 32
        %v5724 = vpop.permute.xlu0 %5723
        %5789 = vrot.lane.b32.xlu0 %v5597, 64
        %v5790 = vpop.permute.xlu0 %5789
        %5791 = vrot.lane.b32.xlu0 %v5598, 64
        %v5792 = vpop.permute.xlu0 %5791
        %5793 = vrot.lane.b32.xlu0 %v5599, 64
        %v5794 = vpop.permute.xlu0 %5793
        %5795 = vrot.lane.b32.xlu0 %v5600, 64
        %v5796 = vpop.permute.xlu0 %5795
        %5797 = vrot.lane.b32.xlu0 %v5601, 64
        %v5798 = vpop.permute.xlu0 %5797
        %5799 = vrot.lane.b32.xlu0 %v5602, 64
        %v5800 = vpop.permute.xlu0 %5799
        %5801 = vrot.lane.b32.xlu0 %v5603, 64
        %v5802 = vpop.permute.xlu0 %5801
        %5803 = vrot.lane.b32.xlu0 %v5604, 64
        %v5804 = vpop.permute.xlu0 %5803
        %5805 = vrot.lane.b32.xlu0 %v5605, 64
        %v5806 = vpop.permute.xlu0 %5805
        %5807 = vrot.lane.b32.xlu0 %v5606, 64
        %v5808 = vpop.permute.xlu0 %5807
        %5809 = vrot.lane.b32.xlu0 %v5607, 64
        %v5810 = vpop.permute.xlu0 %5809
        %5811 = vrot.lane.b32.xlu0 %v5608, 64
        %v5812 = vpop.permute.xlu0 %5811
        %5813 = vrot.lane.b32.xlu0 %v5609, 64
        %v5814 = vpop.permute.xlu0 %5813
        %5815 = vrot.lane.b32.xlu0 %v5610, 64
        %v5816 = vpop.permute.xlu0 %5815
        %5817 = vrot.lane.b32.xlu0 %v5611, 64
        %v5818 = vpop.permute.xlu0 %5817
        %5819 = vrot.lane.b32.xlu0 %v5612, 64
        %v5820 = vpop.permute.xlu0 %5819
        %5821 = vrot.lane.b32.xlu0 %v5613, 64
        %v5822 = vpop.permute.xlu0 %5821
        %5823 = vrot.lane.b32.xlu0 %v5614, 64
        %v5824 = vpop.permute.xlu0 %5823
        %5825 = vrot.lane.b32.xlu0 %v5615, 64
        %v5826 = vpop.permute.xlu0 %5825
        %5827 = vrot.lane.b32.xlu0 %v5616, 64
        %v5828 = vpop.permute.xlu0 %5827
        %5829 = vrot.lane.b32.xlu0 %v5617, 64
        %v5830 = vpop.permute.xlu0 %5829
        %5831 = vrot.lane.b32.xlu0 %v5618, 64
        %v5832 = vpop.permute.xlu0 %5831
        %5833 = vrot.lane.b32.xlu0 %v5619, 64
        %v5834 = vpop.permute.xlu0 %5833
        %5835 = vrot.lane.b32.xlu0 %v5620, 64
        %v5836 = vpop.permute.xlu0 %5835
        %5837 = vrot.lane.b32.xlu0 %v5621, 64
        %v5838 = vpop.permute.xlu0 %5837
        %5839 = vrot.lane.b32.xlu0 %v5622, 64
        %v5840 = vpop.permute.xlu0 %5839
        %5841 = vrot.lane.b32.xlu0 %v5623, 64
        %v5842 = vpop.permute.xlu0 %5841
        %5843 = vrot.lane.b32.xlu0 %v5624, 64
        %v5844 = vpop.permute.xlu0 %5843
        %5845 = vrot.lane.b32.xlu0 %v5625, 64
        %v5846 = vpop.permute.xlu0 %5845
        %5847 = vrot.lane.b32.xlu0 %v5626, 64
        %v5848 = vpop.permute.xlu0 %5847
        %5849 = vrot.lane.b32.xlu0 %v5627, 64
        %v5850 = vpop.permute.xlu0 %5849
        %5851 = vrot.lane.b32.xlu0 %v5628, 64
        %v5852 = vpop.permute.xlu0 %5851
        %v5885 = vsel %vm4137, %v5533, %v5662
        %v5886 = vsel %vm4137, %v5534, %v5664
        %v5887 = vsel %vm4137, %v5535, %v5666
        %v5888 = vsel %vm4137, %v5536, %v5668
        %v5889 = vsel %vm4137, %v5537, %v5670
        %v5890 = vsel %vm4137, %v5538, %v5672
        %v5891 = vsel %vm4137, %v5539, %v5674
        %v5892 = vsel %vm4137, %v5540, %v5676
        %v5893 = vsel %vm4137, %v5541, %v5678
        %v5894 = vsel %vm4137, %v5542, %v5680
        %v5895 = vsel %vm4137, %v5543, %v5682
        %v5896 = vsel %vm4137, %v5544, %v5684
        %v5897 = vsel %vm4137, %v5545, %v5686
        %v5898 = vsel %vm4137, %v5546, %v5688
        %v5899 = vsel %vm4137, %v5547, %v5690
        %v5900 = vsel %vm4137, %v5548, %v5692
        %v5901 = vsel %vm4137, %v5549, %v5694
        %v5902 = vsel %vm4137, %v5550, %v5696
        %v5903 = vsel %vm4137, %v5551, %v5698
        %v5904 = vsel %vm4137, %v5552, %v5700
        %v5905 = vsel %vm4137, %v5553, %v5702
        %v5906 = vsel %vm4137, %v5554, %v5704
        %v5907 = vsel %vm4137, %v5555, %v5706
        %v5908 = vsel %vm4137, %v5556, %v5708
        %v5909 = vsel %vm4137, %v5557, %v5710
        %v5910 = vsel %vm4137, %v5558, %v5712
        %v5911 = vsel %vm4137, %v5559, %v5714
        %v5912 = vsel %vm4137, %v5560, %v5716
        %v5913 = vsel %vm4137, %v5561, %v5718
        %v5914 = vsel %vm4137, %v5562, %v5720
        %v5915 = vsel %vm4137, %v5563, %v5722
        %v5916 = vsel %vm4137, %v5564, %v5724
        %v5917 = vsel %vm5024, %v5885, %v5790
        %v5918 = vsel %vm5024, %v5886, %v5792
        %v5919 = vsel %vm5024, %v5887, %v5794
        %v5920 = vsel %vm5024, %v5888, %v5796
        %v5921 = vsel %vm5024, %v5889, %v5798
        %v5922 = vsel %vm5024, %v5890, %v5800
        %v5923 = vsel %vm5024, %v5891, %v5802
        %v5924 = vsel %vm5024, %v5892, %v5804
        %v5925 = vsel %vm5024, %v5893, %v5806
        %v5926 = vsel %vm5024, %v5894, %v5808
        %v5927 = vsel %vm5024, %v5895, %v5810
        %v5928 = vsel %vm5024, %v5896, %v5812
        %v5929 = vsel %vm5024, %v5897, %v5814
        %v5930 = vsel %vm5024, %v5898, %v5816
        %v5931 = vsel %vm5024, %v5899, %v5818
        %v5932 = vsel %vm5024, %v5900, %v5820
        %v5933 = vsel %vm5024, %v5901, %v5822
        %v5934 = vsel %vm5024, %v5902, %v5824
        %v5935 = vsel %vm5024, %v5903, %v5826
        %v5936 = vsel %vm5024, %v5904, %v5828
        %v5937 = vsel %vm5024, %v5905, %v5830
        %v5938 = vsel %vm5024, %v5906, %v5832
        %v5939 = vsel %vm5024, %v5907, %v5834
        %v5940 = vsel %vm5024, %v5908, %v5836
        %v5941 = vsel %vm5024, %v5909, %v5838
        %v5942 = vsel %vm5024, %v5910, %v5840
        %v5943 = vsel %vm5024, %v5911, %v5842
        %v5944 = vsel %vm5024, %v5912, %v5844
        %v5945 = vsel %vm5024, %v5913, %v5846
        %v5946 = vsel %vm5024, %v5914, %v5848
        %v5947 = vsel %vm5024, %v5915, %v5850
        %v5948 = vsel %vm5024, %v5916, %v5852
        %v5949 = vld [vmem:[%s21] sm:$0xff]
        %v5950 = vld [vmem:[%s21 + $0x8] sm:$0xff]
        %v5951 = vld [vmem:[%s21 + $0x10] sm:$0xff]
        %v5952 = vld [vmem:[%s21 + $0x18] sm:$0xff]
        %v5953 = vld [vmem:[%s21 + $0x20] sm:$0xff]
        %v5954 = vld [vmem:[%s21 + $0x28] sm:$0xff]
        %v5955 = vld [vmem:[%s21 + $0x30] sm:$0xff]
        %v5956 = vld [vmem:[%s21 + $0x38] sm:$0xff]
        %v5957 = vld [vmem:[%s21 + $0x40] sm:$0xff]
        %v5958 = vld [vmem:[%s21 + $0x48] sm:$0xff]
        %v5959 = vld [vmem:[%s21 + $0x50] sm:$0xff]
        %v5960 = vld [vmem:[%s21 + $0x58] sm:$0xff]
        %v5961 = vld [vmem:[#allocation3 + $0x1] sm:$0xff]
        %v5962 = vld [vmem:[#allocation3 + $0x9] sm:$0xff]
        %v5963 = vld [vmem:[#allocation3 + $0x11] sm:$0xff]
        %v5964 = vld [vmem:[#allocation3 + $0x19] sm:$0xff]
        %v5965 = vld [vmem:[#allocation3 + $0x21] sm:$0xff]
        %v5966 = vld [vmem:[#allocation3 + $0x29] sm:$0xff]
        %v5967 = vld [vmem:[#allocation3 + $0x31] sm:$0xff]
        %v5968 = vld [vmem:[#allocation3 + $0x39] sm:$0xff]
        %v5969 = vld [vmem:[#allocation3 + $0x41] sm:$0xff]
        %v5970 = vld [vmem:[#allocation3 + $0x49] sm:$0xff]
        %v5971 = vld [vmem:[#allocation3 + $0x51] sm:$0xff]
        %v5972 = vld [vmem:[#allocation3 + $0x59] sm:$0xff]
        %v5973 = vld [vmem:[#allocation3 + $0x61] sm:$0xff]
        %v5974 = vld [vmem:[#allocation3 + $0x69] sm:$0xff]
        %v5975 = vld [vmem:[#allocation3 + $0x71] sm:$0xff]
        %v5976 = vld [vmem:[#allocation3 + $0x79] sm:$0xff]
        %v5977 = vld [vmem:[#allocation3 + $0x81] sm:$0xff]
        %v5978 = vld [vmem:[#allocation3 + $0x89] sm:$0xff]
        %v5979 = vld [vmem:[#allocation3 + $0x91] sm:$0xff]
        %v5980 = vld [vmem:[#allocation3 + $0x99] sm:$0xff]
        %v5981 = vld [vmem:[#allocation3 + $0xa1] sm:$0xff]
        %v5982 = vld [vmem:[#allocation3 + $0xa9] sm:$0xff]
        %v5983 = vld [vmem:[#allocation3 + $0xb1] sm:$0xff]
        %v5984 = vld [vmem:[#allocation3 + $0xb9] sm:$0xff]
        %v5985 = vld [vmem:[#allocation3 + $0xc1] sm:$0xff]
        %v5986 = vld [vmem:[#allocation3 + $0xc9] sm:$0xff]
        %v5987 = vld [vmem:[#allocation3 + $0xd1] sm:$0xff]
        %v5988 = vld [vmem:[#allocation3 + $0xd9] sm:$0xff]
        %v5989 = vld [vmem:[#allocation3 + $0xe1] sm:$0xff]
        %v5990 = vld [vmem:[#allocation3 + $0xe9] sm:$0xff]
        %v5991 = vld [vmem:[#allocation3 + $0xf1] sm:$0xff]
        %v5992 = vld [vmem:[#allocation3 + $0xf9] sm:$0xff]
        %v5993 = vld [vmem:[%s23] sm:$0xff]
        %v5994 = vld [vmem:[%s23 + $0x8] sm:$0xff]
        %v5996 = vsel %vm3241, %v5961, 0
        %v5999 = vsel %vm3241, %v5962, 0
        %v6002 = vsel %vm3241, %v5963, 0
        %v6005 = vsel %vm3241, %v5964, 0
        %v6008 = vsel %vm3241, %v5965, 0
        %v6011 = vsel %vm3241, %v5966, 0
        %v6014 = vsel %vm3241, %v5967, 0
        %v6017 = vsel %vm3241, %v5968, 0
        %v6020 = vsel %vm3241, %v5969, 0
        %v6023 = vsel %vm3241, %v5970, 0
        %v6026 = vsel %vm3241, %v5971, 0
        %v6029 = vsel %vm3241, %v5972, 0
        %v6032 = vsel %vm3241, %v5973, 0
        %v6035 = vsel %vm3241, %v5974, 0
        %v6038 = vsel %vm3241, %v5975, 0
        %v6041 = vsel %vm3241, %v5976, 0
        %v6044 = vsel %vm3241, %v5977, 0
        %v6047 = vsel %vm3241, %v5978, 0
        %v6050 = vsel %vm3241, %v5979, 0
        %v6053 = vsel %vm3241, %v5980, 0
        %v6056 = vsel %vm3241, %v5981, 0
        %v6059 = vsel %vm3241, %v5982, 0
        %v6062 = vsel %vm3241, %v5983, 0
        %v6065 = vsel %vm3241, %v5984, 0
        %v6068 = vsel %vm3241, %v5985, 0
        %v6071 = vsel %vm3241, %v5986, 0
        %v6074 = vsel %vm3241, %v5987, 0
        %v6077 = vsel %vm3241, %v5988, 0
        %v6080 = vsel %vm3241, %v5989, 0
        %v6083 = vsel %vm3241, %v5990, 0
        %v6086 = vsel %vm3241, %v5991, 0
        %v6089 = vsel %vm3241, %v5992, 0
        %6091 = vmatprep.subr.mxu0 0.0
        %6092 = vmatpush1.msra.mxu0 0.0
        %6093 = vmatprep.subr.mxu0 0.0
        %6094 = vmatpush1.msra.mxu0 0.0
        %6095 = vmatprep.subr.mxu0 0.0
        %6096 = vmatpush1.msra.mxu0 0.0
        %6097 = vmatprep.subr.mxu0 0.0
        %6098 = vmatpush1.msra.mxu0 0.0
        %6099 = vmatprep.subr.mxu0 0.0
        %6100 = vmatpush1.msra.mxu0 0.0
        %6101 = vmatprep.subr.mxu0 0.0
        %6102 = vmatpush1.msra.mxu0 0.0
        %6103 = vmatprep.subr.mxu0 0.0
        %6104 = vmatpush1.msra.mxu0 0.0
        %6105 = vmatprep.subr.mxu0 0.0
        %6106 = vmatpush1.msra.mxu0 0.0
        %6107 = vmatprep.subr.mxu0 0.0
        %6108 = vmatpush1.msra.mxu0 0.0
        %6109 = vmatprep.subr.mxu0 0.0
        %6110 = vmatpush1.msra.mxu0 0.0
        %6111 = vmatprep.subr.mxu0 0.0
        %6112 = vmatpush1.msra.mxu0 0.0
        %6113 = vmatprep.subr.mxu0 0.0
        %6114 = vmatpush1.msra.mxu0 0.0
        %6115 = vmatprep.subr.mxu0 0.0
        %6116 = vmatpush1.msra.mxu0 0.0
        %6117 = vmatprep.subr.mxu0 0.0
        %6118 = vmatpush1.msra.mxu0 0.0
        %6119 = vmatprep.subr.mxu0 0.0
        %6120 = vmatpush1.msra.mxu0 %v5994
        %6121 = vmatprep.subr.mxu0 0.0
        %6122 = vmatpush1.msra.mxu0 %v5993
        %6123 = vmatprep.subr.mxu0 0.0
        %6124 = vmatpush2.msra.mxu0 0.0
        %6125 = vmatprep.subr.mxu0 0.0
        %6126 = vmatpush2.msra.mxu0 0.0
        %6127 = vmatprep.subr.mxu0 0.0
        %6128 = vmatpush2.msra.mxu0 0.0
        %6129 = vmatprep.subr.mxu0 0.0
        %6130 = vmatpush2.msra.mxu0 0.0
        %6131 = vmatprep.subr.mxu0 0.0
        %6132 = vmatpush2.msra.mxu0 0.0
        %6133 = vmatprep.subr.mxu0 0.0
        %6134 = vmatpush2.msra.mxu0 0.0
        %6135 = vmatprep.subr.mxu0 0.0
        %6136 = vmatpush2.msra.mxu0 0.0
        %6137 = vmatprep.subr.mxu0 0.0
        %6138 = vmatpush2.msra.mxu0 0.0
        %6139 = vmatprep.subr.mxu0 0.0
        %6140 = vmatpush2.msra.mxu0 0.0
        %6141 = vmatprep.subr.mxu0 0.0
        %6142 = vmatpush2.msra.mxu0 0.0
        %6143 = vmatprep.subr.mxu0 0.0
        %6144 = vmatpush2.msra.mxu0 0.0
        %6145 = vmatprep.subr.mxu0 0.0
        %6146 = vmatpush2.msra.mxu0 0.0
        %6147 = vmatprep.subr.mxu0 0.0
        %6148 = vmatpush2.msra.mxu0 0.0
        %6149 = vmatprep.subr.mxu0 0.0
        %6150 = vmatpush2.msra.mxu0 0.0
        %6151 = vmatprep.subr.mxu0 0.0
        %6152 = vmatpush2.msra.mxu0 0.0
        %6153 = vmatprep.subr.mxu0 0.0
        %6154 = vmatpush2.msra.mxu0 0.0
        %6155 = vmatprep.mubr.f32.mxu0 0.0
        %6156 = vmatmul.mubr.f32.gmra.mxu0 %v5996
        %v6157 = vpop.f32.mrf.mxu0
        %v6158 = vadd.f32 0.0, %v6157
        %v6159 = vpop.f32.mrf.mxu0
        %6160 = vmatprep.mubr.f32.mxu0 0.0
        %6161 = vmatmul.mubr.f32.gmra.mxu0 %v5999
        %v6162 = vpop.f32.mrf.mxu0
        %v6163 = vadd.f32 0.0, %v6162
        %v6164 = vpop.f32.mrf.mxu0
        %6165 = vmatprep.mubr.f32.mxu0 0.0
        %6166 = vmatmul.mubr.f32.gmra.mxu0 %v6002
        %v6167 = vpop.f32.mrf.mxu0
        %v6168 = vadd.f32 0.0, %v6167
        %v6169 = vpop.f32.mrf.mxu0
        %6170 = vmatprep.mubr.f32.mxu0 0.0
        %6171 = vmatmul.mubr.f32.gmra.mxu0 %v6005
        %v6172 = vpop.f32.mrf.mxu0
        %v6173 = vadd.f32 0.0, %v6172
        %v6174 = vpop.f32.mrf.mxu0
        %6175 = vmatprep.mubr.f32.mxu0 0.0
        %6176 = vmatmul.mubr.f32.gmra.mxu0 %v6008
        %v6177 = vpop.f32.mrf.mxu0
        %v6178 = vadd.f32 0.0, %v6177
        %v6179 = vpop.f32.mrf.mxu0
        %6180 = vmatprep.mubr.f32.mxu0 0.0
        %6181 = vmatmul.mubr.f32.gmra.mxu0 %v6011
        %v6182 = vpop.f32.mrf.mxu0
        %v6183 = vadd.f32 0.0, %v6182
        %v6184 = vpop.f32.mrf.mxu0
        %6185 = vmatprep.mubr.f32.mxu0 0.0
        %6186 = vmatmul.mubr.f32.gmra.mxu0 %v6014
        %v6187 = vpop.f32.mrf.mxu0
        %v6188 = vadd.f32 0.0, %v6187
        %v6189 = vpop.f32.mrf.mxu0
        %6190 = vmatprep.mubr.f32.mxu0 0.0
        %6191 = vmatmul.mubr.f32.gmra.mxu0 %v6017
        %v6192 = vpop.f32.mrf.mxu0
        %v6193 = vadd.f32 0.0, %v6192
        %v6194 = vpop.f32.mrf.mxu0
        %6195 = vmatprep.mubr.f32.mxu0 0.0
        %6196 = vmatmul.mubr.f32.gmra.mxu0 %v6020
        %v6197 = vpop.f32.mrf.mxu0
        %v6198 = vadd.f32 0.0, %v6197
        %v6199 = vpop.f32.mrf.mxu0
        %6200 = vmatprep.mubr.f32.mxu0 0.0
        %6201 = vmatmul.mubr.f32.gmra.mxu0 %v6023
        %v6202 = vpop.f32.mrf.mxu0
        %v6203 = vadd.f32 0.0, %v6202
        %v6204 = vpop.f32.mrf.mxu0
        %6205 = vmatprep.mubr.f32.mxu0 0.0
        %6206 = vmatmul.mubr.f32.gmra.mxu0 %v6026
        %v6207 = vpop.f32.mrf.mxu0
        %v6208 = vadd.f32 0.0, %v6207
        %v6209 = vpop.f32.mrf.mxu0
        %6210 = vmatprep.mubr.f32.mxu0 0.0
        %6211 = vmatmul.mubr.f32.gmra.mxu0 %v6029
        %v6212 = vpop.f32.mrf.mxu0
        %v6213 = vadd.f32 0.0, %v6212
        %v6214 = vpop.f32.mrf.mxu0
        %6215 = vmatprep.mubr.f32.mxu0 0.0
        %6216 = vmatmul.mubr.f32.gmra.mxu0 %v6032
        %v6217 = vpop.f32.mrf.mxu0
        %v6218 = vadd.f32 0.0, %v6217
        %v6219 = vpop.f32.mrf.mxu0
        %6220 = vmatprep.mubr.f32.mxu0 0.0
        %6221 = vmatmul.mubr.f32.gmra.mxu0 %v6035
        %v6222 = vpop.f32.mrf.mxu0
        %v6223 = vadd.f32 0.0, %v6222
        %v6224 = vpop.f32.mrf.mxu0
        %6225 = vmatprep.mubr.f32.mxu0 0.0
        %6226 = vmatmul.mubr.f32.gmra.mxu0 %v6038
        %v6227 = vpop.f32.mrf.mxu0
        %v6228 = vadd.f32 0.0, %v6227
        %v6229 = vpop.f32.mrf.mxu0
        %6230 = vmatprep.mubr.f32.mxu0 0.0
        %6231 = vmatmul.mubr.f32.gmra.mxu0 %v6041
        %v6232 = vpop.f32.mrf.mxu0
        %v6233 = vadd.f32 0.0, %v6232
        %v6234 = vpop.f32.mrf.mxu0
        %6235 = vmatprep.mubr.f32.mxu0 0.0
        %6236 = vmatmul.mubr.f32.gmra.mxu0 %v6044
        %v6237 = vpop.f32.mrf.mxu0
        %v6238 = vadd.f32 0.0, %v6237
        %v6239 = vpop.f32.mrf.mxu0
        %6240 = vmatprep.mubr.f32.mxu0 0.0
        %6241 = vmatmul.mubr.f32.gmra.mxu0 %v6047
        %v6242 = vpop.f32.mrf.mxu0
        %v6243 = vadd.f32 0.0, %v6242
        %v6244 = vpop.f32.mrf.mxu0
        %6245 = vmatprep.mubr.f32.mxu0 0.0
        %6246 = vmatmul.mubr.f32.gmra.mxu0 %v6050
        %v6247 = vpop.f32.mrf.mxu0
        %v6248 = vadd.f32 0.0, %v6247
        %v6249 = vpop.f32.mrf.mxu0
        %6250 = vmatprep.mubr.f32.mxu0 0.0
        %6251 = vmatmul.mubr.f32.gmra.mxu0 %v6053
        %v6252 = vpop.f32.mrf.mxu0
        %v6253 = vadd.f32 0.0, %v6252
        %v6254 = vpop.f32.mrf.mxu0
        %6255 = vmatprep.mubr.f32.mxu0 0.0
        %6256 = vmatmul.mubr.f32.gmra.mxu0 %v6056
        %v6257 = vpop.f32.mrf.mxu0
        %v6258 = vadd.f32 0.0, %v6257
        %v6259 = vpop.f32.mrf.mxu0
        %6260 = vmatprep.mubr.f32.mxu0 0.0
        %6261 = vmatmul.mubr.f32.gmra.mxu0 %v6059
        %v6262 = vpop.f32.mrf.mxu0
        %v6263 = vadd.f32 0.0, %v6262
        %v6264 = vpop.f32.mrf.mxu0
        %6265 = vmatprep.mubr.f32.mxu0 0.0
        %6266 = vmatmul.mubr.f32.gmra.mxu0 %v6062
        %v6267 = vpop.f32.mrf.mxu0
        %v6268 = vadd.f32 0.0, %v6267
        %v6269 = vpop.f32.mrf.mxu0
        %6270 = vmatprep.mubr.f32.mxu0 0.0
        %6271 = vmatmul.mubr.f32.gmra.mxu0 %v6065
        %v6272 = vpop.f32.mrf.mxu0
        %v6273 = vadd.f32 0.0, %v6272
        %v6274 = vpop.f32.mrf.mxu0
        %6275 = vmatprep.mubr.f32.mxu0 0.0
        %6276 = vmatmul.mubr.f32.gmra.mxu0 %v6068
        %v6277 = vpop.f32.mrf.mxu0
        %v6278 = vadd.f32 0.0, %v6277
        %v6279 = vpop.f32.mrf.mxu0
        %6280 = vmatprep.mubr.f32.mxu0 0.0
        %6281 = vmatmul.mubr.f32.gmra.mxu0 %v6071
        %v6282 = vpop.f32.mrf.mxu0
        %v6283 = vadd.f32 0.0, %v6282
        %v6284 = vpop.f32.mrf.mxu0
        %6285 = vmatprep.mubr.f32.mxu0 0.0
        %6286 = vmatmul.mubr.f32.gmra.mxu0 %v6074
        %v6287 = vpop.f32.mrf.mxu0
        %v6288 = vadd.f32 0.0, %v6287
        %v6289 = vpop.f32.mrf.mxu0
        %6290 = vmatprep.mubr.f32.mxu0 0.0
        %6291 = vmatmul.mubr.f32.gmra.mxu0 %v6077
        %v6292 = vpop.f32.mrf.mxu0
        %v6293 = vadd.f32 0.0, %v6292
        %v6294 = vpop.f32.mrf.mxu0
        %6295 = vmatprep.mubr.f32.mxu0 0.0
        %6296 = vmatmul.mubr.f32.gmra.mxu0 %v6080
        %v6297 = vpop.f32.mrf.mxu0
        %v6298 = vadd.f32 0.0, %v6297
        %v6299 = vpop.f32.mrf.mxu0
        %6300 = vmatprep.mubr.f32.mxu0 0.0
        %6301 = vmatmul.mubr.f32.gmra.mxu0 %v6083
        %v6302 = vpop.f32.mrf.mxu0
        %v6303 = vadd.f32 0.0, %v6302
        %v6304 = vpop.f32.mrf.mxu0
        %6305 = vmatprep.mubr.f32.mxu0 0.0
        %6306 = vmatmul.mubr.f32.gmra.mxu0 %v6086
        %v6307 = vpop.f32.mrf.mxu0
        %v6308 = vadd.f32 0.0, %v6307
        %v6309 = vpop.f32.mrf.mxu0
        %6310 = vmatprep.mubr.f32.mxu0 0.0
        %6311 = vmatmul.mubr.f32.gmra.mxu0 %v6089
        %v6312 = vpop.f32.mrf.mxu0
        %v6313 = vadd.f32 0.0, %v6312
        %v6314 = vpop.f32.mrf.mxu0
        %6315 = vdwg.mxu0
        %v6317 = vsel %vm5069, %v5917, 0
        %v6320 = vsel %vm5069, %v5918, 0
        %v6323 = vsel %vm5069, %v5919, 0
        %v6326 = vsel %vm5069, %v5920, 0
        %v6329 = vsel %vm5069, %v5921, 0
        %v6332 = vsel %vm5069, %v5922, 0
        %v6335 = vsel %vm5069, %v5923, 0
        %v6338 = vsel %vm5069, %v5924, 0
        %v6341 = vsel %vm5069, %v5925, 0
        %v6344 = vsel %vm5069, %v5926, 0
        %v6347 = vsel %vm5069, %v5927, 0
        %v6350 = vsel %vm5069, %v5928, 0
        %v6353 = vsel %vm5069, %v5929, 0
        %v6356 = vsel %vm5069, %v5930, 0
        %v6359 = vsel %vm5069, %v5931, 0
        %v6362 = vsel %vm5069, %v5932, 0
        %v6365 = vsel %vm5069, %v5933, 0
        %v6368 = vsel %vm5069, %v5934, 0
        %v6371 = vsel %vm5069, %v5935, 0
        %v6374 = vsel %vm5069, %v5936, 0
        %v6377 = vsel %vm5069, %v5937, 0
        %v6380 = vsel %vm5069, %v5938, 0
        %v6383 = vsel %vm5069, %v5939, 0
        %v6386 = vsel %vm5069, %v5940, 0
        %v6389 = vsel %vm5069, %v5941, 0
        %v6392 = vsel %vm5069, %v5942, 0
        %v6395 = vsel %vm5069, %v5943, 0
        %v6398 = vsel %vm5069, %v5944, 0
        %v6401 = vsel %vm5069, %v5945, 0
        %v6404 = vsel %vm5069, %v5946, 0
        %v6407 = vsel %vm5069, %v5947, 0
        %v6410 = vsel %vm5069, %v5948, 0
        %6412 = vmatprep.subr.mxu0 0.0
        %6413 = vmatpush1.msra.mxu0 0.0
        %6414 = vmatprep.subr.mxu0 0.0
        %6415 = vmatpush1.msra.mxu0 0.0
        %6416 = vmatprep.subr.mxu0 0.0
        %6417 = vmatpush1.msra.mxu0 0.0
        %6418 = vmatprep.subr.mxu0 0.0
        %6419 = vmatpush1.msra.mxu0 0.0
        %6420 = vmatprep.subr.mxu0 0.0
        %6421 = vmatpush1.msra.mxu0 %v5960
        %6422 = vmatprep.subr.mxu0 0.0
        %6423 = vmatpush1.msra.mxu0 %v5959
        %6424 = vmatprep.subr.mxu0 0.0
        %6425 = vmatpush1.msra.mxu0 %v5958
        %6426 = vmatprep.subr.mxu0 0.0
        %6427 = vmatpush1.msra.mxu0 %v5957
        %6428 = vmatprep.subr.mxu0 0.0
        %6429 = vmatpush1.msra.mxu0 %v5956
        %6430 = vmatprep.subr.mxu0 0.0
        %6431 = vmatpush1.msra.mxu0 %v5955
        %6432 = vmatprep.subr.mxu0 0.0
        %6433 = vmatpush1.msra.mxu0 %v5954
        %6434 = vmatprep.subr.mxu0 0.0
        %6435 = vmatpush1.msra.mxu0 %v5953
        %6436 = vmatprep.subr.mxu0 0.0
        %6437 = vmatpush1.msra.mxu0 %v5952
        %6438 = vmatprep.subr.mxu0 0.0
        %6439 = vmatpush1.msra.mxu0 %v5951
        %6440 = vmatprep.subr.mxu0 0.0
        %6441 = vmatpush1.msra.mxu0 %v5950
        %6442 = vmatprep.subr.mxu0 0.0
        %6443 = vmatpush1.msra.mxu0 %v5949
        %6444 = vmatprep.subr.mxu0 0.0
        %6445 = vmatpush2.msra.mxu0 0.0
        %6446 = vmatprep.subr.mxu0 0.0
        %6447 = vmatpush2.msra.mxu0 0.0
        %6448 = vmatprep.subr.mxu0 0.0
        %6449 = vmatpush2.msra.mxu0 0.0
        %6450 = vmatprep.subr.mxu0 0.0
        %6451 = vmatpush2.msra.mxu0 0.0
        %6452 = vmatprep.subr.mxu0 0.0
        %6453 = vmatpush2.msra.mxu0 0.0
        %6454 = vmatprep.subr.mxu0 0.0
        %6455 = vmatpush2.msra.mxu0 0.0
        %6456 = vmatprep.subr.mxu0 0.0
        %6457 = vmatpush2.msra.mxu0 0.0
        %6458 = vmatprep.subr.mxu0 0.0
        %6459 = vmatpush2.msra.mxu0 0.0
        %6460 = vmatprep.subr.mxu0 0.0
        %6461 = vmatpush2.msra.mxu0 0.0
        %6462 = vmatprep.subr.mxu0 0.0
        %6463 = vmatpush2.msra.mxu0 0.0
        %6464 = vmatprep.subr.mxu0 0.0
        %6465 = vmatpush2.msra.mxu0 0.0
        %6466 = vmatprep.subr.mxu0 0.0
        %6467 = vmatpush2.msra.mxu0 0.0
        %6468 = vmatprep.subr.mxu0 0.0
        %6469 = vmatpush2.msra.mxu0 0.0
        %6470 = vmatprep.subr.mxu0 0.0
        %6471 = vmatpush2.msra.mxu0 0.0
        %6472 = vmatprep.subr.mxu0 0.0
        %6473 = vmatpush2.msra.mxu0 0.0
        %6474 = vmatprep.subr.mxu0 0.0
        %6475 = vmatpush2.msra.mxu0 0.0
        %6476 = vmatprep.mubr.f32.mxu0 0.0
        %6477 = vmatmul.mubr.f32.gmra.mxu0 %v6317
        %v6478 = vpop.f32.mrf.mxu0
        %v6479 = vadd.f32 %v6158, %v6478
        %v6480 = vpop.f32.mrf.mxu0
        %6481 = vmatprep.mubr.f32.mxu0 0.0
        %6482 = vmatmul.mubr.f32.gmra.mxu0 %v6320
        %v6483 = vpop.f32.mrf.mxu0
        %v6484 = vadd.f32 %v6163, %v6483
        %v6485 = vpop.f32.mrf.mxu0
        %6486 = vmatprep.mubr.f32.mxu0 0.0
        %6487 = vmatmul.mubr.f32.gmra.mxu0 %v6323
        %v6488 = vpop.f32.mrf.mxu0
        %v6489 = vadd.f32 %v6168, %v6488
        %v6490 = vpop.f32.mrf.mxu0
        %6491 = vmatprep.mubr.f32.mxu0 0.0
        %6492 = vmatmul.mubr.f32.gmra.mxu0 %v6326
        %v6493 = vpop.f32.mrf.mxu0
        %v6494 = vadd.f32 %v6173, %v6493
        %v6495 = vpop.f32.mrf.mxu0
        %6496 = vmatprep.mubr.f32.mxu0 0.0
        %6497 = vmatmul.mubr.f32.gmra.mxu0 %v6329
        %v6498 = vpop.f32.mrf.mxu0
        %v6499 = vadd.f32 %v6178, %v6498
        %v6500 = vpop.f32.mrf.mxu0
        %6501 = vmatprep.mubr.f32.mxu0 0.0
        %6502 = vmatmul.mubr.f32.gmra.mxu0 %v6332
        %v6503 = vpop.f32.mrf.mxu0
        %v6504 = vadd.f32 %v6183, %v6503
        %v6505 = vpop.f32.mrf.mxu0
        %6506 = vmatprep.mubr.f32.mxu0 0.0
        %6507 = vmatmul.mubr.f32.gmra.mxu0 %v6335
        %v6508 = vpop.f32.mrf.mxu0
        %v6509 = vadd.f32 %v6188, %v6508
        %v6510 = vpop.f32.mrf.mxu0
        %6511 = vmatprep.mubr.f32.mxu0 0.0
        %6512 = vmatmul.mubr.f32.gmra.mxu0 %v6338
        %v6513 = vpop.f32.mrf.mxu0
        %v6514 = vadd.f32 %v6193, %v6513
        %v6515 = vpop.f32.mrf.mxu0
        %6516 = vmatprep.mubr.f32.mxu0 0.0
        %6517 = vmatmul.mubr.f32.gmra.mxu0 %v6341
        %v6518 = vpop.f32.mrf.mxu0
        %v6519 = vadd.f32 %v6198, %v6518
        %v6520 = vpop.f32.mrf.mxu0
        %6521 = vmatprep.mubr.f32.mxu0 0.0
        %6522 = vmatmul.mubr.f32.gmra.mxu0 %v6344
        %v6523 = vpop.f32.mrf.mxu0
        %v6524 = vadd.f32 %v6203, %v6523
        %v6525 = vpop.f32.mrf.mxu0
        %6526 = vmatprep.mubr.f32.mxu0 0.0
        %6527 = vmatmul.mubr.f32.gmra.mxu0 %v6347
        %v6528 = vpop.f32.mrf.mxu0
        %v6529 = vadd.f32 %v6208, %v6528
        %v6530 = vpop.f32.mrf.mxu0
        %6531 = vmatprep.mubr.f32.mxu0 0.0
        %6532 = vmatmul.mubr.f32.gmra.mxu0 %v6350
        %v6533 = vpop.f32.mrf.mxu0
        %v6534 = vadd.f32 %v6213, %v6533
        %v6535 = vpop.f32.mrf.mxu0
        %6536 = vmatprep.mubr.f32.mxu0 0.0
        %6537 = vmatmul.mubr.f32.gmra.mxu0 %v6353
        %v6538 = vpop.f32.mrf.mxu0
        %v6539 = vadd.f32 %v6218, %v6538
        %v6540 = vpop.f32.mrf.mxu0
        %6541 = vmatprep.mubr.f32.mxu0 0.0
        %6542 = vmatmul.mubr.f32.gmra.mxu0 %v6356
        %v6543 = vpop.f32.mrf.mxu0
        %v6544 = vadd.f32 %v6223, %v6543
        %v6545 = vpop.f32.mrf.mxu0
        %6546 = vmatprep.mubr.f32.mxu0 0.0
        %6547 = vmatmul.mubr.f32.gmra.mxu0 %v6359
        %v6548 = vpop.f32.mrf.mxu0
        %v6549 = vadd.f32 %v6228, %v6548
        %v6550 = vpop.f32.mrf.mxu0
        %6551 = vmatprep.mubr.f32.mxu0 0.0
        %6552 = vmatmul.mubr.f32.gmra.mxu0 %v6362
        %v6553 = vpop.f32.mrf.mxu0
        %v6554 = vadd.f32 %v6233, %v6553
        %v6555 = vpop.f32.mrf.mxu0
        %6556 = vmatprep.mubr.f32.mxu0 0.0
        %6557 = vmatmul.mubr.f32.gmra.mxu0 %v6365
        %v6558 = vpop.f32.mrf.mxu0
        %v6559 = vadd.f32 %v6238, %v6558
        %v6560 = vpop.f32.mrf.mxu0
        %6561 = vmatprep.mubr.f32.mxu0 0.0
        %6562 = vmatmul.mubr.f32.gmra.mxu0 %v6368
        %v6563 = vpop.f32.mrf.mxu0
        %v6564 = vadd.f32 %v6243, %v6563
        %v6565 = vpop.f32.mrf.mxu0
        %6566 = vmatprep.mubr.f32.mxu0 0.0
        %6567 = vmatmul.mubr.f32.gmra.mxu0 %v6371
        %v6568 = vpop.f32.mrf.mxu0
        %v6569 = vadd.f32 %v6248, %v6568
        %v6570 = vpop.f32.mrf.mxu0
        %6571 = vmatprep.mubr.f32.mxu0 0.0
        %6572 = vmatmul.mubr.f32.gmra.mxu0 %v6374
        %v6573 = vpop.f32.mrf.mxu0
        %v6574 = vadd.f32 %v6253, %v6573
        %v6575 = vpop.f32.mrf.mxu0
        %6576 = vmatprep.mubr.f32.mxu0 0.0
        %6577 = vmatmul.mubr.f32.gmra.mxu0 %v6377
        %v6578 = vpop.f32.mrf.mxu0
        %v6579 = vadd.f32 %v6258, %v6578
        %v6580 = vpop.f32.mrf.mxu0
        %6581 = vmatprep.mubr.f32.mxu0 0.0
        %6582 = vmatmul.mubr.f32.gmra.mxu0 %v6380
        %v6583 = vpop.f32.mrf.mxu0
        %v6584 = vadd.f32 %v6263, %v6583
        %v6585 = vpop.f32.mrf.mxu0
        %6586 = vmatprep.mubr.f32.mxu0 0.0
        %6587 = vmatmul.mubr.f32.gmra.mxu0 %v6383
        %v6588 = vpop.f32.mrf.mxu0
        %v6589 = vadd.f32 %v6268, %v6588
        %v6590 = vpop.f32.mrf.mxu0
        %6591 = vmatprep.mubr.f32.mxu0 0.0
        %6592 = vmatmul.mubr.f32.gmra.mxu0 %v6386
        %v6593 = vpop.f32.mrf.mxu0
        %v6594 = vadd.f32 %v6273, %v6593
        %v6595 = vpop.f32.mrf.mxu0
        %6596 = vmatprep.mubr.f32.mxu0 0.0
        %6597 = vmatmul.mubr.f32.gmra.mxu0 %v6389
        %v6598 = vpop.f32.mrf.mxu0
        %v6599 = vadd.f32 %v6278, %v6598
        %v6600 = vpop.f32.mrf.mxu0
        %6601 = vmatprep.mubr.f32.mxu0 0.0
        %6602 = vmatmul.mubr.f32.gmra.mxu0 %v6392
        %v6603 = vpop.f32.mrf.mxu0
        %v6604 = vadd.f32 %v6283, %v6603
        %v6605 = vpop.f32.mrf.mxu0
        %6606 = vmatprep.mubr.f32.mxu0 0.0
        %6607 = vmatmul.mubr.f32.gmra.mxu0 %v6395
        %v6608 = vpop.f32.mrf.mxu0
        %v6609 = vadd.f32 %v6288, %v6608
        %v6610 = vpop.f32.mrf.mxu0
        %6611 = vmatprep.mubr.f32.mxu0 0.0
        %6612 = vmatmul.mubr.f32.gmra.mxu0 %v6398
        %v6613 = vpop.f32.mrf.mxu0
        %v6614 = vadd.f32 %v6293, %v6613
        %v6615 = vpop.f32.mrf.mxu0
        %6616 = vmatprep.mubr.f32.mxu0 0.0
        %6617 = vmatmul.mubr.f32.gmra.mxu0 %v6401
        %v6618 = vpop.f32.mrf.mxu0
        %v6619 = vadd.f32 %v6298, %v6618
        %v6620 = vpop.f32.mrf.mxu0
        %6621 = vmatprep.mubr.f32.mxu0 0.0
        %6622 = vmatmul.mubr.f32.gmra.mxu0 %v6404
        %v6623 = vpop.f32.mrf.mxu0
        %v6624 = vadd.f32 %v6303, %v6623
        %v6625 = vpop.f32.mrf.mxu0
        %6626 = vmatprep.mubr.f32.mxu0 0.0
        %6627 = vmatmul.mubr.f32.gmra.mxu0 %v6407
        %v6628 = vpop.f32.mrf.mxu0
        %v6629 = vadd.f32 %v6308, %v6628
        %v6630 = vpop.f32.mrf.mxu0
        %6631 = vmatprep.mubr.f32.mxu0 0.0
        %6632 = vmatmul.mubr.f32.gmra.mxu0 %v6410
        %v6633 = vpop.f32.mrf.mxu0
        %v6634 = vadd.f32 %v6313, %v6633
        %v6635 = vpop.f32.mrf.mxu0
        %6636 = vdwg.mxu0
        %v6637 = vld [vmem:[%s25] sm:$0x1]
        %v6639 = vlaneseq
        %v6640 = vshrl.u32 %v6639, 7
        %v6641 = vsub.s32 0, %v6640
        %v6642 = vrot.slane %v6637, %v6641
        %v6644 = vmul.f32 %v6479, %v6642
        %v6645 = vmul.f32 %v6484, %v6642
        %v6646 = vmul.f32 %v6489, %v6642
        %v6647 = vmul.f32 %v6494, %v6642
        %v6648 = vmul.f32 %v6499, %v6642
        %v6649 = vmul.f32 %v6504, %v6642
        %v6650 = vmul.f32 %v6509, %v6642
        %v6651 = vmul.f32 %v6514, %v6642
        %v6652 = vmul.f32 %v6519, %v6642
        %v6653 = vmul.f32 %v6524, %v6642
        %v6654 = vmul.f32 %v6529, %v6642
        %v6655 = vmul.f32 %v6534, %v6642
        %v6656 = vmul.f32 %v6539, %v6642
        %v6657 = vmul.f32 %v6544, %v6642
        %v6658 = vmul.f32 %v6549, %v6642
        %v6659 = vmul.f32 %v6554, %v6642
        %v6660 = vmul.f32 %v6559, %v6642
        %v6661 = vmul.f32 %v6564, %v6642
        %v6662 = vmul.f32 %v6569, %v6642
        %v6663 = vmul.f32 %v6574, %v6642
        %v6664 = vmul.f32 %v6579, %v6642
        %v6665 = vmul.f32 %v6584, %v6642
        %v6666 = vmul.f32 %v6589, %v6642
        %v6667 = vmul.f32 %v6594, %v6642
        %v6668 = vmul.f32 %v6599, %v6642
        %v6669 = vmul.f32 %v6604, %v6642
        %v6670 = vmul.f32 %v6609, %v6642
        %v6671 = vmul.f32 %v6614, %v6642
        %v6672 = vmul.f32 %v6619, %v6642
        %v6673 = vmul.f32 %v6624, %v6642
        %v6674 = vmul.f32 %v6629, %v6642
        %v6675 = vmul.f32 %v6634, %v6642
        %v6676 = vld [vmem:[%s27] sm:$0x1]
        %v6678 = vlaneseq
        %v6679 = vshrl.u32 %v6678, 7
        %v6680 = vsub.s32 0, %v6679
        %v6681 = vrot.slane %v6676, %v6680
        %v6683 = vadd.f32 %v6644, %v6681
        %v6684 = vadd.f32 %v6645, %v6681
        %v6685 = vadd.f32 %v6646, %v6681
        %v6686 = vadd.f32 %v6647, %v6681
        %v6687 = vadd.f32 %v6648, %v6681
        %v6688 = vadd.f32 %v6649, %v6681
        %v6689 = vadd.f32 %v6650, %v6681
        %v6690 = vadd.f32 %v6651, %v6681
        %v6691 = vadd.f32 %v6652, %v6681
        %v6692 = vadd.f32 %v6653, %v6681
        %v6693 = vadd.f32 %v6654, %v6681
        %v6694 = vadd.f32 %v6655, %v6681
        %v6695 = vadd.f32 %v6656, %v6681
        %v6696 = vadd.f32 %v6657, %v6681
        %v6697 = vadd.f32 %v6658, %v6681
        %v6698 = vadd.f32 %v6659, %v6681
        %v6699 = vadd.f32 %v6660, %v6681
        %v6700 = vadd.f32 %v6661, %v6681
        %v6701 = vadd.f32 %v6662, %v6681
        %v6702 = vadd.f32 %v6663, %v6681
        %v6703 = vadd.f32 %v6664, %v6681
        %v6704 = vadd.f32 %v6665, %v6681
        %v6705 = vadd.f32 %v6666, %v6681
        %v6706 = vadd.f32 %v6667, %v6681
        %v6707 = vadd.f32 %v6668, %v6681
        %v6708 = vadd.f32 %v6669, %v6681
        %v6709 = vadd.f32 %v6670, %v6681
        %v6710 = vadd.f32 %v6671, %v6681
        %v6711 = vadd.f32 %v6672, %v6681
        %v6712 = vadd.f32 %v6673, %v6681
        %v6713 = vadd.f32 %v6674, %v6681
        %v6714 = vadd.f32 %v6675, %v6681
        %v6715 = vmax.f32 %v6683, 0.0
        %v6716 = vmax.f32 %v6684, 0.0
        %v6717 = vmax.f32 %v6685, 0.0
        %v6718 = vmax.f32 %v6686, 0.0
        %v6719 = vmax.f32 %v6687, 0.0
        %v6720 = vmax.f32 %v6688, 0.0
        %v6721 = vmax.f32 %v6689, 0.0
        %v6722 = vmax.f32 %v6690, 0.0
        %v6723 = vmax.f32 %v6691, 0.0
        %v6724 = vmax.f32 %v6692, 0.0
        %v6725 = vmax.f32 %v6693, 0.0
        %v6726 = vmax.f32 %v6694, 0.0
        %v6727 = vmax.f32 %v6695, 0.0
        %v6728 = vmax.f32 %v6696, 0.0
        %v6729 = vmax.f32 %v6697, 0.0
        %v6730 = vmax.f32 %v6698, 0.0
        %v6731 = vmax.f32 %v6699, 0.0
        %v6732 = vmax.f32 %v6700, 0.0
        %v6733 = vmax.f32 %v6701, 0.0
        %v6734 = vmax.f32 %v6702, 0.0
        %v6735 = vmax.f32 %v6703, 0.0
        %v6736 = vmax.f32 %v6704, 0.0
        %v6737 = vmax.f32 %v6705, 0.0
        %v6738 = vmax.f32 %v6706, 0.0
        %v6739 = vmax.f32 %v6707, 0.0
        %v6740 = vmax.f32 %v6708, 0.0
        %v6741 = vmax.f32 %v6709, 0.0
        %v6742 = vmax.f32 %v6710, 0.0
        %v6743 = vmax.f32 %v6711, 0.0
        %v6744 = vmax.f32 %v6712, 0.0
        %v6745 = vmax.f32 %v6713, 0.0
        %v6746 = vmax.f32 %v6714, 0.0
        %6747 = vst.msk [vmem:[#allocation4 + $0x1] sm:$0xff] %vm4137, %v6715
        %6748 = vst.msk [vmem:[#allocation4 + $0x9] sm:$0xff] %vm4137, %v6716
        %6749 = vst.msk [vmem:[#allocation4 + $0x11] sm:$0xff] %vm4137, %v6717
        %6750 = vst.msk [vmem:[#allocation4 + $0x19] sm:$0xff] %vm4137, %v6718
        %6751 = vst.msk [vmem:[#allocation4 + $0x21] sm:$0xff] %vm4137, %v6719
        %6752 = vst.msk [vmem:[#allocation4 + $0x29] sm:$0xff] %vm4137, %v6720
        %6753 = vst.msk [vmem:[#allocation4 + $0x31] sm:$0xff] %vm4137, %v6721
        %6754 = vst.msk [vmem:[#allocation4 + $0x39] sm:$0xff] %vm4137, %v6722
        %6755 = vst.msk [vmem:[#allocation4 + $0x41] sm:$0xff] %vm4137, %v6723
        %6756 = vst.msk [vmem:[#allocation4 + $0x49] sm:$0xff] %vm4137, %v6724
        %6757 = vst.msk [vmem:[#allocation4 + $0x51] sm:$0xff] %vm4137, %v6725
        %6758 = vst.msk [vmem:[#allocation4 + $0x59] sm:$0xff] %vm4137, %v6726
        %6759 = vst.msk [vmem:[#allocation4 + $0x61] sm:$0xff] %vm4137, %v6727
        %6760 = vst.msk [vmem:[#allocation4 + $0x69] sm:$0xff] %vm4137, %v6728
        %6761 = vst.msk [vmem:[#allocation4 + $0x71] sm:$0xff] %vm4137, %v6729
        %6762 = vst.msk [vmem:[#allocation4 + $0x79] sm:$0xff] %vm4137, %v6730
        %6763 = vst.msk [vmem:[#allocation4 + $0x81] sm:$0xff] %vm4137, %v6731
        %6764 = vst.msk [vmem:[#allocation4 + $0x89] sm:$0xff] %vm4137, %v6732
        %6765 = vst.msk [vmem:[#allocation4 + $0x91] sm:$0xff] %vm4137, %v6733
        %6766 = vst.msk [vmem:[#allocation4 + $0x99] sm:$0xff] %vm4137, %v6734
        %6767 = vst.msk [vmem:[#allocation4 + $0xa1] sm:$0xff] %vm4137, %v6735
        %6768 = vst.msk [vmem:[#allocation4 + $0xa9] sm:$0xff] %vm4137, %v6736
        %6769 = vst.msk [vmem:[#allocation4 + $0xb1] sm:$0xff] %vm4137, %v6737
        %6770 = vst.msk [vmem:[#allocation4 + $0xb9] sm:$0xff] %vm4137, %v6738
        %6771 = vst.msk [vmem:[#allocation4 + $0xc1] sm:$0xff] %vm4137, %v6739
        %6772 = vst.msk [vmem:[#allocation4 + $0xc9] sm:$0xff] %vm4137, %v6740
        %6773 = vst.msk [vmem:[#allocation4 + $0xd1] sm:$0xff] %vm4137, %v6741
        %6774 = vst.msk [vmem:[#allocation4 + $0xd9] sm:$0xff] %vm4137, %v6742
        %6775 = vst.msk [vmem:[#allocation4 + $0xe1] sm:$0xff] %vm4137, %v6743
        %6776 = vst.msk [vmem:[#allocation4 + $0xe9] sm:$0xff] %vm4137, %v6744
        %6777 = vst.msk [vmem:[#allocation4 + $0xf1] sm:$0xff] %vm4137, %v6745
        %6778 = vst.msk [vmem:[#allocation4 + $0xf9] sm:$0xff] %vm4137, %v6746
        %s6779 = scalar_lea.vmem [#allocation4], 1
        %v6780 = vld [vmem:[%s6779] ss:$4 sm:$0xff]
        %s6781 = scalar_lea.vmem [#allocation4], 33
        %v6782 = vld [vmem:[%s6781] ss:$4 sm:$0xff]
        %s6783 = scalar_lea.vmem [#allocation4], 65
        %v6784 = vld [vmem:[%s6783] ss:$4 sm:$0xff]
        %s6785 = scalar_lea.vmem [#allocation4], 97
        %v6786 = vld [vmem:[%s6785] ss:$4 sm:$0xff]
        %s6787 = scalar_lea.vmem [#allocation4], 129
        %v6788 = vld [vmem:[%s6787] ss:$4 sm:$0xff]
        %s6789 = scalar_lea.vmem [#allocation4], 161
        %v6790 = vld [vmem:[%s6789] ss:$4 sm:$0xff]
        %s6791 = scalar_lea.vmem [#allocation4], 193
        %v6792 = vld [vmem:[%s6791] ss:$4 sm:$0xff]
        %s6793 = scalar_lea.vmem [#allocation4], 225
        %v6794 = vld [vmem:[%s6793] ss:$4 sm:$0xff]
        %s6795 = scalar_lea.vmem [#allocation4], 2
        %v6796 = vld [vmem:[%s6795] ss:$4 sm:$0xff]
        %s6797 = scalar_lea.vmem [#allocation4], 34
        %v6798 = vld [vmem:[%s6797] ss:$4 sm:$0xff]
        %s6799 = scalar_lea.vmem [#allocation4], 66
        %v6800 = vld [vmem:[%s6799] ss:$4 sm:$0xff]
        %s6801 = scalar_lea.vmem [#allocation4], 98
        %v6802 = vld [vmem:[%s6801] ss:$4 sm:$0xff]
        %s6803 = scalar_lea.vmem [#allocation4], 130
        %v6804 = vld [vmem:[%s6803] ss:$4 sm:$0xff]
        %s6805 = scalar_lea.vmem [#allocation4], 162
        %v6806 = vld [vmem:[%s6805] ss:$4 sm:$0xff]
        %s6807 = scalar_lea.vmem [#allocation4], 194
        %v6808 = vld [vmem:[%s6807] ss:$4 sm:$0xff]
        %s6809 = scalar_lea.vmem [#allocation4], 226
        %v6810 = vld [vmem:[%s6809] ss:$4 sm:$0xff]
        %v6811 = vmax.f32 %v6780, %v6796
        %v6812 = vmax.f32 %v6782, %v6798
        %v6813 = vmax.f32 %v6784, %v6800
        %v6814 = vmax.f32 %v6786, %v6802
        %v6815 = vmax.f32 %v6788, %v6804
        %v6816 = vmax.f32 %v6790, %v6806
        %v6817 = vmax.f32 %v6792, %v6808
        %v6818 = vmax.f32 %v6794, %v6810
        %s6819 = scalar_lea.vmem [#allocation4], 3
        %v6820 = vld [vmem:[%s6819] ss:$4 sm:$0xff]
        %s6821 = scalar_lea.vmem [#allocation4], 35
        %v6822 = vld [vmem:[%s6821] ss:$4 sm:$0xff]
        %s6823 = scalar_lea.vmem [#allocation4], 67
        %v6824 = vld [vmem:[%s6823] ss:$4 sm:$0xff]
        %s6825 = scalar_lea.vmem [#allocation4], 99
        %v6826 = vld [vmem:[%s6825] ss:$4 sm:$0xff]
        %s6827 = scalar_lea.vmem [#allocation4], 131
        %v6828 = vld [vmem:[%s6827] ss:$4 sm:$0xff]
        %s6829 = scalar_lea.vmem [#allocation4], 163
        %v6830 = vld [vmem:[%s6829] ss:$4 sm:$0xff]
        %s6831 = scalar_lea.vmem [#allocation4], 195
        %v6832 = vld [vmem:[%s6831] ss:$4 sm:$0xff]
        %s6833 = scalar_lea.vmem [#allocation4], 227
        %v6834 = vld [vmem:[%s6833] ss:$4 sm:$0xff]
        %v6835 = vmax.f32 %v6811, %v6820
        %v6836 = vmax.f32 %v6812, %v6822
        %v6837 = vmax.f32 %v6813, %v6824
        %v6838 = vmax.f32 %v6814, %v6826
        %v6839 = vmax.f32 %v6815, %v6828
        %v6840 = vmax.f32 %v6816, %v6830
        %v6841 = vmax.f32 %v6817, %v6832
        %v6842 = vmax.f32 %v6818, %v6834
        %s6843 = scalar_lea.vmem [#allocation4], 4
        %v6844 = vld [vmem:[%s6843] ss:$4 sm:$0xff]
        %s6845 = scalar_lea.vmem [#allocation4], 36
        %v6846 = vld [vmem:[%s6845] ss:$4 sm:$0xff]
        %s6847 = scalar_lea.vmem [#allocation4], 68
        %v6848 = vld [vmem:[%s6847] ss:$4 sm:$0xff]
        %s6849 = scalar_lea.vmem [#allocation4], 100
        %v6850 = vld [vmem:[%s6849] ss:$4 sm:$0xff]
        %s6851 = scalar_lea.vmem [#allocation4], 132
        %v6852 = vld [vmem:[%s6851] ss:$4 sm:$0xff]
        %s6853 = scalar_lea.vmem [#allocation4], 164
        %v6854 = vld [vmem:[%s6853] ss:$4 sm:$0xff]
        %s6855 = scalar_lea.vmem [#allocation4], 196
        %v6856 = vld [vmem:[%s6855] ss:$4 sm:$0xff]
        %s6857 = scalar_lea.vmem [#allocation4], 228
        %v6858 = vld [vmem:[%s6857] ss:$4 sm:$0xff]
        %v6859 = vmax.f32 %v6835, %v6844
        %v6860 = vmax.f32 %v6836, %v6846
        %v6861 = vmax.f32 %v6837, %v6848
        %v6862 = vmax.f32 %v6838, %v6850
        %v6863 = vmax.f32 %v6839, %v6852
        %v6864 = vmax.f32 %v6840, %v6854
        %v6865 = vmax.f32 %v6841, %v6856
        %v6866 = vmax.f32 %v6842, %v6858
        %6867 = vst.msk [vmem:[#allocation5 + $0x1] sm:$0xff] %vm4137, %v6859
        %6868 = vst.msk [vmem:[#allocation5 + $0x9] sm:$0xff] %vm4137, %v6860
        %6869 = vst.msk [vmem:[#allocation5 + $0x11] sm:$0xff] %vm4137, %v6861
        %6870 = vst.msk [vmem:[#allocation5 + $0x19] sm:$0xff] %vm4137, %v6862
        %6871 = vst.msk [vmem:[#allocation5 + $0x21] sm:$0xff] %vm4137, %v6863
        %6872 = vst.msk [vmem:[#allocation5 + $0x29] sm:$0xff] %vm4137, %v6864
        %6873 = vst.msk [vmem:[#allocation5 + $0x31] sm:$0xff] %vm4137, %v6865
        %6874 = vst.msk [vmem:[#allocation5 + $0x39] sm:$0xff] %vm4137, %v6866
        %v6875 = vld [vmem:[#allocation5] sm:$0xff]
        %v6876 = vld [vmem:[#allocation5 + $0x8] sm:$0xff]
        %v6877 = vld [vmem:[#allocation5 + $0x10] sm:$0xff]
        %v6878 = vld [vmem:[#allocation5 + $0x18] sm:$0xff]
        %v6879 = vld [vmem:[#allocation5 + $0x20] sm:$0xff]
        %v6880 = vld [vmem:[#allocation5 + $0x28] sm:$0xff]
        %v6881 = vld [vmem:[#allocation5 + $0x30] sm:$0xff]
        %v6882 = vld [vmem:[#allocation5 + $0x38] sm:$0xff]
        %v6883 = vld [vmem:[#allocation5 + $0x1] sm:$0xff]
        %v6884 = vld [vmem:[#allocation5 + $0x9] sm:$0xff]
        %v6885 = vld [vmem:[#allocation5 + $0x11] sm:$0xff]
        %v6886 = vld [vmem:[#allocation5 + $0x19] sm:$0xff]
        %v6887 = vld [vmem:[#allocation5 + $0x21] sm:$0xff]
        %v6888 = vld [vmem:[#allocation5 + $0x29] sm:$0xff]
        %v6889 = vld [vmem:[#allocation5 + $0x31] sm:$0xff]
        %v6890 = vld [vmem:[#allocation5 + $0x39] sm:$0xff]
        %v6891 = vld [vmem:[#allocation5 + $0x2] sm:$0xff]
        %v6892 = vld [vmem:[#allocation5 + $0xa] sm:$0xff]
        %v6893 = vld [vmem:[#allocation5 + $0x12] sm:$0xff]
        %v6894 = vld [vmem:[#allocation5 + $0x1a] sm:$0xff]
        %v6895 = vld [vmem:[#allocation5 + $0x22] sm:$0xff]
        %v6896 = vld [vmem:[#allocation5 + $0x2a] sm:$0xff]
        %v6897 = vld [vmem:[#allocation5 + $0x32] sm:$0xff]
        %v6898 = vld [vmem:[#allocation5 + $0x3a] sm:$0xff]
        %6907 = vrot.lane.b32.xlu0 %v6883, 32
        %v6908 = vpop.permute.xlu0 %6907
        %6909 = vrot.lane.b32.xlu0 %v6884, 32
        %v6910 = vpop.permute.xlu0 %6909
        %6911 = vrot.lane.b32.xlu0 %v6885, 32
        %v6912 = vpop.permute.xlu0 %6911
        %6913 = vrot.lane.b32.xlu0 %v6886, 32
        %v6914 = vpop.permute.xlu0 %6913
        %6915 = vrot.lane.b32.xlu0 %v6887, 32
        %v6916 = vpop.permute.xlu0 %6915
        %6917 = vrot.lane.b32.xlu0 %v6888, 32
        %v6918 = vpop.permute.xlu0 %6917
        %6919 = vrot.lane.b32.xlu0 %v6889, 32
        %v6920 = vpop.permute.xlu0 %6919
        %6921 = vrot.lane.b32.xlu0 %v6890, 32
        %v6922 = vpop.permute.xlu0 %6921
        %6939 = vrot.lane.b32.xlu0 %v6891, 64
        %v6940 = vpop.permute.xlu0 %6939
        %6941 = vrot.lane.b32.xlu0 %v6892, 64
        %v6942 = vpop.permute.xlu0 %6941
        %6943 = vrot.lane.b32.xlu0 %v6893, 64
        %v6944 = vpop.permute.xlu0 %6943
        %6945 = vrot.lane.b32.xlu0 %v6894, 64
        %v6946 = vpop.permute.xlu0 %6945
        %6947 = vrot.lane.b32.xlu0 %v6895, 64
        %v6948 = vpop.permute.xlu0 %6947
        %6949 = vrot.lane.b32.xlu0 %v6896, 64
        %v6950 = vpop.permute.xlu0 %6949
        %6951 = vrot.lane.b32.xlu0 %v6897, 64
        %v6952 = vpop.permute.xlu0 %6951
        %6953 = vrot.lane.b32.xlu0 %v6898, 64
        %v6954 = vpop.permute.xlu0 %6953
        %v6963 = vsel %vm4137, %v6875, %v6908
        %v6964 = vsel %vm4137, %v6876, %v6910
        %v6965 = vsel %vm4137, %v6877, %v6912
        %v6966 = vsel %vm4137, %v6878, %v6914
        %v6967 = vsel %vm4137, %v6879, %v6916
        %v6968 = vsel %vm4137, %v6880, %v6918
        %v6969 = vsel %vm4137, %v6881, %v6920
        %v6970 = vsel %vm4137, %v6882, %v6922
        %v6971 = vsel %vm5024, %v6963, %v6940
        %v6972 = vsel %vm5024, %v6964, %v6942
        %v6973 = vsel %vm5024, %v6965, %v6944
        %v6974 = vsel %vm5024, %v6966, %v6946
        %v6975 = vsel %vm5024, %v6967, %v6948
        %v6976 = vsel %vm5024, %v6968, %v6950
        %v6977 = vsel %vm5024, %v6969, %v6952
        %v6978 = vsel %vm5024, %v6970, %v6954
        %v6979 = vld [vmem:[%s29] sm:$0xff]
        %v6980 = vld [vmem:[%s29 + $0x8] sm:$0xff]
        %v6981 = vld [vmem:[%s29 + $0x10] sm:$0xff]
        %v6982 = vld [vmem:[%s29 + $0x18] sm:$0xff]
        %v6983 = vld [vmem:[%s29 + $0x20] sm:$0xff]
        %v6984 = vld [vmem:[%s29 + $0x28] sm:$0xff]
        %v6985 = vld [vmem:[%s29 + $0x30] sm:$0xff]
        %v6986 = vld [vmem:[%s29 + $0x38] sm:$0xff]
        %v6987 = vld [vmem:[%s29 + $0x40] sm:$0xff]
        %v6988 = vld [vmem:[%s29 + $0x48] sm:$0xff]
        %v6989 = vld [vmem:[%s29 + $0x50] sm:$0xff]
        %v6990 = vld [vmem:[%s29 + $0x58] sm:$0xff]
        %v6992 = vsel %vm5069, %v6971, 0
        %v6995 = vsel %vm5069, %v6972, 0
        %v6998 = vsel %vm5069, %v6973, 0
        %v7001 = vsel %vm5069, %v6974, 0
        %v7004 = vsel %vm5069, %v6975, 0
        %v7007 = vsel %vm5069, %v6976, 0
        %v7010 = vsel %vm5069, %v6977, 0
        %v7013 = vsel %vm5069, %v6978, 0
        %7015 = vmatprep.subr.mxu0 0.0
        %7016 = vmatpush1.msra.mxu0 0.0
        %7017 = vmatprep.subr.mxu0 0.0
        %7018 = vmatpush1.msra.mxu0 0.0
        %7019 = vmatprep.subr.mxu0 0.0
        %7020 = vmatpush1.msra.mxu0 0.0
        %7021 = vmatprep.subr.mxu0 0.0
        %7022 = vmatpush1.msra.mxu0 0.0
        %7023 = vmatprep.subr.mxu0 0.0
        %7024 = vmatpush1.msra.mxu0 %v6990
        %7025 = vmatprep.subr.mxu0 0.0
        %7026 = vmatpush1.msra.mxu0 %v6989
        %7027 = vmatprep.subr.mxu0 0.0
        %7028 = vmatpush1.msra.mxu0 %v6988
        %7029 = vmatprep.subr.mxu0 0.0
        %7030 = vmatpush1.msra.mxu0 %v6987
        %7031 = vmatprep.subr.mxu0 0.0
        %7032 = vmatpush1.msra.mxu0 %v6986
        %7033 = vmatprep.subr.mxu0 0.0
        %7034 = vmatpush1.msra.mxu0 %v6985
        %7035 = vmatprep.subr.mxu0 0.0
        %7036 = vmatpush1.msra.mxu0 %v6984
        %7037 = vmatprep.subr.mxu0 0.0
        %7038 = vmatpush1.msra.mxu0 %v6983
        %7039 = vmatprep.subr.mxu0 0.0
        %7040 = vmatpush1.msra.mxu0 %v6982
        %7041 = vmatprep.subr.mxu0 0.0
        %7042 = vmatpush1.msra.mxu0 %v6981
        %7043 = vmatprep.subr.mxu0 0.0
        %7044 = vmatpush1.msra.mxu0 %v6980
        %7045 = vmatprep.subr.mxu0 0.0
        %7046 = vmatpush1.msra.mxu0 %v6979
        %7047 = vmatprep.subr.mxu0 0.0
        %7048 = vmatpush2.msra.mxu0 0.0
        %7049 = vmatprep.subr.mxu0 0.0
        %7050 = vmatpush2.msra.mxu0 0.0
        %7051 = vmatprep.subr.mxu0 0.0
        %7052 = vmatpush2.msra.mxu0 0.0
        %7053 = vmatprep.subr.mxu0 0.0
        %7054 = vmatpush2.msra.mxu0 0.0
        %7055 = vmatprep.subr.mxu0 0.0
        %7056 = vmatpush2.msra.mxu0 0.0
        %7057 = vmatprep.subr.mxu0 0.0
        %7058 = vmatpush2.msra.mxu0 0.0
        %7059 = vmatprep.subr.mxu0 0.0
        %7060 = vmatpush2.msra.mxu0 0.0
        %7061 = vmatprep.subr.mxu0 0.0
        %7062 = vmatpush2.msra.mxu0 0.0
        %7063 = vmatprep.subr.mxu0 0.0
        %7064 = vmatpush2.msra.mxu0 0.0
        %7065 = vmatprep.subr.mxu0 0.0
        %7066 = vmatpush2.msra.mxu0 0.0
        %7067 = vmatprep.subr.mxu0 0.0
        %7068 = vmatpush2.msra.mxu0 0.0
        %7069 = vmatprep.subr.mxu0 0.0
        %7070 = vmatpush2.msra.mxu0 0.0
        %7071 = vmatprep.subr.mxu0 0.0
        %7072 = vmatpush2.msra.mxu0 0.0
        %7073 = vmatprep.subr.mxu0 0.0
        %7074 = vmatpush2.msra.mxu0 0.0
        %7075 = vmatprep.subr.mxu0 0.0
        %7076 = vmatpush2.msra.mxu0 0.0
        %7077 = vmatprep.subr.mxu0 0.0
        %7078 = vmatpush2.msra.mxu0 0.0
        %7079 = vmatprep.mubr.f32.mxu0 0.0
        %7080 = vmatmul.mubr.f32.gmra.mxu0 %v6992
        %v7081 = vpop.f32.mrf.mxu0
        %v7082 = vadd.f32 0.0, %v7081
        %v7083 = vpop.f32.mrf.mxu0
        %7084 = vmatprep.mubr.f32.mxu0 0.0
        %7085 = vmatmul.mubr.f32.gmra.mxu0 %v6995
        %v7086 = vpop.f32.mrf.mxu0
        %v7087 = vadd.f32 0.0, %v7086
        %v7088 = vpop.f32.mrf.mxu0
        %7089 = vmatprep.mubr.f32.mxu0 0.0
        %7090 = vmatmul.mubr.f32.gmra.mxu0 %v6998
        %v7091 = vpop.f32.mrf.mxu0
        %v7092 = vadd.f32 0.0, %v7091
        %v7093 = vpop.f32.mrf.mxu0
        %7094 = vmatprep.mubr.f32.mxu0 0.0
        %7095 = vmatmul.mubr.f32.gmra.mxu0 %v7001
        %v7096 = vpop.f32.mrf.mxu0
        %v7097 = vadd.f32 0.0, %v7096
        %v7098 = vpop.f32.mrf.mxu0
        %7099 = vmatprep.mubr.f32.mxu0 0.0
        %7100 = vmatmul.mubr.f32.gmra.mxu0 %v7004
        %v7101 = vpop.f32.mrf.mxu0
        %v7102 = vadd.f32 0.0, %v7101
        %v7103 = vpop.f32.mrf.mxu0
        %7104 = vmatprep.mubr.f32.mxu0 0.0
        %7105 = vmatmul.mubr.f32.gmra.mxu0 %v7007
        %v7106 = vpop.f32.mrf.mxu0
        %v7107 = vadd.f32 0.0, %v7106
        %v7108 = vpop.f32.mrf.mxu0
        %7109 = vmatprep.mubr.f32.mxu0 0.0
        %7110 = vmatmul.mubr.f32.gmra.mxu0 %v7010
        %v7111 = vpop.f32.mrf.mxu0
        %v7112 = vadd.f32 0.0, %v7111
        %v7113 = vpop.f32.mrf.mxu0
        %7114 = vmatprep.mubr.f32.mxu0 0.0
        %7115 = vmatmul.mubr.f32.gmra.mxu0 %v7013
        %v7116 = vpop.f32.mrf.mxu0
        %v7117 = vadd.f32 0.0, %v7116
        %v7118 = vpop.f32.mrf.mxu0
        %7119 = vdwg.mxu0
        %v7120 = vld [vmem:[%s31] sm:$0x1]
        %v7122 = vlaneseq
        %v7123 = vshrl.u32 %v7122, 7
        %v7124 = vsub.s32 0, %v7123
        %v7125 = vrot.slane %v7120, %v7124
        %v7127 = vmul.f32 %v7082, %v7125
        %v7128 = vmul.f32 %v7087, %v7125
        %v7129 = vmul.f32 %v7092, %v7125
        %v7130 = vmul.f32 %v7097, %v7125
        %v7131 = vmul.f32 %v7102, %v7125
        %v7132 = vmul.f32 %v7107, %v7125
        %v7133 = vmul.f32 %v7112, %v7125
        %v7134 = vmul.f32 %v7117, %v7125
        %v7135 = vld [vmem:[%s33] sm:$0x1]
        %v7137 = vlaneseq
        %v7138 = vshrl.u32 %v7137, 7
        %v7139 = vsub.s32 0, %v7138
        %v7140 = vrot.slane %v7135, %v7139
        %v7142 = vadd.f32 %v7127, %v7140
        %v7143 = vadd.f32 %v7128, %v7140
        %v7144 = vadd.f32 %v7129, %v7140
        %v7145 = vadd.f32 %v7130, %v7140
        %v7146 = vadd.f32 %v7131, %v7140
        %v7147 = vadd.f32 %v7132, %v7140
        %v7148 = vadd.f32 %v7133, %v7140
        %v7149 = vadd.f32 %v7134, %v7140
        %v7150 = vmax.f32 %v7142, 0.0
        %v7151 = vmax.f32 %v7143, 0.0
        %v7152 = vmax.f32 %v7144, 0.0
        %v7153 = vmax.f32 %v7145, 0.0
        %v7154 = vmax.f32 %v7146, 0.0
        %v7155 = vmax.f32 %v7147, 0.0
        %v7156 = vmax.f32 %v7148, 0.0
        %v7157 = vmax.f32 %v7149, 0.0
        %7158 = vst.msk [vmem:[#allocation6 + $0x1] sm:$0xff] %vm5024, %v7150
        %7159 = vst.msk [vmem:[#allocation6 + $0x9] sm:$0xff] %vm5024, %v7151
        %7160 = vst.msk [vmem:[#allocation6 + $0x11] sm:$0xff] %vm5024, %v7152
        %7161 = vst.msk [vmem:[#allocation6 + $0x19] sm:$0xff] %vm5024, %v7153
        %7162 = vst.msk [vmem:[#allocation6 + $0x21] sm:$0xff] %vm5024, %v7154
        %7163 = vst.msk [vmem:[#allocation6 + $0x29] sm:$0xff] %vm5024, %v7155
        %7164 = vst.msk [vmem:[#allocation6 + $0x31] sm:$0xff] %vm5024, %v7156
        %7165 = vst.msk [vmem:[#allocation6 + $0x39] sm:$0xff] %vm5024, %v7157
        %v7166 = vld [vmem:[#allocation6] sm:$0xff]
        %v7167 = vld [vmem:[#allocation6 + $0x8] sm:$0xff]
        %v7168 = vld [vmem:[#allocation6 + $0x10] sm:$0xff]
        %v7169 = vld [vmem:[#allocation6 + $0x18] sm:$0xff]
        %v7170 = vld [vmem:[#allocation6 + $0x20] sm:$0xff]
        %v7171 = vld [vmem:[#allocation6 + $0x28] sm:$0xff]
        %v7172 = vld [vmem:[#allocation6 + $0x30] sm:$0xff]
        %v7173 = vld [vmem:[#allocation6 + $0x38] sm:$0xff]
        %v7174 = vld [vmem:[#allocation6 + $0x1] sm:$0xff]
        %v7175 = vld [vmem:[#allocation6 + $0x9] sm:$0xff]
        %v7176 = vld [vmem:[#allocation6 + $0x11] sm:$0xff]
        %v7177 = vld [vmem:[#allocation6 + $0x19] sm:$0xff]
        %v7178 = vld [vmem:[#allocation6 + $0x21] sm:$0xff]
        %v7179 = vld [vmem:[#allocation6 + $0x29] sm:$0xff]
        %v7180 = vld [vmem:[#allocation6 + $0x31] sm:$0xff]
        %v7181 = vld [vmem:[#allocation6 + $0x39] sm:$0xff]
        %v7182 = vld [vmem:[#allocation6 + $0x2] sm:$0xff]
        %v7183 = vld [vmem:[#allocation6 + $0xa] sm:$0xff]
        %v7184 = vld [vmem:[#allocation6 + $0x12] sm:$0xff]
        %v7185 = vld [vmem:[#allocation6 + $0x1a] sm:$0xff]
        %v7186 = vld [vmem:[#allocation6 + $0x22] sm:$0xff]
        %v7187 = vld [vmem:[#allocation6 + $0x2a] sm:$0xff]
        %v7188 = vld [vmem:[#allocation6 + $0x32] sm:$0xff]
        %v7189 = vld [vmem:[#allocation6 + $0x3a] sm:$0xff]
        %7198 = vrot.lane.b32.xlu0 %v7174, 64
        %v7199 = vpop.permute.xlu0 %7198
        %7200 = vrot.lane.b32.xlu0 %v7175, 64
        %v7201 = vpop.permute.xlu0 %7200
        %7202 = vrot.lane.b32.xlu0 %v7176, 64
        %v7203 = vpop.permute.xlu0 %7202
        %7204 = vrot.lane.b32.xlu0 %v7177, 64
        %v7205 = vpop.permute.xlu0 %7204
        %7206 = vrot.lane.b32.xlu0 %v7178, 64
        %v7207 = vpop.permute.xlu0 %7206
        %7208 = vrot.lane.b32.xlu0 %v7179, 64
        %v7209 = vpop.permute.xlu0 %7208
        %7210 = vrot.lane.b32.xlu0 %v7180, 64
        %v7211 = vpop.permute.xlu0 %7210
        %7212 = vrot.lane.b32.xlu0 %v7181, 64
        %v7213 = vpop.permute.xlu0 %7212
        %v7222 = vsel %vm5024, %v7166, %v7199
        %v7223 = vsel %vm5024, %v7167, %v7201
        %v7224 = vsel %vm5024, %v7168, %v7203
        %v7225 = vsel %vm5024, %v7169, %v7205
        %v7226 = vsel %vm5024, %v7170, %v7207
        %v7227 = vsel %vm5024, %v7171, %v7209
        %v7228 = vsel %vm5024, %v7172, %v7211
        %v7229 = vsel %vm5024, %v7173, %v7213
        %v7230 = vld [vmem:[%s35] sm:$0xff]
        %v7231 = vld [vmem:[%s35 + $0x8] sm:$0xff]
        %v7232 = vld [vmem:[%s35 + $0x10] sm:$0xff]
        %v7233 = vld [vmem:[%s35 + $0x18] sm:$0xff]
        %v7234 = vld [vmem:[%s35 + $0x20] sm:$0xff]
        %v7235 = vld [vmem:[%s35 + $0x28] sm:$0xff]
        %v7236 = vld [vmem:[%s35 + $0x30] sm:$0xff]
        %v7237 = vld [vmem:[%s35 + $0x38] sm:$0xff]
        %v7238 = vld [vmem:[%s35 + $0x40] sm:$0xff]
        %v7239 = vld [vmem:[%s35 + $0x48] sm:$0xff]
        %v7240 = vld [vmem:[%s35 + $0x50] sm:$0xff]
        %v7241 = vld [vmem:[%s35 + $0x58] sm:$0xff]
        %v7242 = vld [vmem:[%s35 + $0x60] sm:$0xff]
        %v7243 = vld [vmem:[%s35 + $0x68] sm:$0xff]
        %v7244 = vld [vmem:[%s35 + $0x70] sm:$0xff]
        %v7245 = vld [vmem:[%s35 + $0x78] sm:$0xff]
        %v7246 = vld [vmem:[%s35 + $0x80] sm:$0xff]
        %v7247 = vld [vmem:[%s35 + $0x88] sm:$0xff]
        %v7248 = vld [vmem:[%s35 + $0x90] sm:$0xff]
        %v7249 = vld [vmem:[%s35 + $0x98] sm:$0xff]
        %v7250 = vld [vmem:[%s35 + $0xa0] sm:$0xff]
        %v7251 = vld [vmem:[%s35 + $0xa8] sm:$0xff]
        %v7252 = vld [vmem:[%s35 + $0xb0] sm:$0xff]
        %v7253 = vld [vmem:[%s35 + $0xb8] sm:$0xff]
        %v7255 = vsel %vm5024, %v7182, 0
        %v7258 = vsel %vm5024, %v7183, 0
        %v7261 = vsel %vm5024, %v7184, 0
        %v7264 = vsel %vm5024, %v7185, 0
        %v7267 = vsel %vm5024, %v7186, 0
        %v7270 = vsel %vm5024, %v7187, 0
        %v7273 = vsel %vm5024, %v7188, 0
        %v7276 = vsel %vm5024, %v7189, 0
        %7278 = vmatprep.subr.mxu0 0.0
        %7279 = vmatpush1.msra.mxu0 %v7245
        %7280 = vmatprep.subr.mxu0 0.0
        %7281 = vmatpush1.msra.mxu0 %v7244
        %7282 = vmatprep.subr.mxu0 0.0
        %7283 = vmatpush1.msra.mxu0 %v7243
        %7284 = vmatprep.subr.mxu0 0.0
        %7285 = vmatpush1.msra.mxu0 %v7242
        %7286 = vmatprep.subr.mxu0 0.0
        %7287 = vmatpush1.msra.mxu0 %v7241
        %7288 = vmatprep.subr.mxu0 0.0
        %7289 = vmatpush1.msra.mxu0 %v7240
        %7290 = vmatprep.subr.mxu0 0.0
        %7291 = vmatpush1.msra.mxu0 %v7239
        %7292 = vmatprep.subr.mxu0 0.0
        %7293 = vmatpush1.msra.mxu0 %v7238
        %7294 = vmatprep.subr.mxu0 0.0
        %7295 = vmatpush1.msra.mxu0 %v7237
        %7296 = vmatprep.subr.mxu0 0.0
        %7297 = vmatpush1.msra.mxu0 %v7236
        %7298 = vmatprep.subr.mxu0 0.0
        %7299 = vmatpush1.msra.mxu0 %v7235
        %7300 = vmatprep.subr.mxu0 0.0
        %7301 = vmatpush1.msra.mxu0 %v7234
        %7302 = vmatprep.subr.mxu0 0.0
        %7303 = vmatpush1.msra.mxu0 %v7233
        %7304 = vmatprep.subr.mxu0 0.0
        %7305 = vmatpush1.msra.mxu0 %v7232
        %7306 = vmatprep.subr.mxu0 0.0
        %7307 = vmatpush1.msra.mxu0 %v7231
        %7308 = vmatprep.subr.mxu0 0.0
        %7309 = vmatpush1.msra.mxu0 %v7230
        %7310 = vmatprep.subr.mxu0 0.0
        %7311 = vmatpush2.msra.mxu0 0.0
        %7312 = vmatprep.subr.mxu0 0.0
        %7313 = vmatpush2.msra.mxu0 0.0
        %7314 = vmatprep.subr.mxu0 0.0
        %7315 = vmatpush2.msra.mxu0 0.0
        %7316 = vmatprep.subr.mxu0 0.0
        %7317 = vmatpush2.msra.mxu0 0.0
        %7318 = vmatprep.subr.mxu0 0.0
        %7319 = vmatpush2.msra.mxu0 0.0
        %7320 = vmatprep.subr.mxu0 0.0
        %7321 = vmatpush2.msra.mxu0 0.0
        %7322 = vmatprep.subr.mxu0 0.0
        %7323 = vmatpush2.msra.mxu0 0.0
        %7324 = vmatprep.subr.mxu0 0.0
        %7325 = vmatpush2.msra.mxu0 0.0
        %7326 = vmatprep.subr.mxu0 0.0
        %7327 = vmatpush2.msra.mxu0 %v7253
        %7328 = vmatprep.subr.mxu0 0.0
        %7329 = vmatpush2.msra.mxu0 %v7252
        %7330 = vmatprep.subr.mxu0 0.0
        %7331 = vmatpush2.msra.mxu0 %v7251
        %7332 = vmatprep.subr.mxu0 0.0
        %7333 = vmatpush2.msra.mxu0 %v7250
        %7334 = vmatprep.subr.mxu0 0.0
        %7335 = vmatpush2.msra.mxu0 %v7249
        %7336 = vmatprep.subr.mxu0 0.0
        %7337 = vmatpush2.msra.mxu0 %v7248
        %7338 = vmatprep.subr.mxu0 0.0
        %7339 = vmatpush2.msra.mxu0 %v7247
        %7340 = vmatprep.subr.mxu0 0.0
        %7341 = vmatpush2.msra.mxu0 %v7246
        %7342 = vmatprep.mubr.f32.mxu0 %v7255
        %7343 = vmatmul.mubr.f32.gmra.mxu0 %v7222
        %v7344 = vpop.f32.mrf.mxu0
        %v7345 = vadd.f32 0.0, %v7344
        %v7346 = vpop.f32.mrf.mxu0
        %7347 = vmatprep.mubr.f32.mxu0 %v7258
        %7348 = vmatmul.mubr.f32.gmra.mxu0 %v7223
        %v7349 = vpop.f32.mrf.mxu0
        %v7350 = vadd.f32 0.0, %v7349
        %v7351 = vpop.f32.mrf.mxu0
        %7352 = vmatprep.mubr.f32.mxu0 %v7261
        %7353 = vmatmul.mubr.f32.gmra.mxu0 %v7224
        %v7354 = vpop.f32.mrf.mxu0
        %v7355 = vadd.f32 0.0, %v7354
        %v7356 = vpop.f32.mrf.mxu0
        %7357 = vmatprep.mubr.f32.mxu0 %v7264
        %7358 = vmatmul.mubr.f32.gmra.mxu0 %v7225
        %v7359 = vpop.f32.mrf.mxu0
        %v7360 = vadd.f32 0.0, %v7359
        %v7361 = vpop.f32.mrf.mxu0
        %7362 = vmatprep.mubr.f32.mxu0 %v7267
        %7363 = vmatmul.mubr.f32.gmra.mxu0 %v7226
        %v7364 = vpop.f32.mrf.mxu0
        %v7365 = vadd.f32 0.0, %v7364
        %v7366 = vpop.f32.mrf.mxu0
        %7367 = vmatprep.mubr.f32.mxu0 %v7270
        %7368 = vmatmul.mubr.f32.gmra.mxu0 %v7227
        %v7369 = vpop.f32.mrf.mxu0
        %v7370 = vadd.f32 0.0, %v7369
        %v7371 = vpop.f32.mrf.mxu0
        %7372 = vmatprep.mubr.f32.mxu0 %v7273
        %7373 = vmatmul.mubr.f32.gmra.mxu0 %v7228
        %v7374 = vpop.f32.mrf.mxu0
        %v7375 = vadd.f32 0.0, %v7374
        %v7376 = vpop.f32.mrf.mxu0
        %7377 = vmatprep.mubr.f32.mxu0 %v7276
        %7378 = vmatmul.mubr.f32.gmra.mxu0 %v7229
        %v7379 = vpop.f32.mrf.mxu0
        %v7380 = vadd.f32 0.0, %v7379
        %v7381 = vpop.f32.mrf.mxu0
        %7382 = vdwg.mxu0
        %v7383 = vld [vmem:[%s37] sm:$0x1]
        %v7385 = vlaneseq
        %v7386 = vshrl.u32 %v7385, 7
        %v7387 = vsub.s32 0, %v7386
        %v7388 = vrot.slane %v7383, %v7387
        %v7390 = vmul.f32 %v7345, %v7388
        %v7391 = vmul.f32 %v7350, %v7388
        %v7392 = vmul.f32 %v7355, %v7388
        %v7393 = vmul.f32 %v7360, %v7388
        %v7394 = vmul.f32 %v7365, %v7388
        %v7395 = vmul.f32 %v7370, %v7388
        %v7396 = vmul.f32 %v7375, %v7388
        %v7397 = vmul.f32 %v7380, %v7388
        %v7398 = vld [vmem:[%s39] sm:$0x1]
        %v7400 = vlaneseq
        %v7401 = vshrl.u32 %v7400, 7
        %v7402 = vsub.s32 0, %v7401
        %v7403 = vrot.slane %v7398, %v7402
        %v7405 = vadd.f32 %v7390, %v7403
        %v7406 = vadd.f32 %v7391, %v7403
        %v7407 = vadd.f32 %v7392, %v7403
        %v7408 = vadd.f32 %v7393, %v7403
        %v7409 = vadd.f32 %v7394, %v7403
        %v7410 = vadd.f32 %v7395, %v7403
        %v7411 = vadd.f32 %v7396, %v7403
        %v7412 = vadd.f32 %v7397, %v7403
        %v7413 = vmax.f32 %v7405, 0.0
        %v7414 = vmax.f32 %v7406, 0.0
        %v7415 = vmax.f32 %v7407, 0.0
        %v7416 = vmax.f32 %v7408, 0.0
        %v7417 = vmax.f32 %v7409, 0.0
        %v7418 = vmax.f32 %v7410, 0.0
        %v7419 = vmax.f32 %v7411, 0.0
        %v7420 = vmax.f32 %v7412, 0.0
        %7421 = vst.msk [vmem:[#allocation6 + $0x1] sm:$0xff] %vm5024, %v7413
        %7422 = vst.msk [vmem:[#allocation6 + $0x9] sm:$0xff] %vm5024, %v7414
        %7423 = vst.msk [vmem:[#allocation6 + $0x11] sm:$0xff] %vm5024, %v7415
        %7424 = vst.msk [vmem:[#allocation6 + $0x19] sm:$0xff] %vm5024, %v7416
        %7425 = vst.msk [vmem:[#allocation6 + $0x21] sm:$0xff] %vm5024, %v7417
        %7426 = vst.msk [vmem:[#allocation6 + $0x29] sm:$0xff] %vm5024, %v7418
        %7427 = vst.msk [vmem:[#allocation6 + $0x31] sm:$0xff] %vm5024, %v7419
        %7428 = vst.msk [vmem:[#allocation6 + $0x39] sm:$0xff] %vm5024, %v7420
        %v7429 = vld [vmem:[#allocation6] sm:$0xff]
        %v7430 = vld [vmem:[#allocation6 + $0x8] sm:$0xff]
        %v7431 = vld [vmem:[#allocation6 + $0x10] sm:$0xff]
        %v7432 = vld [vmem:[#allocation6 + $0x18] sm:$0xff]
        %v7433 = vld [vmem:[#allocation6 + $0x20] sm:$0xff]
        %v7434 = vld [vmem:[#allocation6 + $0x28] sm:$0xff]
        %v7435 = vld [vmem:[#allocation6 + $0x30] sm:$0xff]
        %v7436 = vld [vmem:[#allocation6 + $0x38] sm:$0xff]
        %v7437 = vld [vmem:[#allocation6 + $0x1] sm:$0xff]
        %v7438 = vld [vmem:[#allocation6 + $0x9] sm:$0xff]
        %v7439 = vld [vmem:[#allocation6 + $0x11] sm:$0xff]
        %v7440 = vld [vmem:[#allocation6 + $0x19] sm:$0xff]
        %v7441 = vld [vmem:[#allocation6 + $0x21] sm:$0xff]
        %v7442 = vld [vmem:[#allocation6 + $0x29] sm:$0xff]
        %v7443 = vld [vmem:[#allocation6 + $0x31] sm:$0xff]
        %v7444 = vld [vmem:[#allocation6 + $0x39] sm:$0xff]
        %v7445 = vld [vmem:[#allocation6 + $0x2] sm:$0xff]
        %v7446 = vld [vmem:[#allocation6 + $0xa] sm:$0xff]
        %v7447 = vld [vmem:[#allocation6 + $0x12] sm:$0xff]
        %v7448 = vld [vmem:[#allocation6 + $0x1a] sm:$0xff]
        %v7449 = vld [vmem:[#allocation6 + $0x22] sm:$0xff]
        %v7450 = vld [vmem:[#allocation6 + $0x2a] sm:$0xff]
        %v7451 = vld [vmem:[#allocation6 + $0x32] sm:$0xff]
        %v7452 = vld [vmem:[#allocation6 + $0x3a] sm:$0xff]
        %7461 = vrot.lane.b32.xlu0 %v7437, 64
        %v7462 = vpop.permute.xlu0 %7461
        %7463 = vrot.lane.b32.xlu0 %v7438, 64
        %v7464 = vpop.permute.xlu0 %7463
        %7465 = vrot.lane.b32.xlu0 %v7439, 64
        %v7466 = vpop.permute.xlu0 %7465
        %7467 = vrot.lane.b32.xlu0 %v7440, 64
        %v7468 = vpop.permute.xlu0 %7467
        %7469 = vrot.lane.b32.xlu0 %v7441, 64
        %v7470 = vpop.permute.xlu0 %7469
        %7471 = vrot.lane.b32.xlu0 %v7442, 64
        %v7472 = vpop.permute.xlu0 %7471
        %7473 = vrot.lane.b32.xlu0 %v7443, 64
        %v7474 = vpop.permute.xlu0 %7473
        %7475 = vrot.lane.b32.xlu0 %v7444, 64
        %v7476 = vpop.permute.xlu0 %7475
        %v7485 = vsel %vm5024, %v7429, %v7462
        %v7486 = vsel %vm5024, %v7430, %v7464
        %v7487 = vsel %vm5024, %v7431, %v7466
        %v7488 = vsel %vm5024, %v7432, %v7468
        %v7489 = vsel %vm5024, %v7433, %v7470
        %v7490 = vsel %vm5024, %v7434, %v7472
        %v7491 = vsel %vm5024, %v7435, %v7474
        %v7492 = vsel %vm5024, %v7436, %v7476
        %v7493 = vld [vmem:[%s41] sm:$0xff]
        %v7494 = vld [vmem:[%s41 + $0x8] sm:$0xff]
        %v7495 = vld [vmem:[%s41 + $0x10] sm:$0xff]
        %v7496 = vld [vmem:[%s41 + $0x18] sm:$0xff]
        %v7497 = vld [vmem:[%s41 + $0x20] sm:$0xff]
        %v7498 = vld [vmem:[%s41 + $0x28] sm:$0xff]
        %v7499 = vld [vmem:[%s41 + $0x30] sm:$0xff]
        %v7500 = vld [vmem:[%s41 + $0x38] sm:$0xff]
        %v7501 = vld [vmem:[%s41 + $0x40] sm:$0xff]
        %v7502 = vld [vmem:[%s41 + $0x48] sm:$0xff]
        %v7503 = vld [vmem:[%s41 + $0x50] sm:$0xff]
        %v7504 = vld [vmem:[%s41 + $0x58] sm:$0xff]
        %v7505 = vld [vmem:[%s41 + $0x60] sm:$0xff]
        %v7506 = vld [vmem:[%s41 + $0x68] sm:$0xff]
        %v7507 = vld [vmem:[%s41 + $0x70] sm:$0xff]
        %v7508 = vld [vmem:[%s41 + $0x78] sm:$0xff]
        %v7509 = vld [vmem:[%s41 + $0x80] sm:$0xff]
        %v7510 = vld [vmem:[%s41 + $0x88] sm:$0xff]
        %v7511 = vld [vmem:[%s41 + $0x90] sm:$0xff]
        %v7512 = vld [vmem:[%s41 + $0x98] sm:$0xff]
        %v7513 = vld [vmem:[%s41 + $0xa0] sm:$0xff]
        %v7514 = vld [vmem:[%s41 + $0xa8] sm:$0xff]
        %v7515 = vld [vmem:[%s41 + $0xb0] sm:$0xff]
        %v7516 = vld [vmem:[%s41 + $0xb8] sm:$0xff]
        %v7517 = vld [vmem:[#allocation5 + $0x1] sm:$0xff]
        %v7518 = vld [vmem:[#allocation5 + $0x9] sm:$0xff]
        %v7519 = vld [vmem:[#allocation5 + $0x11] sm:$0xff]
        %v7520 = vld [vmem:[#allocation5 + $0x19] sm:$0xff]
        %v7521 = vld [vmem:[#allocation5 + $0x21] sm:$0xff]
        %v7522 = vld [vmem:[#allocation5 + $0x29] sm:$0xff]
        %v7523 = vld [vmem:[#allocation5 + $0x31] sm:$0xff]
        %v7524 = vld [vmem:[#allocation5 + $0x39] sm:$0xff]
        %v7525 = vld [vmem:[%s43] sm:$0xff]
        %v7526 = vld [vmem:[%s43 + $0x8] sm:$0xff]
        %v7527 = vld [vmem:[%s43 + $0x10] sm:$0xff]
        %v7528 = vld [vmem:[%s43 + $0x18] sm:$0xff]
        %v7530 = vsel %vm4137, %v7517, 0
        %v7533 = vsel %vm4137, %v7518, 0
        %v7536 = vsel %vm4137, %v7519, 0
        %v7539 = vsel %vm4137, %v7520, 0
        %v7542 = vsel %vm4137, %v7521, 0
        %v7545 = vsel %vm4137, %v7522, 0
        %v7548 = vsel %vm4137, %v7523, 0
        %v7551 = vsel %vm4137, %v7524, 0
        %7553 = vmatprep.subr.mxu0 0.0
        %7554 = vmatpush1.msra.mxu0 0.0
        %7555 = vmatprep.subr.mxu0 0.0
        %7556 = vmatpush1.msra.mxu0 0.0
        %7557 = vmatprep.subr.mxu0 0.0
        %7558 = vmatpush1.msra.mxu0 0.0
        %7559 = vmatprep.subr.mxu0 0.0
        %7560 = vmatpush1.msra.mxu0 0.0
        %7561 = vmatprep.subr.mxu0 0.0
        %7562 = vmatpush1.msra.mxu0 0.0
        %7563 = vmatprep.subr.mxu0 0.0
        %7564 = vmatpush1.msra.mxu0 0.0
        %7565 = vmatprep.subr.mxu0 0.0
        %7566 = vmatpush1.msra.mxu0 0.0
        %7567 = vmatprep.subr.mxu0 0.0
        %7568 = vmatpush1.msra.mxu0 0.0
        %7569 = vmatprep.subr.mxu0 0.0
        %7570 = vmatpush1.msra.mxu0 0.0
        %7571 = vmatprep.subr.mxu0 0.0
        %7572 = vmatpush1.msra.mxu0 0.0
        %7573 = vmatprep.subr.mxu0 0.0
        %7574 = vmatpush1.msra.mxu0 0.0
        %7575 = vmatprep.subr.mxu0 0.0
        %7576 = vmatpush1.msra.mxu0 0.0
        %7577 = vmatprep.subr.mxu0 0.0
        %7578 = vmatpush1.msra.mxu0 %v7528
        %7579 = vmatprep.subr.mxu0 0.0
        %7580 = vmatpush1.msra.mxu0 %v7527
        %7581 = vmatprep.subr.mxu0 0.0
        %7582 = vmatpush1.msra.mxu0 %v7526
        %7583 = vmatprep.subr.mxu0 0.0
        %7584 = vmatpush1.msra.mxu0 %v7525
        %7585 = vmatprep.subr.mxu0 0.0
        %7586 = vmatpush2.msra.mxu0 0.0
        %7587 = vmatprep.subr.mxu0 0.0
        %7588 = vmatpush2.msra.mxu0 0.0
        %7589 = vmatprep.subr.mxu0 0.0
        %7590 = vmatpush2.msra.mxu0 0.0
        %7591 = vmatprep.subr.mxu0 0.0
        %7592 = vmatpush2.msra.mxu0 0.0
        %7593 = vmatprep.subr.mxu0 0.0
        %7594 = vmatpush2.msra.mxu0 0.0
        %7595 = vmatprep.subr.mxu0 0.0
        %7596 = vmatpush2.msra.mxu0 0.0
        %7597 = vmatprep.subr.mxu0 0.0
        %7598 = vmatpush2.msra.mxu0 0.0
        %7599 = vmatprep.subr.mxu0 0.0
        %7600 = vmatpush2.msra.mxu0 0.0
        %7601 = vmatprep.subr.mxu0 0.0
        %7602 = vmatpush2.msra.mxu0 0.0
        %7603 = vmatprep.subr.mxu0 0.0
        %7604 = vmatpush2.msra.mxu0 0.0
        %7605 = vmatprep.subr.mxu0 0.0
        %7606 = vmatpush2.msra.mxu0 0.0
        %7607 = vmatprep.subr.mxu0 0.0
        %7608 = vmatpush2.msra.mxu0 0.0
        %7609 = vmatprep.subr.mxu0 0.0
        %7610 = vmatpush2.msra.mxu0 0.0
        %7611 = vmatprep.subr.mxu0 0.0
        %7612 = vmatpush2.msra.mxu0 0.0
        %7613 = vmatprep.subr.mxu0 0.0
        %7614 = vmatpush2.msra.mxu0 0.0
        %7615 = vmatprep.subr.mxu0 0.0
        %7616 = vmatpush2.msra.mxu0 0.0
        %7617 = vmatprep.mubr.f32.mxu0 0.0
        %7618 = vmatmul.mubr.f32.gmra.mxu0 %v7530
        %v7619 = vpop.f32.mrf.mxu0
        %v7620 = vadd.f32 0.0, %v7619
        %v7621 = vpop.f32.mrf.mxu0
        %7622 = vmatprep.mubr.f32.mxu0 0.0
        %7623 = vmatmul.mubr.f32.gmra.mxu0 %v7533
        %v7624 = vpop.f32.mrf.mxu0
        %v7625 = vadd.f32 0.0, %v7624
        %v7626 = vpop.f32.mrf.mxu0
        %7627 = vmatprep.mubr.f32.mxu0 0.0
        %7628 = vmatmul.mubr.f32.gmra.mxu0 %v7536
        %v7629 = vpop.f32.mrf.mxu0
        %v7630 = vadd.f32 0.0, %v7629
        %v7631 = vpop.f32.mrf.mxu0
        %7632 = vmatprep.mubr.f32.mxu0 0.0
        %7633 = vmatmul.mubr.f32.gmra.mxu0 %v7539
        %v7634 = vpop.f32.mrf.mxu0
        %v7635 = vadd.f32 0.0, %v7634
        %v7636 = vpop.f32.mrf.mxu0
        %7637 = vmatprep.mubr.f32.mxu0 0.0
        %7638 = vmatmul.mubr.f32.gmra.mxu0 %v7542
        %v7639 = vpop.f32.mrf.mxu0
        %v7640 = vadd.f32 0.0, %v7639
        %v7641 = vpop.f32.mrf.mxu0
        %7642 = vmatprep.mubr.f32.mxu0 0.0
        %7643 = vmatmul.mubr.f32.gmra.mxu0 %v7545
        %v7644 = vpop.f32.mrf.mxu0
        %v7645 = vadd.f32 0.0, %v7644
        %v7646 = vpop.f32.mrf.mxu0
        %7647 = vmatprep.mubr.f32.mxu0 0.0
        %7648 = vmatmul.mubr.f32.gmra.mxu0 %v7548
        %v7649 = vpop.f32.mrf.mxu0
        %v7650 = vadd.f32 0.0, %v7649
        %v7651 = vpop.f32.mrf.mxu0
        %7652 = vmatprep.mubr.f32.mxu0 0.0
        %7653 = vmatmul.mubr.f32.gmra.mxu0 %v7551
        %v7654 = vpop.f32.mrf.mxu0
        %v7655 = vadd.f32 0.0, %v7654
        %v7656 = vpop.f32.mrf.mxu0
        %7657 = vdwg.mxu0
        %v7659 = vsel %vm5024, %v7445, 0
        %v7662 = vsel %vm5024, %v7446, 0
        %v7665 = vsel %vm5024, %v7447, 0
        %v7668 = vsel %vm5024, %v7448, 0
        %v7671 = vsel %vm5024, %v7449, 0
        %v7674 = vsel %vm5024, %v7450, 0
        %v7677 = vsel %vm5024, %v7451, 0
        %v7680 = vsel %vm5024, %v7452, 0
        %7682 = vmatprep.subr.mxu0 0.0
        %7683 = vmatpush1.msra.mxu0 %v7508
        %7684 = vmatprep.subr.mxu0 0.0
        %7685 = vmatpush1.msra.mxu0 %v7507
        %7686 = vmatprep.subr.mxu0 0.0
        %7687 = vmatpush1.msra.mxu0 %v7506
        %7688 = vmatprep.subr.mxu0 0.0
        %7689 = vmatpush1.msra.mxu0 %v7505
        %7690 = vmatprep.subr.mxu0 0.0
        %7691 = vmatpush1.msra.mxu0 %v7504
        %7692 = vmatprep.subr.mxu0 0.0
        %7693 = vmatpush1.msra.mxu0 %v7503
        %7694 = vmatprep.subr.mxu0 0.0
        %7695 = vmatpush1.msra.mxu0 %v7502
        %7696 = vmatprep.subr.mxu0 0.0
        %7697 = vmatpush1.msra.mxu0 %v7501
        %7698 = vmatprep.subr.mxu0 0.0
        %7699 = vmatpush1.msra.mxu0 %v7500
        %7700 = vmatprep.subr.mxu0 0.0
        %7701 = vmatpush1.msra.mxu0 %v7499
        %7702 = vmatprep.subr.mxu0 0.0
        %7703 = vmatpush1.msra.mxu0 %v7498
        %7704 = vmatprep.subr.mxu0 0.0
        %7705 = vmatpush1.msra.mxu0 %v7497
        %7706 = vmatprep.subr.mxu0 0.0
        %7707 = vmatpush1.msra.mxu0 %v7496
        %7708 = vmatprep.subr.mxu0 0.0
        %7709 = vmatpush1.msra.mxu0 %v7495
        %7710 = vmatprep.subr.mxu0 0.0
        %7711 = vmatpush1.msra.mxu0 %v7494
        %7712 = vmatprep.subr.mxu0 0.0
        %7713 = vmatpush1.msra.mxu0 %v7493
        %7714 = vmatprep.subr.mxu0 0.0
        %7715 = vmatpush2.msra.mxu0 0.0
        %7716 = vmatprep.subr.mxu0 0.0
        %7717 = vmatpush2.msra.mxu0 0.0
        %7718 = vmatprep.subr.mxu0 0.0
        %7719 = vmatpush2.msra.mxu0 0.0
        %7720 = vmatprep.subr.mxu0 0.0
        %7721 = vmatpush2.msra.mxu0 0.0
        %7722 = vmatprep.subr.mxu0 0.0
        %7723 = vmatpush2.msra.mxu0 0.0
        %7724 = vmatprep.subr.mxu0 0.0
        %7725 = vmatpush2.msra.mxu0 0.0
        %7726 = vmatprep.subr.mxu0 0.0
        %7727 = vmatpush2.msra.mxu0 0.0
        %7728 = vmatprep.subr.mxu0 0.0
        %7729 = vmatpush2.msra.mxu0 0.0
        %7730 = vmatprep.subr.mxu0 0.0
        %7731 = vmatpush2.msra.mxu0 %v7516
        %7732 = vmatprep.subr.mxu0 0.0
        %7733 = vmatpush2.msra.mxu0 %v7515
        %7734 = vmatprep.subr.mxu0 0.0
        %7735 = vmatpush2.msra.mxu0 %v7514
        %7736 = vmatprep.subr.mxu0 0.0
        %7737 = vmatpush2.msra.mxu0 %v7513
        %7738 = vmatprep.subr.mxu0 0.0
        %7739 = vmatpush2.msra.mxu0 %v7512
        %7740 = vmatprep.subr.mxu0 0.0
        %7741 = vmatpush2.msra.mxu0 %v7511
        %7742 = vmatprep.subr.mxu0 0.0
        %7743 = vmatpush2.msra.mxu0 %v7510
        %7744 = vmatprep.subr.mxu0 0.0
        %7745 = vmatpush2.msra.mxu0 %v7509
        %7746 = vmatprep.mubr.f32.mxu0 %v7659
        %7747 = vmatmul.mubr.f32.gmra.mxu0 %v7485
        %v7748 = vpop.f32.mrf.mxu0
        %v7749 = vadd.f32 %v7620, %v7748
        %v7750 = vpop.f32.mrf.mxu0
        %7751 = vmatprep.mubr.f32.mxu0 %v7662
        %7752 = vmatmul.mubr.f32.gmra.mxu0 %v7486
        %v7753 = vpop.f32.mrf.mxu0
        %v7754 = vadd.f32 %v7625, %v7753
        %v7755 = vpop.f32.mrf.mxu0
        %7756 = vmatprep.mubr.f32.mxu0 %v7665
        %7757 = vmatmul.mubr.f32.gmra.mxu0 %v7487
        %v7758 = vpop.f32.mrf.mxu0
        %v7759 = vadd.f32 %v7630, %v7758
        %v7760 = vpop.f32.mrf.mxu0
        %7761 = vmatprep.mubr.f32.mxu0 %v7668
        %7762 = vmatmul.mubr.f32.gmra.mxu0 %v7488
        %v7763 = vpop.f32.mrf.mxu0
        %v7764 = vadd.f32 %v7635, %v7763
        %v7765 = vpop.f32.mrf.mxu0
        %7766 = vmatprep.mubr.f32.mxu0 %v7671
        %7767 = vmatmul.mubr.f32.gmra.mxu0 %v7489
        %v7768 = vpop.f32.mrf.mxu0
        %v7769 = vadd.f32 %v7640, %v7768
        %v7770 = vpop.f32.mrf.mxu0
        %7771 = vmatprep.mubr.f32.mxu0 %v7674
        %7772 = vmatmul.mubr.f32.gmra.mxu0 %v7490
        %v7773 = vpop.f32.mrf.mxu0
        %v7774 = vadd.f32 %v7645, %v7773
        %v7775 = vpop.f32.mrf.mxu0
        %7776 = vmatprep.mubr.f32.mxu0 %v7677
        %7777 = vmatmul.mubr.f32.gmra.mxu0 %v7491
        %v7778 = vpop.f32.mrf.mxu0
        %v7779 = vadd.f32 %v7650, %v7778
        %v7780 = vpop.f32.mrf.mxu0
        %7781 = vmatprep.mubr.f32.mxu0 %v7680
        %7782 = vmatmul.mubr.f32.gmra.mxu0 %v7492
        %v7783 = vpop.f32.mrf.mxu0
        %v7784 = vadd.f32 %v7655, %v7783
        %v7785 = vpop.f32.mrf.mxu0
        %7786 = vdwg.mxu0
        %v7787 = vld [vmem:[%s45] sm:$0x1]
        %v7789 = vlaneseq
        %v7790 = vshrl.u32 %v7789, 7
        %v7791 = vsub.s32 0, %v7790
        %v7792 = vrot.slane %v7787, %v7791
        %v7794 = vmul.f32 %v7749, %v7792
        %v7795 = vmul.f32 %v7754, %v7792
        %v7796 = vmul.f32 %v7759, %v7792
        %v7797 = vmul.f32 %v7764, %v7792
        %v7798 = vmul.f32 %v7769, %v7792
        %v7799 = vmul.f32 %v7774, %v7792
        %v7800 = vmul.f32 %v7779, %v7792
        %v7801 = vmul.f32 %v7784, %v7792
        %v7802 = vld [vmem:[%s47] sm:$0x1]
        %v7804 = vlaneseq
        %v7805 = vshrl.u32 %v7804, 7
        %v7806 = vsub.s32 0, %v7805
        %v7807 = vrot.slane %v7802, %v7806
        %v7809 = vadd.f32 %v7794, %v7807
        %v7810 = vadd.f32 %v7795, %v7807
        %v7811 = vadd.f32 %v7796, %v7807
        %v7812 = vadd.f32 %v7797, %v7807
        %v7813 = vadd.f32 %v7798, %v7807
        %v7814 = vadd.f32 %v7799, %v7807
        %v7815 = vadd.f32 %v7800, %v7807
        %v7816 = vadd.f32 %v7801, %v7807
        %v7817 = vmax.f32 %v7809, 0.0
        %v7818 = vmax.f32 %v7810, 0.0
        %v7819 = vmax.f32 %v7811, 0.0
        %v7820 = vmax.f32 %v7812, 0.0
        %v7821 = vmax.f32 %v7813, 0.0
        %v7822 = vmax.f32 %v7814, 0.0
        %v7823 = vmax.f32 %v7815, 0.0
        %v7824 = vmax.f32 %v7816, 0.0
        %7825 = vst.msk [vmem:[#allocation6 + $0x1] sm:$0xff] %vm5024, %v7817
        %7826 = vst.msk [vmem:[#allocation6 + $0x9] sm:$0xff] %vm5024, %v7818
        %7827 = vst.msk [vmem:[#allocation6 + $0x11] sm:$0xff] %vm5024, %v7819
        %7828 = vst.msk [vmem:[#allocation6 + $0x19] sm:$0xff] %vm5024, %v7820
        %7829 = vst.msk [vmem:[#allocation6 + $0x21] sm:$0xff] %vm5024, %v7821
        %7830 = vst.msk [vmem:[#allocation6 + $0x29] sm:$0xff] %vm5024, %v7822
        %7831 = vst.msk [vmem:[#allocation6 + $0x31] sm:$0xff] %vm5024, %v7823
        %7832 = vst.msk [vmem:[#allocation6 + $0x39] sm:$0xff] %vm5024, %v7824
        %s7833 = scalar_lea.vmem [#allocation6], 1
        %v7834 = vld [vmem:[%s7833] ss:$4 sm:$0xff]
        %s7835 = scalar_lea.vmem [#allocation6], 33
        %v7836 = vld [vmem:[%s7835] ss:$4 sm:$0xff]
        %s7837 = scalar_lea.vmem [#allocation6], 2
        %v7838 = vld [vmem:[%s7837] ss:$4 sm:$0xff]
        %s7839 = scalar_lea.vmem [#allocation6], 34
        %v7840 = vld [vmem:[%s7839] ss:$4 sm:$0xff]
        %v7841 = vmax.f32 %v7834, %v7838
        %v7842 = vmax.f32 %v7836, %v7840
        %s7843 = scalar_lea.vmem [#allocation6], 3
        %v7844 = vld [vmem:[%s7843] ss:$4 sm:$0xff]
        %s7845 = scalar_lea.vmem [#allocation6], 35
        %v7846 = vld [vmem:[%s7845] ss:$4 sm:$0xff]
        %v7847 = vmax.f32 %v7841, %v7844
        %v7848 = vmax.f32 %v7842, %v7846
        %s7849 = scalar_lea.vmem [#allocation6], 4
        %v7850 = vld [vmem:[%s7849] ss:$4 sm:$0xff]
        %s7851 = scalar_lea.vmem [#allocation6], 36
        %v7852 = vld [vmem:[%s7851] ss:$4 sm:$0xff]
        %v7853 = vmax.f32 %v7847, %v7850
        %v7854 = vmax.f32 %v7848, %v7852
        %7855 = vst.msk [vmem:[#allocation7 + $0x1] sm:$0xff] %vm5024, %v7853
        %7856 = vst.msk [vmem:[#allocation7 + $0x9] sm:$0xff] %vm5024, %v7854
        %v7857 = vld [vmem:[#allocation7] sm:$0xff]
        %v7858 = vld [vmem:[#allocation7 + $0x8] sm:$0xff]
        %v7859 = vld [vmem:[#allocation7 + $0x1] sm:$0xff]
        %v7860 = vld [vmem:[#allocation7 + $0x9] sm:$0xff]
        %v7861 = vld [vmem:[#allocation7 + $0x2] sm:$0xff]
        %v7862 = vld [vmem:[#allocation7 + $0xa] sm:$0xff]
        %7865 = vrot.lane.b32.xlu0 %v7859, 64
        %v7866 = vpop.permute.xlu0 %7865
        %7867 = vrot.lane.b32.xlu0 %v7860, 64
        %v7868 = vpop.permute.xlu0 %7867
        %v7871 = vsel %vm5024, %v7857, %v7866
        %v7872 = vsel %vm5024, %v7858, %v7868
        %v7873 = vld [vmem:[%s49] sm:$0xff]
        %v7874 = vld [vmem:[%s49 + $0x8] sm:$0xff]
        %v7875 = vld [vmem:[%s49 + $0x10] sm:$0xff]
        %v7876 = vld [vmem:[%s49 + $0x18] sm:$0xff]
        %v7877 = vld [vmem:[%s49 + $0x20] sm:$0xff]
        %v7878 = vld [vmem:[%s49 + $0x28] sm:$0xff]
        %v7879 = vld [vmem:[%s49 + $0x30] sm:$0xff]
        %v7880 = vld [vmem:[%s49 + $0x38] sm:$0xff]
        %v7881 = vld [vmem:[%s49 + $0x40] sm:$0xff]
        %v7882 = vld [vmem:[%s49 + $0x48] sm:$0xff]
        %v7883 = vld [vmem:[%s49 + $0x50] sm:$0xff]
        %v7884 = vld [vmem:[%s49 + $0x58] sm:$0xff]
        %v7885 = vld [vmem:[%s49 + $0x60] sm:$0xff]
        %v7886 = vld [vmem:[%s49 + $0x68] sm:$0xff]
        %v7887 = vld [vmem:[%s49 + $0x70] sm:$0xff]
        %v7888 = vld [vmem:[%s49 + $0x78] sm:$0xff]
        %v7889 = vld [vmem:[%s49 + $0x80] sm:$0xff]
        %v7890 = vld [vmem:[%s49 + $0x88] sm:$0xff]
        %v7891 = vld [vmem:[%s49 + $0x90] sm:$0xff]
        %v7892 = vld [vmem:[%s49 + $0x98] sm:$0xff]
        %v7893 = vld [vmem:[%s49 + $0xa0] sm:$0xff]
        %v7894 = vld [vmem:[%s49 + $0xa8] sm:$0xff]
        %v7895 = vld [vmem:[%s49 + $0xb0] sm:$0xff]
        %v7896 = vld [vmem:[%s49 + $0xb8] sm:$0xff]
        %v7898 = vsel %vm5024, %v7861, 0
        %v7901 = vsel %vm5024, %v7862, 0
        %7903 = vmatprep.subr.mxu0 0.0
        %7904 = vmatpush1.msra.mxu0 %v7888
        %7905 = vmatprep.subr.mxu0 0.0
        %7906 = vmatpush1.msra.mxu0 %v7887
        %7907 = vmatprep.subr.mxu0 0.0
        %7908 = vmatpush1.msra.mxu0 %v7886
        %7909 = vmatprep.subr.mxu0 0.0
        %7910 = vmatpush1.msra.mxu0 %v7885
        %7911 = vmatprep.subr.mxu0 0.0
        %7912 = vmatpush1.msra.mxu0 %v7884
        %7913 = vmatprep.subr.mxu0 0.0
        %7914 = vmatpush1.msra.mxu0 %v7883
        %7915 = vmatprep.subr.mxu0 0.0
        %7916 = vmatpush1.msra.mxu0 %v7882
        %7917 = vmatprep.subr.mxu0 0.0
        %7918 = vmatpush1.msra.mxu0 %v7881
        %7919 = vmatprep.subr.mxu0 0.0
        %7920 = vmatpush1.msra.mxu0 %v7880
        %7921 = vmatprep.subr.mxu0 0.0
        %7922 = vmatpush1.msra.mxu0 %v7879
        %7923 = vmatprep.subr.mxu0 0.0
        %7924 = vmatpush1.msra.mxu0 %v7878
        %7925 = vmatprep.subr.mxu0 0.0
        %7926 = vmatpush1.msra.mxu0 %v7877
        %7927 = vmatprep.subr.mxu0 0.0
        %7928 = vmatpush1.msra.mxu0 %v7876
        %7929 = vmatprep.subr.mxu0 0.0
        %7930 = vmatpush1.msra.mxu0 %v7875
        %7931 = vmatprep.subr.mxu0 0.0
        %7932 = vmatpush1.msra.mxu0 %v7874
        %7933 = vmatprep.subr.mxu0 0.0
        %7934 = vmatpush1.msra.mxu0 %v7873
        %7935 = vmatprep.subr.mxu0 0.0
        %7936 = vmatpush2.msra.mxu0 0.0
        %7937 = vmatprep.subr.mxu0 0.0
        %7938 = vmatpush2.msra.mxu0 0.0
        %7939 = vmatprep.subr.mxu0 0.0
        %7940 = vmatpush2.msra.mxu0 0.0
        %7941 = vmatprep.subr.mxu0 0.0
        %7942 = vmatpush2.msra.mxu0 0.0
        %7943 = vmatprep.subr.mxu0 0.0
        %7944 = vmatpush2.msra.mxu0 0.0
        %7945 = vmatprep.subr.mxu0 0.0
        %7946 = vmatpush2.msra.mxu0 0.0
        %7947 = vmatprep.subr.mxu0 0.0
        %7948 = vmatpush2.msra.mxu0 0.0
        %7949 = vmatprep.subr.mxu0 0.0
        %7950 = vmatpush2.msra.mxu0 0.0
        %7951 = vmatprep.subr.mxu0 0.0
        %7952 = vmatpush2.msra.mxu0 %v7896
        %7953 = vmatprep.subr.mxu0 0.0
        %7954 = vmatpush2.msra.mxu0 %v7895
        %7955 = vmatprep.subr.mxu0 0.0
        %7956 = vmatpush2.msra.mxu0 %v7894
        %7957 = vmatprep.subr.mxu0 0.0
        %7958 = vmatpush2.msra.mxu0 %v7893
        %7959 = vmatprep.subr.mxu0 0.0
        %7960 = vmatpush2.msra.mxu0 %v7892
        %7961 = vmatprep.subr.mxu0 0.0
        %7962 = vmatpush2.msra.mxu0 %v7891
        %7963 = vmatprep.subr.mxu0 0.0
        %7964 = vmatpush2.msra.mxu0 %v7890
        %7965 = vmatprep.subr.mxu0 0.0
        %7966 = vmatpush2.msra.mxu0 %v7889
        %7967 = vmatprep.mubr.f32.mxu0 %v7898
        %7968 = vmatmul.mubr.f32.gmra.mxu0 %v7871
        %v7969 = vpop.f32.mrf.mxu0
        %v7970 = vadd.f32 0.0, %v7969
        %v7971 = vpop.f32.mrf.mxu0
        %7972 = vmatprep.mubr.f32.mxu0 %v7901
        %7973 = vmatmul.mubr.f32.gmra.mxu0 %v7872
        %v7974 = vpop.f32.mrf.mxu0
        %v7975 = vadd.f32 0.0, %v7974
        %v7976 = vpop.f32.mrf.mxu0
        %7977 = vdwg.mxu0
        %v7978 = vld [vmem:[%s51] sm:$0x1]
        %v7980 = vlaneseq
        %v7981 = vshrl.u32 %v7980, 7
        %v7982 = vsub.s32 0, %v7981
        %v7983 = vrot.slane %v7978, %v7982
        %v7985 = vmul.f32 %v7970, %v7983
        %v7986 = vmul.f32 %v7975, %v7983
        %v7987 = vld [vmem:[%s53] sm:$0x1]
        %v7989 = vlaneseq
        %v7990 = vshrl.u32 %v7989, 7
        %v7991 = vsub.s32 0, %v7990
        %v7992 = vrot.slane %v7987, %v7991
        %v7994 = vadd.f32 %v7985, %v7992
        %v7995 = vadd.f32 %v7986, %v7992
        %v7996 = vmax.f32 %v7994, 0.0
        %v7997 = vmax.f32 %v7995, 0.0
        %7998 = vst [vmem:[#allocation8 + $0x1] sm:$0xff] %v7996
        %7999 = vst [vmem:[#allocation8 + $0x9] sm:$0xff] %v7997
        %v8000 = vld [vmem:[#allocation8] sm:$0xff]
        %v8001 = vld [vmem:[#allocation8 + $0x8] sm:$0xff]
        %v8002 = vld [vmem:[#allocation8 + $0x1] sm:$0xff]
        %v8003 = vld [vmem:[#allocation8 + $0x9] sm:$0xff]
        %v8004 = vld [vmem:[#allocation8 + $0x2] sm:$0xff]
        %v8005 = vld [vmem:[#allocation8 + $0xa] sm:$0xff]
        %v8006 = vld [vmem:[%s55] sm:$0xff]
        %v8007 = vld [vmem:[%s55 + $0x8] sm:$0xff]
        %v8008 = vld [vmem:[%s55 + $0x10] sm:$0xff]
        %v8009 = vld [vmem:[%s55 + $0x18] sm:$0xff]
        %v8010 = vld [vmem:[%s55 + $0x20] sm:$0xff]
        %v8011 = vld [vmem:[%s55 + $0x28] sm:$0xff]
        %v8012 = vld [vmem:[%s55 + $0x30] sm:$0xff]
        %v8013 = vld [vmem:[%s55 + $0x38] sm:$0xff]
        %v8014 = vld [vmem:[%s55 + $0x40] sm:$0xff]
        %v8015 = vld [vmem:[%s55 + $0x48] sm:$0xff]
        %v8016 = vld [vmem:[%s55 + $0x50] sm:$0xff]
        %v8017 = vld [vmem:[%s55 + $0x58] sm:$0xff]
        %v8018 = vld [vmem:[%s55 + $0x60] sm:$0xff]
        %v8019 = vld [vmem:[%s55 + $0x68] sm:$0xff]
        %v8020 = vld [vmem:[%s55 + $0x70] sm:$0xff]
        %v8021 = vld [vmem:[%s55 + $0x78] sm:$0xff]
        %v8022 = vld [vmem:[%s55 + $0x80] sm:$0xff]
        %v8023 = vld [vmem:[%s55 + $0x88] sm:$0xff]
        %v8024 = vld [vmem:[%s55 + $0x90] sm:$0xff]
        %v8025 = vld [vmem:[%s55 + $0x98] sm:$0xff]
        %v8026 = vld [vmem:[%s55 + $0xa0] sm:$0xff]
        %v8027 = vld [vmem:[%s55 + $0xa8] sm:$0xff]
        %v8028 = vld [vmem:[%s55 + $0xb0] sm:$0xff]
        %v8029 = vld [vmem:[%s55 + $0xb8] sm:$0xff]
        %v8030 = vld [vmem:[%s55 + $0xc0] sm:$0xff]
        %v8031 = vld [vmem:[%s55 + $0xc8] sm:$0xff]
        %v8032 = vld [vmem:[%s55 + $0xd0] sm:$0xff]
        %v8033 = vld [vmem:[%s55 + $0xd8] sm:$0xff]
        %v8034 = vld [vmem:[%s55 + $0xe0] sm:$0xff]
        %v8035 = vld [vmem:[%s55 + $0xe8] sm:$0xff]
        %v8036 = vld [vmem:[%s55 + $0xf0] sm:$0xff]
        %v8037 = vld [vmem:[%s55 + $0xf8] sm:$0xff]
        %v8038 = vld [vmem:[%s55 + $0x100] sm:$0xff]
        %v8039 = vld [vmem:[%s55 + $0x108] sm:$0xff]
        %v8040 = vld [vmem:[%s55 + $0x110] sm:$0xff]
        %v8041 = vld [vmem:[%s55 + $0x118] sm:$0xff]
        %v8042 = vld [vmem:[%s55 + $0x120] sm:$0xff]
        %v8043 = vld [vmem:[%s55 + $0x128] sm:$0xff]
        %v8044 = vld [vmem:[%s55 + $0x130] sm:$0xff]
        %v8045 = vld [vmem:[%s55 + $0x138] sm:$0xff]
        %v8046 = vld [vmem:[%s55 + $0x140] sm:$0xff]
        %v8047 = vld [vmem:[%s55 + $0x148] sm:$0xff]
        %v8048 = vld [vmem:[%s55 + $0x150] sm:$0xff]
        %v8049 = vld [vmem:[%s55 + $0x158] sm:$0xff]
        %v8050 = vld [vmem:[%s55 + $0x160] sm:$0xff]
        %v8051 = vld [vmem:[%s55 + $0x168] sm:$0xff]
        %v8052 = vld [vmem:[%s55 + $0x170] sm:$0xff]
        %v8053 = vld [vmem:[%s55 + $0x178] sm:$0xff]
        %8054 = vmatprep.subr.mxu0 0.0
        %8055 = vmatpush1.msra.mxu0 %v8021
        %8056 = vmatprep.subr.mxu0 0.0
        %8057 = vmatpush1.msra.mxu0 %v8020
        %8058 = vmatprep.subr.mxu0 0.0
        %8059 = vmatpush1.msra.mxu0 %v8019
        %8060 = vmatprep.subr.mxu0 0.0
        %8061 = vmatpush1.msra.mxu0 %v8018
        %8062 = vmatprep.subr.mxu0 0.0
        %8063 = vmatpush1.msra.mxu0 %v8017
        %8064 = vmatprep.subr.mxu0 0.0
        %8065 = vmatpush1.msra.mxu0 %v8016
        %8066 = vmatprep.subr.mxu0 0.0
        %8067 = vmatpush1.msra.mxu0 %v8015
        %8068 = vmatprep.subr.mxu0 0.0
        %8069 = vmatpush1.msra.mxu0 %v8014
        %8070 = vmatprep.subr.mxu0 0.0
        %8071 = vmatpush1.msra.mxu0 %v8013
        %8072 = vmatprep.subr.mxu0 0.0
        %8073 = vmatpush1.msra.mxu0 %v8012
        %8074 = vmatprep.subr.mxu0 0.0
        %8075 = vmatpush1.msra.mxu0 %v8011
        %8076 = vmatprep.subr.mxu0 0.0
        %8077 = vmatpush1.msra.mxu0 %v8010
        %8078 = vmatprep.subr.mxu0 0.0
        %8079 = vmatpush1.msra.mxu0 %v8009
        %8080 = vmatprep.subr.mxu0 0.0
        %8081 = vmatpush1.msra.mxu0 %v8008
        %8082 = vmatprep.subr.mxu0 0.0
        %8083 = vmatpush1.msra.mxu0 %v8007
        %8084 = vmatprep.subr.mxu0 0.0
        %8085 = vmatpush1.msra.mxu0 %v8006
        %8086 = vmatprep.subr.mxu0 0.0
        %8087 = vmatpush2.msra.mxu0 %v8037
        %8088 = vmatprep.subr.mxu0 0.0
        %8089 = vmatpush2.msra.mxu0 %v8036
        %8090 = vmatprep.subr.mxu0 0.0
        %8091 = vmatpush2.msra.mxu0 %v8035
        %8092 = vmatprep.subr.mxu0 0.0
        %8093 = vmatpush2.msra.mxu0 %v8034
        %8094 = vmatprep.subr.mxu0 0.0
        %8095 = vmatpush2.msra.mxu0 %v8033
        %8096 = vmatprep.subr.mxu0 0.0
        %8097 = vmatpush2.msra.mxu0 %v8032
        %8098 = vmatprep.subr.mxu0 0.0
        %8099 = vmatpush2.msra.mxu0 %v8031
        %8100 = vmatprep.subr.mxu0 0.0
        %8101 = vmatpush2.msra.mxu0 %v8030
        %8102 = vmatprep.subr.mxu0 0.0
        %8103 = vmatpush2.msra.mxu0 %v8029
        %8104 = vmatprep.subr.mxu0 0.0
        %8105 = vmatpush2.msra.mxu0 %v8028
        %8106 = vmatprep.subr.mxu0 0.0
        %8107 = vmatpush2.msra.mxu0 %v8027
        %8108 = vmatprep.subr.mxu0 0.0
        %8109 = vmatpush2.msra.mxu0 %v8026
        %8110 = vmatprep.subr.mxu0 0.0
        %8111 = vmatpush2.msra.mxu0 %v8025
        %8112 = vmatprep.subr.mxu0 0.0
        %8113 = vmatpush2.msra.mxu0 %v8024
        %8114 = vmatprep.subr.mxu0 0.0
        %8115 = vmatpush2.msra.mxu0 %v8023
        %8116 = vmatprep.subr.mxu0 0.0
        %8117 = vmatpush2.msra.mxu0 %v8022
        %8118 = vmatprep.mubr.f32.mxu0 %v8002
        %8119 = vmatmul.mubr.f32.gmra.mxu0 %v8000
        %v8120 = vpop.f32.mrf.mxu0
        %v8121 = vadd.f32 0.0, %v8120
        %v8122 = vpop.f32.mrf.mxu0
        %8123 = vmatprep.mubr.f32.mxu0 %v8003
        %8124 = vmatmul.mubr.f32.gmra.mxu0 %v8001
        %v8125 = vpop.f32.mrf.mxu0
        %v8126 = vadd.f32 0.0, %v8125
        %v8127 = vpop.f32.mrf.mxu0
        %8128 = vdwg.mxu0
        %8129 = vmatprep.subr.mxu0 0.0
        %8130 = vmatpush1.msra.mxu0 %v8053
        %8131 = vmatprep.subr.mxu0 0.0
        %8132 = vmatpush1.msra.mxu0 %v8052
        %8133 = vmatprep.subr.mxu0 0.0
        %8134 = vmatpush1.msra.mxu0 %v8051
        %8135 = vmatprep.subr.mxu0 0.0
        %8136 = vmatpush1.msra.mxu0 %v8050
        %8137 = vmatprep.subr.mxu0 0.0
        %8138 = vmatpush1.msra.mxu0 %v8049
        %8139 = vmatprep.subr.mxu0 0.0
        %8140 = vmatpush1.msra.mxu0 %v8048
        %8141 = vmatprep.subr.mxu0 0.0
        %8142 = vmatpush1.msra.mxu0 %v8047
        %8143 = vmatprep.subr.mxu0 0.0
        %8144 = vmatpush1.msra.mxu0 %v8046
        %8145 = vmatprep.subr.mxu0 0.0
        %8146 = vmatpush1.msra.mxu0 %v8045
        %8147 = vmatprep.subr.mxu0 0.0
        %8148 = vmatpush1.msra.mxu0 %v8044
        %8149 = vmatprep.subr.mxu0 0.0
        %8150 = vmatpush1.msra.mxu0 %v8043
        %8151 = vmatprep.subr.mxu0 0.0
        %8152 = vmatpush1.msra.mxu0 %v8042
        %8153 = vmatprep.subr.mxu0 0.0
        %8154 = vmatpush1.msra.mxu0 %v8041
        %8155 = vmatprep.subr.mxu0 0.0
        %8156 = vmatpush1.msra.mxu0 %v8040
        %8157 = vmatprep.subr.mxu0 0.0
        %8158 = vmatpush1.msra.mxu0 %v8039
        %8159 = vmatprep.subr.mxu0 0.0
        %8160 = vmatpush1.msra.mxu0 %v8038
        %8161 = vmatprep.subr.mxu0 0.0
        %8162 = vmatpush2.msra.mxu0 0.0
        %8163 = vmatprep.subr.mxu0 0.0
        %8164 = vmatpush2.msra.mxu0 0.0
        %8165 = vmatprep.subr.mxu0 0.0
        %8166 = vmatpush2.msra.mxu0 0.0
        %8167 = vmatprep.subr.mxu0 0.0
        %8168 = vmatpush2.msra.mxu0 0.0
        %8169 = vmatprep.subr.mxu0 0.0
        %8170 = vmatpush2.msra.mxu0 0.0
        %8171 = vmatprep.subr.mxu0 0.0
        %8172 = vmatpush2.msra.mxu0 0.0
        %8173 = vmatprep.subr.mxu0 0.0
        %8174 = vmatpush2.msra.mxu0 0.0
        %8175 = vmatprep.subr.mxu0 0.0
        %8176 = vmatpush2.msra.mxu0 0.0
        %8177 = vmatprep.subr.mxu0 0.0
        %8178 = vmatpush2.msra.mxu0 0.0
        %8179 = vmatprep.subr.mxu0 0.0
        %8180 = vmatpush2.msra.mxu0 0.0
        %8181 = vmatprep.subr.mxu0 0.0
        %8182 = vmatpush2.msra.mxu0 0.0
        %8183 = vmatprep.subr.mxu0 0.0
        %8184 = vmatpush2.msra.mxu0 0.0
        %8185 = vmatprep.subr.mxu0 0.0
        %8186 = vmatpush2.msra.mxu0 0.0
        %8187 = vmatprep.subr.mxu0 0.0
        %8188 = vmatpush2.msra.mxu0 0.0
        %8189 = vmatprep.subr.mxu0 0.0
        %8190 = vmatpush2.msra.mxu0 0.0
        %8191 = vmatprep.subr.mxu0 0.0
        %8192 = vmatpush2.msra.mxu0 0.0
        %8193 = vmatprep.mubr.f32.mxu0 0.0
        %8194 = vmatmul.mubr.f32.gmra.mxu0 %v8004
        %v8195 = vpop.f32.mrf.mxu0
        %v8196 = vadd.f32 %v8121, %v8195
        %v8197 = vpop.f32.mrf.mxu0
        %8198 = vmatprep.mubr.f32.mxu0 0.0
        %8199 = vmatmul.mubr.f32.gmra.mxu0 %v8005
        %v8200 = vpop.f32.mrf.mxu0
        %v8201 = vadd.f32 %v8126, %v8200
        %v8202 = vpop.f32.mrf.mxu0
        %8203 = vdwg.mxu0
        %v8204 = vld [vmem:[%s57] sm:$0x1]
        %v8206 = vlaneseq
        %v8207 = vshrl.u32 %v8206, 7
        %v8208 = vsub.s32 0, %v8207
        %v8209 = vrot.slane %v8204, %v8208
        %v8211 = vmul.f32 %v8196, %v8209
        %v8212 = vmul.f32 %v8201, %v8209
        %v8213 = vld [vmem:[%s59] sm:$0x1]
        %v8215 = vlaneseq
        %v8216 = vshrl.u32 %v8215, 7
        %v8217 = vsub.s32 0, %v8216
        %v8218 = vrot.slane %v8213, %v8217
        %v8220 = vadd.f32 %v8211, %v8218
        %v8221 = vadd.f32 %v8212, %v8218
        %v8222 = vmax.f32 %v8220, 0.0
        %v8223 = vmax.f32 %v8221, 0.0
        %8224 = vst [vmem:[#allocation8 + $0x1] sm:$0xff] %v8222
        %8225 = vst [vmem:[#allocation8 + $0x9] sm:$0xff] %v8223
        %v8226 = vld [vmem:[#allocation8] sm:$0xff]
        %v8227 = vld [vmem:[#allocation8 + $0x8] sm:$0xff]
        %v8228 = vld [vmem:[#allocation8 + $0x1] sm:$0xff]
        %v8229 = vld [vmem:[#allocation8 + $0x9] sm:$0xff]
        %v8230 = vld [vmem:[#allocation8 + $0x2] sm:$0xff]
        %v8231 = vld [vmem:[#allocation8 + $0xa] sm:$0xff]
        %v8232 = vld [vmem:[%s61] sm:$0xff]
        %v8233 = vld [vmem:[%s61 + $0x8] sm:$0xff]
        %v8234 = vld [vmem:[%s61 + $0x10] sm:$0xff]
        %v8235 = vld [vmem:[%s61 + $0x18] sm:$0xff]
        %v8236 = vld [vmem:[%s61 + $0x20] sm:$0xff]
        %v8237 = vld [vmem:[%s61 + $0x28] sm:$0xff]
        %v8238 = vld [vmem:[%s61 + $0x30] sm:$0xff]
        %v8239 = vld [vmem:[%s61 + $0x38] sm:$0xff]
        %v8240 = vld [vmem:[%s61 + $0x40] sm:$0xff]
        %v8241 = vld [vmem:[%s61 + $0x48] sm:$0xff]
        %v8242 = vld [vmem:[%s61 + $0x50] sm:$0xff]
        %v8243 = vld [vmem:[%s61 + $0x58] sm:$0xff]
        %v8244 = vld [vmem:[%s61 + $0x60] sm:$0xff]
        %v8245 = vld [vmem:[%s61 + $0x68] sm:$0xff]
        %v8246 = vld [vmem:[%s61 + $0x70] sm:$0xff]
        %v8247 = vld [vmem:[%s61 + $0x78] sm:$0xff]
        %v8248 = vld [vmem:[%s61 + $0x80] sm:$0xff]
        %v8249 = vld [vmem:[%s61 + $0x88] sm:$0xff]
        %v8250 = vld [vmem:[%s61 + $0x90] sm:$0xff]
        %v8251 = vld [vmem:[%s61 + $0x98] sm:$0xff]
        %v8252 = vld [vmem:[%s61 + $0xa0] sm:$0xff]
        %v8253 = vld [vmem:[%s61 + $0xa8] sm:$0xff]
        %v8254 = vld [vmem:[%s61 + $0xb0] sm:$0xff]
        %v8255 = vld [vmem:[%s61 + $0xb8] sm:$0xff]
        %v8256 = vld [vmem:[%s61 + $0xc0] sm:$0xff]
        %v8257 = vld [vmem:[%s61 + $0xc8] sm:$0xff]
        %v8258 = vld [vmem:[%s61 + $0xd0] sm:$0xff]
        %v8259 = vld [vmem:[%s61 + $0xd8] sm:$0xff]
        %v8260 = vld [vmem:[%s61 + $0xe0] sm:$0xff]
        %v8261 = vld [vmem:[%s61 + $0xe8] sm:$0xff]
        %v8262 = vld [vmem:[%s61 + $0xf0] sm:$0xff]
        %v8263 = vld [vmem:[%s61 + $0xf8] sm:$0xff]
        %v8264 = vld [vmem:[%s61 + $0x100] sm:$0xff]
        %v8265 = vld [vmem:[%s61 + $0x108] sm:$0xff]
        %v8266 = vld [vmem:[%s61 + $0x110] sm:$0xff]
        %v8267 = vld [vmem:[%s61 + $0x118] sm:$0xff]
        %v8268 = vld [vmem:[%s61 + $0x120] sm:$0xff]
        %v8269 = vld [vmem:[%s61 + $0x128] sm:$0xff]
        %v8270 = vld [vmem:[%s61 + $0x130] sm:$0xff]
        %v8271 = vld [vmem:[%s61 + $0x138] sm:$0xff]
        %v8272 = vld [vmem:[%s61 + $0x140] sm:$0xff]
        %v8273 = vld [vmem:[%s61 + $0x148] sm:$0xff]
        %v8274 = vld [vmem:[%s61 + $0x150] sm:$0xff]
        %v8275 = vld [vmem:[%s61 + $0x158] sm:$0xff]
        %v8276 = vld [vmem:[%s61 + $0x160] sm:$0xff]
        %v8277 = vld [vmem:[%s61 + $0x168] sm:$0xff]
        %v8278 = vld [vmem:[%s61 + $0x170] sm:$0xff]
        %v8279 = vld [vmem:[%s61 + $0x178] sm:$0xff]
        %v8280 = vld [vmem:[#allocation7 + $0x1] sm:$0xff]
        %v8281 = vld [vmem:[#allocation7 + $0x9] sm:$0xff]
        %v8282 = vld [vmem:[%s63] sm:$0xff]
        %v8283 = vld [vmem:[%s63 + $0x8] sm:$0xff]
        %v8284 = vld [vmem:[%s63 + $0x10] sm:$0xff]
        %v8285 = vld [vmem:[%s63 + $0x18] sm:$0xff]
        %v8286 = vld [vmem:[%s63 + $0x20] sm:$0xff]
        %v8287 = vld [vmem:[%s63 + $0x28] sm:$0xff]
        %v8288 = vld [vmem:[%s63 + $0x30] sm:$0xff]
        %v8289 = vld [vmem:[%s63 + $0x38] sm:$0xff]
        %v8291 = vsel %vm5024, %v8280, 0
        %v8294 = vsel %vm5024, %v8281, 0
        %8296 = vmatprep.subr.mxu0 0.0
        %8297 = vmatpush1.msra.mxu0 0.0
        %8298 = vmatprep.subr.mxu0 0.0
        %8299 = vmatpush1.msra.mxu0 0.0
        %8300 = vmatprep.subr.mxu0 0.0
        %8301 = vmatpush1.msra.mxu0 0.0
        %8302 = vmatprep.subr.mxu0 0.0
        %8303 = vmatpush1.msra.mxu0 0.0
        %8304 = vmatprep.subr.mxu0 0.0
        %8305 = vmatpush1.msra.mxu0 0.0
        %8306 = vmatprep.subr.mxu0 0.0
        %8307 = vmatpush1.msra.mxu0 0.0
        %8308 = vmatprep.subr.mxu0 0.0
        %8309 = vmatpush1.msra.mxu0 0.0
        %8310 = vmatprep.subr.mxu0 0.0
        %8311 = vmatpush1.msra.mxu0 0.0
        %8312 = vmatprep.subr.mxu0 0.0
        %8313 = vmatpush1.msra.mxu0 %v8289
        %8314 = vmatprep.subr.mxu0 0.0
        %8315 = vmatpush1.msra.mxu0 %v8288
        %8316 = vmatprep.subr.mxu0 0.0
        %8317 = vmatpush1.msra.mxu0 %v8287
        %8318 = vmatprep.subr.mxu0 0.0
        %8319 = vmatpush1.msra.mxu0 %v8286
        %8320 = vmatprep.subr.mxu0 0.0
        %8321 = vmatpush1.msra.mxu0 %v8285
        %8322 = vmatprep.subr.mxu0 0.0
        %8323 = vmatpush1.msra.mxu0 %v8284
        %8324 = vmatprep.subr.mxu0 0.0
        %8325 = vmatpush1.msra.mxu0 %v8283
        %8326 = vmatprep.subr.mxu0 0.0
        %8327 = vmatpush1.msra.mxu0 %v8282
        %8328 = vmatprep.subr.mxu0 0.0
        %8329 = vmatpush2.msra.mxu0 0.0
        %8330 = vmatprep.subr.mxu0 0.0
        %8331 = vmatpush2.msra.mxu0 0.0
        %8332 = vmatprep.subr.mxu0 0.0
        %8333 = vmatpush2.msra.mxu0 0.0
        %8334 = vmatprep.subr.mxu0 0.0
        %8335 = vmatpush2.msra.mxu0 0.0
        %8336 = vmatprep.subr.mxu0 0.0
        %8337 = vmatpush2.msra.mxu0 0.0
        %8338 = vmatprep.subr.mxu0 0.0
        %8339 = vmatpush2.msra.mxu0 0.0
        %8340 = vmatprep.subr.mxu0 0.0
        %8341 = vmatpush2.msra.mxu0 0.0
        %8342 = vmatprep.subr.mxu0 0.0
        %8343 = vmatpush2.msra.mxu0 0.0
        %8344 = vmatprep.subr.mxu0 0.0
        %8345 = vmatpush2.msra.mxu0 0.0
        %8346 = vmatprep.subr.mxu0 0.0
        %8347 = vmatpush2.msra.mxu0 0.0
        %8348 = vmatprep.subr.mxu0 0.0
        %8349 = vmatpush2.msra.mxu0 0.0
        %8350 = vmatprep.subr.mxu0 0.0
        %8351 = vmatpush2.msra.mxu0 0.0
        %8352 = vmatprep.subr.mxu0 0.0
        %8353 = vmatpush2.msra.mxu0 0.0
        %8354 = vmatprep.subr.mxu0 0.0
        %8355 = vmatpush2.msra.mxu0 0.0
        %8356 = vmatprep.subr.mxu0 0.0
        %8357 = vmatpush2.msra.mxu0 0.0
        %8358 = vmatprep.subr.mxu0 0.0
        %8359 = vmatpush2.msra.mxu0 0.0
        %8360 = vmatprep.mubr.f32.mxu0 0.0
        %8361 = vmatmul.mubr.f32.gmra.mxu0 %v8291
        %v8362 = vpop.f32.mrf.mxu0
        %v8363 = vadd.f32 0.0, %v8362
        %v8364 = vpop.f32.mrf.mxu0
        %8365 = vmatprep.mubr.f32.mxu0 0.0
        %8366 = vmatmul.mubr.f32.gmra.mxu0 %v8294
        %v8367 = vpop.f32.mrf.mxu0
        %v8368 = vadd.f32 0.0, %v8367
        %v8369 = vpop.f32.mrf.mxu0
        %8370 = vdwg.mxu0
        %8371 = vmatprep.subr.mxu0 0.0
        %8372 = vmatpush1.msra.mxu0 %v8247
        %8373 = vmatprep.subr.mxu0 0.0
        %8374 = vmatpush1.msra.mxu0 %v8246
        %8375 = vmatprep.subr.mxu0 0.0
        %8376 = vmatpush1.msra.mxu0 %v8245
        %8377 = vmatprep.subr.mxu0 0.0
        %8378 = vmatpush1.msra.mxu0 %v8244
        %8379 = vmatprep.subr.mxu0 0.0
        %8380 = vmatpush1.msra.mxu0 %v8243
        %8381 = vmatprep.subr.mxu0 0.0
        %8382 = vmatpush1.msra.mxu0 %v8242
        %8383 = vmatprep.subr.mxu0 0.0
        %8384 = vmatpush1.msra.mxu0 %v8241
        %8385 = vmatprep.subr.mxu0 0.0
        %8386 = vmatpush1.msra.mxu0 %v8240
        %8387 = vmatprep.subr.mxu0 0.0
        %8388 = vmatpush1.msra.mxu0 %v8239
        %8389 = vmatprep.subr.mxu0 0.0
        %8390 = vmatpush1.msra.mxu0 %v8238
        %8391 = vmatprep.subr.mxu0 0.0
        %8392 = vmatpush1.msra.mxu0 %v8237
        %8393 = vmatprep.subr.mxu0 0.0
        %8394 = vmatpush1.msra.mxu0 %v8236
        %8395 = vmatprep.subr.mxu0 0.0
        %8396 = vmatpush1.msra.mxu0 %v8235
        %8397 = vmatprep.subr.mxu0 0.0
        %8398 = vmatpush1.msra.mxu0 %v8234
        %8399 = vmatprep.subr.mxu0 0.0
        %8400 = vmatpush1.msra.mxu0 %v8233
        %8401 = vmatprep.subr.mxu0 0.0
        %8402 = vmatpush1.msra.mxu0 %v8232
        %8403 = vmatprep.subr.mxu0 0.0
        %8404 = vmatpush2.msra.mxu0 %v8263
        %8405 = vmatprep.subr.mxu0 0.0
        %8406 = vmatpush2.msra.mxu0 %v8262
        %8407 = vmatprep.subr.mxu0 0.0
        %8408 = vmatpush2.msra.mxu0 %v8261
        %8409 = vmatprep.subr.mxu0 0.0
        %8410 = vmatpush2.msra.mxu0 %v8260
        %8411 = vmatprep.subr.mxu0 0.0
        %8412 = vmatpush2.msra.mxu0 %v8259
        %8413 = vmatprep.subr.mxu0 0.0
        %8414 = vmatpush2.msra.mxu0 %v8258
        %8415 = vmatprep.subr.mxu0 0.0
        %8416 = vmatpush2.msra.mxu0 %v8257
        %8417 = vmatprep.subr.mxu0 0.0
        %8418 = vmatpush2.msra.mxu0 %v8256
        %8419 = vmatprep.subr.mxu0 0.0
        %8420 = vmatpush2.msra.mxu0 %v8255
        %8421 = vmatprep.subr.mxu0 0.0
        %8422 = vmatpush2.msra.mxu0 %v8254
        %8423 = vmatprep.subr.mxu0 0.0
        %8424 = vmatpush2.msra.mxu0 %v8253
        %8425 = vmatprep.subr.mxu0 0.0
        %8426 = vmatpush2.msra.mxu0 %v8252
        %8427 = vmatprep.subr.mxu0 0.0
        %8428 = vmatpush2.msra.mxu0 %v8251
        %8429 = vmatprep.subr.mxu0 0.0
        %8430 = vmatpush2.msra.mxu0 %v8250
        %8431 = vmatprep.subr.mxu0 0.0
        %8432 = vmatpush2.msra.mxu0 %v8249
        %8433 = vmatprep.subr.mxu0 0.0
        %8434 = vmatpush2.msra.mxu0 %v8248
        %8435 = vmatprep.mubr.f32.mxu0 %v8228
        %8436 = vmatmul.mubr.f32.gmra.mxu0 %v8226
        %v8437 = vpop.f32.mrf.mxu0
        %v8438 = vadd.f32 %v8363, %v8437
        %v8439 = vpop.f32.mrf.mxu0
        %8440 = vmatprep.mubr.f32.mxu0 %v8229
        %8441 = vmatmul.mubr.f32.gmra.mxu0 %v8227
        %v8442 = vpop.f32.mrf.mxu0
        %v8443 = vadd.f32 %v8368, %v8442
        %v8444 = vpop.f32.mrf.mxu0
        %8445 = vdwg.mxu0
        %8446 = vmatprep.subr.mxu0 0.0
        %8447 = vmatpush1.msra.mxu0 %v8279
        %8448 = vmatprep.subr.mxu0 0.0
        %8449 = vmatpush1.msra.mxu0 %v8278
        %8450 = vmatprep.subr.mxu0 0.0
        %8451 = vmatpush1.msra.mxu0 %v8277
        %8452 = vmatprep.subr.mxu0 0.0
        %8453 = vmatpush1.msra.mxu0 %v8276
        %8454 = vmatprep.subr.mxu0 0.0
        %8455 = vmatpush1.msra.mxu0 %v8275
        %8456 = vmatprep.subr.mxu0 0.0
        %8457 = vmatpush1.msra.mxu0 %v8274
        %8458 = vmatprep.subr.mxu0 0.0
        %8459 = vmatpush1.msra.mxu0 %v8273
        %8460 = vmatprep.subr.mxu0 0.0
        %8461 = vmatpush1.msra.mxu0 %v8272
        %8462 = vmatprep.subr.mxu0 0.0
        %8463 = vmatpush1.msra.mxu0 %v8271
        %8464 = vmatprep.subr.mxu0 0.0
        %8465 = vmatpush1.msra.mxu0 %v8270
        %8466 = vmatprep.subr.mxu0 0.0
        %8467 = vmatpush1.msra.mxu0 %v8269
        %8468 = vmatprep.subr.mxu0 0.0
        %8469 = vmatpush1.msra.mxu0 %v8268
        %8470 = vmatprep.subr.mxu0 0.0
        %8471 = vmatpush1.msra.mxu0 %v8267
        %8472 = vmatprep.subr.mxu0 0.0
        %8473 = vmatpush1.msra.mxu0 %v8266
        %8474 = vmatprep.subr.mxu0 0.0
        %8475 = vmatpush1.msra.mxu0 %v8265
        %8476 = vmatprep.subr.mxu0 0.0
        %8477 = vmatpush1.msra.mxu0 %v8264
        %8478 = vmatprep.subr.mxu0 0.0
        %8479 = vmatpush2.msra.mxu0 0.0
        %8480 = vmatprep.subr.mxu0 0.0
        %8481 = vmatpush2.msra.mxu0 0.0
        %8482 = vmatprep.subr.mxu0 0.0
        %8483 = vmatpush2.msra.mxu0 0.0
        %8484 = vmatprep.subr.mxu0 0.0
        %8485 = vmatpush2.msra.mxu0 0.0
        %8486 = vmatprep.subr.mxu0 0.0
        %8487 = vmatpush2.msra.mxu0 0.0
        %8488 = vmatprep.subr.mxu0 0.0
        %8489 = vmatpush2.msra.mxu0 0.0
        %8490 = vmatprep.subr.mxu0 0.0
        %8491 = vmatpush2.msra.mxu0 0.0
        %8492 = vmatprep.subr.mxu0 0.0
        %8493 = vmatpush2.msra.mxu0 0.0
        %8494 = vmatprep.subr.mxu0 0.0
        %8495 = vmatpush2.msra.mxu0 0.0
        %8496 = vmatprep.subr.mxu0 0.0
        %8497 = vmatpush2.msra.mxu0 0.0
        %8498 = vmatprep.subr.mxu0 0.0
        %8499 = vmatpush2.msra.mxu0 0.0
        %8500 = vmatprep.subr.mxu0 0.0
        %8501 = vmatpush2.msra.mxu0 0.0
        %8502 = vmatprep.subr.mxu0 0.0
        %8503 = vmatpush2.msra.mxu0 0.0
        %8504 = vmatprep.subr.mxu0 0.0
        %8505 = vmatpush2.msra.mxu0 0.0
        %8506 = vmatprep.subr.mxu0 0.0
        %8507 = vmatpush2.msra.mxu0 0.0
        %8508 = vmatprep.subr.mxu0 0.0
        %8509 = vmatpush2.msra.mxu0 0.0
        %8510 = vmatprep.mubr.f32.mxu0 0.0
        %8511 = vmatmul.mubr.f32.gmra.mxu0 %v8230
        %v8512 = vpop.f32.mrf.mxu0
        %v8513 = vadd.f32 %v8438, %v8512
        %v8514 = vpop.f32.mrf.mxu0
        %8515 = vmatprep.mubr.f32.mxu0 0.0
        %8516 = vmatmul.mubr.f32.gmra.mxu0 %v8231
        %v8517 = vpop.f32.mrf.mxu0
        %v8518 = vadd.f32 %v8443, %v8517
        %v8519 = vpop.f32.mrf.mxu0
        %8520 = vdwg.mxu0
        %v8521 = vld [vmem:[%s65] sm:$0x1]
        %v8523 = vlaneseq
        %v8524 = vshrl.u32 %v8523, 7
        %v8525 = vsub.s32 0, %v8524
        %v8526 = vrot.slane %v8521, %v8525
        %v8528 = vmul.f32 %v8513, %v8526
        %v8529 = vmul.f32 %v8518, %v8526
        %v8530 = vld [vmem:[%s67] sm:$0x1]
        %v8532 = vlaneseq
        %v8533 = vshrl.u32 %v8532, 7
        %v8534 = vsub.s32 0, %v8533
        %v8535 = vrot.slane %v8530, %v8534
        %v8537 = vadd.f32 %v8528, %v8535
        %v8538 = vadd.f32 %v8529, %v8535
        %v8539 = vmax.f32 %v8537, 0.0
        %v8540 = vmax.f32 %v8538, 0.0
        %8541 = vst [vmem:[#allocation8 + $0x1] sm:$0xff] %v8539
        %8542 = vst [vmem:[#allocation8 + $0x9] sm:$0xff] %v8540
        %s8543 = scalar_lea.vmem [#allocation8], 1
        %v8544 = vld [vmem:[%s8543] ss:$4 sm:$0xf]
        %s8545 = scalar_lea.vmem [#allocation8], 2
        %v8546 = vld [vmem:[%s8545] ss:$4 sm:$0xf]
        %v8547 = vmax.f32 %v8544, %v8546
        %s8548 = scalar_lea.vmem [#allocation8], 3
        %v8549 = vld [vmem:[%s8548] ss:$4 sm:$0xf]
        %v8550 = vmax.f32 %v8547, %v8549
        %s8551 = scalar_lea.vmem [#allocation8], 4
        %v8552 = vld [vmem:[%s8551] ss:$4 sm:$0xf]
        %v8553 = vmax.f32 %v8550, %v8552
        %8554 = vst [vmem:[#allocation9 + $0x1] sm:$0xf] %v8553
        %v8555 = vld [vmem:[#allocation9] sm:$0xf]
        %v8556 = vld [vmem:[#allocation9 + $0x1] sm:$0xf]
        %v8557 = vld [vmem:[#allocation9 + $0x2] sm:$0xf]
        %v8558 = vld [vmem:[%s69] sm:$0xff]
        %v8559 = vld [vmem:[%s69 + $0x8] sm:$0xff]
        %v8560 = vld [vmem:[%s69 + $0x10] sm:$0xff]
        %v8561 = vld [vmem:[%s69 + $0x18] sm:$0xff]
        %v8562 = vld [vmem:[%s69 + $0x20] sm:$0xff]
        %v8563 = vld [vmem:[%s69 + $0x28] sm:$0xff]
        %v8564 = vld [vmem:[%s69 + $0x30] sm:$0xff]
        %v8565 = vld [vmem:[%s69 + $0x38] sm:$0xff]
        %v8566 = vld [vmem:[%s69 + $0x40] sm:$0xff]
        %v8567 = vld [vmem:[%s69 + $0x48] sm:$0xff]
        %v8568 = vld [vmem:[%s69 + $0x50] sm:$0xff]
        %v8569 = vld [vmem:[%s69 + $0x58] sm:$0xff]
        %v8570 = vld [vmem:[%s69 + $0x60] sm:$0xff]
        %v8571 = vld [vmem:[%s69 + $0x68] sm:$0xff]
        %v8572 = vld [vmem:[%s69 + $0x70] sm:$0xff]
        %v8573 = vld [vmem:[%s69 + $0x78] sm:$0xff]
        %v8574 = vld [vmem:[%s69 + $0x80] sm:$0xff]
        %v8575 = vld [vmem:[%s69 + $0x88] sm:$0xff]
        %v8576 = vld [vmem:[%s69 + $0x90] sm:$0xff]
        %v8577 = vld [vmem:[%s69 + $0x98] sm:$0xff]
        %v8578 = vld [vmem:[%s69 + $0xa0] sm:$0xff]
        %v8579 = vld [vmem:[%s69 + $0xa8] sm:$0xff]
        %v8580 = vld [vmem:[%s69 + $0xb0] sm:$0xff]
        %v8581 = vld [vmem:[%s69 + $0xb8] sm:$0xff]
        %v8582 = vld [vmem:[%s69 + $0xc0] sm:$0xff]
        %v8583 = vld [vmem:[%s69 + $0xc8] sm:$0xff]
        %v8584 = vld [vmem:[%s69 + $0xd0] sm:$0xff]
        %v8585 = vld [vmem:[%s69 + $0xd8] sm:$0xff]
        %v8586 = vld [vmem:[%s69 + $0xe0] sm:$0xff]
        %v8587 = vld [vmem:[%s69 + $0xe8] sm:$0xff]
        %v8588 = vld [vmem:[%s69 + $0xf0] sm:$0xff]
        %v8589 = vld [vmem:[%s69 + $0xf8] sm:$0xff]
        %v8590 = vld [vmem:[%s69 + $0x100] sm:$0xff]
        %v8591 = vld [vmem:[%s69 + $0x108] sm:$0xff]
        %v8592 = vld [vmem:[%s69 + $0x110] sm:$0xff]
        %v8593 = vld [vmem:[%s69 + $0x118] sm:$0xff]
        %v8594 = vld [vmem:[%s69 + $0x120] sm:$0xff]
        %v8595 = vld [vmem:[%s69 + $0x128] sm:$0xff]
        %v8596 = vld [vmem:[%s69 + $0x130] sm:$0xff]
        %v8597 = vld [vmem:[%s69 + $0x138] sm:$0xff]
        %v8598 = vld [vmem:[%s69 + $0x140] sm:$0xff]
        %v8599 = vld [vmem:[%s69 + $0x148] sm:$0xff]
        %v8600 = vld [vmem:[%s69 + $0x150] sm:$0xff]
        %v8601 = vld [vmem:[%s69 + $0x158] sm:$0xff]
        %v8602 = vld [vmem:[%s69 + $0x160] sm:$0xff]
        %v8603 = vld [vmem:[%s69 + $0x168] sm:$0xff]
        %v8604 = vld [vmem:[%s69 + $0x170] sm:$0xff]
        %v8605 = vld [vmem:[%s69 + $0x178] sm:$0xff]
        %8606 = vmatprep.subr.mxu0 0.0
        %8607 = vmatpush1.msra.mxu0 %v8573
        %8608 = vmatprep.subr.mxu0 0.0
        %8609 = vmatpush1.msra.mxu0 %v8572
        %8610 = vmatprep.subr.mxu0 0.0
        %8611 = vmatpush1.msra.mxu0 %v8571
        %8612 = vmatprep.subr.mxu0 0.0
        %8613 = vmatpush1.msra.mxu0 %v8570
        %8614 = vmatprep.subr.mxu0 0.0
        %8615 = vmatpush1.msra.mxu0 %v8569
        %8616 = vmatprep.subr.mxu0 0.0
        %8617 = vmatpush1.msra.mxu0 %v8568
        %8618 = vmatprep.subr.mxu0 0.0
        %8619 = vmatpush1.msra.mxu0 %v8567
        %8620 = vmatprep.subr.mxu0 0.0
        %8621 = vmatpush1.msra.mxu0 %v8566
        %8622 = vmatprep.subr.mxu0 0.0
        %8623 = vmatpush1.msra.mxu0 %v8565
        %8624 = vmatprep.subr.mxu0 0.0
        %8625 = vmatpush1.msra.mxu0 %v8564
        %8626 = vmatprep.subr.mxu0 0.0
        %8627 = vmatpush1.msra.mxu0 %v8563
        %8628 = vmatprep.subr.mxu0 0.0
        %8629 = vmatpush1.msra.mxu0 %v8562
        %8630 = vmatprep.subr.mxu0 0.0
        %8631 = vmatpush1.msra.mxu0 %v8561
        %8632 = vmatprep.subr.mxu0 0.0
        %8633 = vmatpush1.msra.mxu0 %v8560
        %8634 = vmatprep.subr.mxu0 0.0
        %8635 = vmatpush1.msra.mxu0 %v8559
        %8636 = vmatprep.subr.mxu0 0.0
        %8637 = vmatpush1.msra.mxu0 %v8558
        %8638 = vmatprep.subr.mxu0 0.0
        %8639 = vmatpush2.msra.mxu0 %v8589
        %8640 = vmatprep.subr.mxu0 0.0
        %8641 = vmatpush2.msra.mxu0 %v8588
        %8642 = vmatprep.subr.mxu0 0.0
        %8643 = vmatpush2.msra.mxu0 %v8587
        %8644 = vmatprep.subr.mxu0 0.0
        %8645 = vmatpush2.msra.mxu0 %v8586
        %8646 = vmatprep.subr.mxu0 0.0
        %8647 = vmatpush2.msra.mxu0 %v8585
        %8648 = vmatprep.subr.mxu0 0.0
        %8649 = vmatpush2.msra.mxu0 %v8584
        %8650 = vmatprep.subr.mxu0 0.0
        %8651 = vmatpush2.msra.mxu0 %v8583
        %8652 = vmatprep.subr.mxu0 0.0
        %8653 = vmatpush2.msra.mxu0 %v8582
        %8654 = vmatprep.subr.mxu0 0.0
        %8655 = vmatpush2.msra.mxu0 %v8581
        %8656 = vmatprep.subr.mxu0 0.0
        %8657 = vmatpush2.msra.mxu0 %v8580
        %8658 = vmatprep.subr.mxu0 0.0
        %8659 = vmatpush2.msra.mxu0 %v8579
        %8660 = vmatprep.subr.mxu0 0.0
        %8661 = vmatpush2.msra.mxu0 %v8578
        %8662 = vmatprep.subr.mxu0 0.0
        %8663 = vmatpush2.msra.mxu0 %v8577
        %8664 = vmatprep.subr.mxu0 0.0
        %8665 = vmatpush2.msra.mxu0 %v8576
        %8666 = vmatprep.subr.mxu0 0.0
        %8667 = vmatpush2.msra.mxu0 %v8575
        %8668 = vmatprep.subr.mxu0 0.0
        %8669 = vmatpush2.msra.mxu0 %v8574
        %8670 = vmatprep.mubr.f32.mxu0 %v8556
        %8671 = vmatmul.mubr.f32.gmra.mxu0 %v8555
        %v8672 = vpop.f32.mrf.mxu0
        %v8673 = vadd.f32 0.0, %v8672
        %v8674 = vpop.f32.mrf.mxu0
        %8675 = vdwg.mxu0
        %8676 = vmatprep.subr.mxu0 0.0
        %8677 = vmatpush1.msra.mxu0 %v8605
        %8678 = vmatprep.subr.mxu0 0.0
        %8679 = vmatpush1.msra.mxu0 %v8604
        %8680 = vmatprep.subr.mxu0 0.0
        %8681 = vmatpush1.msra.mxu0 %v8603
        %8682 = vmatprep.subr.mxu0 0.0
        %8683 = vmatpush1.msra.mxu0 %v8602
        %8684 = vmatprep.subr.mxu0 0.0
        %8685 = vmatpush1.msra.mxu0 %v8601
        %8686 = vmatprep.subr.mxu0 0.0
        %8687 = vmatpush1.msra.mxu0 %v8600
        %8688 = vmatprep.subr.mxu0 0.0
        %8689 = vmatpush1.msra.mxu0 %v8599
        %8690 = vmatprep.subr.mxu0 0.0
        %8691 = vmatpush1.msra.mxu0 %v8598
        %8692 = vmatprep.subr.mxu0 0.0
        %8693 = vmatpush1.msra.mxu0 %v8597
        %8694 = vmatprep.subr.mxu0 0.0
        %8695 = vmatpush1.msra.mxu0 %v8596
        %8696 = vmatprep.subr.mxu0 0.0
        %8697 = vmatpush1.msra.mxu0 %v8595
        %8698 = vmatprep.subr.mxu0 0.0
        %8699 = vmatpush1.msra.mxu0 %v8594
        %8700 = vmatprep.subr.mxu0 0.0
        %8701 = vmatpush1.msra.mxu0 %v8593
        %8702 = vmatprep.subr.mxu0 0.0
        %8703 = vmatpush1.msra.mxu0 %v8592
        %8704 = vmatprep.subr.mxu0 0.0
        %8705 = vmatpush1.msra.mxu0 %v8591
        %8706 = vmatprep.subr.mxu0 0.0
        %8707 = vmatpush1.msra.mxu0 %v8590
        %8708 = vmatprep.subr.mxu0 0.0
        %8709 = vmatpush2.msra.mxu0 0.0
        %8710 = vmatprep.subr.mxu0 0.0
        %8711 = vmatpush2.msra.mxu0 0.0
        %8712 = vmatprep.subr.mxu0 0.0
        %8713 = vmatpush2.msra.mxu0 0.0
        %8714 = vmatprep.subr.mxu0 0.0
        %8715 = vmatpush2.msra.mxu0 0.0
        %8716 = vmatprep.subr.mxu0 0.0
        %8717 = vmatpush2.msra.mxu0 0.0
        %8718 = vmatprep.subr.mxu0 0.0
        %8719 = vmatpush2.msra.mxu0 0.0
        %8720 = vmatprep.subr.mxu0 0.0
        %8721 = vmatpush2.msra.mxu0 0.0
        %8722 = vmatprep.subr.mxu0 0.0
        %8723 = vmatpush2.msra.mxu0 0.0
        %8724 = vmatprep.subr.mxu0 0.0
        %8725 = vmatpush2.msra.mxu0 0.0
        %8726 = vmatprep.subr.mxu0 0.0
        %8727 = vmatpush2.msra.mxu0 0.0
        %8728 = vmatprep.subr.mxu0 0.0
        %8729 = vmatpush2.msra.mxu0 0.0
        %8730 = vmatprep.subr.mxu0 0.0
        %8731 = vmatpush2.msra.mxu0 0.0
        %8732 = vmatprep.subr.mxu0 0.0
        %8733 = vmatpush2.msra.mxu0 0.0
        %8734 = vmatprep.subr.mxu0 0.0
        %8735 = vmatpush2.msra.mxu0 0.0
        %8736 = vmatprep.subr.mxu0 0.0
        %8737 = vmatpush2.msra.mxu0 0.0
        %8738 = vmatprep.subr.mxu0 0.0
        %8739 = vmatpush2.msra.mxu0 0.0
        %8740 = vmatprep.mubr.f32.mxu0 0.0
        %8741 = vmatmul.mubr.f32.gmra.mxu0 %v8557
        %v8742 = vpop.f32.mrf.mxu0
        %v8743 = vadd.f32 %v8673, %v8742
        %v8744 = vpop.f32.mrf.mxu0
        %8745 = vdwg.mxu0
        %v8746 = vld [vmem:[#allocation11] sm:$0x1]
        %v8748 = vlaneseq
        %v8749 = vshrl.u32 %v8748, 7
        %v8750 = vsub.s32 0, %v8749
        %v8751 = vrot.slane %v8746, %v8750
        %v8753 = vmul.f32 %v8743, %v8751
        %v8754 = vld [vmem:[#allocation14] sm:$0x1]
        %v8756 = vlaneseq
        %v8757 = vshrl.u32 %v8756, 7
        %v8758 = vsub.s32 0, %v8757
        %v8759 = vrot.slane %v8754, %v8758
        %v8761 = vadd.f32 %v8753, %v8759
        %v8762 = vmax.f32 %v8761, 0.0
        %8763 = vst [vmem:[#allocation10 + $0x1] sm:$0xf] %v8762
        %v8764 = vld [vmem:[#allocation10] sm:$0xf]
        %v8765 = vld [vmem:[#allocation10 + $0x1] sm:$0xf]
        %v8766 = vld [vmem:[#allocation10 + $0x2] sm:$0xf]
        %v8767 = vld [vmem:[%s75] sm:$0xff]
        %v8768 = vld [vmem:[%s75 + $0x8] sm:$0xff]
        %v8769 = vld [vmem:[%s75 + $0x10] sm:$0xff]
        %v8770 = vld [vmem:[%s75 + $0x18] sm:$0xff]
        %v8771 = vld [vmem:[%s75 + $0x20] sm:$0xff]
        %v8772 = vld [vmem:[%s75 + $0x28] sm:$0xff]
        %v8773 = vld [vmem:[%s75 + $0x30] sm:$0xff]
        %v8774 = vld [vmem:[%s75 + $0x38] sm:$0xff]
        %v8775 = vld [vmem:[%s75 + $0x40] sm:$0xff]
        %v8776 = vld [vmem:[%s75 + $0x48] sm:$0xff]
        %v8777 = vld [vmem:[%s75 + $0x50] sm:$0xff]
        %v8778 = vld [vmem:[%s75 + $0x58] sm:$0xff]
        %v8779 = vld [vmem:[%s75 + $0x60] sm:$0xff]
        %v8780 = vld [vmem:[%s75 + $0x68] sm:$0xff]
        %v8781 = vld [vmem:[%s75 + $0x70] sm:$0xff]
        %v8782 = vld [vmem:[%s75 + $0x78] sm:$0xff]
        %v8783 = vld [vmem:[%s75 + $0x80] sm:$0xff]
        %v8784 = vld [vmem:[%s75 + $0x88] sm:$0xff]
        %v8785 = vld [vmem:[%s75 + $0x90] sm:$0xff]
        %v8786 = vld [vmem:[%s75 + $0x98] sm:$0xff]
        %v8787 = vld [vmem:[%s75 + $0xa0] sm:$0xff]
        %v8788 = vld [vmem:[%s75 + $0xa8] sm:$0xff]
        %v8789 = vld [vmem:[%s75 + $0xb0] sm:$0xff]
        %v8790 = vld [vmem:[%s75 + $0xb8] sm:$0xff]
        %v8791 = vld [vmem:[%s75 + $0xc0] sm:$0xff]
        %v8792 = vld [vmem:[%s75 + $0xc8] sm:$0xff]
        %v8793 = vld [vmem:[%s75 + $0xd0] sm:$0xff]
        %v8794 = vld [vmem:[%s75 + $0xd8] sm:$0xff]
        %v8795 = vld [vmem:[%s75 + $0xe0] sm:$0xff]
        %v8796 = vld [vmem:[%s75 + $0xe8] sm:$0xff]
        %v8797 = vld [vmem:[%s75 + $0xf0] sm:$0xff]
        %v8798 = vld [vmem:[%s75 + $0xf8] sm:$0xff]
        %v8799 = vld [vmem:[%s75 + $0x100] sm:$0xff]
        %v8800 = vld [vmem:[%s75 + $0x108] sm:$0xff]
        %v8801 = vld [vmem:[%s75 + $0x110] sm:$0xff]
        %v8802 = vld [vmem:[%s75 + $0x118] sm:$0xff]
        %v8803 = vld [vmem:[%s75 + $0x120] sm:$0xff]
        %v8804 = vld [vmem:[%s75 + $0x128] sm:$0xff]
        %v8805 = vld [vmem:[%s75 + $0x130] sm:$0xff]
        %v8806 = vld [vmem:[%s75 + $0x138] sm:$0xff]
        %v8807 = vld [vmem:[%s75 + $0x140] sm:$0xff]
        %v8808 = vld [vmem:[%s75 + $0x148] sm:$0xff]
        %v8809 = vld [vmem:[%s75 + $0x150] sm:$0xff]
        %v8810 = vld [vmem:[%s75 + $0x158] sm:$0xff]
        %v8811 = vld [vmem:[%s75 + $0x160] sm:$0xff]
        %v8812 = vld [vmem:[%s75 + $0x168] sm:$0xff]
        %v8813 = vld [vmem:[%s75 + $0x170] sm:$0xff]
        %v8814 = vld [vmem:[%s75 + $0x178] sm:$0xff]
        %8815 = vmatprep.subr.mxu0 0.0
        %8816 = vmatpush1.msra.mxu0 %v8782
        %8817 = vmatprep.subr.mxu0 0.0
        %8818 = vmatpush1.msra.mxu0 %v8781
        %8819 = vmatprep.subr.mxu0 0.0
        %8820 = vmatpush1.msra.mxu0 %v8780
        %8821 = vmatprep.subr.mxu0 0.0
        %8822 = vmatpush1.msra.mxu0 %v8779
        %8823 = vmatprep.subr.mxu0 0.0
        %8824 = vmatpush1.msra.mxu0 %v8778
        %8825 = vmatprep.subr.mxu0 0.0
        %8826 = vmatpush1.msra.mxu0 %v8777
        %8827 = vmatprep.subr.mxu0 0.0
        %8828 = vmatpush1.msra.mxu0 %v8776
        %8829 = vmatprep.subr.mxu0 0.0
        %8830 = vmatpush1.msra.mxu0 %v8775
        %8831 = vmatprep.subr.mxu0 0.0
        %8832 = vmatpush1.msra.mxu0 %v8774
        %8833 = vmatprep.subr.mxu0 0.0
        %8834 = vmatpush1.msra.mxu0 %v8773
        %8835 = vmatprep.subr.mxu0 0.0
        %8836 = vmatpush1.msra.mxu0 %v8772
        %8837 = vmatprep.subr.mxu0 0.0
        %8838 = vmatpush1.msra.mxu0 %v8771
        %8839 = vmatprep.subr.mxu0 0.0
        %8840 = vmatpush1.msra.mxu0 %v8770
        %8841 = vmatprep.subr.mxu0 0.0
        %8842 = vmatpush1.msra.mxu0 %v8769
        %8843 = vmatprep.subr.mxu0 0.0
        %8844 = vmatpush1.msra.mxu0 %v8768
        %8845 = vmatprep.subr.mxu0 0.0
        %8846 = vmatpush1.msra.mxu0 %v8767
        %8847 = vmatprep.subr.mxu0 0.0
        %8848 = vmatpush2.msra.mxu0 %v8798
        %8849 = vmatprep.subr.mxu0 0.0
        %8850 = vmatpush2.msra.mxu0 %v8797
        %8851 = vmatprep.subr.mxu0 0.0
        %8852 = vmatpush2.msra.mxu0 %v8796
        %8853 = vmatprep.subr.mxu0 0.0
        %8854 = vmatpush2.msra.mxu0 %v8795
        %8855 = vmatprep.subr.mxu0 0.0
        %8856 = vmatpush2.msra.mxu0 %v8794
        %8857 = vmatprep.subr.mxu0 0.0
        %8858 = vmatpush2.msra.mxu0 %v8793
        %8859 = vmatprep.subr.mxu0 0.0
        %8860 = vmatpush2.msra.mxu0 %v8792
        %8861 = vmatprep.subr.mxu0 0.0
        %8862 = vmatpush2.msra.mxu0 %v8791
        %8863 = vmatprep.subr.mxu0 0.0
        %8864 = vmatpush2.msra.mxu0 %v8790
        %8865 = vmatprep.subr.mxu0 0.0
        %8866 = vmatpush2.msra.mxu0 %v8789
        %8867 = vmatprep.subr.mxu0 0.0
        %8868 = vmatpush2.msra.mxu0 %v8788
        %8869 = vmatprep.subr.mxu0 0.0
        %8870 = vmatpush2.msra.mxu0 %v8787
        %8871 = vmatprep.subr.mxu0 0.0
        %8872 = vmatpush2.msra.mxu0 %v8786
        %8873 = vmatprep.subr.mxu0 0.0
        %8874 = vmatpush2.msra.mxu0 %v8785
        %8875 = vmatprep.subr.mxu0 0.0
        %8876 = vmatpush2.msra.mxu0 %v8784
        %8877 = vmatprep.subr.mxu0 0.0
        %8878 = vmatpush2.msra.mxu0 %v8783
        %8879 = vmatprep.mubr.f32.mxu0 %v8765
        %8880 = vmatmul.mubr.f32.gmra.mxu0 %v8764
        %v8881 = vpop.f32.mrf.mxu0
        %v8882 = vadd.f32 0.0, %v8881
        %v8883 = vpop.f32.mrf.mxu0
        %8884 = vdwg.mxu0
        %8885 = vmatprep.subr.mxu0 0.0
        %8886 = vmatpush1.msra.mxu0 %v8814
        %8887 = vmatprep.subr.mxu0 0.0
        %8888 = vmatpush1.msra.mxu0 %v8813
        %8889 = vmatprep.subr.mxu0 0.0
        %8890 = vmatpush1.msra.mxu0 %v8812
        %8891 = vmatprep.subr.mxu0 0.0
        %8892 = vmatpush1.msra.mxu0 %v8811
        %8893 = vmatprep.subr.mxu0 0.0
        %8894 = vmatpush1.msra.mxu0 %v8810
        %8895 = vmatprep.subr.mxu0 0.0
        %8896 = vmatpush1.msra.mxu0 %v8809
        %8897 = vmatprep.subr.mxu0 0.0
        %8898 = vmatpush1.msra.mxu0 %v8808
        %8899 = vmatprep.subr.mxu0 0.0
        %8900 = vmatpush1.msra.mxu0 %v8807
        %8901 = vmatprep.subr.mxu0 0.0
        %8902 = vmatpush1.msra.mxu0 %v8806
        %8903 = vmatprep.subr.mxu0 0.0
        %8904 = vmatpush1.msra.mxu0 %v8805
        %8905 = vmatprep.subr.mxu0 0.0
        %8906 = vmatpush1.msra.mxu0 %v8804
        %8907 = vmatprep.subr.mxu0 0.0
        %8908 = vmatpush1.msra.mxu0 %v8803
        %8909 = vmatprep.subr.mxu0 0.0
        %8910 = vmatpush1.msra.mxu0 %v8802
        %8911 = vmatprep.subr.mxu0 0.0
        %8912 = vmatpush1.msra.mxu0 %v8801
        %8913 = vmatprep.subr.mxu0 0.0
        %8914 = vmatpush1.msra.mxu0 %v8800
        %8915 = vmatprep.subr.mxu0 0.0
        %8916 = vmatpush1.msra.mxu0 %v8799
        %8917 = vmatprep.subr.mxu0 0.0
        %8918 = vmatpush2.msra.mxu0 0.0
        %8919 = vmatprep.subr.mxu0 0.0
        %8920 = vmatpush2.msra.mxu0 0.0
        %8921 = vmatprep.subr.mxu0 0.0
        %8922 = vmatpush2.msra.mxu0 0.0
        %8923 = vmatprep.subr.mxu0 0.0
        %8924 = vmatpush2.msra.mxu0 0.0
        %8925 = vmatprep.subr.mxu0 0.0
        %8926 = vmatpush2.msra.mxu0 0.0
        %8927 = vmatprep.subr.mxu0 0.0
        %8928 = vmatpush2.msra.mxu0 0.0
        %8929 = vmatprep.subr.mxu0 0.0
        %8930 = vmatpush2.msra.mxu0 0.0
        %8931 = vmatprep.subr.mxu0 0.0
        %8932 = vmatpush2.msra.mxu0 0.0
        %8933 = vmatprep.subr.mxu0 0.0
        %8934 = vmatpush2.msra.mxu0 0.0
        %8935 = vmatprep.subr.mxu0 0.0
        %8936 = vmatpush2.msra.mxu0 0.0
        %8937 = vmatprep.subr.mxu0 0.0
        %8938 = vmatpush2.msra.mxu0 0.0
        %8939 = vmatprep.subr.mxu0 0.0
        %8940 = vmatpush2.msra.mxu0 0.0
        %8941 = vmatprep.subr.mxu0 0.0
        %8942 = vmatpush2.msra.mxu0 0.0
        %8943 = vmatprep.subr.mxu0 0.0
        %8944 = vmatpush2.msra.mxu0 0.0
        %8945 = vmatprep.subr.mxu0 0.0
        %8946 = vmatpush2.msra.mxu0 0.0
        %8947 = vmatprep.subr.mxu0 0.0
        %8948 = vmatpush2.msra.mxu0 0.0
        %8949 = vmatprep.mubr.f32.mxu0 0.0
        %8950 = vmatmul.mubr.f32.gmra.mxu0 %v8766
        %v8951 = vpop.f32.mrf.mxu0
        %v8952 = vadd.f32 %v8882, %v8951
        %v8953 = vpop.f32.mrf.mxu0
        %8954 = vdwg.mxu0
        %v8955 = vld [vmem:[#allocation16] sm:$0x1]
        %v8957 = vlaneseq
        %v8958 = vshrl.u32 %v8957, 7
        %v8959 = vsub.s32 0, %v8958
        %v8960 = vrot.slane %v8955, %v8959
        %v8962 = vmul.f32 %v8952, %v8960
        %v8963 = vld [vmem:[#allocation17] sm:$0x1]
        %v8965 = vlaneseq
        %v8966 = vshrl.u32 %v8965, 7
        %v8967 = vsub.s32 0, %v8966
        %v8968 = vrot.slane %v8963, %v8967
        %v8970 = vadd.f32 %v8962, %v8968
        %v8971 = vmax.f32 %v8970, 0.0
        %8972 = vst [vmem:[#allocation10 + $0x1] sm:$0xf] %v8971
        %v8973 = vld [vmem:[#allocation10] sm:$0xf]
        %v8974 = vld [vmem:[#allocation10 + $0x1] sm:$0xf]
        %v8975 = vld [vmem:[#allocation10 + $0x2] sm:$0xf]
        %v8976 = vld [vmem:[%s81] sm:$0xff]
        %v8977 = vld [vmem:[%s81 + $0x8] sm:$0xff]
        %v8978 = vld [vmem:[%s81 + $0x10] sm:$0xff]
        %v8979 = vld [vmem:[%s81 + $0x18] sm:$0xff]
        %v8980 = vld [vmem:[%s81 + $0x20] sm:$0xff]
        %v8981 = vld [vmem:[%s81 + $0x28] sm:$0xff]
        %v8982 = vld [vmem:[%s81 + $0x30] sm:$0xff]
        %v8983 = vld [vmem:[%s81 + $0x38] sm:$0xff]
        %v8984 = vld [vmem:[%s81 + $0x40] sm:$0xff]
        %v8985 = vld [vmem:[%s81 + $0x48] sm:$0xff]
        %v8986 = vld [vmem:[%s81 + $0x50] sm:$0xff]
        %v8987 = vld [vmem:[%s81 + $0x58] sm:$0xff]
        %v8988 = vld [vmem:[%s81 + $0x60] sm:$0xff]
        %v8989 = vld [vmem:[%s81 + $0x68] sm:$0xff]
        %v8990 = vld [vmem:[%s81 + $0x70] sm:$0xff]
        %v8991 = vld [vmem:[%s81 + $0x78] sm:$0xff]
        %v8992 = vld [vmem:[%s81 + $0x80] sm:$0xff]
        %v8993 = vld [vmem:[%s81 + $0x88] sm:$0xff]
        %v8994 = vld [vmem:[%s81 + $0x90] sm:$0xff]
        %v8995 = vld [vmem:[%s81 + $0x98] sm:$0xff]
        %v8996 = vld [vmem:[%s81 + $0xa0] sm:$0xff]
        %v8997 = vld [vmem:[%s81 + $0xa8] sm:$0xff]
        %v8998 = vld [vmem:[%s81 + $0xb0] sm:$0xff]
        %v8999 = vld [vmem:[%s81 + $0xb8] sm:$0xff]
        %v9000 = vld [vmem:[%s81 + $0xc0] sm:$0xff]
        %v9001 = vld [vmem:[%s81 + $0xc8] sm:$0xff]
        %v9002 = vld [vmem:[%s81 + $0xd0] sm:$0xff]
        %v9003 = vld [vmem:[%s81 + $0xd8] sm:$0xff]
        %v9004 = vld [vmem:[%s81 + $0xe0] sm:$0xff]
        %v9005 = vld [vmem:[%s81 + $0xe8] sm:$0xff]
        %v9006 = vld [vmem:[%s81 + $0xf0] sm:$0xff]
        %v9007 = vld [vmem:[%s81 + $0xf8] sm:$0xff]
        %v9008 = vld [vmem:[%s81 + $0x100] sm:$0xff]
        %v9009 = vld [vmem:[%s81 + $0x108] sm:$0xff]
        %v9010 = vld [vmem:[%s81 + $0x110] sm:$0xff]
        %v9011 = vld [vmem:[%s81 + $0x118] sm:$0xff]
        %v9012 = vld [vmem:[%s81 + $0x120] sm:$0xff]
        %v9013 = vld [vmem:[%s81 + $0x128] sm:$0xff]
        %v9014 = vld [vmem:[%s81 + $0x130] sm:$0xff]
        %v9015 = vld [vmem:[%s81 + $0x138] sm:$0xff]
        %v9016 = vld [vmem:[%s81 + $0x140] sm:$0xff]
        %v9017 = vld [vmem:[%s81 + $0x148] sm:$0xff]
        %v9018 = vld [vmem:[%s81 + $0x150] sm:$0xff]
        %v9019 = vld [vmem:[%s81 + $0x158] sm:$0xff]
        %v9020 = vld [vmem:[%s81 + $0x160] sm:$0xff]
        %v9021 = vld [vmem:[%s81 + $0x168] sm:$0xff]
        %v9022 = vld [vmem:[%s81 + $0x170] sm:$0xff]
        %v9023 = vld [vmem:[%s81 + $0x178] sm:$0xff]
        %v9024 = vld [vmem:[#allocation9 + $0x1] sm:$0xf]
        %v9025 = vld [vmem:[%s83] sm:$0xff]
        %v9026 = vld [vmem:[%s83 + $0x8] sm:$0xff]
        %v9027 = vld [vmem:[%s83 + $0x10] sm:$0xff]
        %v9028 = vld [vmem:[%s83 + $0x18] sm:$0xff]
        %v9029 = vld [vmem:[%s83 + $0x20] sm:$0xff]
        %v9030 = vld [vmem:[%s83 + $0x28] sm:$0xff]
        %v9031 = vld [vmem:[%s83 + $0x30] sm:$0xff]
        %v9032 = vld [vmem:[%s83 + $0x38] sm:$0xff]
        %v9033 = vld [vmem:[%s83 + $0x40] sm:$0xff]
        %v9034 = vld [vmem:[%s83 + $0x48] sm:$0xff]
        %v9035 = vld [vmem:[%s83 + $0x50] sm:$0xff]
        %v9036 = vld [vmem:[%s83 + $0x58] sm:$0xff]
        %v9037 = vld [vmem:[%s83 + $0x60] sm:$0xff]
        %v9038 = vld [vmem:[%s83 + $0x68] sm:$0xff]
        %v9039 = vld [vmem:[%s83 + $0x70] sm:$0xff]
        %v9040 = vld [vmem:[%s83 + $0x78] sm:$0xff]
        %9041 = vmatprep.subr.mxu0 0.0
        %9042 = vmatpush1.msra.mxu0 %v9040
        %9043 = vmatprep.subr.mxu0 0.0
        %9044 = vmatpush1.msra.mxu0 %v9039
        %9045 = vmatprep.subr.mxu0 0.0
        %9046 = vmatpush1.msra.mxu0 %v9038
        %9047 = vmatprep.subr.mxu0 0.0
        %9048 = vmatpush1.msra.mxu0 %v9037
        %9049 = vmatprep.subr.mxu0 0.0
        %9050 = vmatpush1.msra.mxu0 %v9036
        %9051 = vmatprep.subr.mxu0 0.0
        %9052 = vmatpush1.msra.mxu0 %v9035
        %9053 = vmatprep.subr.mxu0 0.0
        %9054 = vmatpush1.msra.mxu0 %v9034
        %9055 = vmatprep.subr.mxu0 0.0
        %9056 = vmatpush1.msra.mxu0 %v9033
        %9057 = vmatprep.subr.mxu0 0.0
        %9058 = vmatpush1.msra.mxu0 %v9032
        %9059 = vmatprep.subr.mxu0 0.0
        %9060 = vmatpush1.msra.mxu0 %v9031
        %9061 = vmatprep.subr.mxu0 0.0
        %9062 = vmatpush1.msra.mxu0 %v9030
        %9063 = vmatprep.subr.mxu0 0.0
        %9064 = vmatpush1.msra.mxu0 %v9029
        %9065 = vmatprep.subr.mxu0 0.0
        %9066 = vmatpush1.msra.mxu0 %v9028
        %9067 = vmatprep.subr.mxu0 0.0
        %9068 = vmatpush1.msra.mxu0 %v9027
        %9069 = vmatprep.subr.mxu0 0.0
        %9070 = vmatpush1.msra.mxu0 %v9026
        %9071 = vmatprep.subr.mxu0 0.0
        %9072 = vmatpush1.msra.mxu0 %v9025
        %9073 = vmatprep.subr.mxu0 0.0
        %9074 = vmatpush2.msra.mxu0 0.0
        %9075 = vmatprep.subr.mxu0 0.0
        %9076 = vmatpush2.msra.mxu0 0.0
        %9077 = vmatprep.subr.mxu0 0.0
        %9078 = vmatpush2.msra.mxu0 0.0
        %9079 = vmatprep.subr.mxu0 0.0
        %9080 = vmatpush2.msra.mxu0 0.0
        %9081 = vmatprep.subr.mxu0 0.0
        %9082 = vmatpush2.msra.mxu0 0.0
        %9083 = vmatprep.subr.mxu0 0.0
        %9084 = vmatpush2.msra.mxu0 0.0
        %9085 = vmatprep.subr.mxu0 0.0
        %9086 = vmatpush2.msra.mxu0 0.0
        %9087 = vmatprep.subr.mxu0 0.0
        %9088 = vmatpush2.msra.mxu0 0.0
        %9089 = vmatprep.subr.mxu0 0.0
        %9090 = vmatpush2.msra.mxu0 0.0
        %9091 = vmatprep.subr.mxu0 0.0
        %9092 = vmatpush2.msra.mxu0 0.0
        %9093 = vmatprep.subr.mxu0 0.0
        %9094 = vmatpush2.msra.mxu0 0.0
        %9095 = vmatprep.subr.mxu0 0.0
        %9096 = vmatpush2.msra.mxu0 0.0
        %9097 = vmatprep.subr.mxu0 0.0
        %9098 = vmatpush2.msra.mxu0 0.0
        %9099 = vmatprep.subr.mxu0 0.0
        %9100 = vmatpush2.msra.mxu0 0.0
        %9101 = vmatprep.subr.mxu0 0.0
        %9102 = vmatpush2.msra.mxu0 0.0
        %9103 = vmatprep.subr.mxu0 0.0
        %9104 = vmatpush2.msra.mxu0 0.0
        %9105 = vmatprep.mubr.f32.mxu0 0.0
        %9106 = vmatmul.mubr.f32.gmra.mxu0 %v9024
        %v9107 = vpop.f32.mrf.mxu0
        %v9108 = vadd.f32 0.0, %v9107
        %v9109 = vpop.f32.mrf.mxu0
        %9110 = vdwg.mxu0
        %9111 = vmatprep.subr.mxu0 0.0
        %9112 = vmatpush1.msra.mxu0 %v8991
        %9113 = vmatprep.subr.mxu0 0.0
        %9114 = vmatpush1.msra.mxu0 %v8990
        %9115 = vmatprep.subr.mxu0 0.0
        %9116 = vmatpush1.msra.mxu0 %v8989
        %9117 = vmatprep.subr.mxu0 0.0
        %9118 = vmatpush1.msra.mxu0 %v8988
        %9119 = vmatprep.subr.mxu0 0.0
        %9120 = vmatpush1.msra.mxu0 %v8987
        %9121 = vmatprep.subr.mxu0 0.0
        %9122 = vmatpush1.msra.mxu0 %v8986
        %9123 = vmatprep.subr.mxu0 0.0
        %9124 = vmatpush1.msra.mxu0 %v8985
        %9125 = vmatprep.subr.mxu0 0.0
        %9126 = vmatpush1.msra.mxu0 %v8984
        %9127 = vmatprep.subr.mxu0 0.0
        %9128 = vmatpush1.msra.mxu0 %v8983
        %9129 = vmatprep.subr.mxu0 0.0
        %9130 = vmatpush1.msra.mxu0 %v8982
        %9131 = vmatprep.subr.mxu0 0.0
        %9132 = vmatpush1.msra.mxu0 %v8981
        %9133 = vmatprep.subr.mxu0 0.0
        %9134 = vmatpush1.msra.mxu0 %v8980
        %9135 = vmatprep.subr.mxu0 0.0
        %9136 = vmatpush1.msra.mxu0 %v8979
        %9137 = vmatprep.subr.mxu0 0.0
        %9138 = vmatpush1.msra.mxu0 %v8978
        %9139 = vmatprep.subr.mxu0 0.0
        %9140 = vmatpush1.msra.mxu0 %v8977
        %9141 = vmatprep.subr.mxu0 0.0
        %9142 = vmatpush1.msra.mxu0 %v8976
        %9143 = vmatprep.subr.mxu0 0.0
        %9144 = vmatpush2.msra.mxu0 %v9007
        %9145 = vmatprep.subr.mxu0 0.0
        %9146 = vmatpush2.msra.mxu0 %v9006
        %9147 = vmatprep.subr.mxu0 0.0
        %9148 = vmatpush2.msra.mxu0 %v9005
        %9149 = vmatprep.subr.mxu0 0.0
        %9150 = vmatpush2.msra.mxu0 %v9004
        %9151 = vmatprep.subr.mxu0 0.0
        %9152 = vmatpush2.msra.mxu0 %v9003
        %9153 = vmatprep.subr.mxu0 0.0
        %9154 = vmatpush2.msra.mxu0 %v9002
        %9155 = vmatprep.subr.mxu0 0.0
        %9156 = vmatpush2.msra.mxu0 %v9001
        %9157 = vmatprep.subr.mxu0 0.0
        %9158 = vmatpush2.msra.mxu0 %v9000
        %9159 = vmatprep.subr.mxu0 0.0
        %9160 = vmatpush2.msra.mxu0 %v8999
        %9161 = vmatprep.subr.mxu0 0.0
        %9162 = vmatpush2.msra.mxu0 %v8998
        %9163 = vmatprep.subr.mxu0 0.0
        %9164 = vmatpush2.msra.mxu0 %v8997
        %9165 = vmatprep.subr.mxu0 0.0
        %9166 = vmatpush2.msra.mxu0 %v8996
        %9167 = vmatprep.subr.mxu0 0.0
        %9168 = vmatpush2.msra.mxu0 %v8995
        %9169 = vmatprep.subr.mxu0 0.0
        %9170 = vmatpush2.msra.mxu0 %v8994
        %9171 = vmatprep.subr.mxu0 0.0
        %9172 = vmatpush2.msra.mxu0 %v8993
        %9173 = vmatprep.subr.mxu0 0.0
        %9174 = vmatpush2.msra.mxu0 %v8992
        %9175 = vmatprep.mubr.f32.mxu0 %v8974
        %9176 = vmatmul.mubr.f32.gmra.mxu0 %v8973
        %v9177 = vpop.f32.mrf.mxu0
        %v9178 = vadd.f32 %v9108, %v9177
        %v9179 = vpop.f32.mrf.mxu0
        %9180 = vdwg.mxu0
        %9181 = vmatprep.subr.mxu0 0.0
        %9182 = vmatpush1.msra.mxu0 %v9023
        %9183 = vmatprep.subr.mxu0 0.0
        %9184 = vmatpush1.msra.mxu0 %v9022
        %9185 = vmatprep.subr.mxu0 0.0
        %9186 = vmatpush1.msra.mxu0 %v9021
        %9187 = vmatprep.subr.mxu0 0.0
        %9188 = vmatpush1.msra.mxu0 %v9020
        %9189 = vmatprep.subr.mxu0 0.0
        %9190 = vmatpush1.msra.mxu0 %v9019
        %9191 = vmatprep.subr.mxu0 0.0
        %9192 = vmatpush1.msra.mxu0 %v9018
        %9193 = vmatprep.subr.mxu0 0.0
        %9194 = vmatpush1.msra.mxu0 %v9017
        %9195 = vmatprep.subr.mxu0 0.0
        %9196 = vmatpush1.msra.mxu0 %v9016
        %9197 = vmatprep.subr.mxu0 0.0
        %9198 = vmatpush1.msra.mxu0 %v9015
        %9199 = vmatprep.subr.mxu0 0.0
        %9200 = vmatpush1.msra.mxu0 %v9014
        %9201 = vmatprep.subr.mxu0 0.0
        %9202 = vmatpush1.msra.mxu0 %v9013
        %9203 = vmatprep.subr.mxu0 0.0
        %9204 = vmatpush1.msra.mxu0 %v9012
        %9205 = vmatprep.subr.mxu0 0.0
        %9206 = vmatpush1.msra.mxu0 %v9011
        %9207 = vmatprep.subr.mxu0 0.0
        %9208 = vmatpush1.msra.mxu0 %v9010
        %9209 = vmatprep.subr.mxu0 0.0
        %9210 = vmatpush1.msra.mxu0 %v9009
        %9211 = vmatprep.subr.mxu0 0.0
        %9212 = vmatpush1.msra.mxu0 %v9008
        %9213 = vmatprep.subr.mxu0 0.0
        %9214 = vmatpush2.msra.mxu0 0.0
        %9215 = vmatprep.subr.mxu0 0.0
        %9216 = vmatpush2.msra.mxu0 0.0
        %9217 = vmatprep.subr.mxu0 0.0
        %9218 = vmatpush2.msra.mxu0 0.0
        %9219 = vmatprep.subr.mxu0 0.0
        %9220 = vmatpush2.msra.mxu0 0.0
        %9221 = vmatprep.subr.mxu0 0.0
        %9222 = vmatpush2.msra.mxu0 0.0
        %9223 = vmatprep.subr.mxu0 0.0
        %9224 = vmatpush2.msra.mxu0 0.0
        %9225 = vmatprep.subr.mxu0 0.0
        %9226 = vmatpush2.msra.mxu0 0.0
        %9227 = vmatprep.subr.mxu0 0.0
        %9228 = vmatpush2.msra.mxu0 0.0
        %9229 = vmatprep.subr.mxu0 0.0
        %9230 = vmatpush2.msra.mxu0 0.0
        %9231 = vmatprep.subr.mxu0 0.0
        %9232 = vmatpush2.msra.mxu0 0.0
        %9233 = vmatprep.subr.mxu0 0.0
        %9234 = vmatpush2.msra.mxu0 0.0
        %9235 = vmatprep.subr.mxu0 0.0
        %9236 = vmatpush2.msra.mxu0 0.0
        %9237 = vmatprep.subr.mxu0 0.0
        %9238 = vmatpush2.msra.mxu0 0.0
        %9239 = vmatprep.subr.mxu0 0.0
        %9240 = vmatpush2.msra.mxu0 0.0
        %9241 = vmatprep.subr.mxu0 0.0
        %9242 = vmatpush2.msra.mxu0 0.0
        %9243 = vmatprep.subr.mxu0 0.0
        %9244 = vmatpush2.msra.mxu0 0.0
        %9245 = vmatprep.mubr.f32.mxu0 0.0
        %9246 = vmatmul.mubr.f32.gmra.mxu0 %v8975
        %v9247 = vpop.f32.mrf.mxu0
        %v9248 = vadd.f32 %v9178, %v9247
        %v9249 = vpop.f32.mrf.mxu0
        %9250 = vdwg.mxu0
        %v9251 = vld [vmem:[#allocation19] sm:$0x1]
        %v9253 = vlaneseq
        %v9254 = vshrl.u32 %v9253, 7
        %v9255 = vsub.s32 0, %v9254
        %v9256 = vrot.slane %v9251, %v9255
        %v9258 = vmul.f32 %v9248, %v9256
        %v9259 = vld [vmem:[#allocation20] sm:$0x1]
        %v9261 = vlaneseq
        %v9262 = vshrl.u32 %v9261, 7
        %v9263 = vsub.s32 0, %v9262
        %v9264 = vrot.slane %v9259, %v9263
        %v9266 = vadd.f32 %v9258, %v9264
        %v9267 = vmax.f32 %v9266, 0.0
        %9268 = vst [vmem:[#allocation10 + $0x1] sm:$0xf] %v9267
        %vm9269 = vcmask 1043456
        %v9270 = vsel %vm9269, %v9267, -inf
        %v9271 = vrot.slane %v9270, 4
        %v9272 = vmax.f32 %v9270, %v9271
        %v9273 = vrot.slane %v9272, 2
        %v9274 = vmax.f32 %v9272, %v9273
        %v9275 = vrot.slane %v9274, 1
        %v9276 = vmax.f32 %v9274, %v9275
        %v9277 = vld [vmem:[%s89] sm:$0xff]
        %v9278 = vld [vmem:[%s89 + $0x8] sm:$0xff]
        %v9279 = vld [vmem:[%s89 + $0x10] sm:$0xff]
        %v9280 = vld [vmem:[%s89 + $0x18] sm:$0xff]
        %v9281 = vld [vmem:[%s89 + $0x20] sm:$0xff]
        %v9282 = vld [vmem:[%s89 + $0x28] sm:$0xff]
        %v9283 = vld [vmem:[%s89 + $0x30] sm:$0xff]
        %v9284 = vld [vmem:[%s89 + $0x38] sm:$0xff]
        %v9285 = vld [vmem:[%s89 + $0x40] sm:$0xff]
        %v9286 = vld [vmem:[%s89 + $0x48] sm:$0xff]
        %v9287 = vld [vmem:[%s89 + $0x50] sm:$0xff]
        %v9288 = vld [vmem:[%s89 + $0x58] sm:$0xff]
        %v9289 = vld [vmem:[%s89 + $0x60] sm:$0xff]
        %v9290 = vld [vmem:[%s89 + $0x68] sm:$0xff]
        %v9291 = vld [vmem:[%s89 + $0x70] sm:$0xff]
        %v9292 = vld [vmem:[%s89 + $0x78] sm:$0xff]
        %v9293 = vld [vmem:[#allocation22] sm:$0x1]
        %9294 = vmatprep.subr.mxu0 0.0
        %9295 = vmatpush1.msra.mxu0 %v9292
        %9296 = vmatprep.subr.mxu0 0.0
        %9297 = vmatpush1.msra.mxu0 %v9291
        %9298 = vmatprep.subr.mxu0 0.0
        %9299 = vmatpush1.msra.mxu0 %v9290
        %9300 = vmatprep.subr.mxu0 0.0
        %9301 = vmatpush1.msra.mxu0 %v9289
        %9302 = vmatprep.subr.mxu0 0.0
        %9303 = vmatpush1.msra.mxu0 %v9288
        %9304 = vmatprep.subr.mxu0 0.0
        %9305 = vmatpush1.msra.mxu0 %v9287
        %9306 = vmatprep.subr.mxu0 0.0
        %9307 = vmatpush1.msra.mxu0 %v9286
        %9308 = vmatprep.subr.mxu0 0.0
        %9309 = vmatpush1.msra.mxu0 %v9285
        %9310 = vmatprep.subr.mxu0 0.0
        %9311 = vmatpush1.msra.mxu0 %v9284
        %9312 = vmatprep.subr.mxu0 0.0
        %9313 = vmatpush1.msra.mxu0 %v9283
        %9314 = vmatprep.subr.mxu0 0.0
        %9315 = vmatpush1.msra.mxu0 %v9282
        %9316 = vmatprep.subr.mxu0 0.0
        %9317 = vmatpush1.msra.mxu0 %v9281
        %9318 = vmatprep.subr.mxu0 0.0
        %9319 = vmatpush1.msra.mxu0 %v9280
        %9320 = vmatprep.subr.mxu0 0.0
        %9321 = vmatpush1.msra.mxu0 %v9279
        %9322 = vmatprep.subr.mxu0 0.0
        %9323 = vmatpush1.msra.mxu0 %v9278
        %9324 = vmatprep.subr.mxu0 0.0
        %9325 = vmatpush1.msra.mxu0 %v9277
        %9326 = vmatprep.subr.mxu0 0.0
        %9327 = vmatpush2.msra.mxu0 0.0
        %9328 = vmatprep.subr.mxu0 0.0
        %9329 = vmatpush2.msra.mxu0 0.0
        %9330 = vmatprep.subr.mxu0 0.0
        %9331 = vmatpush2.msra.mxu0 0.0
        %9332 = vmatprep.subr.mxu0 0.0
        %9333 = vmatpush2.msra.mxu0 0.0
        %9334 = vmatprep.subr.mxu0 0.0
        %9335 = vmatpush2.msra.mxu0 0.0
        %9336 = vmatprep.subr.mxu0 0.0
        %9337 = vmatpush2.msra.mxu0 0.0
        %9338 = vmatprep.subr.mxu0 0.0
        %9339 = vmatpush2.msra.mxu0 0.0
        %9340 = vmatprep.subr.mxu0 0.0
        %9341 = vmatpush2.msra.mxu0 0.0
        %9342 = vmatprep.subr.mxu0 0.0
        %9343 = vmatpush2.msra.mxu0 0.0
        %9344 = vmatprep.subr.mxu0 0.0
        %9345 = vmatpush2.msra.mxu0 0.0
        %9346 = vmatprep.subr.mxu0 0.0
        %9347 = vmatpush2.msra.mxu0 0.0
        %9348 = vmatprep.subr.mxu0 0.0
        %9349 = vmatpush2.msra.mxu0 0.0
        %9350 = vmatprep.subr.mxu0 0.0
        %9351 = vmatpush2.msra.mxu0 0.0
        %9352 = vmatprep.subr.mxu0 0.0
        %9353 = vmatpush2.msra.mxu0 0.0
        %9354 = vmatprep.subr.mxu0 0.0
        %9355 = vmatpush2.msra.mxu0 0.0
        %9356 = vmatprep.subr.mxu0 0.0
        %9357 = vmatpush2.msra.mxu0 0.0
        %9358 = vmatprep.mubr.f32.mxu0 0.0
        %9359 = vmatmul.mubr.f32.gmra.mxu0 %v9276
        %v9360 = vpop.f32.mrf.mxu0
        %v9361 = vadd.f32 %v9293, %v9360
        %v9362 = vpop.f32.mrf.mxu0
        %9363 = vdwg.mxu0
        %v9364 = vmax.f32 %v9361, 0.0
        %v9365 = vld [vmem:[%s93] sm:$0xff]
        %v9366 = vld [vmem:[%s93 + $0x8] sm:$0xff]
        %v9367 = vld [vmem:[%s93 + $0x10] sm:$0xff]
        %v9368 = vld [vmem:[%s93 + $0x18] sm:$0xff]
        %v9369 = vld [vmem:[%s93 + $0x20] sm:$0xff]
        %v9370 = vld [vmem:[%s93 + $0x28] sm:$0xff]
        %v9371 = vld [vmem:[%s93 + $0x30] sm:$0xff]
        %v9372 = vld [vmem:[%s93 + $0x38] sm:$0xff]
        %v9373 = vld [vmem:[#allocation23] sm:$0x1]
        %v9375 = vsel %vm5024, %v9364, 0
        %9377 = vmatprep.subr.mxu0 0.0
        %9378 = vmatpush1.msra.mxu0 0.0
        %9379 = vmatprep.subr.mxu0 0.0
        %9380 = vmatpush1.msra.mxu0 0.0
        %9381 = vmatprep.subr.mxu0 0.0
        %9382 = vmatpush1.msra.mxu0 0.0
        %9383 = vmatprep.subr.mxu0 0.0
        %9384 = vmatpush1.msra.mxu0 0.0
        %9385 = vmatprep.subr.mxu0 0.0
        %9386 = vmatpush1.msra.mxu0 0.0
        %9387 = vmatprep.subr.mxu0 0.0
        %9388 = vmatpush1.msra.mxu0 0.0
        %9389 = vmatprep.subr.mxu0 0.0
        %9390 = vmatpush1.msra.mxu0 0.0
        %9391 = vmatprep.subr.mxu0 0.0
        %9392 = vmatpush1.msra.mxu0 0.0
        %9393 = vmatprep.subr.mxu0 0.0
        %9394 = vmatpush1.msra.mxu0 %v9372
        %9395 = vmatprep.subr.mxu0 0.0
        %9396 = vmatpush1.msra.mxu0 %v9371
        %9397 = vmatprep.subr.mxu0 0.0
        %9398 = vmatpush1.msra.mxu0 %v9370
        %9399 = vmatprep.subr.mxu0 0.0
        %9400 = vmatpush1.msra.mxu0 %v9369
        %9401 = vmatprep.subr.mxu0 0.0
        %9402 = vmatpush1.msra.mxu0 %v9368
        %9403 = vmatprep.subr.mxu0 0.0
        %9404 = vmatpush1.msra.mxu0 %v9367
        %9405 = vmatprep.subr.mxu0 0.0
        %9406 = vmatpush1.msra.mxu0 %v9366
        %9407 = vmatprep.subr.mxu0 0.0
        %9408 = vmatpush1.msra.mxu0 %v9365
        %9409 = vmatprep.subr.mxu0 0.0
        %9410 = vmatpush2.msra.mxu0 0.0
        %9411 = vmatprep.subr.mxu0 0.0
        %9412 = vmatpush2.msra.mxu0 0.0
        %9413 = vmatprep.subr.mxu0 0.0
        %9414 = vmatpush2.msra.mxu0 0.0
        %9415 = vmatprep.subr.mxu0 0.0
        %9416 = vmatpush2.msra.mxu0 0.0
        %9417 = vmatprep.subr.mxu0 0.0
        %9418 = vmatpush2.msra.mxu0 0.0
        %9419 = vmatprep.subr.mxu0 0.0
        %9420 = vmatpush2.msra.mxu0 0.0
        %9421 = vmatprep.subr.mxu0 0.0
        %9422 = vmatpush2.msra.mxu0 0.0
        %9423 = vmatprep.subr.mxu0 0.0
        %9424 = vmatpush2.msra.mxu0 0.0
        %9425 = vmatprep.subr.mxu0 0.0
        %9426 = vmatpush2.msra.mxu0 0.0
        %9427 = vmatprep.subr.mxu0 0.0
        %9428 = vmatpush2.msra.mxu0 0.0
        %9429 = vmatprep.subr.mxu0 0.0
        %9430 = vmatpush2.msra.mxu0 0.0
        %9431 = vmatprep.subr.mxu0 0.0
        %9432 = vmatpush2.msra.mxu0 0.0
        %9433 = vmatprep.subr.mxu0 0.0
        %9434 = vmatpush2.msra.mxu0 0.0
        %9435 = vmatprep.subr.mxu0 0.0
        %9436 = vmatpush2.msra.mxu0 0.0
        %9437 = vmatprep.subr.mxu0 0.0
        %9438 = vmatpush2.msra.mxu0 0.0
        %9439 = vmatprep.subr.mxu0 0.0
        %9440 = vmatpush2.msra.mxu0 0.0
        %9441 = vmatprep.mubr.f32.mxu0 0.0
        %9442 = vmatmul.mubr.f32.gmra.mxu0 %v9375
        %v9443 = vpop.f32.mrf.mxu0
        %v9444 = vadd.f32 %v9373, %v9443
        %v9445 = vpop.f32.mrf.mxu0
        %9446 = vdwg.mxu0
        %v9447 = vmax.f32 %v9444, 0.0
        %v9448 = vld [vmem:[%s97] sm:$0xff]
        %v9449 = vld [vmem:[%s97 + $0x8] sm:$0xff]
        %v9450 = vld [vmem:[%s97 + $0x10] sm:$0xff]
        %v9451 = vld [vmem:[%s97 + $0x18] sm:$0xff]
        %v9452 = vld [vmem:[#allocation25] sm:$0x1]
        %v9454 = vsel %vm4137, %v9447, 0
        %9456 = vmatprep.subr.mxu0 0.0
        %9457 = vmatpush1.msra.mxu0 0.0
        %9458 = vmatprep.subr.mxu0 0.0
        %9459 = vmatpush1.msra.mxu0 0.0
        %9460 = vmatprep.subr.mxu0 0.0
        %9461 = vmatpush1.msra.mxu0 0.0
        %9462 = vmatprep.subr.mxu0 0.0
        %9463 = vmatpush1.msra.mxu0 0.0
        %9464 = vmatprep.subr.mxu0 0.0
        %9465 = vmatpush1.msra.mxu0 0.0
        %9466 = vmatprep.subr.mxu0 0.0
        %9467 = vmatpush1.msra.mxu0 0.0
        %9468 = vmatprep.subr.mxu0 0.0
        %9469 = vmatpush1.msra.mxu0 0.0
        %9470 = vmatprep.subr.mxu0 0.0
        %9471 = vmatpush1.msra.mxu0 0.0
        %9472 = vmatprep.subr.mxu0 0.0
        %9473 = vmatpush1.msra.mxu0 0.0
        %9474 = vmatprep.subr.mxu0 0.0
        %9475 = vmatpush1.msra.mxu0 0.0
        %9476 = vmatprep.subr.mxu0 0.0
        %9477 = vmatpush1.msra.mxu0 0.0
        %9478 = vmatprep.subr.mxu0 0.0
        %9479 = vmatpush1.msra.mxu0 0.0
        %9480 = vmatprep.subr.mxu0 0.0
        %9481 = vmatpush1.msra.mxu0 %v9451
        %9482 = vmatprep.subr.mxu0 0.0
        %9483 = vmatpush1.msra.mxu0 %v9450
        %9484 = vmatprep.subr.mxu0 0.0
        %9485 = vmatpush1.msra.mxu0 %v9449
        %9486 = vmatprep.subr.mxu0 0.0
        %9487 = vmatpush1.msra.mxu0 %v9448
        %9488 = vmatprep.subr.mxu0 0.0
        %9489 = vmatpush2.msra.mxu0 0.0
        %9490 = vmatprep.subr.mxu0 0.0
        %9491 = vmatpush2.msra.mxu0 0.0
        %9492 = vmatprep.subr.mxu0 0.0
        %9493 = vmatpush2.msra.mxu0 0.0
        %9494 = vmatprep.subr.mxu0 0.0
        %9495 = vmatpush2.msra.mxu0 0.0
        %9496 = vmatprep.subr.mxu0 0.0
        %9497 = vmatpush2.msra.mxu0 0.0
        %9498 = vmatprep.subr.mxu0 0.0
        %9499 = vmatpush2.msra.mxu0 0.0
        %9500 = vmatprep.subr.mxu0 0.0
        %9501 = vmatpush2.msra.mxu0 0.0
        %9502 = vmatprep.subr.mxu0 0.0
        %9503 = vmatpush2.msra.mxu0 0.0
        %9504 = vmatprep.subr.mxu0 0.0
        %9505 = vmatpush2.msra.mxu0 0.0
        %9506 = vmatprep.subr.mxu0 0.0
        %9507 = vmatpush2.msra.mxu0 0.0
        %9508 = vmatprep.subr.mxu0 0.0
        %9509 = vmatpush2.msra.mxu0 0.0
        %9510 = vmatprep.subr.mxu0 0.0
        %9511 = vmatpush2.msra.mxu0 0.0
        %9512 = vmatprep.subr.mxu0 0.0
        %9513 = vmatpush2.msra.mxu0 0.0
        %9514 = vmatprep.subr.mxu0 0.0
        %9515 = vmatpush2.msra.mxu0 0.0
        %9516 = vmatprep.subr.mxu0 0.0
        %9517 = vmatpush2.msra.mxu0 0.0
        %9518 = vmatprep.subr.mxu0 0.0
        %9519 = vmatpush2.msra.mxu0 0.0
        %9520 = vmatprep.mubr.f32.mxu0 0.0
        %9521 = vmatmul.mubr.f32.gmra.mxu0 %v9454
        %v9522 = vpop.f32.mrf.mxu0
        %v9523 = vadd.f32 %v9452, %v9522
        %v9524 = vpop.f32.mrf.mxu0
        %9525 = vdwg.mxu0
        %vm9526 = vcmask 8192
        %9527 = vst.msk [vmem:[%s1595] sm:$0x1] %vm9526, %v9523
        %s9528 = sand.u32 %s1183, 1
        %s9529 = scalar_lea.sflag [#allocation13], %s9528
        %s9530 = sand.u32 %s1183, 1
        %s9531 = scalar_lea.vmem [#allocation26], %s9530
        // Predicated region
        $region257: #{ssdnet1d_forward.1} parent=219 // pred_check
          %p9532 = pneg %p1193
        $region258: #{ssdnet1d_forward.1} parent=219 // pred_check_branch
          %9534 = sbr.rel (%p9532) target = $region260
        $region259: #{ssdnet1d_forward.1} parent=219 // pred_region
          %s9536 = ssub.s32 16, 16
          %9537 = vsyncadd %s9529, %s9536
          %s9538 = smul.addr %s120, 16
          %s9539 = scalar_lea.hbm %s101, %s9538
          %s9541 = sshll.u32 %s9531, 4
          %s9542 = int_to_ptr.vmem [resolvable:$true] %s9541
          %9544 = dma.vmem_to_hbm [thread:$0]  %s9542, 16, %s9539, %s9529
        $region260: #{ssdnet1d_forward.1} parent=219 // pred_fallthru
          _
      $region220: #{ssdnet1d_forward.1} parent=5 // pred_fallthru
        _
      %p9545 = scmp.le.s32.totalorder 2, %s115
      // Predicated region
      $region261: #{ssdnet1d_forward.1} parent=5 // pred_check
        %p9546 = pneg %p9545
      $region262: #{ssdnet1d_forward.1} parent=5 // pred_check_branch
        %9548 = sbr.rel (%p9546) target = $region264
      $region263: #{ssdnet1d_forward.1} parent=5 // pred_region
        %s9549 = ssub.s32 %s115, 2
        // Predicated region
        $region265: #{ssdnet1d_forward.1} parent=263 // pred_check
          %p9550 = pneg %p1199
        $region266: #{ssdnet1d_forward.1} parent=263 // pred_check_branch
          %9552 = sbr.rel (%p9550) target = $region268
        $region267: #{ssdnet1d_forward.1} parent=263 // pred_region
          %s9553 = sand.u32 %s1184, 1
          %s9554 = scalar_lea.sflag [#allocation13], %s9553
          %s9555 = sand.u32 %s1184, 1
          %s9556 = scalar_lea.vmem [#allocation26], %s9555
          %9557 = dma.done %s9554, 16
        $region268: #{ssdnet1d_forward.1} parent=263 // pred_fallthru
          _
      $region264: #{ssdnet1d_forward.1} parent=5 // pred_fallthru
        _
    $region6: #{ssdnet1d_forward.1} parent=1 // loop_footer
      %s119 = sadd.s32 1, %s115
    $region7: #{ssdnet1d_forward.1} parent=1 // loop_footer_branch
      %114 = sbr.rel target = $region3
    $region8: #{ssdnet1d_forward.1} parent=1 // loop_exit
      _
    %9558 = vsyncpa [#allocation12], 1
    %s9559 = scalar_lea.sflag [#allocation12], 1
    %9560 = vsyncpa %s9559, 1
    %9561 = vsyncpa [#allocation15], 1
    %9562 = vsyncpa [#allocation18], 1
    %9563 = vsyncpa [#allocation21], 1
    %9564 = vsyncpa [#allocation24], 1
    %9565 = vsyncpa [#allocation13], 1
    %s9566 = scalar_lea.sflag [#allocation13], 1
    %9567 = vsyncpa %s9566, 1

</llo_original>
